<compile_context>
chip_gen: v5e
topology: v5e:2x2
jax: 0.10.0
libtpu: 0.0.40
codegen_flags: <defaults>
</compile_context>

<pallas_src>
import jax
import jax.numpy as jnp
from jax.experimental import pallas as pl
from jax.experimental.pallas import tpu as pltpu

INPUT_DIM = 16
HIDDEN_DIM = 32            # H
OUTPUT_DIM = 8
LAYER_NUM = 3
BATCH = 2
SEQ = 8

H = HIDDEN_DIM
H2 = 2 * H                 # 64
H4 = 4 * H                 # 128

_VMEM = pl.BlockSpec(memory_space=pltpu.MemorySpace.VMEM)


def _sig(x):
    # sigmoid(x) = 0.5 * tanh(0.5 x) + 0.5 : one EUP push, no divide.
    return 0.5 * jnp.tanh(0.5 * x) + 0.5


# ----------------------------------------------------------------------------
# Fused kernel: 3-layer BiLSTM -> attention energies -> masked softmax ->
#               context -> prediction head.  Everything VMEM resident, all
#               loops statically unrolled (S=8, 3 layers).
# ----------------------------------------------------------------------------
def _fused_kernel(x_ref, lens_ref, wih_ref, whh_ref, b_ref, mat_ref, vec_ref,
                  out_ref, sa_f, sa_b, sb_f, sb_b):
    S, Bn, IN = x_ref.shape
    NL = b_ref.shape[0]
    Hd = whh_ref.shape[1]                      # hidden dim
    G4 = 4 * Hd
    G8 = 8 * Hd
    O = OUTPUT_DIM
    f32 = jnp.float32

    lens = lens_ref[...]                       # [B,1] int32
    # hoisted per-timestep validity masks, shared across all layers
    vmask = [t < lens for t in range(S)]       # each [B,1] bool

    zeros_h = jnp.zeros((Bn, Hd), f32)
    pairs = ((sa_f, sa_b), (sb_f, sb_b))       # ping-pong layer buffers
    h_f = h_b = zeros_h

    for l in range(NL):                        # static layer loop
        src_f, src_b = (None, None) if l == 0 else pairs[(l - 1) % 2]
        dst_f, dst_b = pairs[l % 2]
        wih_l = wih_ref[l]                     # [2H, 8H]  (fw gates | bw gates)
        b_l = b_ref[l]                         # [1, 8H]
        whh_f = whh_ref[2 * l]                 # [H, 4H]
        whh_b = whh_ref[2 * l + 1]             # [H, 4H]

        # ---- input projections for all timesteps / both directions,
        #      issued OFF the recurrent dependency chain ----
        zx = []
        for t in range(S):
            if l == 0:
                zt = jnp.dot(x_ref[t], wih_l[0:IN, :],
                             preferred_element_type=f32)
            else:
                in_t = jnp.concatenate([src_f[t], src_b[t]], axis=1)   # [B,2H]
                zt = jnp.dot(in_t, wih_l, preferred_element_type=f32)
            zx.append(zt + b_l)                # [B, 8H]

        # ---- merged fw/bw recurrence: S dependent steps instead of 2S ----
        h_f = zeros_h; c_f = zeros_h
        h_b = zeros_h; c_b = zeros_h
        for s in range(S):                     # static unrolled scan
            tf = s
            tb = S - 1 - s
            zf = zx[tf][:, 0:G4] + jnp.dot(h_f, whh_f,
                                           preferred_element_type=f32)
            zb = zx[tb][:, G4:G8] + jnp.dot(h_b, whh_b,
                                            preferred_element_type=f32)
            # gate order (i, f, o, g): one sigmoid slab + one tanh / direction
            sf = _sig(zf[:, 0:3 * Hd]); gf = jnp.tanh(zf[:, 3 * Hd:4 * Hd])
            sb = _sig(zb[:, 0:3 * Hd]); gb = jnp.tanh(zb[:, 3 * Hd:4 * Hd])
            cf_n = sf[:, Hd:2 * Hd] * c_f + sf[:, 0:Hd] * gf
            cb_n = sb[:, Hd:2 * Hd] * c_b + sb[:, 0:Hd] * gb
            hf_n = sf[:, 2 * Hd:3 * Hd] * jnp.tanh(cf_n)
            hb_n = sb[:, 2 * Hd:3 * Hd] * jnp.tanh(cb_n)
            vf = vmask[tf]; vb = vmask[tb]
            h_f = jnp.where(vf, hf_n, h_f); c_f = jnp.where(vf, cf_n, c_f)
            h_b = jnp.where(vb, hb_n, h_b); c_b = jnp.where(vb, cb_n, c_b)
            dst_f[tf] = h_f
            dst_b[tb] = h_b

    # last layer's sequence buffers + final hidden states (= sentence embedding)
    buf_f, buf_b = pairs[(NL - 1) % 2]
    se_f, se_b = h_f, h_b                      # [B, H] each  ([fw | bw] halves)

    # ---- attention + prediction heads (eval-mode BN already folded) ----
    ew1_wf = mat_ref[0:Hd, :]                  # energy W1, word fw half
    ew1_wb = mat_ref[Hd:2 * Hd, :]             # energy W1, word bw half
    ew1_sf = mat_ref[2 * Hd:3 * Hd, :]         # energy W1, sentence fw half
    ew1_sb = mat_ref[3 * Hd:4 * Hd, :]         # energy W1, sentence bw half
    pw1_sf = mat_ref[4 * Hd:5 * Hd, :]         # predict W1, sentence fw half
    pw1_sb = mat_ref[5 * Hd:6 * Hd, :]
    pw1_cf = mat_ref[6 * Hd:7 * Hd, :]         # predict W1, context fw half
    pw1_cb = mat_ref[7 * Hd:8 * Hd, :]
    pw2 = mat_ref[8 * Hd:12 * Hd, :]           # predict W2, zero-padded cols
    vec = vec_ref[...]                         # [8, 4H]  (one vreg)
    eb1 = vec[0:1, :]
    ew2 = vec[1:2, :]
    pb1 = vec[2:3, :]
    pb2 = vec[3:4, :]

    # fcEnergy sentence half: computed once per sentence (not once per word)
    part_s = (jnp.dot(se_f, ew1_sf, preferred_element_type=f32) +
              jnp.dot(se_b, ew1_sb, preferred_element_type=f32) + eb1)  # [B,4H]

    lane_s = jax.lax.broadcasted_iota(jnp.int32, (Bn, S), 1)
    e = jnp.zeros((Bn, S), f32)
    for t in range(S):
        pw_t = (jnp.dot(buf_f[t], ew1_wf, preferred_element_type=f32) +
                jnp.dot(buf_b[t], ew1_wb, preferred_element_type=f32))
        hh_t = jnp.tanh(pw_t + part_s)                                  # [B,4H]
        # energy (Linear(4H,1)) as a single-vreg lane reduce; its scalar bias
        # cancels in the softmax.
        e_t = jnp.sum(hh_t * ew2, axis=1, keepdims=True)                # [B,1]
        e = e + jnp.where(lane_s == t, e_t, 0.0)

    # masked per-sentence softmax over the (lane) sequence axis
    msk = lane_s < lens
    e = jnp.where(msk, e, -1e30)
    m = jnp.max(e, axis=1, keepdims=True)
    w = jnp.where(msk, jnp.exp(e - m), 0.0)
    denom = jnp.maximum(jnp.sum(w, axis=1, keepdims=True), 1e-30)       # len==0 guard
    w = w / denom                                                       # [B,S]

    # context: VPU multiply-accumulate over timesteps (no M=1 MXU ops)
    ctx_f = zeros_h
    ctx_b = zeros_h
    for t in range(S):
        wt = w[:, t:t + 1]                                              # [B,1]
        ctx_f = ctx_f + wt * buf_f[t]
        ctx_b = ctx_b + wt * buf_b[t]

    # fcPredict: tanh([sent | ctx] @ W1 + b1) @ W2 + b2 -> softmax(dim=1)
    hp = jnp.tanh(jnp.dot(se_f, pw1_sf, preferred_element_type=f32) +
                  jnp.dot(se_b, pw1_sb, preferred_element_type=f32) +
                  jnp.dot(ctx_f, pw1_cf, preferred_element_type=f32) +
                  jnp.dot(ctx_b, pw1_cb, preferred_element_type=f32) + pb1)
    logits = jnp.dot(hp, pw2, preferred_element_type=f32)[:, 0:O] + pb2[:, 0:O]
    lm = jnp.max(logits, axis=1, keepdims=True)
    pe = jnp.exp(logits - lm)
    probs = pe / jnp.sum(pe, axis=1, keepdims=True)                     # [B,O]

    # single lane-dense packed output: lanes [0:O) = probs, [O:O+S) = weights
    out_ref[...] = jnp.zeros(out_ref.shape, out_ref.dtype)
    out_ref[:, 0:O] = probs
    out_ref[:, O:O + S] = w


# ----------------------------------------------------------------------------
# One-time parameter preparation (runs ONCE, outside the jitted forward)
# ----------------------------------------------------------------------------
def prepare_params(p):
    Hd = HIDDEN_DIM
    h4 = 4 * Hd

    def reorder(wm):
        # (i, f, g, o) -> (i, f, o, g) along the last (4H) axis
        i, f, g, o = jnp.split(wm, 4, axis=-1)
        return jnp.concatenate([i, f, o, g], axis=-1)

    wih_list, whh_list, b_list = [], [], []
    for layer in p["lstm"]:
        wf = reorder(layer["fw"]["w_ih"])
        wb = reorder(layer["bw"]["w_ih"])
        pad = 2 * Hd - wf.shape[0]
        if pad > 0:
            z = jnp.zeros((pad, h4), jnp.float32)
            wf = jnp.concatenate([wf, z], axis=0)
            wb = jnp.concatenate([wb, z], axis=0)
        wih_list.append(jnp.concatenate([wf, wb], axis=1))          # [2H, 8H]
        whh_list.append(reorder(layer["fw"]["w_hh"]))               # [H, 4H]
        whh_list.append(reorder(layer["bw"]["w_hh"]))
        bf = reorder(layer["fw"]["b"].reshape(1, h4))
        bb = reorder(layer["bw"]["b"].reshape(1, h4))
        b_list.append(jnp.concatenate([bf, bb], axis=1))            # [1, 8H]

    wih_pack = jnp.stack(wih_list)             # [L, 2H, 8H]
    whh_pack = jnp.stack(whh_list)             # [2L, H, 4H]
    b_pack = jnp.stack(b_list)                 # [L, 1, 8H]

    # fold eval-mode BatchNorm into the first Linear of each head:
    #   x_bn @ W + b == x @ (diag(scale) W) + (b + bias @ W)
    O = p["pw2"].shape[1]
    ew1f = p["ebn_scale"].reshape(h4, 1) * p["ew1"]
    eb1f = p["eb1"] + p["ebn_bias"] @ p["ew1"]
    pw1f = p["pbn_scale"].reshape(h4, 1) * p["pw1"]
    pb1f = p["pb1"] + p["pbn_bias"] @ p["pw1"]
    pw2_pad = jnp.zeros((h4, h4), jnp.float32).at[:, :O].set(p["pw2"])

    mat_pack = jnp.concatenate([ew1f, pw1f, pw2_pad], axis=0)       # [12H, 4H]
    vec_pack = jnp.zeros((8, h4), jnp.float32)
    vec_pack = vec_pack.at[0, :].set(eb1f[0])
    vec_pack = vec_pack.at[1, :].set(p["ew2"][0])
    vec_pack = vec_pack.at[2, :].set(pb1f[0])
    vec_pack = vec_pack.at[3, :O].set(p["pb2"][0])
    # p["eb2"] (energy Linear(4H,1) bias) cancels in the softmax -> unused.

    return dict(wih=wih_pack, whh=whh_pack, b=b_pack,
                mat=mat_pack, vec=vec_pack)


# ----------------------------------------------------------------------------
# Jitted forward: one tiny transpose + ONE pallas_call + two output slices
# ----------------------------------------------------------------------------
@jax.jit
def intent_detection_forward(x, seq_lens, packed):
    B, S, _ = x.shape
    x_tm = jnp.transpose(x, (1, 0, 2))                      # [S, B, IN]
    lens_col = seq_lens.astype(jnp.int32).reshape(B, 1)

    out = pl.pallas_call(
        _fused_kernel,
        out_shape=jax.ShapeDtypeStruct((B, 128), jnp.float32),
        in_specs=[_VMEM] * 7,
        out_specs=_VMEM,
        scratch_shapes=[pltpu.VMEM((S, B, HIDDEN_DIM), jnp.float32)] * 4,
    )(x_tm, lens_col, packed["wih"], packed["whh"], packed["b"],
      packed["mat"], packed["vec"])

    probs = out[:, 0:OUTPUT_DIM]
    weights = out[:, OUTPUT_DIM:OUTPUT_DIM + S]
    return probs, weights


# ----------------------------------------------------------------------------
# Deterministic parameter initialization (gate order i, f, g, o)
# ----------------------------------------------------------------------------
def init_params(key):
    keys = iter(jax.random.split(key, 64))

    def u(shape, scale=0.1):
        return jax.random.uniform(
            next(keys), shape, dtype=jnp.float32, minval=-scale, maxval=scale
        )

    lstm_layers = []
    in_dim = INPUT_DIM
    for _ in range(LAYER_NUM):
        layer = {}
        for d in ("fw", "bw"):
            layer[d] = dict(
                w_ih=u((in_dim, 4 * HIDDEN_DIM)),
                w_hh=u((HIDDEN_DIM, 4 * HIDDEN_DIM)),
                b=u((4 * HIDDEN_DIM,)),
            )
        lstm_layers.append(layer)
        in_dim = 2 * HIDDEN_DIM

    def folded_bn(dim):
        gamma = 1.0 + u((dim,))
        beta = u((dim,))
        running_mean = u((dim,))
        running_var = 1.0 + jnp.abs(u((dim,)))
        eps = 1e-5
        scale = gamma / jnp.sqrt(running_var + eps)
        bias = beta - running_mean * scale
        return scale.reshape(1, dim), bias.reshape(1, dim)

    ebn_scale, ebn_bias = folded_bn(H4)
    pbn_scale, pbn_bias = folded_bn(H4)

    return dict(
        lstm=lstm_layers,
        ebn_scale=ebn_scale, ebn_bias=ebn_bias,
        ew1=u((H4, H4)), eb1=u((1, H4)),
        ew2=u((1, H4)), eb2=u((1, 1)),          # eb2 cancels in the softmax
        pbn_scale=pbn_scale, pbn_bias=pbn_bias,
        pw1=u((H4, H4)), pb1=u((1, H4)),
        pw2=u((H4, OUTPUT_DIM)), pb2=u((1, OUTPUT_DIM)),
    )


# ----------------------------------------------------------------------------
if __name__ == "__main__":
    key = jax.random.PRNGKey(0)
    kp, kx = jax.random.split(key)
    params = init_params(kp)
    packed = prepare_params(params)             # one-time packing / BN folding

    x = jax.random.normal(kx, (BATCH, SEQ, INPUT_DIM), dtype=jnp.float32)
    seq_lens = jnp.array([SEQ, SEQ - 3], dtype=jnp.int32)

    probs, weights = intent_detection_forward(x, seq_lens, packed)
    probs = jax.block_until_ready(probs)
    weights = jax.block_until_ready(weights)

    assert probs.shape == (BATCH, OUTPUT_DIM)
    assert weights.shape == (BATCH, SEQ)
    assert bool(jnp.all(jnp.isfinite(probs)))
    assert bool(jnp.all(jnp.isfinite(weights)))
    # Each output row is a probability distribution; attention weights per
    # sentence sum to 1 (padded positions are exact zeros).
    assert bool(jnp.all(jnp.abs(jnp.sum(probs, axis=1) - 1.0) < 1e-3))
    assert bool(jnp.all(jnp.abs(jnp.sum(weights, axis=1) - 1.0) < 1e-3))
    assert bool(jnp.all(weights[1, SEQ - 3:] == 0.0))

    print("KERNEL_OK")
</pallas_src>

<mosaic_0001>
module attributes {stable_mosaic.version = 11 : i64} {
  func.func @_fused_kernel(%arg0: memref<8x2x16xf32, #tpu.memory_space<vmem>>, %arg1: memref<2x1xi32, #tpu.memory_space<vmem>>, %arg2: memref<3x64x256xf32, #tpu.memory_space<vmem>>, %arg3: memref<6x32x128xf32, #tpu.memory_space<vmem>>, %arg4: memref<3x1x256xf32, #tpu.memory_space<vmem>>, %arg5: memref<384x128xf32, #tpu.memory_space<vmem>>, %arg6: memref<8x128xf32, #tpu.memory_space<vmem>>, %arg7: memref<2x128xf32, #tpu.memory_space<vmem>>, %arg8: memref<8x2x32xf32, #tpu.memory_space<vmem>>, %arg9: memref<8x2x32xf32, #tpu.memory_space<vmem>>, %arg10: memref<8x2x32xf32, #tpu.memory_space<vmem>>, %arg11: memref<8x2x32xf32, #tpu.memory_space<vmem>>) attributes {dimension_semantics = [], scalar_prefetch = 0 : i64, scratch_operands = 4 : i64, tpu.core_type = #tpu.core_type<tc>} {
    %c0 = arith.constant 0 : index
    %c0_0 = arith.constant 0 : index
    %0 = vector.load %arg1[%c0, %c0_0] : memref<2x1xi32, #tpu.memory_space<vmem>>, vector<2x1xi32>
    %c0_i32 = arith.constant 0 : i32
    %1 = vector.broadcast %c0_i32 : i32 to vector<2x1xi32>
    %2 = arith.cmpi sgt, %0, %1 : vector<2x1xi32>
    %c1_i32 = arith.constant 1 : i32
    %3 = vector.broadcast %c1_i32 : i32 to vector<2x1xi32>
    %4 = arith.cmpi sgt, %0, %3 : vector<2x1xi32>
    %c2_i32 = arith.constant 2 : i32
    %5 = vector.broadcast %c2_i32 : i32 to vector<2x1xi32>
    %6 = arith.cmpi sgt, %0, %5 : vector<2x1xi32>
    %c3_i32 = arith.constant 3 : i32
    %7 = vector.broadcast %c3_i32 : i32 to vector<2x1xi32>
    %8 = arith.cmpi sgt, %0, %7 : vector<2x1xi32>
    %c4_i32 = arith.constant 4 : i32
    %9 = vector.broadcast %c4_i32 : i32 to vector<2x1xi32>
    %10 = arith.cmpi sgt, %0, %9 : vector<2x1xi32>
    %c5_i32 = arith.constant 5 : i32
    %11 = vector.broadcast %c5_i32 : i32 to vector<2x1xi32>
    %12 = arith.cmpi sgt, %0, %11 : vector<2x1xi32>
    %c6_i32 = arith.constant 6 : i32
    %13 = vector.broadcast %c6_i32 : i32 to vector<2x1xi32>
    %14 = arith.cmpi sgt, %0, %13 : vector<2x1xi32>
    %c7_i32 = arith.constant 7 : i32
    %15 = vector.broadcast %c7_i32 : i32 to vector<2x1xi32>
    %16 = arith.cmpi sgt, %0, %15 : vector<2x1xi32>
    %cst = arith.constant 0.000000e+00 : f32
    %17 = vector.broadcast %cst : f32 to vector<2x32xf32>
    %c0_1 = arith.constant 0 : index
    %c0_2 = arith.constant 0 : index
    %c0_3 = arith.constant 0 : index
    %18 = vector.load %arg2[%c0_1, %c0_2, %c0_3] : memref<3x64x256xf32, #tpu.memory_space<vmem>>, vector<1x64x256xf32>
    %19 = vector.shape_cast %18 : vector<1x64x256xf32> to vector<64x256xf32>
    %c0_4 = arith.constant 0 : index
    %c0_5 = arith.constant 0 : index
    %c0_6 = arith.constant 0 : index
    %20 = vector.load %arg4[%c0_4, %c0_5, %c0_6] : memref<3x1x256xf32, #tpu.memory_space<vmem>>, vector<1x1x256xf32>
    %21 = vector.shape_cast %20 : vector<1x1x256xf32> to vector<1x256xf32>
    %c0_7 = arith.constant 0 : index
    %c0_8 = arith.constant 0 : index
    %c0_9 = arith.constant 0 : index
    %22 = vector.load %arg3[%c0_7, %c0_8, %c0_9] : memref<6x32x128xf32, #tpu.memory_space<vmem>>, vector<1x32x128xf32>
    %23 = vector.shape_cast %22 : vector<1x32x128xf32> to vector<32x128xf32>
    %c1 = arith.constant 1 : index
    %c0_10 = arith.constant 0 : index
    %c0_11 = arith.constant 0 : index
    %24 = vector.load %arg3[%c1, %c0_10, %c0_11] : memref<6x32x128xf32, #tpu.memory_space<vmem>>, vector<1x32x128xf32>
    %25 = vector.shape_cast %24 : vector<1x32x128xf32> to vector<32x128xf32>
    %c0_12 = arith.constant 0 : index
    %c0_13 = arith.constant 0 : index
    %c0_14 = arith.constant 0 : index
    %26 = vector.load %arg0[%c0_12, %c0_13, %c0_14] : memref<8x2x16xf32, #tpu.memory_space<vmem>>, vector<1x2x16xf32>
    %27 = vector.shape_cast %26 : vector<1x2x16xf32> to vector<2x16xf32>
    %28 = vector.extract_strided_slice %19 {offsets = [0, 0], sizes = [16, 256], strides = [1, 1]} : vector<64x256xf32> to vector<16x256xf32>
    %cst_15 = arith.constant dense<0.000000e+00> : vector<2x256xf32>
    %29 = tpu.matmul %27, %28, %cst_15 {dimension_numbers = #tpu.dot_dimension_numbers<[1], [0], [0], [1], [0, 0, 1, 1], [], []>} : vector<2x16xf32>, vector<16x256xf32>, vector<2x256xf32> -> vector<2x256xf32>
    %30 = vector.broadcast %21 : vector<1x256xf32> to vector<2x256xf32>
    %31 = arith.addf %29, %30 : vector<2x256xf32>
    %c1_16 = arith.constant 1 : index
    %c0_17 = arith.constant 0 : index
    %c0_18 = arith.constant 0 : index
    %32 = vector.load %arg0[%c1_16, %c0_17, %c0_18] : memref<8x2x16xf32, #tpu.memory_space<vmem>>, vector<1x2x16xf32>
    %33 = vector.shape_cast %32 : vector<1x2x16xf32> to vector<2x16xf32>
    %34 = vector.extract_strided_slice %19 {offsets = [0, 0], sizes = [16, 256], strides = [1, 1]} : vector<64x256xf32> to vector<16x256xf32>
    %cst_19 = arith.constant dense<0.000000e+00> : vector<2x256xf32>
    %35 = tpu.matmul %33, %34, %cst_19 {dimension_numbers = #tpu.dot_dimension_numbers<[1], [0], [0], [1], [0, 0, 1, 1], [], []>} : vector<2x16xf32>, vector<16x256xf32>, vector<2x256xf32> -> vector<2x256xf32>
    %36 = vector.broadcast %21 : vector<1x256xf32> to vector<2x256xf32>
    %37 = arith.addf %35, %36 : vector<2x256xf32>
    %c2 = arith.constant 2 : index
    %c0_20 = arith.constant 0 : index
    %c0_21 = arith.constant 0 : index
    %38 = vector.load %arg0[%c2, %c0_20, %c0_21] : memref<8x2x16xf32, #tpu.memory_space<vmem>>, vector<1x2x16xf32>
    %39 = vector.shape_cast %38 : vector<1x2x16xf32> to vector<2x16xf32>
    %40 = vector.extract_strided_slice %19 {offsets = [0, 0], sizes = [16, 256], strides = [1, 1]} : vector<64x256xf32> to vector<16x256xf32>
    %cst_22 = arith.constant dense<0.000000e+00> : vector<2x256xf32>
    %41 = tpu.matmul %39, %40, %cst_22 {dimension_numbers = #tpu.dot_dimension_numbers<[1], [0], [0], [1], [0, 0, 1, 1], [], []>} : vector<2x16xf32>, vector<16x256xf32>, vector<2x256xf32> -> vector<2x256xf32>
    %42 = vector.broadcast %21 : vector<1x256xf32> to vector<2x256xf32>
    %43 = arith.addf %41, %42 : vector<2x256xf32>
    %c3 = arith.constant 3 : index
    %c0_23 = arith.constant 0 : index
    %c0_24 = arith.constant 0 : index
    %44 = vector.load %arg0[%c3, %c0_23, %c0_24] : memref<8x2x16xf32, #tpu.memory_space<vmem>>, vector<1x2x16xf32>
    %45 = vector.shape_cast %44 : vector<1x2x16xf32> to vector<2x16xf32>
    %46 = vector.extract_strided_slice %19 {offsets = [0, 0], sizes = [16, 256], strides = [1, 1]} : vector<64x256xf32> to vector<16x256xf32>
    %cst_25 = arith.constant dense<0.000000e+00> : vector<2x256xf32>
    %47 = tpu.matmul %45, %46, %cst_25 {dimension_numbers = #tpu.dot_dimension_numbers<[1], [0], [0], [1], [0, 0, 1, 1], [], []>} : vector<2x16xf32>, vector<16x256xf32>, vector<2x256xf32> -> vector<2x256xf32>
    %48 = vector.broadcast %21 : vector<1x256xf32> to vector<2x256xf32>
    %49 = arith.addf %47, %48 : vector<2x256xf32>
    %c4 = arith.constant 4 : index
    %c0_26 = arith.constant 0 : index
    %c0_27 = arith.constant 0 : index
    %50 = vector.load %arg0[%c4, %c0_26, %c0_27] : memref<8x2x16xf32, #tpu.memory_space<vmem>>, vector<1x2x16xf32>
    %51 = vector.shape_cast %50 : vector<1x2x16xf32> to vector<2x16xf32>
    %52 = vector.extract_strided_slice %19 {offsets = [0, 0], sizes = [16, 256], strides = [1, 1]} : vector<64x256xf32> to vector<16x256xf32>
    %cst_28 = arith.constant dense<0.000000e+00> : vector<2x256xf32>
    %53 = tpu.matmul %51, %52, %cst_28 {dimension_numbers = #tpu.dot_dimension_numbers<[1], [0], [0], [1], [0, 0, 1, 1], [], []>} : vector<2x16xf32>, vector<16x256xf32>, vector<2x256xf32> -> vector<2x256xf32>
    %54 = vector.broadcast %21 : vector<1x256xf32> to vector<2x256xf32>
    %55 = arith.addf %53, %54 : vector<2x256xf32>
    %c5 = arith.constant 5 : index
    %c0_29 = arith.constant 0 : index
    %c0_30 = arith.constant 0 : index
    %56 = vector.load %arg0[%c5, %c0_29, %c0_30] : memref<8x2x16xf32, #tpu.memory_space<vmem>>, vector<1x2x16xf32>
    %57 = vector.shape_cast %56 : vector<1x2x16xf32> to vector<2x16xf32>
    %58 = vector.extract_strided_slice %19 {offsets = [0, 0], sizes = [16, 256], strides = [1, 1]} : vector<64x256xf32> to vector<16x256xf32>
    %cst_31 = arith.constant dense<0.000000e+00> : vector<2x256xf32>
    %59 = tpu.matmul %57, %58, %cst_31 {dimension_numbers = #tpu.dot_dimension_numbers<[1], [0], [0], [1], [0, 0, 1, 1], [], []>} : vector<2x16xf32>, vector<16x256xf32>, vector<2x256xf32> -> vector<2x256xf32>
    %60 = vector.broadcast %21 : vector<1x256xf32> to vector<2x256xf32>
    %61 = arith.addf %59, %60 : vector<2x256xf32>
    %c6 = arith.constant 6 : index
    %c0_32 = arith.constant 0 : index
    %c0_33 = arith.constant 0 : index
    %62 = vector.load %arg0[%c6, %c0_32, %c0_33] : memref<8x2x16xf32, #tpu.memory_space<vmem>>, vector<1x2x16xf32>
    %63 = vector.shape_cast %62 : vector<1x2x16xf32> to vector<2x16xf32>
    %64 = vector.extract_strided_slice %19 {offsets = [0, 0], sizes = [16, 256], strides = [1, 1]} : vector<64x256xf32> to vector<16x256xf32>
    %cst_34 = arith.constant dense<0.000000e+00> : vector<2x256xf32>
    %65 = tpu.matmul %63, %64, %cst_34 {dimension_numbers = #tpu.dot_dimension_numbers<[1], [0], [0], [1], [0, 0, 1, 1], [], []>} : vector<2x16xf32>, vector<16x256xf32>, vector<2x256xf32> -> vector<2x256xf32>
    %66 = vector.broadcast %21 : vector<1x256xf32> to vector<2x256xf32>
    %67 = arith.addf %65, %66 : vector<2x256xf32>
    %c7 = arith.constant 7 : index
    %c0_35 = arith.constant 0 : index
    %c0_36 = arith.constant 0 : index
    %68 = vector.load %arg0[%c7, %c0_35, %c0_36] : memref<8x2x16xf32, #tpu.memory_space<vmem>>, vector<1x2x16xf32>
    %69 = vector.shape_cast %68 : vector<1x2x16xf32> to vector<2x16xf32>
    %70 = vector.extract_strided_slice %19 {offsets = [0, 0], sizes = [16, 256], strides = [1, 1]} : vector<64x256xf32> to vector<16x256xf32>
    %cst_37 = arith.constant dense<0.000000e+00> : vector<2x256xf32>
    %71 = tpu.matmul %69, %70, %cst_37 {dimension_numbers = #tpu.dot_dimension_numbers<[1], [0], [0], [1], [0, 0, 1, 1], [], []>} : vector<2x16xf32>, vector<16x256xf32>, vector<2x256xf32> -> vector<2x256xf32>
    %72 = vector.broadcast %21 : vector<1x256xf32> to vector<2x256xf32>
    %73 = arith.addf %71, %72 : vector<2x256xf32>
    %74 = vector.extract_strided_slice %31 {offsets = [0, 0], sizes = [2, 128], strides = [1, 1]} : vector<2x256xf32> to vector<2x128xf32>
    %cst_38 = arith.constant dense<0.000000e+00> : vector<2x128xf32>
    %75 = tpu.matmul %17, %23, %cst_38 {dimension_numbers = #tpu.dot_dimension_numbers<[1], [0], [0], [1], [0, 0, 1, 1], [], []>} : vector<2x32xf32>, vector<32x128xf32>, vector<2x128xf32> -> vector<2x128xf32>
    %76 = arith.addf %74, %75 : vector<2x128xf32>
    %77 = vector.extract_strided_slice %73 {offsets = [0, 128], sizes = [2, 128], strides = [1, 1]} : vector<2x256xf32> to vector<2x128xf32>
    %cst_39 = arith.constant dense<0.000000e+00> : vector<2x128xf32>
    %78 = tpu.matmul %17, %25, %cst_39 {dimension_numbers = #tpu.dot_dimension_numbers<[1], [0], [0], [1], [0, 0, 1, 1], [], []>} : vector<2x32xf32>, vector<32x128xf32>, vector<2x128xf32> -> vector<2x128xf32>
    %79 = arith.addf %77, %78 : vector<2x128xf32>
    %80 = vector.extract_strided_slice %76 {offsets = [0, 0], sizes = [2, 96], strides = [1, 1]} : vector<2x128xf32> to vector<2x96xf32>
    %cst_40 = arith.constant 5.000000e-01 : f32
    %81 = vector.broadcast %cst_40 : f32 to vector<2x96xf32>
    %82 = arith.mulf %81, %80 : vector<2x96xf32>
    %83 = math.tanh %82 : vector<2x96xf32>
    %cst_41 = arith.constant 5.000000e-01 : f32
    %84 = vector.broadcast %cst_41 : f32 to vector<2x96xf32>
    %85 = arith.mulf %84, %83 : vector<2x96xf32>
    %cst_42 = arith.constant 5.000000e-01 : f32
    %86 = vector.broadcast %cst_42 : f32 to vector<2x96xf32>
    %87 = arith.addf %85, %86 : vector<2x96xf32>
    %88 = vector.extract_strided_slice %76 {offsets = [0, 96], sizes = [2, 32], strides = [1, 1]} : vector<2x128xf32> to vector<2x32xf32>
    %89 = math.tanh %88 : vector<2x32xf32>
    %90 = vector.extract_strided_slice %79 {offsets = [0, 0], sizes = [2, 96], strides = [1, 1]} : vector<2x128xf32> to vector<2x96xf32>
    %cst_43 = arith.constant 5.000000e-01 : f32
    %91 = vector.broadcast %cst_43 : f32 to vector<2x96xf32>
    %92 = arith.mulf %91, %90 : vector<2x96xf32>
    %93 = math.tanh %92 : vector<2x96xf32>
    %cst_44 = arith.constant 5.000000e-01 : f32
    %94 = vector.broadcast %cst_44 : f32 to vector<2x96xf32>
    %95 = arith.mulf %94, %93 : vector<2x96xf32>
    %cst_45 = arith.constant 5.000000e-01 : f32
    %96 = vector.broadcast %cst_45 : f32 to vector<2x96xf32>
    %97 = arith.addf %95, %96 : vector<2x96xf32>
    %98 = vector.extract_strided_slice %79 {offsets = [0, 96], sizes = [2, 32], strides = [1, 1]} : vector<2x128xf32> to vector<2x32xf32>
    %99 = math.tanh %98 : vector<2x32xf32>
    %100 = vector.extract_strided_slice %87 {offsets = [0, 32], sizes = [2, 32], strides = [1, 1]} : vector<2x96xf32> to vector<2x32xf32>
    %101 = arith.mulf %100, %17 : vector<2x32xf32>
    %102 = vector.extract_strided_slice %87 {offsets = [0, 0], sizes = [2, 32], strides = [1, 1]} : vector<2x96xf32> to vector<2x32xf32>
    %103 = arith.mulf %102, %89 : vector<2x32xf32>
    %104 = arith.addf %101, %103 : vector<2x32xf32>
    %105 = vector.extract_strided_slice %97 {offsets = [0, 32], sizes = [2, 32], strides = [1, 1]} : vector<2x96xf32> to vector<2x32xf32>
    %106 = arith.mulf %105, %17 : vector<2x32xf32>
    %107 = vector.extract_strided_slice %97 {offsets = [0, 0], sizes = [2, 32], strides = [1, 1]} : vector<2x96xf32> to vector<2x32xf32>
    %108 = arith.mulf %107, %99 : vector<2x32xf32>
    %109 = arith.addf %106, %108 : vector<2x32xf32>
    %110 = vector.extract_strided_slice %87 {offsets = [0, 64], sizes = [2, 32], strides = [1, 1]} : vector<2x96xf32> to vector<2x32xf32>
    %111 = math.tanh %104 : vector<2x32xf32>
    %112 = arith.mulf %110, %111 : vector<2x32xf32>
    %113 = vector.extract_strided_slice %97 {offsets = [0, 64], sizes = [2, 32], strides = [1, 1]} : vector<2x96xf32> to vector<2x32xf32>
    %114 = math.tanh %109 : vector<2x32xf32>
    %115 = arith.mulf %113, %114 : vector<2x32xf32>
    %116 = vector.shape_cast %2 : vector<2x1xi1> to vector<2x1xi1>
    %117 = vector.broadcast %116 : vector<2x1xi1> to vector<2x32xi1>
    %118 = arith.select %117, %112, %17 : vector<2x32xi1>, vector<2x32xf32>
    %119 = vector.shape_cast %2 : vector<2x1xi1> to vector<2x1xi1>
    %120 = vector.broadcast %119 : vector<2x1xi1> to vector<2x32xi1>
    %121 = arith.select %120, %104, %17 : vector<2x32xi1>, vector<2x32xf32>
    %122 = vector.shape_cast %16 : vector<2x1xi1> to vector<2x1xi1>
    %123 = vector.broadcast %122 : vector<2x1xi1> to vector<2x32xi1>
    %124 = arith.select %123, %115, %17 : vector<2x32xi1>, vector<2x32xf32>
    %125 = vector.shape_cast %16 : vector<2x1xi1> to vector<2x1xi1>
    %126 = vector.broadcast %125 : vector<2x1xi1> to vector<2x32xi1>
    %127 = arith.select %126, %109, %17 : vector<2x32xi1>, vector<2x32xf32>
    %c0_46 = arith.constant 0 : index
    %c0_47 = arith.constant 0 : index
    %c0_48 = arith.constant 0 : index
    %128 = vector.load %arg8[%c0_46, %c0_47, %c0_48] : memref<8x2x32xf32, #tpu.memory_space<vmem>>, vector<1x2x32xf32>
    %129 = vector.shape_cast %128 : vector<1x2x32xf32> to vector<2x32xf32>
    %130 = vector.shape_cast %118 : vector<2x32xf32> to vector<1x2x32xf32>
    tpu.vector_store %arg8[%c0_46, %c0_47, %c0_48], %130 {strides = array<i32>} : memref<8x2x32xf32, #tpu.memory_space<vmem>>, vector<1x2x32xf32>,
    %c7_49 = arith.constant 7 : index
    %c0_50 = arith.constant 0 : index
    %c0_51 = arith.constant 0 : index
    %131 = vector.load %arg9[%c7_49, %c0_50, %c0_51] : memref<8x2x32xf32, #tpu.memory_space<vmem>>, vector<1x2x32xf32>
    %132 = vector.shape_cast %131 : vector<1x2x32xf32> to vector<2x32xf32>
    %133 = vector.shape_cast %124 : vector<2x32xf32> to vector<1x2x32xf32>
    tpu.vector_store %arg9[%c7_49, %c0_50, %c0_51], %133 {strides = array<i32>} : memref<8x2x32xf32, #tpu.memory_space<vmem>>, vector<1x2x32xf32>,
    %134 = vector.extract_strided_slice %37 {offsets = [0, 0], sizes = [2, 128], strides = [1, 1]} : vector<2x256xf32> to vector<2x128xf32>
    %cst_52 = arith.constant dense<0.000000e+00> : vector<2x128xf32>
    %135 = tpu.matmul %118, %23, %cst_52 {dimension_numbers = #tpu.dot_dimension_numbers<[1], [0], [0], [1], [0, 0, 1, 1], [], []>} : vector<2x32xf32>, vector<32x128xf32>, vector<2x128xf32> -> vector<2x128xf32>
    %136 = arith.addf %134, %135 : vector<2x128xf32>
    %137 = vector.extract_strided_slice %67 {offsets = [0, 128], sizes = [2, 128], strides = [1, 1]} : vector<2x256xf32> to vector<2x128xf32>
    %cst_53 = arith.constant dense<0.000000e+00> : vector<2x128xf32>
    %138 = tpu.matmul %124, %25, %cst_53 {dimension_numbers = #tpu.dot_dimension_numbers<[1], [0], [0], [1], [0, 0, 1, 1], [], []>} : vector<2x32xf32>, vector<32x128xf32>, vector<2x128xf32> -> vector<2x128xf32>
    %139 = arith.addf %137, %138 : vector<2x128xf32>
    %140 = vector.extract_strided_slice %136 {offsets = [0, 0], sizes = [2, 96], strides = [1, 1]} : vector<2x128xf32> to vector<2x96xf32>
    %cst_54 = arith.constant 5.000000e-01 : f32
    %141 = vector.broadcast %cst_54 : f32 to vector<2x96xf32>
    %142 = arith.mulf %141, %140 : vector<2x96xf32>
    %143 = math.tanh %142 : vector<2x96xf32>
    %cst_55 = arith.constant 5.000000e-01 : f32
    %144 = vector.broadcast %cst_55 : f32 to vector<2x96xf32>
    %145 = arith.mulf %144, %143 : vector<2x96xf32>
    %cst_56 = arith.constant 5.000000e-01 : f32
    %146 = vector.broadcast %cst_56 : f32 to vector<2x96xf32>
    %147 = arith.addf %145, %146 : vector<2x96xf32>
    %148 = vector.extract_strided_slice %136 {offsets = [0, 96], sizes = [2, 32], strides = [1, 1]} : vector<2x128xf32> to vector<2x32xf32>
    %149 = math.tanh %148 : vector<2x32xf32>
    %150 = vector.extract_strided_slice %139 {offsets = [0, 0], sizes = [2, 96], strides = [1, 1]} : vector<2x128xf32> to vector<2x96xf32>
    %cst_57 = arith.constant 5.000000e-01 : f32
    %151 = vector.broadcast %cst_57 : f32 to vector<2x96xf32>
    %152 = arith.mulf %151, %150 : vector<2x96xf32>
    %153 = math.tanh %152 : vector<2x96xf32>
    %cst_58 = arith.constant 5.000000e-01 : f32
    %154 = vector.broadcast %cst_58 : f32 to vector<2x96xf32>
    %155 = arith.mulf %154, %153 : vector<2x96xf32>
    %cst_59 = arith.constant 5.000000e-01 : f32
    %156 = vector.broadcast %cst_59 : f32 to vector<2x96xf32>
    %157 = arith.addf %155, %156 : vector<2x96xf32>
    %158 = vector.extract_strided_slice %139 {offsets = [0, 96], sizes = [2, 32], strides = [1, 1]} : vector<2x128xf32> to vector<2x32xf32>
    %159 = math.tanh %158 : vector<2x32xf32>
    %160 = vector.extract_strided_slice %147 {offsets = [0, 32], sizes = [2, 32], strides = [1, 1]} : vector<2x96xf32> to vector<2x32xf32>
    %161 = arith.mulf %160, %121 : vector<2x32xf32>
    %162 = vector.extract_strided_slice %147 {offsets = [0, 0], sizes = [2, 32], strides = [1, 1]} : vector<2x96xf32> to vector<2x32xf32>
    %163 = arith.mulf %162, %149 : vector<2x32xf32>
    %164 = arith.addf %161, %163 : vector<2x32xf32>
    %165 = vector.extract_strided_slice %157 {offsets = [0, 32], sizes = [2, 32], strides = [1, 1]} : vector<2x96xf32> to vector<2x32xf32>
    %166 = arith.mulf %165, %127 : vector<2x32xf32>
    %167 = vector.extract_strided_slice %157 {offsets = [0, 0], sizes = [2, 32], strides = [1, 1]} : vector<2x96xf32> to vector<2x32xf32>
    %168 = arith.mulf %167, %159 : vector<2x32xf32>
    %169 = arith.addf %166, %168 : vector<2x32xf32>
    %170 = vector.extract_strided_slice %147 {offsets = [0, 64], sizes = [2, 32], strides = [1, 1]} : vector<2x96xf32> to vector<2x32xf32>
    %171 = math.tanh %164 : vector<2x32xf32>
    %172 = arith.mulf %170, %171 : vector<2x32xf32>
    %173 = vector.extract_strided_slice %157 {offsets = [0, 64], sizes = [2, 32], strides = [1, 1]} : vector<2x96xf32> to vector<2x32xf32>
    %174 = math.tanh %169 : vector<2x32xf32>
    %175 = arith.mulf %173, %174 : vector<2x32xf32>
    %176 = vector.shape_cast %4 : vector<2x1xi1> to vector<2x1xi1>
    %177 = vector.broadcast %176 : vector<2x1xi1> to vector<2x32xi1>
    %178 = arith.select %177, %172, %118 : vector<2x32xi1>, vector<2x32xf32>
    %179 = vector.shape_cast %4 : vector<2x1xi1> to vector<2x1xi1>
    %180 = vector.broadcast %179 : vector<2x1xi1> to vector<2x32xi1>
    %181 = arith.select %180, %164, %121 : vector<2x32xi1>, vector<2x32xf32>
    %182 = vector.shape_cast %14 : vector<2x1xi1> to vector<2x1xi1>
    %183 = vector.broadcast %182 : vector<2x1xi1> to vector<2x32xi1>
    %184 = arith.select %183, %175, %124 : vector<2x32xi1>, vector<2x32xf32>
    %185 = vector.shape_cast %14 : vector<2x1xi1> to vector<2x1xi1>
    %186 = vector.broadcast %185 : vector<2x1xi1> to vector<2x32xi1>
    %187 = arith.select %186, %169, %127 : vector<2x32xi1>, vector<2x32xf32>
    %c1_60 = arith.constant 1 : index
    %c0_61 = arith.constant 0 : index
    %c0_62 = arith.constant 0 : index
    %188 = vector.load %arg8[%c1_60, %c0_61, %c0_62] : memref<8x2x32xf32, #tpu.memory_space<vmem>>, vector<1x2x32xf32>
    %189 = vector.shape_cast %188 : vector<1x2x32xf32> to vector<2x32xf32>
    %190 = vector.shape_cast %178 : vector<2x32xf32> to vector<1x2x32xf32>
    tpu.vector_store %arg8[%c1_60, %c0_61, %c0_62], %190 {strides = array<i32>} : memref<8x2x32xf32, #tpu.memory_space<vmem>>, vector<1x2x32xf32>,
    %c6_63 = arith.constant 6 : index
    %c0_64 = arith.constant 0 : index
    %c0_65 = arith.constant 0 : index
    %191 = vector.load %arg9[%c6_63, %c0_64, %c0_65] : memref<8x2x32xf32, #tpu.memory_space<vmem>>, vector<1x2x32xf32>
    %192 = vector.shape_cast %191 : vector<1x2x32xf32> to vector<2x32xf32>
    %193 = vector.shape_cast %184 : vector<2x32xf32> to vector<1x2x32xf32>
    tpu.vector_store %arg9[%c6_63, %c0_64, %c0_65], %193 {strides = array<i32>} : memref<8x2x32xf32, #tpu.memory_space<vmem>>, vector<1x2x32xf32>,
    %194 = vector.extract_strided_slice %43 {offsets = [0, 0], sizes = [2, 128], strides = [1, 1]} : vector<2x256xf32> to vector<2x128xf32>
    %cst_66 = arith.constant dense<0.000000e+00> : vector<2x128xf32>
    %195 = tpu.matmul %178, %23, %cst_66 {dimension_numbers = #tpu.dot_dimension_numbers<[1], [0], [0], [1], [0, 0, 1, 1], [], []>} : vector<2x32xf32>, vector<32x128xf32>, vector<2x128xf32> -> vector<2x128xf32>
    %196 = arith.addf %194, %195 : vector<2x128xf32>
    %197 = vector.extract_strided_slice %61 {offsets = [0, 128], sizes = [2, 128], strides = [1, 1]} : vector<2x256xf32> to vector<2x128xf32>
    %cst_67 = arith.constant dense<0.000000e+00> : vector<2x128xf32>
    %198 = tpu.matmul %184, %25, %cst_67 {dimension_numbers = #tpu.dot_dimension_numbers<[1], [0], [0], [1], [0, 0, 1, 1], [], []>} : vector<2x32xf32>, vector<32x128xf32>, vector<2x128xf32> -> vector<2x128xf32>
    %199 = arith.addf %197, %198 : vector<2x128xf32>
    %200 = vector.extract_strided_slice %196 {offsets = [0, 0], sizes = [2, 96], strides = [1, 1]} : vector<2x128xf32> to vector<2x96xf32>
    %cst_68 = arith.constant 5.000000e-01 : f32
    %201 = vector.broadcast %cst_68 : f32 to vector<2x96xf32>
    %202 = arith.mulf %201, %200 : vector<2x96xf32>
    %203 = math.tanh %202 : vector<2x96xf32>
    %cst_69 = arith.constant 5.000000e-01 : f32
    %204 = vector.broadcast %cst_69 : f32 to vector<2x96xf32>
    %205 = arith.mulf %204, %203 : vector<2x96xf32>
    %cst_70 = arith.constant 5.000000e-01 : f32
    %206 = vector.broadcast %cst_70 : f32 to vector<2x96xf32>
    %207 = arith.addf %205, %206 : vector<2x96xf32>
    %208 = vector.extract_strided_slice %196 {offsets = [0, 96], sizes = [2, 32], strides = [1, 1]} : vector<2x128xf32> to vector<2x32xf32>
    %209 = math.tanh %208 : vector<2x32xf32>
    %210 = vector.extract_strided_slice %199 {offsets = [0, 0], sizes = [2, 96], strides = [1, 1]} : vector<2x128xf32> to vector<2x96xf32>
    %cst_71 = arith.constant 5.000000e-01 : f32
    %211 = vector.broadcast %cst_71 : f32 to vector<2x96xf32>
    %212 = arith.mulf %211, %210 : vector<2x96xf32>
    %213 = math.tanh %212 : vector<2x96xf32>
    %cst_72 = arith.constant 5.000000e-01 : f32
    %214 = vector.broadcast %cst_72 : f32 to vector<2x96xf32>
    %215 = arith.mulf %214, %213 : vector<2x96xf32>
    %cst_73 = arith.constant 5.000000e-01 : f32
    %216 = vector.broadcast %cst_73 : f32 to vector<2x96xf32>
    %217 = arith.addf %215, %216 : vector<2x96xf32>
    %218 = vector.extract_strided_slice %199 {offsets = [0, 96], sizes = [2, 32], strides = [1, 1]} : vector<2x128xf32> to vector<2x32xf32>
    %219 = math.tanh %218 : vector<2x32xf32>
    %220 = vector.extract_strided_slice %207 {offsets = [0, 32], sizes = [2, 32], strides = [1, 1]} : vector<2x96xf32> to vector<2x32xf32>
    %221 = arith.mulf %220, %181 : vector<2x32xf32>
    %222 = vector.extract_strided_slice %207 {offsets = [0, 0], sizes = [2, 32], strides = [1, 1]} : vector<2x96xf32> to vector<2x32xf32>
    %223 = arith.mulf %222, %209 : vector<2x32xf32>
    %224 = arith.addf %221, %223 : vector<2x32xf32>
    %225 = vector.extract_strided_slice %217 {offsets = [0, 32], sizes = [2, 32], strides = [1, 1]} : vector<2x96xf32> to vector<2x32xf32>
    %226 = arith.mulf %225, %187 : vector<2x32xf32>
    %227 = vector.extract_strided_slice %217 {offsets = [0, 0], sizes = [2, 32], strides = [1, 1]} : vector<2x96xf32> to vector<2x32xf32>
    %228 = arith.mulf %227, %219 : vector<2x32xf32>
    %229 = arith.addf %226, %228 : vector<2x32xf32>
    %230 = vector.extract_strided_slice %207 {offsets = [0, 64], sizes = [2, 32], strides = [1, 1]} : vector<2x96xf32> to vector<2x32xf32>
    %231 = math.tanh %224 : vector<2x32xf32>
    %232 = arith.mulf %230, %231 : vector<2x32xf32>
    %233 = vector.extract_strided_slice %217 {offsets = [0, 64], sizes = [2, 32], strides = [1, 1]} : vector<2x96xf32> to vector<2x32xf32>
    %234 = math.tanh %229 : vector<2x32xf32>
    %235 = arith.mulf %233, %234 : vector<2x32xf32>
    %236 = vector.shape_cast %6 : vector<2x1xi1> to vector<2x1xi1>
    %237 = vector.broadcast %236 : vector<2x1xi1> to vector<2x32xi1>
    %238 = arith.select %237, %232, %178 : vector<2x32xi1>, vector<2x32xf32>
    %239 = vector.shape_cast %6 : vector<2x1xi1> to vector<2x1xi1>
    %240 = vector.broadcast %239 : vector<2x1xi1> to vector<2x32xi1>
    %241 = arith.select %240, %224, %181 : vector<2x32xi1>, vector<2x32xf32>
    %242 = vector.shape_cast %12 : vector<2x1xi1> to vector<2x1xi1>
    %243 = vector.broadcast %242 : vector<2x1xi1> to vector<2x32xi1>
    %244 = arith.select %243, %235, %184 : vector<2x32xi1>, vector<2x32xf32>
    %245 = vector.shape_cast %12 : vector<2x1xi1> to vector<2x1xi1>
    %246 = vector.broadcast %245 : vector<2x1xi1> to vector<2x32xi1>
    %247 = arith.select %246, %229, %187 : vector<2x32xi1>, vector<2x32xf32>
    %c2_74 = arith.constant 2 : index
    %c0_75 = arith.constant 0 : index
    %c0_76 = arith.constant 0 : index
    %248 = vector.load %arg8[%c2_74, %c0_75, %c0_76] : memref<8x2x32xf32, #tpu.memory_space<vmem>>, vector<1x2x32xf32>
    %249 = vector.shape_cast %248 : vector<1x2x32xf32> to vector<2x32xf32>
    %250 = vector.shape_cast %238 : vector<2x32xf32> to vector<1x2x32xf32>
    tpu.vector_store %arg8[%c2_74, %c0_75, %c0_76], %250 {strides = array<i32>} : memref<8x2x32xf32, #tpu.memory_space<vmem>>, vector<1x2x32xf32>,
    %c5_77 = arith.constant 5 : index
    %c0_78 = arith.constant 0 : index
    %c0_79 = arith.constant 0 : index
    %251 = vector.load %arg9[%c5_77, %c0_78, %c0_79] : memref<8x2x32xf32, #tpu.memory_space<vmem>>, vector<1x2x32xf32>
    %252 = vector.shape_cast %251 : vector<1x2x32xf32> to vector<2x32xf32>
    %253 = vector.shape_cast %244 : vector<2x32xf32> to vector<1x2x32xf32>
    tpu.vector_store %arg9[%c5_77, %c0_78, %c0_79], %253 {strides = array<i32>} : memref<8x2x32xf32, #tpu.memory_space<vmem>>, vector<1x2x32xf32>,
    %254 = vector.extract_strided_slice %49 {offsets = [0, 0], sizes = [2, 128], strides = [1, 1]} : vector<2x256xf32> to vector<2x128xf32>
    %cst_80 = arith.constant dense<0.000000e+00> : vector<2x128xf32>
    %255 = tpu.matmul %238, %23, %cst_80 {dimension_numbers = #tpu.dot_dimension_numbers<[1], [0], [0], [1], [0, 0, 1, 1], [], []>} : vector<2x32xf32>, vector<32x128xf32>, vector<2x128xf32> -> vector<2x128xf32>
    %256 = arith.addf %254, %255 : vector<2x128xf32>
    %257 = vector.extract_strided_slice %55 {offsets = [0, 128], sizes = [2, 128], strides = [1, 1]} : vector<2x256xf32> to vector<2x128xf32>
    %cst_81 = arith.constant dense<0.000000e+00> : vector<2x128xf32>
    %258 = tpu.matmul %244, %25, %cst_81 {dimension_numbers = #tpu.dot_dimension_numbers<[1], [0], [0], [1], [0, 0, 1, 1], [], []>} : vector<2x32xf32>, vector<32x128xf32>, vector<2x128xf32> -> vector<2x128xf32>
    %259 = arith.addf %257, %258 : vector<2x128xf32>
    %260 = vector.extract_strided_slice %256 {offsets = [0, 0], sizes = [2, 96], strides = [1, 1]} : vector<2x128xf32> to vector<2x96xf32>
    %cst_82 = arith.constant 5.000000e-01 : f32
    %261 = vector.broadcast %cst_82 : f32 to vector<2x96xf32>
    %262 = arith.mulf %261, %260 : vector<2x96xf32>
    %263 = math.tanh %262 : vector<2x96xf32>
    %cst_83 = arith.constant 5.000000e-01 : f32
    %264 = vector.broadcast %cst_83 : f32 to vector<2x96xf32>
    %265 = arith.mulf %264, %263 : vector<2x96xf32>
    %cst_84 = arith.constant 5.000000e-01 : f32
    %266 = vector.broadcast %cst_84 : f32 to vector<2x96xf32>
    %267 = arith.addf %265, %266 : vector<2x96xf32>
    %268 = vector.extract_strided_slice %256 {offsets = [0, 96], sizes = [2, 32], strides = [1, 1]} : vector<2x128xf32> to vector<2x32xf32>
    %269 = math.tanh %268 : vector<2x32xf32>
    %270 = vector.extract_strided_slice %259 {offsets = [0, 0], sizes = [2, 96], strides = [1, 1]} : vector<2x128xf32> to vector<2x96xf32>
    %cst_85 = arith.constant 5.000000e-01 : f32
    %271 = vector.broadcast %cst_85 : f32 to vector<2x96xf32>
    %272 = arith.mulf %271, %270 : vector<2x96xf32>
    %273 = math.tanh %272 : vector<2x96xf32>
    %cst_86 = arith.constant 5.000000e-01 : f32
    %274 = vector.broadcast %cst_86 : f32 to vector<2x96xf32>
    %275 = arith.mulf %274, %273 : vector<2x96xf32>
    %cst_87 = arith.constant 5.000000e-01 : f32
    %276 = vector.broadcast %cst_87 : f32 to vector<2x96xf32>
    %277 = arith.addf %275, %276 : vector<2x96xf32>
    %278 = vector.extract_strided_slice %259 {offsets = [0, 96], sizes = [2, 32], strides = [1, 1]} : vector<2x128xf32> to vector<2x32xf32>
    %279 = math.tanh %278 : vector<2x32xf32>
    %280 = vector.extract_strided_slice %267 {offsets = [0, 32], sizes = [2, 32], strides = [1, 1]} : vector<2x96xf32> to vector<2x32xf32>
    %281 = arith.mulf %280, %241 : vector<2x32xf32>
    %282 = vector.extract_strided_slice %267 {offsets = [0, 0], sizes = [2, 32], strides = [1, 1]} : vector<2x96xf32> to vector<2x32xf32>
    %283 = arith.mulf %282, %269 : vector<2x32xf32>
    %284 = arith.addf %281, %283 : vector<2x32xf32>
    %285 = vector.extract_strided_slice %277 {offsets = [0, 32], sizes = [2, 32], strides = [1, 1]} : vector<2x96xf32> to vector<2x32xf32>
    %286 = arith.mulf %285, %247 : vector<2x32xf32>
    %287 = vector.extract_strided_slice %277 {offsets = [0, 0], sizes = [2, 32], strides = [1, 1]} : vector<2x96xf32> to vector<2x32xf32>
    %288 = arith.mulf %287, %279 : vector<2x32xf32>
    %289 = arith.addf %286, %288 : vector<2x32xf32>
    %290 = vector.extract_strided_slice %267 {offsets = [0, 64], sizes = [2, 32], strides = [1, 1]} : vector<2x96xf32> to vector<2x32xf32>
    %291 = math.tanh %284 : vector<2x32xf32>
    %292 = arith.mulf %290, %291 : vector<2x32xf32>
    %293 = vector.extract_strided_slice %277 {offsets = [0, 64], sizes = [2, 32], strides = [1, 1]} : vector<2x96xf32> to vector<2x32xf32>
    %294 = math.tanh %289 : vector<2x32xf32>
    %295 = arith.mulf %293, %294 : vector<2x32xf32>
    %296 = vector.shape_cast %8 : vector<2x1xi1> to vector<2x1xi1>
    %297 = vector.broadcast %296 : vector<2x1xi1> to vector<2x32xi1>
    %298 = arith.select %297, %292, %238 : vector<2x32xi1>, vector<2x32xf32>
    %299 = vector.shape_cast %8 : vector<2x1xi1> to vector<2x1xi1>
    %300 = vector.broadcast %299 : vector<2x1xi1> to vector<2x32xi1>
    %301 = arith.select %300, %284, %241 : vector<2x32xi1>, vector<2x32xf32>
    %302 = vector.shape_cast %10 : vector<2x1xi1> to vector<2x1xi1>
    %303 = vector.broadcast %302 : vector<2x1xi1> to vector<2x32xi1>
    %304 = arith.select %303, %295, %244 : vector<2x32xi1>, vector<2x32xf32>
    %305 = vector.shape_cast %10 : vector<2x1xi1> to vector<2x1xi1>
    %306 = vector.broadcast %305 : vector<2x1xi1> to vector<2x32xi1>
    %307 = arith.select %306, %289, %247 : vector<2x32xi1>, vector<2x32xf32>
    %c3_88 = arith.constant 3 : index
    %c0_89 = arith.constant 0 : index
    %c0_90 = arith.constant 0 : index
    %308 = vector.load %arg8[%c3_88, %c0_89, %c0_90] : memref<8x2x32xf32, #tpu.memory_space<vmem>>, vector<1x2x32xf32>
    %309 = vector.shape_cast %308 : vector<1x2x32xf32> to vector<2x32xf32>
    %310 = vector.shape_cast %298 : vector<2x32xf32> to vector<1x2x32xf32>
    tpu.vector_store %arg8[%c3_88, %c0_89, %c0_90], %310 {strides = array<i32>} : memref<8x2x32xf32, #tpu.memory_space<vmem>>, vector<1x2x32xf32>,
    %c4_91 = arith.constant 4 : index
    %c0_92 = arith.constant 0 : index
    %c0_93 = arith.constant 0 : index
    %311 = vector.load %arg9[%c4_91, %c0_92, %c0_93] : memref<8x2x32xf32, #tpu.memory_space<vmem>>, vector<1x2x32xf32>
    %312 = vector.shape_cast %311 : vector<1x2x32xf32> to vector<2x32xf32>
    %313 = vector.shape_cast %304 : vector<2x32xf32> to vector<1x2x32xf32>
    tpu.vector_store %arg9[%c4_91, %c0_92, %c0_93], %313 {strides = array<i32>} : memref<8x2x32xf32, #tpu.memory_space<vmem>>, vector<1x2x32xf32>,
    %314 = vector.extract_strided_slice %55 {offsets = [0, 0], sizes = [2, 128], strides = [1, 1]} : vector<2x256xf32> to vector<2x128xf32>
    %cst_94 = arith.constant dense<0.000000e+00> : vector<2x128xf32>
    %315 = tpu.matmul %298, %23, %cst_94 {dimension_numbers = #tpu.dot_dimension_numbers<[1], [0], [0], [1], [0, 0, 1, 1], [], []>} : vector<2x32xf32>, vector<32x128xf32>, vector<2x128xf32> -> vector<2x128xf32>
    %316 = arith.addf %314, %315 : vector<2x128xf32>
    %317 = vector.extract_strided_slice %49 {offsets = [0, 128], sizes = [2, 128], strides = [1, 1]} : vector<2x256xf32> to vector<2x128xf32>
    %cst_95 = arith.constant dense<0.000000e+00> : vector<2x128xf32>
    %318 = tpu.matmul %304, %25, %cst_95 {dimension_numbers = #tpu.dot_dimension_numbers<[1], [0], [0], [1], [0, 0, 1, 1], [], []>} : vector<2x32xf32>, vector<32x128xf32>, vector<2x128xf32> -> vector<2x128xf32>
    %319 = arith.addf %317, %318 : vector<2x128xf32>
    %320 = vector.extract_strided_slice %316 {offsets = [0, 0], sizes = [2, 96], strides = [1, 1]} : vector<2x128xf32> to vector<2x96xf32>
    %cst_96 = arith.constant 5.000000e-01 : f32
    %321 = vector.broadcast %cst_96 : f32 to vector<2x96xf32>
    %322 = arith.mulf %321, %320 : vector<2x96xf32>
    %323 = math.tanh %322 : vector<2x96xf32>
    %cst_97 = arith.constant 5.000000e-01 : f32
    %324 = vector.broadcast %cst_97 : f32 to vector<2x96xf32>
    %325 = arith.mulf %324, %323 : vector<2x96xf32>
    %cst_98 = arith.constant 5.000000e-01 : f32
    %326 = vector.broadcast %cst_98 : f32 to vector<2x96xf32>
    %327 = arith.addf %325, %326 : vector<2x96xf32>
    %328 = vector.extract_strided_slice %316 {offsets = [0, 96], sizes = [2, 32], strides = [1, 1]} : vector<2x128xf32> to vector<2x32xf32>
    %329 = math.tanh %328 : vector<2x32xf32>
    %330 = vector.extract_strided_slice %319 {offsets = [0, 0], sizes = [2, 96], strides = [1, 1]} : vector<2x128xf32> to vector<2x96xf32>
    %cst_99 = arith.constant 5.000000e-01 : f32
    %331 = vector.broadcast %cst_99 : f32 to vector<2x96xf32>
    %332 = arith.mulf %331, %330 : vector<2x96xf32>
    %333 = math.tanh %332 : vector<2x96xf32>
    %cst_100 = arith.constant 5.000000e-01 : f32
    %334 = vector.broadcast %cst_100 : f32 to vector<2x96xf32>
    %335 = arith.mulf %334, %333 : vector<2x96xf32>
    %cst_101 = arith.constant 5.000000e-01 : f32
    %336 = vector.broadcast %cst_101 : f32 to vector<2x96xf32>
    %337 = arith.addf %335, %336 : vector<2x96xf32>
    %338 = vector.extract_strided_slice %319 {offsets = [0, 96], sizes = [2, 32], strides = [1, 1]} : vector<2x128xf32> to vector<2x32xf32>
    %339 = math.tanh %338 : vector<2x32xf32>
    %340 = vector.extract_strided_slice %327 {offsets = [0, 32], sizes = [2, 32], strides = [1, 1]} : vector<2x96xf32> to vector<2x32xf32>
    %341 = arith.mulf %340, %301 : vector<2x32xf32>
    %342 = vector.extract_strided_slice %327 {offsets = [0, 0], sizes = [2, 32], strides = [1, 1]} : vector<2x96xf32> to vector<2x32xf32>
    %343 = arith.mulf %342, %329 : vector<2x32xf32>
    %344 = arith.addf %341, %343 : vector<2x32xf32>
    %345 = vector.extract_strided_slice %337 {offsets = [0, 32], sizes = [2, 32], strides = [1, 1]} : vector<2x96xf32> to vector<2x32xf32>
    %346 = arith.mulf %345, %307 : vector<2x32xf32>
    %347 = vector.extract_strided_slice %337 {offsets = [0, 0], sizes = [2, 32], strides = [1, 1]} : vector<2x96xf32> to vector<2x32xf32>
    %348 = arith.mulf %347, %339 : vector<2x32xf32>
    %349 = arith.addf %346, %348 : vector<2x32xf32>
    %350 = vector.extract_strided_slice %327 {offsets = [0, 64], sizes = [2, 32], strides = [1, 1]} : vector<2x96xf32> to vector<2x32xf32>
    %351 = math.tanh %344 : vector<2x32xf32>
    %352 = arith.mulf %350, %351 : vector<2x32xf32>
    %353 = vector.extract_strided_slice %337 {offsets = [0, 64], sizes = [2, 32], strides = [1, 1]} : vector<2x96xf32> to vector<2x32xf32>
    %354 = math.tanh %349 : vector<2x32xf32>
    %355 = arith.mulf %353, %354 : vector<2x32xf32>
    %356 = vector.shape_cast %10 : vector<2x1xi1> to vector<2x1xi1>
    %357 = vector.broadcast %356 : vector<2x1xi1> to vector<2x32xi1>
    %358 = arith.select %357, %352, %298 : vector<2x32xi1>, vector<2x32xf32>
    %359 = vector.shape_cast %10 : vector<2x1xi1> to vector<2x1xi1>
    %360 = vector.broadcast %359 : vector<2x1xi1> to vector<2x32xi1>
    %361 = arith.select %360, %344, %301 : vector<2x32xi1>, vector<2x32xf32>
    %362 = vector.shape_cast %8 : vector<2x1xi1> to vector<2x1xi1>
    %363 = vector.broadcast %362 : vector<2x1xi1> to vector<2x32xi1>
    %364 = arith.select %363, %355, %304 : vector<2x32xi1>, vector<2x32xf32>
    %365 = vector.shape_cast %8 : vector<2x1xi1> to vector<2x1xi1>
    %366 = vector.broadcast %365 : vector<2x1xi1> to vector<2x32xi1>
    %367 = arith.select %366, %349, %307 : vector<2x32xi1>, vector<2x32xf32>
    %c4_102 = arith.constant 4 : index
    %c0_103 = arith.constant 0 : index
    %c0_104 = arith.constant 0 : index
    %368 = vector.load %arg8[%c4_102, %c0_103, %c0_104] : memref<8x2x32xf32, #tpu.memory_space<vmem>>, vector<1x2x32xf32>
    %369 = vector.shape_cast %368 : vector<1x2x32xf32> to vector<2x32xf32>
    %370 = vector.shape_cast %358 : vector<2x32xf32> to vector<1x2x32xf32>
    tpu.vector_store %arg8[%c4_102, %c0_103, %c0_104], %370 {strides = array<i32>} : memref<8x2x32xf32, #tpu.memory_space<vmem>>, vector<1x2x32xf32>,
    %c3_105 = arith.constant 3 : index
    %c0_106 = arith.constant 0 : index
    %c0_107 = arith.constant 0 : index
    %371 = vector.load %arg9[%c3_105, %c0_106, %c0_107] : memref<8x2x32xf32, #tpu.memory_space<vmem>>, vector<1x2x32xf32>
    %372 = vector.shape_cast %371 : vector<1x2x32xf32> to vector<2x32xf32>
    %373 = vector.shape_cast %364 : vector<2x32xf32> to vector<1x2x32xf32>
    tpu.vector_store %arg9[%c3_105, %c0_106, %c0_107], %373 {strides = array<i32>} : memref<8x2x32xf32, #tpu.memory_space<vmem>>, vector<1x2x32xf32>,
    %374 = vector.extract_strided_slice %61 {offsets = [0, 0], sizes = [2, 128], strides = [1, 1]} : vector<2x256xf32> to vector<2x128xf32>
    %cst_108 = arith.constant dense<0.000000e+00> : vector<2x128xf32>
    %375 = tpu.matmul %358, %23, %cst_108 {dimension_numbers = #tpu.dot_dimension_numbers<[1], [0], [0], [1], [0, 0, 1, 1], [], []>} : vector<2x32xf32>, vector<32x128xf32>, vector<2x128xf32> -> vector<2x128xf32>
    %376 = arith.addf %374, %375 : vector<2x128xf32>
    %377 = vector.extract_strided_slice %43 {offsets = [0, 128], sizes = [2, 128], strides = [1, 1]} : vector<2x256xf32> to vector<2x128xf32>
    %cst_109 = arith.constant dense<0.000000e+00> : vector<2x128xf32>
    %378 = tpu.matmul %364, %25, %cst_109 {dimension_numbers = #tpu.dot_dimension_numbers<[1], [0], [0], [1], [0, 0, 1, 1], [], []>} : vector<2x32xf32>, vector<32x128xf32>, vector<2x128xf32> -> vector<2x128xf32>
    %379 = arith.addf %377, %378 : vector<2x128xf32>
    %380 = vector.extract_strided_slice %376 {offsets = [0, 0], sizes = [2, 96], strides = [1, 1]} : vector<2x128xf32> to vector<2x96xf32>
    %cst_110 = arith.constant 5.000000e-01 : f32
    %381 = vector.broadcast %cst_110 : f32 to vector<2x96xf32>
    %382 = arith.mulf %381, %380 : vector<2x96xf32>
    %383 = math.tanh %382 : vector<2x96xf32>
    %cst_111 = arith.constant 5.000000e-01 : f32
    %384 = vector.broadcast %cst_111 : f32 to vector<2x96xf32>
    %385 = arith.mulf %384, %383 : vector<2x96xf32>
    %cst_112 = arith.constant 5.000000e-01 : f32
    %386 = vector.broadcast %cst_112 : f32 to vector<2x96xf32>
    %387 = arith.addf %385, %386 : vector<2x96xf32>
    %388 = vector.extract_strided_slice %376 {offsets = [0, 96], sizes = [2, 32], strides = [1, 1]} : vector<2x128xf32> to vector<2x32xf32>
    %389 = math.tanh %388 : vector<2x32xf32>
    %390 = vector.extract_strided_slice %379 {offsets = [0, 0], sizes = [2, 96], strides = [1, 1]} : vector<2x128xf32> to vector<2x96xf32>
    %cst_113 = arith.constant 5.000000e-01 : f32
    %391 = vector.broadcast %cst_113 : f32 to vector<2x96xf32>
    %392 = arith.mulf %391, %390 : vector<2x96xf32>
    %393 = math.tanh %392 : vector<2x96xf32>
    %cst_114 = arith.constant 5.000000e-01 : f32
    %394 = vector.broadcast %cst_114 : f32 to vector<2x96xf32>
    %395 = arith.mulf %394, %393 : vector<2x96xf32>
    %cst_115 = arith.constant 5.000000e-01 : f32
    %396 = vector.broadcast %cst_115 : f32 to vector<2x96xf32>
    %397 = arith.addf %395, %396 : vector<2x96xf32>
    %398 = vector.extract_strided_slice %379 {offsets = [0, 96], sizes = [2, 32], strides = [1, 1]} : vector<2x128xf32> to vector<2x32xf32>
    %399 = math.tanh %398 : vector<2x32xf32>
    %400 = vector.extract_strided_slice %387 {offsets = [0, 32], sizes = [2, 32], strides = [1, 1]} : vector<2x96xf32> to vector<2x32xf32>
    %401 = arith.mulf %400, %361 : vector<2x32xf32>
    %402 = vector.extract_strided_slice %387 {offsets = [0, 0], sizes = [2, 32], strides = [1, 1]} : vector<2x96xf32> to vector<2x32xf32>
    %403 = arith.mulf %402, %389 : vector<2x32xf32>
    %404 = arith.addf %401, %403 : vector<2x32xf32>
    %405 = vector.extract_strided_slice %397 {offsets = [0, 32], sizes = [2, 32], strides = [1, 1]} : vector<2x96xf32> to vector<2x32xf32>
    %406 = arith.mulf %405, %367 : vector<2x32xf32>
    %407 = vector.extract_strided_slice %397 {offsets = [0, 0], sizes = [2, 32], strides = [1, 1]} : vector<2x96xf32> to vector<2x32xf32>
    %408 = arith.mulf %407, %399 : vector<2x32xf32>
    %409 = arith.addf %406, %408 : vector<2x32xf32>
    %410 = vector.extract_strided_slice %387 {offsets = [0, 64], sizes = [2, 32], strides = [1, 1]} : vector<2x96xf32> to vector<2x32xf32>
    %411 = math.tanh %404 : vector<2x32xf32>
    %412 = arith.mulf %410, %411 : vector<2x32xf32>
    %413 = vector.extract_strided_slice %397 {offsets = [0, 64], sizes = [2, 32], strides = [1, 1]} : vector<2x96xf32> to vector<2x32xf32>
    %414 = math.tanh %409 : vector<2x32xf32>
    %415 = arith.mulf %413, %414 : vector<2x32xf32>
    %416 = vector.shape_cast %12 : vector<2x1xi1> to vector<2x1xi1>
    %417 = vector.broadcast %416 : vector<2x1xi1> to vector<2x32xi1>
    %418 = arith.select %417, %412, %358 : vector<2x32xi1>, vector<2x32xf32>
    %419 = vector.shape_cast %12 : vector<2x1xi1> to vector<2x1xi1>
    %420 = vector.broadcast %419 : vector<2x1xi1> to vector<2x32xi1>
    %421 = arith.select %420, %404, %361 : vector<2x32xi1>, vector<2x32xf32>
    %422 = vector.shape_cast %6 : vector<2x1xi1> to vector<2x1xi1>
    %423 = vector.broadcast %422 : vector<2x1xi1> to vector<2x32xi1>
    %424 = arith.select %423, %415, %364 : vector<2x32xi1>, vector<2x32xf32>
    %425 = vector.shape_cast %6 : vector<2x1xi1> to vector<2x1xi1>
    %426 = vector.broadcast %425 : vector<2x1xi1> to vector<2x32xi1>
    %427 = arith.select %426, %409, %367 : vector<2x32xi1>, vector<2x32xf32>
    %c5_116 = arith.constant 5 : index
    %c0_117 = arith.constant 0 : index
    %c0_118 = arith.constant 0 : index
    %428 = vector.load %arg8[%c5_116, %c0_117, %c0_118] : memref<8x2x32xf32, #tpu.memory_space<vmem>>, vector<1x2x32xf32>
    %429 = vector.shape_cast %428 : vector<1x2x32xf32> to vector<2x32xf32>
    %430 = vector.shape_cast %418 : vector<2x32xf32> to vector<1x2x32xf32>
    tpu.vector_store %arg8[%c5_116, %c0_117, %c0_118], %430 {strides = array<i32>} : memref<8x2x32xf32, #tpu.memory_space<vmem>>, vector<1x2x32xf32>,
    %c2_119 = arith.constant 2 : index
    %c0_120 = arith.constant 0 : index
    %c0_121 = arith.constant 0 : index
    %431 = vector.load %arg9[%c2_119, %c0_120, %c0_121] : memref<8x2x32xf32, #tpu.memory_space<vmem>>, vector<1x2x32xf32>
    %432 = vector.shape_cast %431 : vector<1x2x32xf32> to vector<2x32xf32>
    %433 = vector.shape_cast %424 : vector<2x32xf32> to vector<1x2x32xf32>
    tpu.vector_store %arg9[%c2_119, %c0_120, %c0_121], %433 {strides = array<i32>} : memref<8x2x32xf32, #tpu.memory_space<vmem>>, vector<1x2x32xf32>,
    %434 = vector.extract_strided_slice %67 {offsets = [0, 0], sizes = [2, 128], strides = [1, 1]} : vector<2x256xf32> to vector<2x128xf32>
    %cst_122 = arith.constant dense<0.000000e+00> : vector<2x128xf32>
    %435 = tpu.matmul %418, %23, %cst_122 {dimension_numbers = #tpu.dot_dimension_numbers<[1], [0], [0], [1], [0, 0, 1, 1], [], []>} : vector<2x32xf32>, vector<32x128xf32>, vector<2x128xf32> -> vector<2x128xf32>
    %436 = arith.addf %434, %435 : vector<2x128xf32>
    %437 = vector.extract_strided_slice %37 {offsets = [0, 128], sizes = [2, 128], strides = [1, 1]} : vector<2x256xf32> to vector<2x128xf32>
    %cst_123 = arith.constant dense<0.000000e+00> : vector<2x128xf32>
    %438 = tpu.matmul %424, %25, %cst_123 {dimension_numbers = #tpu.dot_dimension_numbers<[1], [0], [0], [1], [0, 0, 1, 1], [], []>} : vector<2x32xf32>, vector<32x128xf32>, vector<2x128xf32> -> vector<2x128xf32>
    %439 = arith.addf %437, %438 : vector<2x128xf32>
    %440 = vector.extract_strided_slice %436 {offsets = [0, 0], sizes = [2, 96], strides = [1, 1]} : vector<2x128xf32> to vector<2x96xf32>
    %cst_124 = arith.constant 5.000000e-01 : f32
    %441 = vector.broadcast %cst_124 : f32 to vector<2x96xf32>
    %442 = arith.mulf %441, %440 : vector<2x96xf32>
    %443 = math.tanh %442 : vector<2x96xf32>
    %cst_125 = arith.constant 5.000000e-01 : f32
    %444 = vector.broadcast %cst_125 : f32 to vector<2x96xf32>
    %445 = arith.mulf %444, %443 : vector<2x96xf32>
    %cst_126 = arith.constant 5.000000e-01 : f32
    %446 = vector.broadcast %cst_126 : f32 to vector<2x96xf32>
    %447 = arith.addf %445, %446 : vector<2x96xf32>
    %448 = vector.extract_strided_slice %436 {offsets = [0, 96], sizes = [2, 32], strides = [1, 1]} : vector<2x128xf32> to vector<2x32xf32>
    %449 = math.tanh %448 : vector<2x32xf32>
    %450 = vector.extract_strided_slice %439 {offsets = [0, 0], sizes = [2, 96], strides = [1, 1]} : vector<2x128xf32> to vector<2x96xf32>
    %cst_127 = arith.constant 5.000000e-01 : f32
    %451 = vector.broadcast %cst_127 : f32 to vector<2x96xf32>
    %452 = arith.mulf %451, %450 : vector<2x96xf32>
    %453 = math.tanh %452 : vector<2x96xf32>
    %cst_128 = arith.constant 5.000000e-01 : f32
    %454 = vector.broadcast %cst_128 : f32 to vector<2x96xf32>
    %455 = arith.mulf %454, %453 : vector<2x96xf32>
    %cst_129 = arith.constant 5.000000e-01 : f32
    %456 = vector.broadcast %cst_129 : f32 to vector<2x96xf32>
    %457 = arith.addf %455, %456 : vector<2x96xf32>
    %458 = vector.extract_strided_slice %439 {offsets = [0, 96], sizes = [2, 32], strides = [1, 1]} : vector<2x128xf32> to vector<2x32xf32>
    %459 = math.tanh %458 : vector<2x32xf32>
    %460 = vector.extract_strided_slice %447 {offsets = [0, 32], sizes = [2, 32], strides = [1, 1]} : vector<2x96xf32> to vector<2x32xf32>
    %461 = arith.mulf %460, %421 : vector<2x32xf32>
    %462 = vector.extract_strided_slice %447 {offsets = [0, 0], sizes = [2, 32], strides = [1, 1]} : vector<2x96xf32> to vector<2x32xf32>
    %463 = arith.mulf %462, %449 : vector<2x32xf32>
    %464 = arith.addf %461, %463 : vector<2x32xf32>
    %465 = vector.extract_strided_slice %457 {offsets = [0, 32], sizes = [2, 32], strides = [1, 1]} : vector<2x96xf32> to vector<2x32xf32>
    %466 = arith.mulf %465, %427 : vector<2x32xf32>
    %467 = vector.extract_strided_slice %457 {offsets = [0, 0], sizes = [2, 32], strides = [1, 1]} : vector<2x96xf32> to vector<2x32xf32>
    %468 = arith.mulf %467, %459 : vector<2x32xf32>
    %469 = arith.addf %466, %468 : vector<2x32xf32>
    %470 = vector.extract_strided_slice %447 {offsets = [0, 64], sizes = [2, 32], strides = [1, 1]} : vector<2x96xf32> to vector<2x32xf32>
    %471 = math.tanh %464 : vector<2x32xf32>
    %472 = arith.mulf %470, %471 : vector<2x32xf32>
    %473 = vector.extract_strided_slice %457 {offsets = [0, 64], sizes = [2, 32], strides = [1, 1]} : vector<2x96xf32> to vector<2x32xf32>
    %474 = math.tanh %469 : vector<2x32xf32>
    %475 = arith.mulf %473, %474 : vector<2x32xf32>
    %476 = vector.shape_cast %14 : vector<2x1xi1> to vector<2x1xi1>
    %477 = vector.broadcast %476 : vector<2x1xi1> to vector<2x32xi1>
    %478 = arith.select %477, %472, %418 : vector<2x32xi1>, vector<2x32xf32>
    %479 = vector.shape_cast %14 : vector<2x1xi1> to vector<2x1xi1>
    %480 = vector.broadcast %479 : vector<2x1xi1> to vector<2x32xi1>
    %481 = arith.select %480, %464, %421 : vector<2x32xi1>, vector<2x32xf32>
    %482 = vector.shape_cast %4 : vector<2x1xi1> to vector<2x1xi1>
    %483 = vector.broadcast %482 : vector<2x1xi1> to vector<2x32xi1>
    %484 = arith.select %483, %475, %424 : vector<2x32xi1>, vector<2x32xf32>
    %485 = vector.shape_cast %4 : vector<2x1xi1> to vector<2x1xi1>
    %486 = vector.broadcast %485 : vector<2x1xi1> to vector<2x32xi1>
    %487 = arith.select %486, %469, %427 : vector<2x32xi1>, vector<2x32xf32>
    %c6_130 = arith.constant 6 : index
    %c0_131 = arith.constant 0 : index
    %c0_132 = arith.constant 0 : index
    %488 = vector.load %arg8[%c6_130, %c0_131, %c0_132] : memref<8x2x32xf32, #tpu.memory_space<vmem>>, vector<1x2x32xf32>
    %489 = vector.shape_cast %488 : vector<1x2x32xf32> to vector<2x32xf32>
    %490 = vector.shape_cast %478 : vector<2x32xf32> to vector<1x2x32xf32>
    tpu.vector_store %arg8[%c6_130, %c0_131, %c0_132], %490 {strides = array<i32>} : memref<8x2x32xf32, #tpu.memory_space<vmem>>, vector<1x2x32xf32>,
    %c1_133 = arith.constant 1 : index
    %c0_134 = arith.constant 0 : index
    %c0_135 = arith.constant 0 : index
    %491 = vector.load %arg9[%c1_133, %c0_134, %c0_135] : memref<8x2x32xf32, #tpu.memory_space<vmem>>, vector<1x2x32xf32>
    %492 = vector.shape_cast %491 : vector<1x2x32xf32> to vector<2x32xf32>
    %493 = vector.shape_cast %484 : vector<2x32xf32> to vector<1x2x32xf32>
    tpu.vector_store %arg9[%c1_133, %c0_134, %c0_135], %493 {strides = array<i32>} : memref<8x2x32xf32, #tpu.memory_space<vmem>>, vector<1x2x32xf32>,
    %494 = vector.extract_strided_slice %73 {offsets = [0, 0], sizes = [2, 128], strides = [1, 1]} : vector<2x256xf32> to vector<2x128xf32>
    %cst_136 = arith.constant dense<0.000000e+00> : vector<2x128xf32>
    %495 = tpu.matmul %478, %23, %cst_136 {dimension_numbers = #tpu.dot_dimension_numbers<[1], [0], [0], [1], [0, 0, 1, 1], [], []>} : vector<2x32xf32>, vector<32x128xf32>, vector<2x128xf32> -> vector<2x128xf32>
    %496 = arith.addf %494, %495 : vector<2x128xf32>
    %497 = vector.extract_strided_slice %31 {offsets = [0, 128], sizes = [2, 128], strides = [1, 1]} : vector<2x256xf32> to vector<2x128xf32>
    %cst_137 = arith.constant dense<0.000000e+00> : vector<2x128xf32>
    %498 = tpu.matmul %484, %25, %cst_137 {dimension_numbers = #tpu.dot_dimension_numbers<[1], [0], [0], [1], [0, 0, 1, 1], [], []>} : vector<2x32xf32>, vector<32x128xf32>, vector<2x128xf32> -> vector<2x128xf32>
    %499 = arith.addf %497, %498 : vector<2x128xf32>
    %500 = vector.extract_strided_slice %496 {offsets = [0, 0], sizes = [2, 96], strides = [1, 1]} : vector<2x128xf32> to vector<2x96xf32>
    %cst_138 = arith.constant 5.000000e-01 : f32
    %501 = vector.broadcast %cst_138 : f32 to vector<2x96xf32>
    %502 = arith.mulf %501, %500 : vector<2x96xf32>
    %503 = math.tanh %502 : vector<2x96xf32>
    %cst_139 = arith.constant 5.000000e-01 : f32
    %504 = vector.broadcast %cst_139 : f32 to vector<2x96xf32>
    %505 = arith.mulf %504, %503 : vector<2x96xf32>
    %cst_140 = arith.constant 5.000000e-01 : f32
    %506 = vector.broadcast %cst_140 : f32 to vector<2x96xf32>
    %507 = arith.addf %505, %506 : vector<2x96xf32>
    %508 = vector.extract_strided_slice %496 {offsets = [0, 96], sizes = [2, 32], strides = [1, 1]} : vector<2x128xf32> to vector<2x32xf32>
    %509 = math.tanh %508 : vector<2x32xf32>
    %510 = vector.extract_strided_slice %499 {offsets = [0, 0], sizes = [2, 96], strides = [1, 1]} : vector<2x128xf32> to vector<2x96xf32>
    %cst_141 = arith.constant 5.000000e-01 : f32
    %511 = vector.broadcast %cst_141 : f32 to vector<2x96xf32>
    %512 = arith.mulf %511, %510 : vector<2x96xf32>
    %513 = math.tanh %512 : vector<2x96xf32>
    %cst_142 = arith.constant 5.000000e-01 : f32
    %514 = vector.broadcast %cst_142 : f32 to vector<2x96xf32>
    %515 = arith.mulf %514, %513 : vector<2x96xf32>
    %cst_143 = arith.constant 5.000000e-01 : f32
    %516 = vector.broadcast %cst_143 : f32 to vector<2x96xf32>
    %517 = arith.addf %515, %516 : vector<2x96xf32>
    %518 = vector.extract_strided_slice %499 {offsets = [0, 96], sizes = [2, 32], strides = [1, 1]} : vector<2x128xf32> to vector<2x32xf32>
    %519 = math.tanh %518 : vector<2x32xf32>
    %520 = vector.extract_strided_slice %507 {offsets = [0, 32], sizes = [2, 32], strides = [1, 1]} : vector<2x96xf32> to vector<2x32xf32>
    %521 = arith.mulf %520, %481 : vector<2x32xf32>
    %522 = vector.extract_strided_slice %507 {offsets = [0, 0], sizes = [2, 32], strides = [1, 1]} : vector<2x96xf32> to vector<2x32xf32>
    %523 = arith.mulf %522, %509 : vector<2x32xf32>
    %524 = arith.addf %521, %523 : vector<2x32xf32>
    %525 = vector.extract_strided_slice %517 {offsets = [0, 32], sizes = [2, 32], strides = [1, 1]} : vector<2x96xf32> to vector<2x32xf32>
    %526 = arith.mulf %525, %487 : vector<2x32xf32>
    %527 = vector.extract_strided_slice %517 {offsets = [0, 0], sizes = [2, 32], strides = [1, 1]} : vector<2x96xf32> to vector<2x32xf32>
    %528 = arith.mulf %527, %519 : vector<2x32xf32>
    %529 = arith.addf %526, %528 : vector<2x32xf32>
    %530 = vector.extract_strided_slice %507 {offsets = [0, 64], sizes = [2, 32], strides = [1, 1]} : vector<2x96xf32> to vector<2x32xf32>
    %531 = math.tanh %524 : vector<2x32xf32>
    %532 = arith.mulf %530, %531 : vector<2x32xf32>
    %533 = vector.extract_strided_slice %517 {offsets = [0, 64], sizes = [2, 32], strides = [1, 1]} : vector<2x96xf32> to vector<2x32xf32>
    %534 = math.tanh %529 : vector<2x32xf32>
    %535 = arith.mulf %533, %534 : vector<2x32xf32>
    %536 = vector.shape_cast %16 : vector<2x1xi1> to vector<2x1xi1>
    %537 = vector.broadcast %536 : vector<2x1xi1> to vector<2x32xi1>
    %538 = arith.select %537, %532, %478 : vector<2x32xi1>, vector<2x32xf32>
    %539 = vector.shape_cast %2 : vector<2x1xi1> to vector<2x1xi1>
    %540 = vector.broadcast %539 : vector<2x1xi1> to vector<2x32xi1>
    %541 = arith.select %540, %535, %484 : vector<2x32xi1>, vector<2x32xf32>
    %c7_144 = arith.constant 7 : index
    %c0_145 = arith.constant 0 : index
    %c0_146 = arith.constant 0 : index
    %542 = vector.load %arg8[%c7_144, %c0_145, %c0_146] : memref<8x2x32xf32, #tpu.memory_space<vmem>>, vector<1x2x32xf32>
    %543 = vector.shape_cast %542 : vector<1x2x32xf32> to vector<2x32xf32>
    %544 = vector.shape_cast %538 : vector<2x32xf32> to vector<1x2x32xf32>
    tpu.vector_store %arg8[%c7_144, %c0_145, %c0_146], %544 {strides = array<i32>} : memref<8x2x32xf32, #tpu.memory_space<vmem>>, vector<1x2x32xf32>,
    %c0_147 = arith.constant 0 : index
    %c0_148 = arith.constant 0 : index
    %c0_149 = arith.constant 0 : index
    %545 = vector.load %arg9[%c0_147, %c0_148, %c0_149] : memref<8x2x32xf32, #tpu.memory_space<vmem>>, vector<1x2x32xf32>
    %546 = vector.shape_cast %545 : vector<1x2x32xf32> to vector<2x32xf32>
    %547 = vector.shape_cast %541 : vector<2x32xf32> to vector<1x2x32xf32>
    tpu.vector_store %arg9[%c0_147, %c0_148, %c0_149], %547 {strides = array<i32>} : memref<8x2x32xf32, #tpu.memory_space<vmem>>, vector<1x2x32xf32>,
    %c1_150 = arith.constant 1 : index
    %c0_151 = arith.constant 0 : index
    %c0_152 = arith.constant 0 : index
    %548 = vector.load %arg2[%c1_150, %c0_151, %c0_152] : memref<3x64x256xf32, #tpu.memory_space<vmem>>, vector<1x64x256xf32>
    %549 = vector.shape_cast %548 : vector<1x64x256xf32> to vector<64x256xf32>
    %c1_153 = arith.constant 1 : index
    %c0_154 = arith.constant 0 : index
    %c0_155 = arith.constant 0 : index
    %550 = vector.load %arg4[%c1_153, %c0_154, %c0_155] : memref<3x1x256xf32, #tpu.memory_space<vmem>>, vector<1x1x256xf32>
    %551 = vector.shape_cast %550 : vector<1x1x256xf32> to vector<1x256xf32>
    %c2_156 = arith.constant 2 : index
    %c0_157 = arith.constant 0 : index
    %c0_158 = arith.constant 0 : index
    %552 = vector.load %arg3[%c2_156, %c0_157, %c0_158] : memref<6x32x128xf32, #tpu.memory_space<vmem>>, vector<1x32x128xf32>
    %553 = vector.shape_cast %552 : vector<1x32x128xf32> to vector<32x128xf32>
    %c3_159 = arith.constant 3 : index
    %c0_160 = arith.constant 0 : index
    %c0_161 = arith.constant 0 : index
    %554 = vector.load %arg3[%c3_159, %c0_160, %c0_161] : memref<6x32x128xf32, #tpu.memory_space<vmem>>, vector<1x32x128xf32>
    %555 = vector.shape_cast %554 : vector<1x32x128xf32> to vector<32x128xf32>
    %c0_162 = arith.constant 0 : index
    %c0_163 = arith.constant 0 : index
    %c0_164 = arith.constant 0 : index
    %556 = vector.load %arg8[%c0_162, %c0_163, %c0_164] : memref<8x2x32xf32, #tpu.memory_space<vmem>>, vector<1x2x32xf32>
    %557 = vector.shape_cast %556 : vector<1x2x32xf32> to vector<2x32xf32>
    %c0_165 = arith.constant 0 : index
    %c0_166 = arith.constant 0 : index
    %c0_167 = arith.constant 0 : index
    %558 = vector.load %arg9[%c0_165, %c0_166, %c0_167] : memref<8x2x32xf32, #tpu.memory_space<vmem>>, vector<1x2x32xf32>
    %559 = vector.shape_cast %558 : vector<1x2x32xf32> to vector<2x32xf32>
    %560 = tpu.concatenate %557, %559 in 1 : vector<2x32xf32>, vector<2x32xf32> -> vector<2x64xf32>
    %cst_168 = arith.constant dense<0.000000e+00> : vector<2x256xf32>
    %561 = tpu.matmul %560, %549, %cst_168 {dimension_numbers = #tpu.dot_dimension_numbers<[1], [0], [0], [1], [0, 0, 1, 1], [], []>} : vector<2x64xf32>, vector<64x256xf32>, vector<2x256xf32> -> vector<2x256xf32>
    %562 = vector.broadcast %551 : vector<1x256xf32> to vector<2x256xf32>
    %563 = arith.addf %561, %562 : vector<2x256xf32>
    %c1_169 = arith.constant 1 : index
    %c0_170 = arith.constant 0 : index
    %c0_171 = arith.constant 0 : index
    %564 = vector.load %arg8[%c1_169, %c0_170, %c0_171] : memref<8x2x32xf32, #tpu.memory_space<vmem>>, vector<1x2x32xf32>
    %565 = vector.shape_cast %564 : vector<1x2x32xf32> to vector<2x32xf32>
    %c1_172 = arith.constant 1 : index
    %c0_173 = arith.constant 0 : index
    %c0_174 = arith.constant 0 : index
    %566 = vector.load %arg9[%c1_172, %c0_173, %c0_174] : memref<8x2x32xf32, #tpu.memory_space<vmem>>, vector<1x2x32xf32>
    %567 = vector.shape_cast %566 : vector<1x2x32xf32> to vector<2x32xf32>
    %568 = tpu.concatenate %565, %567 in 1 : vector<2x32xf32>, vector<2x32xf32> -> vector<2x64xf32>
    %cst_175 = arith.constant dense<0.000000e+00> : vector<2x256xf32>
    %569 = tpu.matmul %568, %549, %cst_175 {dimension_numbers = #tpu.dot_dimension_numbers<[1], [0], [0], [1], [0, 0, 1, 1], [], []>} : vector<2x64xf32>, vector<64x256xf32>, vector<2x256xf32> -> vector<2x256xf32>
    %570 = vector.broadcast %551 : vector<1x256xf32> to vector<2x256xf32>
    %571 = arith.addf %569, %570 : vector<2x256xf32>
    %c2_176 = arith.constant 2 : index
    %c0_177 = arith.constant 0 : index
    %c0_178 = arith.constant 0 : index
    %572 = vector.load %arg8[%c2_176, %c0_177, %c0_178] : memref<8x2x32xf32, #tpu.memory_space<vmem>>, vector<1x2x32xf32>
    %573 = vector.shape_cast %572 : vector<1x2x32xf32> to vector<2x32xf32>
    %c2_179 = arith.constant 2 : index
    %c0_180 = arith.constant 0 : index
    %c0_181 = arith.constant 0 : index
    %574 = vector.load %arg9[%c2_179, %c0_180, %c0_181] : memref<8x2x32xf32, #tpu.memory_space<vmem>>, vector<1x2x32xf32>
    %575 = vector.shape_cast %574 : vector<1x2x32xf32> to vector<2x32xf32>
    %576 = tpu.concatenate %573, %575 in 1 : vector<2x32xf32>, vector<2x32xf32> -> vector<2x64xf32>
    %cst_182 = arith.constant dense<0.000000e+00> : vector<2x256xf32>
    %577 = tpu.matmul %576, %549, %cst_182 {dimension_numbers = #tpu.dot_dimension_numbers<[1], [0], [0], [1], [0, 0, 1, 1], [], []>} : vector<2x64xf32>, vector<64x256xf32>, vector<2x256xf32> -> vector<2x256xf32>
    %578 = vector.broadcast %551 : vector<1x256xf32> to vector<2x256xf32>
    %579 = arith.addf %577, %578 : vector<2x256xf32>
    %c3_183 = arith.constant 3 : index
    %c0_184 = arith.constant 0 : index
    %c0_185 = arith.constant 0 : index
    %580 = vector.load %arg8[%c3_183, %c0_184, %c0_185] : memref<8x2x32xf32, #tpu.memory_space<vmem>>, vector<1x2x32xf32>
    %581 = vector.shape_cast %580 : vector<1x2x32xf32> to vector<2x32xf32>
    %c3_186 = arith.constant 3 : index
    %c0_187 = arith.constant 0 : index
    %c0_188 = arith.constant 0 : index
    %582 = vector.load %arg9[%c3_186, %c0_187, %c0_188] : memref<8x2x32xf32, #tpu.memory_space<vmem>>, vector<1x2x32xf32>
    %583 = vector.shape_cast %582 : vector<1x2x32xf32> to vector<2x32xf32>
    %584 = tpu.concatenate %581, %583 in 1 : vector<2x32xf32>, vector<2x32xf32> -> vector<2x64xf32>
    %cst_189 = arith.constant dense<0.000000e+00> : vector<2x256xf32>
    %585 = tpu.matmul %584, %549, %cst_189 {dimension_numbers = #tpu.dot_dimension_numbers<[1], [0], [0], [1], [0, 0, 1, 1], [], []>} : vector<2x64xf32>, vector<64x256xf32>, vector<2x256xf32> -> vector<2x256xf32>
    %586 = vector.broadcast %551 : vector<1x256xf32> to vector<2x256xf32>
    %587 = arith.addf %585, %586 : vector<2x256xf32>
    %c4_190 = arith.constant 4 : index
    %c0_191 = arith.constant 0 : index
    %c0_192 = arith.constant 0 : index
    %588 = vector.load %arg8[%c4_190, %c0_191, %c0_192] : memref<8x2x32xf32, #tpu.memory_space<vmem>>, vector<1x2x32xf32>
    %589 = vector.shape_cast %588 : vector<1x2x32xf32> to vector<2x32xf32>
    %c4_193 = arith.constant 4 : index
    %c0_194 = arith.constant 0 : index
    %c0_195 = arith.constant 0 : index
    %590 = vector.load %arg9[%c4_193, %c0_194, %c0_195] : memref<8x2x32xf32, #tpu.memory_space<vmem>>, vector<1x2x32xf32>
    %591 = vector.shape_cast %590 : vector<1x2x32xf32> to vector<2x32xf32>
    %592 = tpu.concatenate %589, %591 in 1 : vector<2x32xf32>, vector<2x32xf32> -> vector<2x64xf32>
    %cst_196 = arith.constant dense<0.000000e+00> : vector<2x256xf32>
    %593 = tpu.matmul %592, %549, %cst_196 {dimension_numbers = #tpu.dot_dimension_numbers<[1], [0], [0], [1], [0, 0, 1, 1], [], []>} : vector<2x64xf32>, vector<64x256xf32>, vector<2x256xf32> -> vector<2x256xf32>
    %594 = vector.broadcast %551 : vector<1x256xf32> to vector<2x256xf32>
    %595 = arith.addf %593, %594 : vector<2x256xf32>
    %c5_197 = arith.constant 5 : index
    %c0_198 = arith.constant 0 : index
    %c0_199 = arith.constant 0 : index
    %596 = vector.load %arg8[%c5_197, %c0_198, %c0_199] : memref<8x2x32xf32, #tpu.memory_space<vmem>>, vector<1x2x32xf32>
    %597 = vector.shape_cast %596 : vector<1x2x32xf32> to vector<2x32xf32>
    %c5_200 = arith.constant 5 : index
    %c0_201 = arith.constant 0 : index
    %c0_202 = arith.constant 0 : index
    %598 = vector.load %arg9[%c5_200, %c0_201, %c0_202] : memref<8x2x32xf32, #tpu.memory_space<vmem>>, vector<1x2x32xf32>
    %599 = vector.shape_cast %598 : vector<1x2x32xf32> to vector<2x32xf32>
    %600 = tpu.concatenate %597, %599 in 1 : vector<2x32xf32>, vector<2x32xf32> -> vector<2x64xf32>
    %cst_203 = arith.constant dense<0.000000e+00> : vector<2x256xf32>
    %601 = tpu.matmul %600, %549, %cst_203 {dimension_numbers = #tpu.dot_dimension_numbers<[1], [0], [0], [1], [0, 0, 1, 1], [], []>} : vector<2x64xf32>, vector<64x256xf32>, vector<2x256xf32> -> vector<2x256xf32>
    %602 = vector.broadcast %551 : vector<1x256xf32> to vector<2x256xf32>
    %603 = arith.addf %601, %602 : vector<2x256xf32>
    %c6_204 = arith.constant 6 : index
    %c0_205 = arith.constant 0 : index
    %c0_206 = arith.constant 0 : index
    %604 = vector.load %arg8[%c6_204, %c0_205, %c0_206] : memref<8x2x32xf32, #tpu.memory_space<vmem>>, vector<1x2x32xf32>
    %605 = vector.shape_cast %604 : vector<1x2x32xf32> to vector<2x32xf32>
    %c6_207 = arith.constant 6 : index
    %c0_208 = arith.constant 0 : index
    %c0_209 = arith.constant 0 : index
    %606 = vector.load %arg9[%c6_207, %c0_208, %c0_209] : memref<8x2x32xf32, #tpu.memory_space<vmem>>, vector<1x2x32xf32>
    %607 = vector.shape_cast %606 : vector<1x2x32xf32> to vector<2x32xf32>
    %608 = tpu.concatenate %605, %607 in 1 : vector<2x32xf32>, vector<2x32xf32> -> vector<2x64xf32>
    %cst_210 = arith.constant dense<0.000000e+00> : vector<2x256xf32>
    %609 = tpu.matmul %608, %549, %cst_210 {dimension_numbers = #tpu.dot_dimension_numbers<[1], [0], [0], [1], [0, 0, 1, 1], [], []>} : vector<2x64xf32>, vector<64x256xf32>, vector<2x256xf32> -> vector<2x256xf32>
    %610 = vector.broadcast %551 : vector<1x256xf32> to vector<2x256xf32>
    %611 = arith.addf %609, %610 : vector<2x256xf32>
    %c7_211 = arith.constant 7 : index
    %c0_212 = arith.constant 0 : index
    %c0_213 = arith.constant 0 : index
    %612 = vector.load %arg8[%c7_211, %c0_212, %c0_213] : memref<8x2x32xf32, #tpu.memory_space<vmem>>, vector<1x2x32xf32>
    %613 = vector.shape_cast %612 : vector<1x2x32xf32> to vector<2x32xf32>
    %c7_214 = arith.constant 7 : index
    %c0_215 = arith.constant 0 : index
    %c0_216 = arith.constant 0 : index
    %614 = vector.load %arg9[%c7_214, %c0_215, %c0_216] : memref<8x2x32xf32, #tpu.memory_space<vmem>>, vector<1x2x32xf32>
    %615 = vector.shape_cast %614 : vector<1x2x32xf32> to vector<2x32xf32>
    %616 = tpu.concatenate %613, %615 in 1 : vector<2x32xf32>, vector<2x32xf32> -> vector<2x64xf32>
    %cst_217 = arith.constant dense<0.000000e+00> : vector<2x256xf32>
    %617 = tpu.matmul %616, %549, %cst_217 {dimension_numbers = #tpu.dot_dimension_numbers<[1], [0], [0], [1], [0, 0, 1, 1], [], []>} : vector<2x64xf32>, vector<64x256xf32>, vector<2x256xf32> -> vector<2x256xf32>
    %618 = vector.broadcast %551 : vector<1x256xf32> to vector<2x256xf32>
    %619 = arith.addf %617, %618 : vector<2x256xf32>
    %620 = vector.extract_strided_slice %563 {offsets = [0, 0], sizes = [2, 128], strides = [1, 1]} : vector<2x256xf32> to vector<2x128xf32>
    %cst_218 = arith.constant dense<0.000000e+00> : vector<2x128xf32>
    %621 = tpu.matmul %17, %553, %cst_218 {dimension_numbers = #tpu.dot_dimension_numbers<[1], [0], [0], [1], [0, 0, 1, 1], [], []>} : vector<2x32xf32>, vector<32x128xf32>, vector<2x128xf32> -> vector<2x128xf32>
    %622 = arith.addf %620, %621 : vector<2x128xf32>
    %623 = vector.extract_strided_slice %619 {offsets = [0, 128], sizes = [2, 128], strides = [1, 1]} : vector<2x256xf32> to vector<2x128xf32>
    %cst_219 = arith.constant dense<0.000000e+00> : vector<2x128xf32>
    %624 = tpu.matmul %17, %555, %cst_219 {dimension_numbers = #tpu.dot_dimension_numbers<[1], [0], [0], [1], [0, 0, 1, 1], [], []>} : vector<2x32xf32>, vector<32x128xf32>, vector<2x128xf32> -> vector<2x128xf32>
    %625 = arith.addf %623, %624 : vector<2x128xf32>
    %626 = vector.extract_strided_slice %622 {offsets = [0, 0], sizes = [2, 96], strides = [1, 1]} : vector<2x128xf32> to vector<2x96xf32>
    %cst_220 = arith.constant 5.000000e-01 : f32
    %627 = vector.broadcast %cst_220 : f32 to vector<2x96xf32>
    %628 = arith.mulf %627, %626 : vector<2x96xf32>
    %629 = math.tanh %628 : vector<2x96xf32>
    %cst_221 = arith.constant 5.000000e-01 : f32
    %630 = vector.broadcast %cst_221 : f32 to vector<2x96xf32>
    %631 = arith.mulf %630, %629 : vector<2x96xf32>
    %cst_222 = arith.constant 5.000000e-01 : f32
    %632 = vector.broadcast %cst_222 : f32 to vector<2x96xf32>
    %633 = arith.addf %631, %632 : vector<2x96xf32>
    %634 = vector.extract_strided_slice %622 {offsets = [0, 96], sizes = [2, 32], strides = [1, 1]} : vector<2x128xf32> to vector<2x32xf32>
    %635 = math.tanh %634 : vector<2x32xf32>
    %636 = vector.extract_strided_slice %625 {offsets = [0, 0], sizes = [2, 96], strides = [1, 1]} : vector<2x128xf32> to vector<2x96xf32>
    %cst_223 = arith.constant 5.000000e-01 : f32
    %637 = vector.broadcast %cst_223 : f32 to vector<2x96xf32>
    %638 = arith.mulf %637, %636 : vector<2x96xf32>
    %639 = math.tanh %638 : vector<2x96xf32>
    %cst_224 = arith.constant 5.000000e-01 : f32
    %640 = vector.broadcast %cst_224 : f32 to vector<2x96xf32>
    %641 = arith.mulf %640, %639 : vector<2x96xf32>
    %cst_225 = arith.constant 5.000000e-01 : f32
    %642 = vector.broadcast %cst_225 : f32 to vector<2x96xf32>
    %643 = arith.addf %641, %642 : vector<2x96xf32>
    %644 = vector.extract_strided_slice %625 {offsets = [0, 96], sizes = [2, 32], strides = [1, 1]} : vector<2x128xf32> to vector<2x32xf32>
    %645 = math.tanh %644 : vector<2x32xf32>
    %646 = vector.extract_strided_slice %633 {offsets = [0, 32], sizes = [2, 32], strides = [1, 1]} : vector<2x96xf32> to vector<2x32xf32>
    %647 = arith.mulf %646, %17 : vector<2x32xf32>
    %648 = vector.extract_strided_slice %633 {offsets = [0, 0], sizes = [2, 32], strides = [1, 1]} : vector<2x96xf32> to vector<2x32xf32>
    %649 = arith.mulf %648, %635 : vector<2x32xf32>
    %650 = arith.addf %647, %649 : vector<2x32xf32>
    %651 = vector.extract_strided_slice %643 {offsets = [0, 32], sizes = [2, 32], strides = [1, 1]} : vector<2x96xf32> to vector<2x32xf32>
    %652 = arith.mulf %651, %17 : vector<2x32xf32>
    %653 = vector.extract_strided_slice %643 {offsets = [0, 0], sizes = [2, 32], strides = [1, 1]} : vector<2x96xf32> to vector<2x32xf32>
    %654 = arith.mulf %653, %645 : vector<2x32xf32>
    %655 = arith.addf %652, %654 : vector<2x32xf32>
    %656 = vector.extract_strided_slice %633 {offsets = [0, 64], sizes = [2, 32], strides = [1, 1]} : vector<2x96xf32> to vector<2x32xf32>
    %657 = math.tanh %650 : vector<2x32xf32>
    %658 = arith.mulf %656, %657 : vector<2x32xf32>
    %659 = vector.extract_strided_slice %643 {offsets = [0, 64], sizes = [2, 32], strides = [1, 1]} : vector<2x96xf32> to vector<2x32xf32>
    %660 = math.tanh %655 : vector<2x32xf32>
    %661 = arith.mulf %659, %660 : vector<2x32xf32>
    %662 = vector.shape_cast %2 : vector<2x1xi1> to vector<2x1xi1>
    %663 = vector.broadcast %662 : vector<2x1xi1> to vector<2x32xi1>
    %664 = arith.select %663, %658, %17 : vector<2x32xi1>, vector<2x32xf32>
    %665 = vector.shape_cast %2 : vector<2x1xi1> to vector<2x1xi1>
    %666 = vector.broadcast %665 : vector<2x1xi1> to vector<2x32xi1>
    %667 = arith.select %666, %650, %17 : vector<2x32xi1>, vector<2x32xf32>
    %668 = vector.shape_cast %16 : vector<2x1xi1> to vector<2x1xi1>
    %669 = vector.broadcast %668 : vector<2x1xi1> to vector<2x32xi1>
    %670 = arith.select %669, %661, %17 : vector<2x32xi1>, vector<2x32xf32>
    %671 = vector.shape_cast %16 : vector<2x1xi1> to vector<2x1xi1>
    %672 = vector.broadcast %671 : vector<2x1xi1> to vector<2x32xi1>
    %673 = arith.select %672, %655, %17 : vector<2x32xi1>, vector<2x32xf32>
    %c0_226 = arith.constant 0 : index
    %c0_227 = arith.constant 0 : index
    %c0_228 = arith.constant 0 : index
    %674 = vector.load %arg10[%c0_226, %c0_227, %c0_228] : memref<8x2x32xf32, #tpu.memory_space<vmem>>, vector<1x2x32xf32>
    %675 = vector.shape_cast %674 : vector<1x2x32xf32> to vector<2x32xf32>
    %676 = vector.shape_cast %664 : vector<2x32xf32> to vector<1x2x32xf32>
    tpu.vector_store %arg10[%c0_226, %c0_227, %c0_228], %676 {strides = array<i32>} : memref<8x2x32xf32, #tpu.memory_space<vmem>>, vector<1x2x32xf32>,
    %c7_229 = arith.constant 7 : index
    %c0_230 = arith.constant 0 : index
    %c0_231 = arith.constant 0 : index
    %677 = vector.load %arg11[%c7_229, %c0_230, %c0_231] : memref<8x2x32xf32, #tpu.memory_space<vmem>>, vector<1x2x32xf32>
    %678 = vector.shape_cast %677 : vector<1x2x32xf32> to vector<2x32xf32>
    %679 = vector.shape_cast %670 : vector<2x32xf32> to vector<1x2x32xf32>
    tpu.vector_store %arg11[%c7_229, %c0_230, %c0_231], %679 {strides = array<i32>} : memref<8x2x32xf32, #tpu.memory_space<vmem>>, vector<1x2x32xf32>,
    %680 = vector.extract_strided_slice %571 {offsets = [0, 0], sizes = [2, 128], strides = [1, 1]} : vector<2x256xf32> to vector<2x128xf32>
    %cst_232 = arith.constant dense<0.000000e+00> : vector<2x128xf32>
    %681 = tpu.matmul %664, %553, %cst_232 {dimension_numbers = #tpu.dot_dimension_numbers<[1], [0], [0], [1], [0, 0, 1, 1], [], []>} : vector<2x32xf32>, vector<32x128xf32>, vector<2x128xf32> -> vector<2x128xf32>
    %682 = arith.addf %680, %681 : vector<2x128xf32>
    %683 = vector.extract_strided_slice %611 {offsets = [0, 128], sizes = [2, 128], strides = [1, 1]} : vector<2x256xf32> to vector<2x128xf32>
    %cst_233 = arith.constant dense<0.000000e+00> : vector<2x128xf32>
    %684 = tpu.matmul %670, %555, %cst_233 {dimension_numbers = #tpu.dot_dimension_numbers<[1], [0], [0], [1], [0, 0, 1, 1], [], []>} : vector<2x32xf32>, vector<32x128xf32>, vector<2x128xf32> -> vector<2x128xf32>
    %685 = arith.addf %683, %684 : vector<2x128xf32>
    %686 = vector.extract_strided_slice %682 {offsets = [0, 0], sizes = [2, 96], strides = [1, 1]} : vector<2x128xf32> to vector<2x96xf32>
    %cst_234 = arith.constant 5.000000e-01 : f32
    %687 = vector.broadcast %cst_234 : f32 to vector<2x96xf32>
    %688 = arith.mulf %687, %686 : vector<2x96xf32>
    %689 = math.tanh %688 : vector<2x96xf32>
    %cst_235 = arith.constant 5.000000e-01 : f32
    %690 = vector.broadcast %cst_235 : f32 to vector<2x96xf32>
    %691 = arith.mulf %690, %689 : vector<2x96xf32>
    %cst_236 = arith.constant 5.000000e-01 : f32
    %692 = vector.broadcast %cst_236 : f32 to vector<2x96xf32>
    %693 = arith.addf %691, %692 : vector<2x96xf32>
    %694 = vector.extract_strided_slice %682 {offsets = [0, 96], sizes = [2, 32], strides = [1, 1]} : vector<2x128xf32> to vector<2x32xf32>
    %695 = math.tanh %694 : vector<2x32xf32>
    %696 = vector.extract_strided_slice %685 {offsets = [0, 0], sizes = [2, 96], strides = [1, 1]} : vector<2x128xf32> to vector<2x96xf32>
    %cst_237 = arith.constant 5.000000e-01 : f32
    %697 = vector.broadcast %cst_237 : f32 to vector<2x96xf32>
    %698 = arith.mulf %697, %696 : vector<2x96xf32>
    %699 = math.tanh %698 : vector<2x96xf32>
    %cst_238 = arith.constant 5.000000e-01 : f32
    %700 = vector.broadcast %cst_238 : f32 to vector<2x96xf32>
    %701 = arith.mulf %700, %699 : vector<2x96xf32>
    %cst_239 = arith.constant 5.000000e-01 : f32
    %702 = vector.broadcast %cst_239 : f32 to vector<2x96xf32>
    %703 = arith.addf %701, %702 : vector<2x96xf32>
    %704 = vector.extract_strided_slice %685 {offsets = [0, 96], sizes = [2, 32], strides = [1, 1]} : vector<2x128xf32> to vector<2x32xf32>
    %705 = math.tanh %704 : vector<2x32xf32>
    %706 = vector.extract_strided_slice %693 {offsets = [0, 32], sizes = [2, 32], strides = [1, 1]} : vector<2x96xf32> to vector<2x32xf32>
    %707 = arith.mulf %706, %667 : vector<2x32xf32>
    %708 = vector.extract_strided_slice %693 {offsets = [0, 0], sizes = [2, 32], strides = [1, 1]} : vector<2x96xf32> to vector<2x32xf32>
    %709 = arith.mulf %708, %695 : vector<2x32xf32>
    %710 = arith.addf %707, %709 : vector<2x32xf32>
    %711 = vector.extract_strided_slice %703 {offsets = [0, 32], sizes = [2, 32], strides = [1, 1]} : vector<2x96xf32> to vector<2x32xf32>
    %712 = arith.mulf %711, %673 : vector<2x32xf32>
    %713 = vector.extract_strided_slice %703 {offsets = [0, 0], sizes = [2, 32], strides = [1, 1]} : vector<2x96xf32> to vector<2x32xf32>
    %714 = arith.mulf %713, %705 : vector<2x32xf32>
    %715 = arith.addf %712, %714 : vector<2x32xf32>
    %716 = vector.extract_strided_slice %693 {offsets = [0, 64], sizes = [2, 32], strides = [1, 1]} : vector<2x96xf32> to vector<2x32xf32>
    %717 = math.tanh %710 : vector<2x32xf32>
    %718 = arith.mulf %716, %717 : vector<2x32xf32>
    %719 = vector.extract_strided_slice %703 {offsets = [0, 64], sizes = [2, 32], strides = [1, 1]} : vector<2x96xf32> to vector<2x32xf32>
    %720 = math.tanh %715 : vector<2x32xf32>
    %721 = arith.mulf %719, %720 : vector<2x32xf32>
    %722 = vector.shape_cast %4 : vector<2x1xi1> to vector<2x1xi1>
    %723 = vector.broadcast %722 : vector<2x1xi1> to vector<2x32xi1>
    %724 = arith.select %723, %718, %664 : vector<2x32xi1>, vector<2x32xf32>
    %725 = vector.shape_cast %4 : vector<2x1xi1> to vector<2x1xi1>
    %726 = vector.broadcast %725 : vector<2x1xi1> to vector<2x32xi1>
    %727 = arith.select %726, %710, %667 : vector<2x32xi1>, vector<2x32xf32>
    %728 = vector.shape_cast %14 : vector<2x1xi1> to vector<2x1xi1>
    %729 = vector.broadcast %728 : vector<2x1xi1> to vector<2x32xi1>
    %730 = arith.select %729, %721, %670 : vector<2x32xi1>, vector<2x32xf32>
    %731 = vector.shape_cast %14 : vector<2x1xi1> to vector<2x1xi1>
    %732 = vector.broadcast %731 : vector<2x1xi1> to vector<2x32xi1>
    %733 = arith.select %732, %715, %673 : vector<2x32xi1>, vector<2x32xf32>
    %c1_240 = arith.constant 1 : index
    %c0_241 = arith.constant 0 : index
    %c0_242 = arith.constant 0 : index
    %734 = vector.load %arg10[%c1_240, %c0_241, %c0_242] : memref<8x2x32xf32, #tpu.memory_space<vmem>>, vector<1x2x32xf32>
    %735 = vector.shape_cast %734 : vector<1x2x32xf32> to vector<2x32xf32>
    %736 = vector.shape_cast %724 : vector<2x32xf32> to vector<1x2x32xf32>
    tpu.vector_store %arg10[%c1_240, %c0_241, %c0_242], %736 {strides = array<i32>} : memref<8x2x32xf32, #tpu.memory_space<vmem>>, vector<1x2x32xf32>,
    %c6_243 = arith.constant 6 : index
    %c0_244 = arith.constant 0 : index
    %c0_245 = arith.constant 0 : index
    %737 = vector.load %arg11[%c6_243, %c0_244, %c0_245] : memref<8x2x32xf32, #tpu.memory_space<vmem>>, vector<1x2x32xf32>
    %738 = vector.shape_cast %737 : vector<1x2x32xf32> to vector<2x32xf32>
    %739 = vector.shape_cast %730 : vector<2x32xf32> to vector<1x2x32xf32>
    tpu.vector_store %arg11[%c6_243, %c0_244, %c0_245], %739 {strides = array<i32>} : memref<8x2x32xf32, #tpu.memory_space<vmem>>, vector<1x2x32xf32>,
    %740 = vector.extract_strided_slice %579 {offsets = [0, 0], sizes = [2, 128], strides = [1, 1]} : vector<2x256xf32> to vector<2x128xf32>
    %cst_246 = arith.constant dense<0.000000e+00> : vector<2x128xf32>
    %741 = tpu.matmul %724, %553, %cst_246 {dimension_numbers = #tpu.dot_dimension_numbers<[1], [0], [0], [1], [0, 0, 1, 1], [], []>} : vector<2x32xf32>, vector<32x128xf32>, vector<2x128xf32> -> vector<2x128xf32>
    %742 = arith.addf %740, %741 : vector<2x128xf32>
    %743 = vector.extract_strided_slice %603 {offsets = [0, 128], sizes = [2, 128], strides = [1, 1]} : vector<2x256xf32> to vector<2x128xf32>
    %cst_247 = arith.constant dense<0.000000e+00> : vector<2x128xf32>
    %744 = tpu.matmul %730, %555, %cst_247 {dimension_numbers = #tpu.dot_dimension_numbers<[1], [0], [0], [1], [0, 0, 1, 1], [], []>} : vector<2x32xf32>, vector<32x128xf32>, vector<2x128xf32> -> vector<2x128xf32>
    %745 = arith.addf %743, %744 : vector<2x128xf32>
    %746 = vector.extract_strided_slice %742 {offsets = [0, 0], sizes = [2, 96], strides = [1, 1]} : vector<2x128xf32> to vector<2x96xf32>
    %cst_248 = arith.constant 5.000000e-01 : f32
    %747 = vector.broadcast %cst_248 : f32 to vector<2x96xf32>
    %748 = arith.mulf %747, %746 : vector<2x96xf32>
    %749 = math.tanh %748 : vector<2x96xf32>
    %cst_249 = arith.constant 5.000000e-01 : f32
    %750 = vector.broadcast %cst_249 : f32 to vector<2x96xf32>
    %751 = arith.mulf %750, %749 : vector<2x96xf32>
    %cst_250 = arith.constant 5.000000e-01 : f32
    %752 = vector.broadcast %cst_250 : f32 to vector<2x96xf32>
    %753 = arith.addf %751, %752 : vector<2x96xf32>
    %754 = vector.extract_strided_slice %742 {offsets = [0, 96], sizes = [2, 32], strides = [1, 1]} : vector<2x128xf32> to vector<2x32xf32>
    %755 = math.tanh %754 : vector<2x32xf32>
    %756 = vector.extract_strided_slice %745 {offsets = [0, 0], sizes = [2, 96], strides = [1, 1]} : vector<2x128xf32> to vector<2x96xf32>
    %cst_251 = arith.constant 5.000000e-01 : f32
    %757 = vector.broadcast %cst_251 : f32 to vector<2x96xf32>
    %758 = arith.mulf %757, %756 : vector<2x96xf32>
    %759 = math.tanh %758 : vector<2x96xf32>
    %cst_252 = arith.constant 5.000000e-01 : f32
    %760 = vector.broadcast %cst_252 : f32 to vector<2x96xf32>
    %761 = arith.mulf %760, %759 : vector<2x96xf32>
    %cst_253 = arith.constant 5.000000e-01 : f32
    %762 = vector.broadcast %cst_253 : f32 to vector<2x96xf32>
    %763 = arith.addf %761, %762 : vector<2x96xf32>
    %764 = vector.extract_strided_slice %745 {offsets = [0, 96], sizes = [2, 32], strides = [1, 1]} : vector<2x128xf32> to vector<2x32xf32>
    %765 = math.tanh %764 : vector<2x32xf32>
    %766 = vector.extract_strided_slice %753 {offsets = [0, 32], sizes = [2, 32], strides = [1, 1]} : vector<2x96xf32> to vector<2x32xf32>
    %767 = arith.mulf %766, %727 : vector<2x32xf32>
    %768 = vector.extract_strided_slice %753 {offsets = [0, 0], sizes = [2, 32], strides = [1, 1]} : vector<2x96xf32> to vector<2x32xf32>
    %769 = arith.mulf %768, %755 : vector<2x32xf32>
    %770 = arith.addf %767, %769 : vector<2x32xf32>
    %771 = vector.extract_strided_slice %763 {offsets = [0, 32], sizes = [2, 32], strides = [1, 1]} : vector<2x96xf32> to vector<2x32xf32>
    %772 = arith.mulf %771, %733 : vector<2x32xf32>
    %773 = vector.extract_strided_slice %763 {offsets = [0, 0], sizes = [2, 32], strides = [1, 1]} : vector<2x96xf32> to vector<2x32xf32>
    %774 = arith.mulf %773, %765 : vector<2x32xf32>
    %775 = arith.addf %772, %774 : vector<2x32xf32>
    %776 = vector.extract_strided_slice %753 {offsets = [0, 64], sizes = [2, 32], strides = [1, 1]} : vector<2x96xf32> to vector<2x32xf32>
    %777 = math.tanh %770 : vector<2x32xf32>
    %778 = arith.mulf %776, %777 : vector<2x32xf32>
    %779 = vector.extract_strided_slice %763 {offsets = [0, 64], sizes = [2, 32], strides = [1, 1]} : vector<2x96xf32> to vector<2x32xf32>
    %780 = math.tanh %775 : vector<2x32xf32>
    %781 = arith.mulf %779, %780 : vector<2x32xf32>
    %782 = vector.shape_cast %6 : vector<2x1xi1> to vector<2x1xi1>
    %783 = vector.broadcast %782 : vector<2x1xi1> to vector<2x32xi1>
    %784 = arith.select %783, %778, %724 : vector<2x32xi1>, vector<2x32xf32>
    %785 = vector.shape_cast %6 : vector<2x1xi1> to vector<2x1xi1>
    %786 = vector.broadcast %785 : vector<2x1xi1> to vector<2x32xi1>
    %787 = arith.select %786, %770, %727 : vector<2x32xi1>, vector<2x32xf32>
    %788 = vector.shape_cast %12 : vector<2x1xi1> to vector<2x1xi1>
    %789 = vector.broadcast %788 : vector<2x1xi1> to vector<2x32xi1>
    %790 = arith.select %789, %781, %730 : vector<2x32xi1>, vector<2x32xf32>
    %791 = vector.shape_cast %12 : vector<2x1xi1> to vector<2x1xi1>
    %792 = vector.broadcast %791 : vector<2x1xi1> to vector<2x32xi1>
    %793 = arith.select %792, %775, %733 : vector<2x32xi1>, vector<2x32xf32>
    %c2_254 = arith.constant 2 : index
    %c0_255 = arith.constant 0 : index
    %c0_256 = arith.constant 0 : index
    %794 = vector.load %arg10[%c2_254, %c0_255, %c0_256] : memref<8x2x32xf32, #tpu.memory_space<vmem>>, vector<1x2x32xf32>
    %795 = vector.shape_cast %794 : vector<1x2x32xf32> to vector<2x32xf32>
    %796 = vector.shape_cast %784 : vector<2x32xf32> to vector<1x2x32xf32>
    tpu.vector_store %arg10[%c2_254, %c0_255, %c0_256], %796 {strides = array<i32>} : memref<8x2x32xf32, #tpu.memory_space<vmem>>, vector<1x2x32xf32>,
    %c5_257 = arith.constant 5 : index
    %c0_258 = arith.constant 0 : index
    %c0_259 = arith.constant 0 : index
    %797 = vector.load %arg11[%c5_257, %c0_258, %c0_259] : memref<8x2x32xf32, #tpu.memory_space<vmem>>, vector<1x2x32xf32>
    %798 = vector.shape_cast %797 : vector<1x2x32xf32> to vector<2x32xf32>
    %799 = vector.shape_cast %790 : vector<2x32xf32> to vector<1x2x32xf32>
    tpu.vector_store %arg11[%c5_257, %c0_258, %c0_259], %799 {strides = array<i32>} : memref<8x2x32xf32, #tpu.memory_space<vmem>>, vector<1x2x32xf32>,
    %800 = vector.extract_strided_slice %587 {offsets = [0, 0], sizes = [2, 128], strides = [1, 1]} : vector<2x256xf32> to vector<2x128xf32>
    %cst_260 = arith.constant dense<0.000000e+00> : vector<2x128xf32>
    %801 = tpu.matmul %784, %553, %cst_260 {dimension_numbers = #tpu.dot_dimension_numbers<[1], [0], [0], [1], [0, 0, 1, 1], [], []>} : vector<2x32xf32>, vector<32x128xf32>, vector<2x128xf32> -> vector<2x128xf32>
    %802 = arith.addf %800, %801 : vector<2x128xf32>
    %803 = vector.extract_strided_slice %595 {offsets = [0, 128], sizes = [2, 128], strides = [1, 1]} : vector<2x256xf32> to vector<2x128xf32>
    %cst_261 = arith.constant dense<0.000000e+00> : vector<2x128xf32>
    %804 = tpu.matmul %790, %555, %cst_261 {dimension_numbers = #tpu.dot_dimension_numbers<[1], [0], [0], [1], [0, 0, 1, 1], [], []>} : vector<2x32xf32>, vector<32x128xf32>, vector<2x128xf32> -> vector<2x128xf32>
    %805 = arith.addf %803, %804 : vector<2x128xf32>
    %806 = vector.extract_strided_slice %802 {offsets = [0, 0], sizes = [2, 96], strides = [1, 1]} : vector<2x128xf32> to vector<2x96xf32>
    %cst_262 = arith.constant 5.000000e-01 : f32
    %807 = vector.broadcast %cst_262 : f32 to vector<2x96xf32>
    %808 = arith.mulf %807, %806 : vector<2x96xf32>
    %809 = math.tanh %808 : vector<2x96xf32>
    %cst_263 = arith.constant 5.000000e-01 : f32
    %810 = vector.broadcast %cst_263 : f32 to vector<2x96xf32>
    %811 = arith.mulf %810, %809 : vector<2x96xf32>
    %cst_264 = arith.constant 5.000000e-01 : f32
    %812 = vector.broadcast %cst_264 : f32 to vector<2x96xf32>
    %813 = arith.addf %811, %812 : vector<2x96xf32>
    %814 = vector.extract_strided_slice %802 {offsets = [0, 96], sizes = [2, 32], strides = [1, 1]} : vector<2x128xf32> to vector<2x32xf32>
    %815 = math.tanh %814 : vector<2x32xf32>
    %816 = vector.extract_strided_slice %805 {offsets = [0, 0], sizes = [2, 96], strides = [1, 1]} : vector<2x128xf32> to vector<2x96xf32>
    %cst_265 = arith.constant 5.000000e-01 : f32
    %817 = vector.broadcast %cst_265 : f32 to vector<2x96xf32>
    %818 = arith.mulf %817, %816 : vector<2x96xf32>
    %819 = math.tanh %818 : vector<2x96xf32>
    %cst_266 = arith.constant 5.000000e-01 : f32
    %820 = vector.broadcast %cst_266 : f32 to vector<2x96xf32>
    %821 = arith.mulf %820, %819 : vector<2x96xf32>
    %cst_267 = arith.constant 5.000000e-01 : f32
    %822 = vector.broadcast %cst_267 : f32 to vector<2x96xf32>
    %823 = arith.addf %821, %822 : vector<2x96xf32>
    %824 = vector.extract_strided_slice %805 {offsets = [0, 96], sizes = [2, 32], strides = [1, 1]} : vector<2x128xf32> to vector<2x32xf32>
    %825 = math.tanh %824 : vector<2x32xf32>
    %826 = vector.extract_strided_slice %813 {offsets = [0, 32], sizes = [2, 32], strides = [1, 1]} : vector<2x96xf32> to vector<2x32xf32>
    %827 = arith.mulf %826, %787 : vector<2x32xf32>
    %828 = vector.extract_strided_slice %813 {offsets = [0, 0], sizes = [2, 32], strides = [1, 1]} : vector<2x96xf32> to vector<2x32xf32>
    %829 = arith.mulf %828, %815 : vector<2x32xf32>
    %830 = arith.addf %827, %829 : vector<2x32xf32>
    %831 = vector.extract_strided_slice %823 {offsets = [0, 32], sizes = [2, 32], strides = [1, 1]} : vector<2x96xf32> to vector<2x32xf32>
    %832 = arith.mulf %831, %793 : vector<2x32xf32>
    %833 = vector.extract_strided_slice %823 {offsets = [0, 0], sizes = [2, 32], strides = [1, 1]} : vector<2x96xf32> to vector<2x32xf32>
    %834 = arith.mulf %833, %825 : vector<2x32xf32>
    %835 = arith.addf %832, %834 : vector<2x32xf32>
    %836 = vector.extract_strided_slice %813 {offsets = [0, 64], sizes = [2, 32], strides = [1, 1]} : vector<2x96xf32> to vector<2x32xf32>
    %837 = math.tanh %830 : vector<2x32xf32>
    %838 = arith.mulf %836, %837 : vector<2x32xf32>
    %839 = vector.extract_strided_slice %823 {offsets = [0, 64], sizes = [2, 32], strides = [1, 1]} : vector<2x96xf32> to vector<2x32xf32>
    %840 = math.tanh %835 : vector<2x32xf32>
    %841 = arith.mulf %839, %840 : vector<2x32xf32>
    %842 = vector.shape_cast %8 : vector<2x1xi1> to vector<2x1xi1>
    %843 = vector.broadcast %842 : vector<2x1xi1> to vector<2x32xi1>
    %844 = arith.select %843, %838, %784 : vector<2x32xi1>, vector<2x32xf32>
    %845 = vector.shape_cast %8 : vector<2x1xi1> to vector<2x1xi1>
    %846 = vector.broadcast %845 : vector<2x1xi1> to vector<2x32xi1>
    %847 = arith.select %846, %830, %787 : vector<2x32xi1>, vector<2x32xf32>
    %848 = vector.shape_cast %10 : vector<2x1xi1> to vector<2x1xi1>
    %849 = vector.broadcast %848 : vector<2x1xi1> to vector<2x32xi1>
    %850 = arith.select %849, %841, %790 : vector<2x32xi1>, vector<2x32xf32>
    %851 = vector.shape_cast %10 : vector<2x1xi1> to vector<2x1xi1>
    %852 = vector.broadcast %851 : vector<2x1xi1> to vector<2x32xi1>
    %853 = arith.select %852, %835, %793 : vector<2x32xi1>, vector<2x32xf32>
    %c3_268 = arith.constant 3 : index
    %c0_269 = arith.constant 0 : index
    %c0_270 = arith.constant 0 : index
    %854 = vector.load %arg10[%c3_268, %c0_269, %c0_270] : memref<8x2x32xf32, #tpu.memory_space<vmem>>, vector<1x2x32xf32>
    %855 = vector.shape_cast %854 : vector<1x2x32xf32> to vector<2x32xf32>
    %856 = vector.shape_cast %844 : vector<2x32xf32> to vector<1x2x32xf32>
    tpu.vector_store %arg10[%c3_268, %c0_269, %c0_270], %856 {strides = array<i32>} : memref<8x2x32xf32, #tpu.memory_space<vmem>>, vector<1x2x32xf32>,
    %c4_271 = arith.constant 4 : index
    %c0_272 = arith.constant 0 : index
    %c0_273 = arith.constant 0 : index
    %857 = vector.load %arg11[%c4_271, %c0_272, %c0_273] : memref<8x2x32xf32, #tpu.memory_space<vmem>>, vector<1x2x32xf32>
    %858 = vector.shape_cast %857 : vector<1x2x32xf32> to vector<2x32xf32>
    %859 = vector.shape_cast %850 : vector<2x32xf32> to vector<1x2x32xf32>
    tpu.vector_store %arg11[%c4_271, %c0_272, %c0_273], %859 {strides = array<i32>} : memref<8x2x32xf32, #tpu.memory_space<vmem>>, vector<1x2x32xf32>,
    %860 = vector.extract_strided_slice %595 {offsets = [0, 0], sizes = [2, 128], strides = [1, 1]} : vector<2x256xf32> to vector<2x128xf32>
    %cst_274 = arith.constant dense<0.000000e+00> : vector<2x128xf32>
    %861 = tpu.matmul %844, %553, %cst_274 {dimension_numbers = #tpu.dot_dimension_numbers<[1], [0], [0], [1], [0, 0, 1, 1], [], []>} : vector<2x32xf32>, vector<32x128xf32>, vector<2x128xf32> -> vector<2x128xf32>
    %862 = arith.addf %860, %861 : vector<2x128xf32>
    %863 = vector.extract_strided_slice %587 {offsets = [0, 128], sizes = [2, 128], strides = [1, 1]} : vector<2x256xf32> to vector<2x128xf32>
    %cst_275 = arith.constant dense<0.000000e+00> : vector<2x128xf32>
    %864 = tpu.matmul %850, %555, %cst_275 {dimension_numbers = #tpu.dot_dimension_numbers<[1], [0], [0], [1], [0, 0, 1, 1], [], []>} : vector<2x32xf32>, vector<32x128xf32>, vector<2x128xf32> -> vector<2x128xf32>
    %865 = arith.addf %863, %864 : vector<2x128xf32>
    %866 = vector.extract_strided_slice %862 {offsets = [0, 0], sizes = [2, 96], strides = [1, 1]} : vector<2x128xf32> to vector<2x96xf32>
    %cst_276 = arith.constant 5.000000e-01 : f32
    %867 = vector.broadcast %cst_276 : f32 to vector<2x96xf32>
    %868 = arith.mulf %867, %866 : vector<2x96xf32>
    %869 = math.tanh %868 : vector<2x96xf32>
    %cst_277 = arith.constant 5.000000e-01 : f32
    %870 = vector.broadcast %cst_277 : f32 to vector<2x96xf32>
    %871 = arith.mulf %870, %869 : vector<2x96xf32>
    %cst_278 = arith.constant 5.000000e-01 : f32
    %872 = vector.broadcast %cst_278 : f32 to vector<2x96xf32>
    %873 = arith.addf %871, %872 : vector<2x96xf32>
    %874 = vector.extract_strided_slice %862 {offsets = [0, 96], sizes = [2, 32], strides = [1, 1]} : vector<2x128xf32> to vector<2x32xf32>
    %875 = math.tanh %874 : vector<2x32xf32>
    %876 = vector.extract_strided_slice %865 {offsets = [0, 0], sizes = [2, 96], strides = [1, 1]} : vector<2x128xf32> to vector<2x96xf32>
    %cst_279 = arith.constant 5.000000e-01 : f32
    %877 = vector.broadcast %cst_279 : f32 to vector<2x96xf32>
    %878 = arith.mulf %877, %876 : vector<2x96xf32>
    %879 = math.tanh %878 : vector<2x96xf32>
    %cst_280 = arith.constant 5.000000e-01 : f32
    %880 = vector.broadcast %cst_280 : f32 to vector<2x96xf32>
    %881 = arith.mulf %880, %879 : vector<2x96xf32>
    %cst_281 = arith.constant 5.000000e-01 : f32
    %882 = vector.broadcast %cst_281 : f32 to vector<2x96xf32>
    %883 = arith.addf %881, %882 : vector<2x96xf32>
    %884 = vector.extract_strided_slice %865 {offsets = [0, 96], sizes = [2, 32], strides = [1, 1]} : vector<2x128xf32> to vector<2x32xf32>
    %885 = math.tanh %884 : vector<2x32xf32>
    %886 = vector.extract_strided_slice %873 {offsets = [0, 32], sizes = [2, 32], strides = [1, 1]} : vector<2x96xf32> to vector<2x32xf32>
    %887 = arith.mulf %886, %847 : vector<2x32xf32>
    %888 = vector.extract_strided_slice %873 {offsets = [0, 0], sizes = [2, 32], strides = [1, 1]} : vector<2x96xf32> to vector<2x32xf32>
    %889 = arith.mulf %888, %875 : vector<2x32xf32>
    %890 = arith.addf %887, %889 : vector<2x32xf32>
    %891 = vector.extract_strided_slice %883 {offsets = [0, 32], sizes = [2, 32], strides = [1, 1]} : vector<2x96xf32> to vector<2x32xf32>
    %892 = arith.mulf %891, %853 : vector<2x32xf32>
    %893 = vector.extract_strided_slice %883 {offsets = [0, 0], sizes = [2, 32], strides = [1, 1]} : vector<2x96xf32> to vector<2x32xf32>
    %894 = arith.mulf %893, %885 : vector<2x32xf32>
    %895 = arith.addf %892, %894 : vector<2x32xf32>
    %896 = vector.extract_strided_slice %873 {offsets = [0, 64], sizes = [2, 32], strides = [1, 1]} : vector<2x96xf32> to vector<2x32xf32>
    %897 = math.tanh %890 : vector<2x32xf32>
    %898 = arith.mulf %896, %897 : vector<2x32xf32>
    %899 = vector.extract_strided_slice %883 {offsets = [0, 64], sizes = [2, 32], strides = [1, 1]} : vector<2x96xf32> to vector<2x32xf32>
    %900 = math.tanh %895 : vector<2x32xf32>
    %901 = arith.mulf %899, %900 : vector<2x32xf32>
    %902 = vector.shape_cast %10 : vector<2x1xi1> to vector<2x1xi1>
    %903 = vector.broadcast %902 : vector<2x1xi1> to vector<2x32xi1>
    %904 = arith.select %903, %898, %844 : vector<2x32xi1>, vector<2x32xf32>
    %905 = vector.shape_cast %10 : vector<2x1xi1> to vector<2x1xi1>
    %906 = vector.broadcast %905 : vector<2x1xi1> to vector<2x32xi1>
    %907 = arith.select %906, %890, %847 : vector<2x32xi1>, vector<2x32xf32>
    %908 = vector.shape_cast %8 : vector<2x1xi1> to vector<2x1xi1>
    %909 = vector.broadcast %908 : vector<2x1xi1> to vector<2x32xi1>
    %910 = arith.select %909, %901, %850 : vector<2x32xi1>, vector<2x32xf32>
    %911 = vector.shape_cast %8 : vector<2x1xi1> to vector<2x1xi1>
    %912 = vector.broadcast %911 : vector<2x1xi1> to vector<2x32xi1>
    %913 = arith.select %912, %895, %853 : vector<2x32xi1>, vector<2x32xf32>
    %c4_282 = arith.constant 4 : index
    %c0_283 = arith.constant 0 : index
    %c0_284 = arith.constant 0 : index
    %914 = vector.load %arg10[%c4_282, %c0_283, %c0_284] : memref<8x2x32xf32, #tpu.memory_space<vmem>>, vector<1x2x32xf32>
    %915 = vector.shape_cast %914 : vector<1x2x32xf32> to vector<2x32xf32>
    %916 = vector.shape_cast %904 : vector<2x32xf32> to vector<1x2x32xf32>
    tpu.vector_store %arg10[%c4_282, %c0_283, %c0_284], %916 {strides = array<i32>} : memref<8x2x32xf32, #tpu.memory_space<vmem>>, vector<1x2x32xf32>,
    %c3_285 = arith.constant 3 : index
    %c0_286 = arith.constant 0 : index
    %c0_287 = arith.constant 0 : index
    %917 = vector.load %arg11[%c3_285, %c0_286, %c0_287] : memref<8x2x32xf32, #tpu.memory_space<vmem>>, vector<1x2x32xf32>
    %918 = vector.shape_cast %917 : vector<1x2x32xf32> to vector<2x32xf32>
    %919 = vector.shape_cast %910 : vector<2x32xf32> to vector<1x2x32xf32>
    tpu.vector_store %arg11[%c3_285, %c0_286, %c0_287], %919 {strides = array<i32>} : memref<8x2x32xf32, #tpu.memory_space<vmem>>, vector<1x2x32xf32>,
    %920 = vector.extract_strided_slice %603 {offsets = [0, 0], sizes = [2, 128], strides = [1, 1]} : vector<2x256xf32> to vector<2x128xf32>
    %cst_288 = arith.constant dense<0.000000e+00> : vector<2x128xf32>
    %921 = tpu.matmul %904, %553, %cst_288 {dimension_numbers = #tpu.dot_dimension_numbers<[1], [0], [0], [1], [0, 0, 1, 1], [], []>} : vector<2x32xf32>, vector<32x128xf32>, vector<2x128xf32> -> vector<2x128xf32>
    %922 = arith.addf %920, %921 : vector<2x128xf32>
    %923 = vector.extract_strided_slice %579 {offsets = [0, 128], sizes = [2, 128], strides = [1, 1]} : vector<2x256xf32> to vector<2x128xf32>
    %cst_289 = arith.constant dense<0.000000e+00> : vector<2x128xf32>
    %924 = tpu.matmul %910, %555, %cst_289 {dimension_numbers = #tpu.dot_dimension_numbers<[1], [0], [0], [1], [0, 0, 1, 1], [], []>} : vector<2x32xf32>, vector<32x128xf32>, vector<2x128xf32> -> vector<2x128xf32>
    %925 = arith.addf %923, %924 : vector<2x128xf32>
    %926 = vector.extract_strided_slice %922 {offsets = [0, 0], sizes = [2, 96], strides = [1, 1]} : vector<2x128xf32> to vector<2x96xf32>
    %cst_290 = arith.constant 5.000000e-01 : f32
    %927 = vector.broadcast %cst_290 : f32 to vector<2x96xf32>
    %928 = arith.mulf %927, %926 : vector<2x96xf32>
    %929 = math.tanh %928 : vector<2x96xf32>
    %cst_291 = arith.constant 5.000000e-01 : f32
    %930 = vector.broadcast %cst_291 : f32 to vector<2x96xf32>
    %931 = arith.mulf %930, %929 : vector<2x96xf32>
    %cst_292 = arith.constant 5.000000e-01 : f32
    %932 = vector.broadcast %cst_292 : f32 to vector<2x96xf32>
    %933 = arith.addf %931, %932 : vector<2x96xf32>
    %934 = vector.extract_strided_slice %922 {offsets = [0, 96], sizes = [2, 32], strides = [1, 1]} : vector<2x128xf32> to vector<2x32xf32>
    %935 = math.tanh %934 : vector<2x32xf32>
    %936 = vector.extract_strided_slice %925 {offsets = [0, 0], sizes = [2, 96], strides = [1, 1]} : vector<2x128xf32> to vector<2x96xf32>
    %cst_293 = arith.constant 5.000000e-01 : f32
    %937 = vector.broadcast %cst_293 : f32 to vector<2x96xf32>
    %938 = arith.mulf %937, %936 : vector<2x96xf32>
    %939 = math.tanh %938 : vector<2x96xf32>
    %cst_294 = arith.constant 5.000000e-01 : f32
    %940 = vector.broadcast %cst_294 : f32 to vector<2x96xf32>
    %941 = arith.mulf %940, %939 : vector<2x96xf32>
    %cst_295 = arith.constant 5.000000e-01 : f32
    %942 = vector.broadcast %cst_295 : f32 to vector<2x96xf32>
    %943 = arith.addf %941, %942 : vector<2x96xf32>
    %944 = vector.extract_strided_slice %925 {offsets = [0, 96], sizes = [2, 32], strides = [1, 1]} : vector<2x128xf32> to vector<2x32xf32>
    %945 = math.tanh %944 : vector<2x32xf32>
    %946 = vector.extract_strided_slice %933 {offsets = [0, 32], sizes = [2, 32], strides = [1, 1]} : vector<2x96xf32> to vector<2x32xf32>
    %947 = arith.mulf %946, %907 : vector<2x32xf32>
    %948 = vector.extract_strided_slice %933 {offsets = [0, 0], sizes = [2, 32], strides = [1, 1]} : vector<2x96xf32> to vector<2x32xf32>
    %949 = arith.mulf %948, %935 : vector<2x32xf32>
    %950 = arith.addf %947, %949 : vector<2x32xf32>
    %951 = vector.extract_strided_slice %943 {offsets = [0, 32], sizes = [2, 32], strides = [1, 1]} : vector<2x96xf32> to vector<2x32xf32>
    %952 = arith.mulf %951, %913 : vector<2x32xf32>
    %953 = vector.extract_strided_slice %943 {offsets = [0, 0], sizes = [2, 32], strides = [1, 1]} : vector<2x96xf32> to vector<2x32xf32>
    %954 = arith.mulf %953, %945 : vector<2x32xf32>
    %955 = arith.addf %952, %954 : vector<2x32xf32>
    %956 = vector.extract_strided_slice %933 {offsets = [0, 64], sizes = [2, 32], strides = [1, 1]} : vector<2x96xf32> to vector<2x32xf32>
    %957 = math.tanh %950 : vector<2x32xf32>
    %958 = arith.mulf %956, %957 : vector<2x32xf32>
    %959 = vector.extract_strided_slice %943 {offsets = [0, 64], sizes = [2, 32], strides = [1, 1]} : vector<2x96xf32> to vector<2x32xf32>
    %960 = math.tanh %955 : vector<2x32xf32>
    %961 = arith.mulf %959, %960 : vector<2x32xf32>
    %962 = vector.shape_cast %12 : vector<2x1xi1> to vector<2x1xi1>
    %963 = vector.broadcast %962 : vector<2x1xi1> to vector<2x32xi1>
    %964 = arith.select %963, %958, %904 : vector<2x32xi1>, vector<2x32xf32>
    %965 = vector.shape_cast %12 : vector<2x1xi1> to vector<2x1xi1>
    %966 = vector.broadcast %965 : vector<2x1xi1> to vector<2x32xi1>
    %967 = arith.select %966, %950, %907 : vector<2x32xi1>, vector<2x32xf32>
    %968 = vector.shape_cast %6 : vector<2x1xi1> to vector<2x1xi1>
    %969 = vector.broadcast %968 : vector<2x1xi1> to vector<2x32xi1>
    %970 = arith.select %969, %961, %910 : vector<2x32xi1>, vector<2x32xf32>
    %971 = vector.shape_cast %6 : vector<2x1xi1> to vector<2x1xi1>
    %972 = vector.broadcast %971 : vector<2x1xi1> to vector<2x32xi1>
    %973 = arith.select %972, %955, %913 : vector<2x32xi1>, vector<2x32xf32>
    %c5_296 = arith.constant 5 : index
    %c0_297 = arith.constant 0 : index
    %c0_298 = arith.constant 0 : index
    %974 = vector.load %arg10[%c5_296, %c0_297, %c0_298] : memref<8x2x32xf32, #tpu.memory_space<vmem>>, vector<1x2x32xf32>
    %975 = vector.shape_cast %974 : vector<1x2x32xf32> to vector<2x32xf32>
    %976 = vector.shape_cast %964 : vector<2x32xf32> to vector<1x2x32xf32>
    tpu.vector_store %arg10[%c5_296, %c0_297, %c0_298], %976 {strides = array<i32>} : memref<8x2x32xf32, #tpu.memory_space<vmem>>, vector<1x2x32xf32>,
    %c2_299 = arith.constant 2 : index
    %c0_300 = arith.constant 0 : index
    %c0_301 = arith.constant 0 : index
    %977 = vector.load %arg11[%c2_299, %c0_300, %c0_301] : memref<8x2x32xf32, #tpu.memory_space<vmem>>, vector<1x2x32xf32>
    %978 = vector.shape_cast %977 : vector<1x2x32xf32> to vector<2x32xf32>
    %979 = vector.shape_cast %970 : vector<2x32xf32> to vector<1x2x32xf32>
    tpu.vector_store %arg11[%c2_299, %c0_300, %c0_301], %979 {strides = array<i32>} : memref<8x2x32xf32, #tpu.memory_space<vmem>>, vector<1x2x32xf32>,
    %980 = vector.extract_strided_slice %611 {offsets = [0, 0], sizes = [2, 128], strides = [1, 1]} : vector<2x256xf32> to vector<2x128xf32>
    %cst_302 = arith.constant dense<0.000000e+00> : vector<2x128xf32>
    %981 = tpu.matmul %964, %553, %cst_302 {dimension_numbers = #tpu.dot_dimension_numbers<[1], [0], [0], [1], [0, 0, 1, 1], [], []>} : vector<2x32xf32>, vector<32x128xf32>, vector<2x128xf32> -> vector<2x128xf32>
    %982 = arith.addf %980, %981 : vector<2x128xf32>
    %983 = vector.extract_strided_slice %571 {offsets = [0, 128], sizes = [2, 128], strides = [1, 1]} : vector<2x256xf32> to vector<2x128xf32>
    %cst_303 = arith.constant dense<0.000000e+00> : vector<2x128xf32>
    %984 = tpu.matmul %970, %555, %cst_303 {dimension_numbers = #tpu.dot_dimension_numbers<[1], [0], [0], [1], [0, 0, 1, 1], [], []>} : vector<2x32xf32>, vector<32x128xf32>, vector<2x128xf32> -> vector<2x128xf32>
    %985 = arith.addf %983, %984 : vector<2x128xf32>
    %986 = vector.extract_strided_slice %982 {offsets = [0, 0], sizes = [2, 96], strides = [1, 1]} : vector<2x128xf32> to vector<2x96xf32>
    %cst_304 = arith.constant 5.000000e-01 : f32
    %987 = vector.broadcast %cst_304 : f32 to vector<2x96xf32>
    %988 = arith.mulf %987, %986 : vector<2x96xf32>
    %989 = math.tanh %988 : vector<2x96xf32>
    %cst_305 = arith.constant 5.000000e-01 : f32
    %990 = vector.broadcast %cst_305 : f32 to vector<2x96xf32>
    %991 = arith.mulf %990, %989 : vector<2x96xf32>
    %cst_306 = arith.constant 5.000000e-01 : f32
    %992 = vector.broadcast %cst_306 : f32 to vector<2x96xf32>
    %993 = arith.addf %991, %992 : vector<2x96xf32>
    %994 = vector.extract_strided_slice %982 {offsets = [0, 96], sizes = [2, 32], strides = [1, 1]} : vector<2x128xf32> to vector<2x32xf32>
    %995 = math.tanh %994 : vector<2x32xf32>
    %996 = vector.extract_strided_slice %985 {offsets = [0, 0], sizes = [2, 96], strides = [1, 1]} : vector<2x128xf32> to vector<2x96xf32>
    %cst_307 = arith.constant 5.000000e-01 : f32
    %997 = vector.broadcast %cst_307 : f32 to vector<2x96xf32>
    %998 = arith.mulf %997, %996 : vector<2x96xf32>
    %999 = math.tanh %998 : vector<2x96xf32>
    %cst_308 = arith.constant 5.000000e-01 : f32
    %1000 = vector.broadcast %cst_308 : f32 to vector<2x96xf32>
    %1001 = arith.mulf %1000, %999 : vector<2x96xf32>
    %cst_309 = arith.constant 5.000000e-01 : f32
    %1002 = vector.broadcast %cst_309 : f32 to vector<2x96xf32>
    %1003 = arith.addf %1001, %1002 : vector<2x96xf32>
    %1004 = vector.extract_strided_slice %985 {offsets = [0, 96], sizes = [2, 32], strides = [1, 1]} : vector<2x128xf32> to vector<2x32xf32>
    %1005 = math.tanh %1004 : vector<2x32xf32>
    %1006 = vector.extract_strided_slice %993 {offsets = [0, 32], sizes = [2, 32], strides = [1, 1]} : vector<2x96xf32> to vector<2x32xf32>
    %1007 = arith.mulf %1006, %967 : vector<2x32xf32>
    %1008 = vector.extract_strided_slice %993 {offsets = [0, 0], sizes = [2, 32], strides = [1, 1]} : vector<2x96xf32> to vector<2x32xf32>
    %1009 = arith.mulf %1008, %995 : vector<2x32xf32>
    %1010 = arith.addf %1007, %1009 : vector<2x32xf32>
    %1011 = vector.extract_strided_slice %1003 {offsets = [0, 32], sizes = [2, 32], strides = [1, 1]} : vector<2x96xf32> to vector<2x32xf32>
    %1012 = arith.mulf %1011, %973 : vector<2x32xf32>
    %1013 = vector.extract_strided_slice %1003 {offsets = [0, 0], sizes = [2, 32], strides = [1, 1]} : vector<2x96xf32> to vector<2x32xf32>
    %1014 = arith.mulf %1013, %1005 : vector<2x32xf32>
    %1015 = arith.addf %1012, %1014 : vector<2x32xf32>
    %1016 = vector.extract_strided_slice %993 {offsets = [0, 64], sizes = [2, 32], strides = [1, 1]} : vector<2x96xf32> to vector<2x32xf32>
    %1017 = math.tanh %1010 : vector<2x32xf32>
    %1018 = arith.mulf %1016, %1017 : vector<2x32xf32>
    %1019 = vector.extract_strided_slice %1003 {offsets = [0, 64], sizes = [2, 32], strides = [1, 1]} : vector<2x96xf32> to vector<2x32xf32>
    %1020 = math.tanh %1015 : vector<2x32xf32>
    %1021 = arith.mulf %1019, %1020 : vector<2x32xf32>
    %1022 = vector.shape_cast %14 : vector<2x1xi1> to vector<2x1xi1>
    %1023 = vector.broadcast %1022 : vector<2x1xi1> to vector<2x32xi1>
    %1024 = arith.select %1023, %1018, %964 : vector<2x32xi1>, vector<2x32xf32>
    %1025 = vector.shape_cast %14 : vector<2x1xi1> to vector<2x1xi1>
    %1026 = vector.broadcast %1025 : vector<2x1xi1> to vector<2x32xi1>
    %1027 = arith.select %1026, %1010, %967 : vector<2x32xi1>, vector<2x32xf32>
    %1028 = vector.shape_cast %4 : vector<2x1xi1> to vector<2x1xi1>
    %1029 = vector.broadcast %1028 : vector<2x1xi1> to vector<2x32xi1>
    %1030 = arith.select %1029, %1021, %970 : vector<2x32xi1>, vector<2x32xf32>
    %1031 = vector.shape_cast %4 : vector<2x1xi1> to vector<2x1xi1>
    %1032 = vector.broadcast %1031 : vector<2x1xi1> to vector<2x32xi1>
    %1033 = arith.select %1032, %1015, %973 : vector<2x32xi1>, vector<2x32xf32>
    %c6_310 = arith.constant 6 : index
    %c0_311 = arith.constant 0 : index
    %c0_312 = arith.constant 0 : index
    %1034 = vector.load %arg10[%c6_310, %c0_311, %c0_312] : memref<8x2x32xf32, #tpu.memory_space<vmem>>, vector<1x2x32xf32>
    %1035 = vector.shape_cast %1034 : vector<1x2x32xf32> to vector<2x32xf32>
    %1036 = vector.shape_cast %1024 : vector<2x32xf32> to vector<1x2x32xf32>
    tpu.vector_store %arg10[%c6_310, %c0_311, %c0_312], %1036 {strides = array<i32>} : memref<8x2x32xf32, #tpu.memory_space<vmem>>, vector<1x2x32xf32>,
    %c1_313 = arith.constant 1 : index
    %c0_314 = arith.constant 0 : index
    %c0_315 = arith.constant 0 : index
    %1037 = vector.load %arg11[%c1_313, %c0_314, %c0_315] : memref<8x2x32xf32, #tpu.memory_space<vmem>>, vector<1x2x32xf32>
    %1038 = vector.shape_cast %1037 : vector<1x2x32xf32> to vector<2x32xf32>
    %1039 = vector.shape_cast %1030 : vector<2x32xf32> to vector<1x2x32xf32>
    tpu.vector_store %arg11[%c1_313, %c0_314, %c0_315], %1039 {strides = array<i32>} : memref<8x2x32xf32, #tpu.memory_space<vmem>>, vector<1x2x32xf32>,
    %1040 = vector.extract_strided_slice %619 {offsets = [0, 0], sizes = [2, 128], strides = [1, 1]} : vector<2x256xf32> to vector<2x128xf32>
    %cst_316 = arith.constant dense<0.000000e+00> : vector<2x128xf32>
    %1041 = tpu.matmul %1024, %553, %cst_316 {dimension_numbers = #tpu.dot_dimension_numbers<[1], [0], [0], [1], [0, 0, 1, 1], [], []>} : vector<2x32xf32>, vector<32x128xf32>, vector<2x128xf32> -> vector<2x128xf32>
    %1042 = arith.addf %1040, %1041 : vector<2x128xf32>
    %1043 = vector.extract_strided_slice %563 {offsets = [0, 128], sizes = [2, 128], strides = [1, 1]} : vector<2x256xf32> to vector<2x128xf32>
    %cst_317 = arith.constant dense<0.000000e+00> : vector<2x128xf32>
    %1044 = tpu.matmul %1030, %555, %cst_317 {dimension_numbers = #tpu.dot_dimension_numbers<[1], [0], [0], [1], [0, 0, 1, 1], [], []>} : vector<2x32xf32>, vector<32x128xf32>, vector<2x128xf32> -> vector<2x128xf32>
    %1045 = arith.addf %1043, %1044 : vector<2x128xf32>
    %1046 = vector.extract_strided_slice %1042 {offsets = [0, 0], sizes = [2, 96], strides = [1, 1]} : vector<2x128xf32> to vector<2x96xf32>
    %cst_318 = arith.constant 5.000000e-01 : f32
    %1047 = vector.broadcast %cst_318 : f32 to vector<2x96xf32>
    %1048 = arith.mulf %1047, %1046 : vector<2x96xf32>
    %1049 = math.tanh %1048 : vector<2x96xf32>
    %cst_319 = arith.constant 5.000000e-01 : f32
    %1050 = vector.broadcast %cst_319 : f32 to vector<2x96xf32>
    %1051 = arith.mulf %1050, %1049 : vector<2x96xf32>
    %cst_320 = arith.constant 5.000000e-01 : f32
    %1052 = vector.broadcast %cst_320 : f32 to vector<2x96xf32>
    %1053 = arith.addf %1051, %1052 : vector<2x96xf32>
    %1054 = vector.extract_strided_slice %1042 {offsets = [0, 96], sizes = [2, 32], strides = [1, 1]} : vector<2x128xf32> to vector<2x32xf32>
    %1055 = math.tanh %1054 : vector<2x32xf32>
    %1056 = vector.extract_strided_slice %1045 {offsets = [0, 0], sizes = [2, 96], strides = [1, 1]} : vector<2x128xf32> to vector<2x96xf32>
    %cst_321 = arith.constant 5.000000e-01 : f32
    %1057 = vector.broadcast %cst_321 : f32 to vector<2x96xf32>
    %1058 = arith.mulf %1057, %1056 : vector<2x96xf32>
    %1059 = math.tanh %1058 : vector<2x96xf32>
    %cst_322 = arith.constant 5.000000e-01 : f32
    %1060 = vector.broadcast %cst_322 : f32 to vector<2x96xf32>
    %1061 = arith.mulf %1060, %1059 : vector<2x96xf32>
    %cst_323 = arith.constant 5.000000e-01 : f32
    %1062 = vector.broadcast %cst_323 : f32 to vector<2x96xf32>
    %1063 = arith.addf %1061, %1062 : vector<2x96xf32>
    %1064 = vector.extract_strided_slice %1045 {offsets = [0, 96], sizes = [2, 32], strides = [1, 1]} : vector<2x128xf32> to vector<2x32xf32>
    %1065 = math.tanh %1064 : vector<2x32xf32>
    %1066 = vector.extract_strided_slice %1053 {offsets = [0, 32], sizes = [2, 32], strides = [1, 1]} : vector<2x96xf32> to vector<2x32xf32>
    %1067 = arith.mulf %1066, %1027 : vector<2x32xf32>
    %1068 = vector.extract_strided_slice %1053 {offsets = [0, 0], sizes = [2, 32], strides = [1, 1]} : vector<2x96xf32> to vector<2x32xf32>
    %1069 = arith.mulf %1068, %1055 : vector<2x32xf32>
    %1070 = arith.addf %1067, %1069 : vector<2x32xf32>
    %1071 = vector.extract_strided_slice %1063 {offsets = [0, 32], sizes = [2, 32], strides = [1, 1]} : vector<2x96xf32> to vector<2x32xf32>
    %1072 = arith.mulf %1071, %1033 : vector<2x32xf32>
    %1073 = vector.extract_strided_slice %1063 {offsets = [0, 0], sizes = [2, 32], strides = [1, 1]} : vector<2x96xf32> to vector<2x32xf32>
    %1074 = arith.mulf %1073, %1065 : vector<2x32xf32>
    %1075 = arith.addf %1072, %1074 : vector<2x32xf32>
    %1076 = vector.extract_strided_slice %1053 {offsets = [0, 64], sizes = [2, 32], strides = [1, 1]} : vector<2x96xf32> to vector<2x32xf32>
    %1077 = math.tanh %1070 : vector<2x32xf32>
    %1078 = arith.mulf %1076, %1077 : vector<2x32xf32>
    %1079 = vector.extract_strided_slice %1063 {offsets = [0, 64], sizes = [2, 32], strides = [1, 1]} : vector<2x96xf32> to vector<2x32xf32>
    %1080 = math.tanh %1075 : vector<2x32xf32>
    %1081 = arith.mulf %1079, %1080 : vector<2x32xf32>
    %1082 = vector.shape_cast %16 : vector<2x1xi1> to vector<2x1xi1>
    %1083 = vector.broadcast %1082 : vector<2x1xi1> to vector<2x32xi1>
    %1084 = arith.select %1083, %1078, %1024 : vector<2x32xi1>, vector<2x32xf32>
    %1085 = vector.shape_cast %2 : vector<2x1xi1> to vector<2x1xi1>
    %1086 = vector.broadcast %1085 : vector<2x1xi1> to vector<2x32xi1>
    %1087 = arith.select %1086, %1081, %1030 : vector<2x32xi1>, vector<2x32xf32>
    %c7_324 = arith.constant 7 : index
    %c0_325 = arith.constant 0 : index
    %c0_326 = arith.constant 0 : index
    %1088 = vector.load %arg10[%c7_324, %c0_325, %c0_326] : memref<8x2x32xf32, #tpu.memory_space<vmem>>, vector<1x2x32xf32>
    %1089 = vector.shape_cast %1088 : vector<1x2x32xf32> to vector<2x32xf32>
    %1090 = vector.shape_cast %1084 : vector<2x32xf32> to vector<1x2x32xf32>
    tpu.vector_store %arg10[%c7_324, %c0_325, %c0_326], %1090 {strides = array<i32>} : memref<8x2x32xf32, #tpu.memory_space<vmem>>, vector<1x2x32xf32>,
    %c0_327 = arith.constant 0 : index
    %c0_328 = arith.constant 0 : index
    %c0_329 = arith.constant 0 : index
    %1091 = vector.load %arg11[%c0_327, %c0_328, %c0_329] : memref<8x2x32xf32, #tpu.memory_space<vmem>>, vector<1x2x32xf32>
    %1092 = vector.shape_cast %1091 : vector<1x2x32xf32> to vector<2x32xf32>
    %1093 = vector.shape_cast %1087 : vector<2x32xf32> to vector<1x2x32xf32>
    tpu.vector_store %arg11[%c0_327, %c0_328, %c0_329], %1093 {strides = array<i32>} : memref<8x2x32xf32, #tpu.memory_space<vmem>>, vector<1x2x32xf32>,
    %c2_330 = arith.constant 2 : index
    %c0_331 = arith.constant 0 : index
    %c0_332 = arith.constant 0 : index
    %1094 = vector.load %arg2[%c2_330, %c0_331, %c0_332] : memref<3x64x256xf32, #tpu.memory_space<vmem>>, vector<1x64x256xf32>
    %1095 = vector.shape_cast %1094 : vector<1x64x256xf32> to vector<64x256xf32>
    %c2_333 = arith.constant 2 : index
    %c0_334 = arith.constant 0 : index
    %c0_335 = arith.constant 0 : index
    %1096 = vector.load %arg4[%c2_333, %c0_334, %c0_335] : memref<3x1x256xf32, #tpu.memory_space<vmem>>, vector<1x1x256xf32>
    %1097 = vector.shape_cast %1096 : vector<1x1x256xf32> to vector<1x256xf32>
    %c4_336 = arith.constant 4 : index
    %c0_337 = arith.constant 0 : index
    %c0_338 = arith.constant 0 : index
    %1098 = vector.load %arg3[%c4_336, %c0_337, %c0_338] : memref<6x32x128xf32, #tpu.memory_space<vmem>>, vector<1x32x128xf32>
    %1099 = vector.shape_cast %1098 : vector<1x32x128xf32> to vector<32x128xf32>
    %c5_339 = arith.constant 5 : index
    %c0_340 = arith.constant 0 : index
    %c0_341 = arith.constant 0 : index
    %1100 = vector.load %arg3[%c5_339, %c0_340, %c0_341] : memref<6x32x128xf32, #tpu.memory_space<vmem>>, vector<1x32x128xf32>
    %1101 = vector.shape_cast %1100 : vector<1x32x128xf32> to vector<32x128xf32>
    %c0_342 = arith.constant 0 : index
    %c0_343 = arith.constant 0 : index
    %c0_344 = arith.constant 0 : index
    %1102 = vector.load %arg10[%c0_342, %c0_343, %c0_344] : memref<8x2x32xf32, #tpu.memory_space<vmem>>, vector<1x2x32xf32>
    %1103 = vector.shape_cast %1102 : vector<1x2x32xf32> to vector<2x32xf32>
    %c0_345 = arith.constant 0 : index
    %c0_346 = arith.constant 0 : index
    %c0_347 = arith.constant 0 : index
    %1104 = vector.load %arg11[%c0_345, %c0_346, %c0_347] : memref<8x2x32xf32, #tpu.memory_space<vmem>>, vector<1x2x32xf32>
    %1105 = vector.shape_cast %1104 : vector<1x2x32xf32> to vector<2x32xf32>
    %1106 = tpu.concatenate %1103, %1105 in 1 : vector<2x32xf32>, vector<2x32xf32> -> vector<2x64xf32>
    %cst_348 = arith.constant dense<0.000000e+00> : vector<2x256xf32>
    %1107 = tpu.matmul %1106, %1095, %cst_348 {dimension_numbers = #tpu.dot_dimension_numbers<[1], [0], [0], [1], [0, 0, 1, 1], [], []>} : vector<2x64xf32>, vector<64x256xf32>, vector<2x256xf32> -> vector<2x256xf32>
    %1108 = vector.broadcast %1097 : vector<1x256xf32> to vector<2x256xf32>
    %1109 = arith.addf %1107, %1108 : vector<2x256xf32>
    %c1_349 = arith.constant 1 : index
    %c0_350 = arith.constant 0 : index
    %c0_351 = arith.constant 0 : index
    %1110 = vector.load %arg10[%c1_349, %c0_350, %c0_351] : memref<8x2x32xf32, #tpu.memory_space<vmem>>, vector<1x2x32xf32>
    %1111 = vector.shape_cast %1110 : vector<1x2x32xf32> to vector<2x32xf32>
    %c1_352 = arith.constant 1 : index
    %c0_353 = arith.constant 0 : index
    %c0_354 = arith.constant 0 : index
    %1112 = vector.load %arg11[%c1_352, %c0_353, %c0_354] : memref<8x2x32xf32, #tpu.memory_space<vmem>>, vector<1x2x32xf32>
    %1113 = vector.shape_cast %1112 : vector<1x2x32xf32> to vector<2x32xf32>
    %1114 = tpu.concatenate %1111, %1113 in 1 : vector<2x32xf32>, vector<2x32xf32> -> vector<2x64xf32>
    %cst_355 = arith.constant dense<0.000000e+00> : vector<2x256xf32>
    %1115 = tpu.matmul %1114, %1095, %cst_355 {dimension_numbers = #tpu.dot_dimension_numbers<[1], [0], [0], [1], [0, 0, 1, 1], [], []>} : vector<2x64xf32>, vector<64x256xf32>, vector<2x256xf32> -> vector<2x256xf32>
    %1116 = vector.broadcast %1097 : vector<1x256xf32> to vector<2x256xf32>
    %1117 = arith.addf %1115, %1116 : vector<2x256xf32>
    %c2_356 = arith.constant 2 : index
    %c0_357 = arith.constant 0 : index
    %c0_358 = arith.constant 0 : index
    %1118 = vector.load %arg10[%c2_356, %c0_357, %c0_358] : memref<8x2x32xf32, #tpu.memory_space<vmem>>, vector<1x2x32xf32>
    %1119 = vector.shape_cast %1118 : vector<1x2x32xf32> to vector<2x32xf32>
    %c2_359 = arith.constant 2 : index
    %c0_360 = arith.constant 0 : index
    %c0_361 = arith.constant 0 : index
    %1120 = vector.load %arg11[%c2_359, %c0_360, %c0_361] : memref<8x2x32xf32, #tpu.memory_space<vmem>>, vector<1x2x32xf32>
    %1121 = vector.shape_cast %1120 : vector<1x2x32xf32> to vector<2x32xf32>
    %1122 = tpu.concatenate %1119, %1121 in 1 : vector<2x32xf32>, vector<2x32xf32> -> vector<2x64xf32>
    %cst_362 = arith.constant dense<0.000000e+00> : vector<2x256xf32>
    %1123 = tpu.matmul %1122, %1095, %cst_362 {dimension_numbers = #tpu.dot_dimension_numbers<[1], [0], [0], [1], [0, 0, 1, 1], [], []>} : vector<2x64xf32>, vector<64x256xf32>, vector<2x256xf32> -> vector<2x256xf32>
    %1124 = vector.broadcast %1097 : vector<1x256xf32> to vector<2x256xf32>
    %1125 = arith.addf %1123, %1124 : vector<2x256xf32>
    %c3_363 = arith.constant 3 : index
    %c0_364 = arith.constant 0 : index
    %c0_365 = arith.constant 0 : index
    %1126 = vector.load %arg10[%c3_363, %c0_364, %c0_365] : memref<8x2x32xf32, #tpu.memory_space<vmem>>, vector<1x2x32xf32>
    %1127 = vector.shape_cast %1126 : vector<1x2x32xf32> to vector<2x32xf32>
    %c3_366 = arith.constant 3 : index
    %c0_367 = arith.constant 0 : index
    %c0_368 = arith.constant 0 : index
    %1128 = vector.load %arg11[%c3_366, %c0_367, %c0_368] : memref<8x2x32xf32, #tpu.memory_space<vmem>>, vector<1x2x32xf32>
    %1129 = vector.shape_cast %1128 : vector<1x2x32xf32> to vector<2x32xf32>
    %1130 = tpu.concatenate %1127, %1129 in 1 : vector<2x32xf32>, vector<2x32xf32> -> vector<2x64xf32>
    %cst_369 = arith.constant dense<0.000000e+00> : vector<2x256xf32>
    %1131 = tpu.matmul %1130, %1095, %cst_369 {dimension_numbers = #tpu.dot_dimension_numbers<[1], [0], [0], [1], [0, 0, 1, 1], [], []>} : vector<2x64xf32>, vector<64x256xf32>, vector<2x256xf32> -> vector<2x256xf32>
    %1132 = vector.broadcast %1097 : vector<1x256xf32> to vector<2x256xf32>
    %1133 = arith.addf %1131, %1132 : vector<2x256xf32>
    %c4_370 = arith.constant 4 : index
    %c0_371 = arith.constant 0 : index
    %c0_372 = arith.constant 0 : index
    %1134 = vector.load %arg10[%c4_370, %c0_371, %c0_372] : memref<8x2x32xf32, #tpu.memory_space<vmem>>, vector<1x2x32xf32>
    %1135 = vector.shape_cast %1134 : vector<1x2x32xf32> to vector<2x32xf32>
    %c4_373 = arith.constant 4 : index
    %c0_374 = arith.constant 0 : index
    %c0_375 = arith.constant 0 : index
    %1136 = vector.load %arg11[%c4_373, %c0_374, %c0_375] : memref<8x2x32xf32, #tpu.memory_space<vmem>>, vector<1x2x32xf32>
    %1137 = vector.shape_cast %1136 : vector<1x2x32xf32> to vector<2x32xf32>
    %1138 = tpu.concatenate %1135, %1137 in 1 : vector<2x32xf32>, vector<2x32xf32> -> vector<2x64xf32>
    %cst_376 = arith.constant dense<0.000000e+00> : vector<2x256xf32>
    %1139 = tpu.matmul %1138, %1095, %cst_376 {dimension_numbers = #tpu.dot_dimension_numbers<[1], [0], [0], [1], [0, 0, 1, 1], [], []>} : vector<2x64xf32>, vector<64x256xf32>, vector<2x256xf32> -> vector<2x256xf32>
    %1140 = vector.broadcast %1097 : vector<1x256xf32> to vector<2x256xf32>
    %1141 = arith.addf %1139, %1140 : vector<2x256xf32>
    %c5_377 = arith.constant 5 : index
    %c0_378 = arith.constant 0 : index
    %c0_379 = arith.constant 0 : index
    %1142 = vector.load %arg10[%c5_377, %c0_378, %c0_379] : memref<8x2x32xf32, #tpu.memory_space<vmem>>, vector<1x2x32xf32>
    %1143 = vector.shape_cast %1142 : vector<1x2x32xf32> to vector<2x32xf32>
    %c5_380 = arith.constant 5 : index
    %c0_381 = arith.constant 0 : index
    %c0_382 = arith.constant 0 : index
    %1144 = vector.load %arg11[%c5_380, %c0_381, %c0_382] : memref<8x2x32xf32, #tpu.memory_space<vmem>>, vector<1x2x32xf32>
    %1145 = vector.shape_cast %1144 : vector<1x2x32xf32> to vector<2x32xf32>
    %1146 = tpu.concatenate %1143, %1145 in 1 : vector<2x32xf32>, vector<2x32xf32> -> vector<2x64xf32>
    %cst_383 = arith.constant dense<0.000000e+00> : vector<2x256xf32>
    %1147 = tpu.matmul %1146, %1095, %cst_383 {dimension_numbers = #tpu.dot_dimension_numbers<[1], [0], [0], [1], [0, 0, 1, 1], [], []>} : vector<2x64xf32>, vector<64x256xf32>, vector<2x256xf32> -> vector<2x256xf32>
    %1148 = vector.broadcast %1097 : vector<1x256xf32> to vector<2x256xf32>
    %1149 = arith.addf %1147, %1148 : vector<2x256xf32>
    %c6_384 = arith.constant 6 : index
    %c0_385 = arith.constant 0 : index
    %c0_386 = arith.constant 0 : index
    %1150 = vector.load %arg10[%c6_384, %c0_385, %c0_386] : memref<8x2x32xf32, #tpu.memory_space<vmem>>, vector<1x2x32xf32>
    %1151 = vector.shape_cast %1150 : vector<1x2x32xf32> to vector<2x32xf32>
    %c6_387 = arith.constant 6 : index
    %c0_388 = arith.constant 0 : index
    %c0_389 = arith.constant 0 : index
    %1152 = vector.load %arg11[%c6_387, %c0_388, %c0_389] : memref<8x2x32xf32, #tpu.memory_space<vmem>>, vector<1x2x32xf32>
    %1153 = vector.shape_cast %1152 : vector<1x2x32xf32> to vector<2x32xf32>
    %1154 = tpu.concatenate %1151, %1153 in 1 : vector<2x32xf32>, vector<2x32xf32> -> vector<2x64xf32>
    %cst_390 = arith.constant dense<0.000000e+00> : vector<2x256xf32>
    %1155 = tpu.matmul %1154, %1095, %cst_390 {dimension_numbers = #tpu.dot_dimension_numbers<[1], [0], [0], [1], [0, 0, 1, 1], [], []>} : vector<2x64xf32>, vector<64x256xf32>, vector<2x256xf32> -> vector<2x256xf32>
    %1156 = vector.broadcast %1097 : vector<1x256xf32> to vector<2x256xf32>
    %1157 = arith.addf %1155, %1156 : vector<2x256xf32>
    %c7_391 = arith.constant 7 : index
    %c0_392 = arith.constant 0 : index
    %c0_393 = arith.constant 0 : index
    %1158 = vector.load %arg10[%c7_391, %c0_392, %c0_393] : memref<8x2x32xf32, #tpu.memory_space<vmem>>, vector<1x2x32xf32>
    %1159 = vector.shape_cast %1158 : vector<1x2x32xf32> to vector<2x32xf32>
    %c7_394 = arith.constant 7 : index
    %c0_395 = arith.constant 0 : index
    %c0_396 = arith.constant 0 : index
    %1160 = vector.load %arg11[%c7_394, %c0_395, %c0_396] : memref<8x2x32xf32, #tpu.memory_space<vmem>>, vector<1x2x32xf32>
    %1161 = vector.shape_cast %1160 : vector<1x2x32xf32> to vector<2x32xf32>
    %1162 = tpu.concatenate %1159, %1161 in 1 : vector<2x32xf32>, vector<2x32xf32> -> vector<2x64xf32>
    %cst_397 = arith.constant dense<0.000000e+00> : vector<2x256xf32>
    %1163 = tpu.matmul %1162, %1095, %cst_397 {dimension_numbers = #tpu.dot_dimension_numbers<[1], [0], [0], [1], [0, 0, 1, 1], [], []>} : vector<2x64xf32>, vector<64x256xf32>, vector<2x256xf32> -> vector<2x256xf32>
    %1164 = vector.broadcast %1097 : vector<1x256xf32> to vector<2x256xf32>
    %1165 = arith.addf %1163, %1164 : vector<2x256xf32>
    %1166 = vector.extract_strided_slice %1109 {offsets = [0, 0], sizes = [2, 128], strides = [1, 1]} : vector<2x256xf32> to vector<2x128xf32>
    %cst_398 = arith.constant dense<0.000000e+00> : vector<2x128xf32>
    %1167 = tpu.matmul %17, %1099, %cst_398 {dimension_numbers = #tpu.dot_dimension_numbers<[1], [0], [0], [1], [0, 0, 1, 1], [], []>} : vector<2x32xf32>, vector<32x128xf32>, vector<2x128xf32> -> vector<2x128xf32>
    %1168 = arith.addf %1166, %1167 : vector<2x128xf32>
    %1169 = vector.extract_strided_slice %1165 {offsets = [0, 128], sizes = [2, 128], strides = [1, 1]} : vector<2x256xf32> to vector<2x128xf32>
    %cst_399 = arith.constant dense<0.000000e+00> : vector<2x128xf32>
    %1170 = tpu.matmul %17, %1101, %cst_399 {dimension_numbers = #tpu.dot_dimension_numbers<[1], [0], [0], [1], [0, 0, 1, 1], [], []>} : vector<2x32xf32>, vector<32x128xf32>, vector<2x128xf32> -> vector<2x128xf32>
    %1171 = arith.addf %1169, %1170 : vector<2x128xf32>
    %1172 = vector.extract_strided_slice %1168 {offsets = [0, 0], sizes = [2, 96], strides = [1, 1]} : vector<2x128xf32> to vector<2x96xf32>
    %cst_400 = arith.constant 5.000000e-01 : f32
    %1173 = vector.broadcast %cst_400 : f32 to vector<2x96xf32>
    %1174 = arith.mulf %1173, %1172 : vector<2x96xf32>
    %1175 = math.tanh %1174 : vector<2x96xf32>
    %cst_401 = arith.constant 5.000000e-01 : f32
    %1176 = vector.broadcast %cst_401 : f32 to vector<2x96xf32>
    %1177 = arith.mulf %1176, %1175 : vector<2x96xf32>
    %cst_402 = arith.constant 5.000000e-01 : f32
    %1178 = vector.broadcast %cst_402 : f32 to vector<2x96xf32>
    %1179 = arith.addf %1177, %1178 : vector<2x96xf32>
    %1180 = vector.extract_strided_slice %1168 {offsets = [0, 96], sizes = [2, 32], strides = [1, 1]} : vector<2x128xf32> to vector<2x32xf32>
    %1181 = math.tanh %1180 : vector<2x32xf32>
    %1182 = vector.extract_strided_slice %1171 {offsets = [0, 0], sizes = [2, 96], strides = [1, 1]} : vector<2x128xf32> to vector<2x96xf32>
    %cst_403 = arith.constant 5.000000e-01 : f32
    %1183 = vector.broadcast %cst_403 : f32 to vector<2x96xf32>
    %1184 = arith.mulf %1183, %1182 : vector<2x96xf32>
    %1185 = math.tanh %1184 : vector<2x96xf32>
    %cst_404 = arith.constant 5.000000e-01 : f32
    %1186 = vector.broadcast %cst_404 : f32 to vector<2x96xf32>
    %1187 = arith.mulf %1186, %1185 : vector<2x96xf32>
    %cst_405 = arith.constant 5.000000e-01 : f32
    %1188 = vector.broadcast %cst_405 : f32 to vector<2x96xf32>
    %1189 = arith.addf %1187, %1188 : vector<2x96xf32>
    %1190 = vector.extract_strided_slice %1171 {offsets = [0, 96], sizes = [2, 32], strides = [1, 1]} : vector<2x128xf32> to vector<2x32xf32>
    %1191 = math.tanh %1190 : vector<2x32xf32>
    %1192 = vector.extract_strided_slice %1179 {offsets = [0, 32], sizes = [2, 32], strides = [1, 1]} : vector<2x96xf32> to vector<2x32xf32>
    %1193 = arith.mulf %1192, %17 : vector<2x32xf32>
    %1194 = vector.extract_strided_slice %1179 {offsets = [0, 0], sizes = [2, 32], strides = [1, 1]} : vector<2x96xf32> to vector<2x32xf32>
    %1195 = arith.mulf %1194, %1181 : vector<2x32xf32>
    %1196 = arith.addf %1193, %1195 : vector<2x32xf32>
    %1197 = vector.extract_strided_slice %1189 {offsets = [0, 32], sizes = [2, 32], strides = [1, 1]} : vector<2x96xf32> to vector<2x32xf32>
    %1198 = arith.mulf %1197, %17 : vector<2x32xf32>
    %1199 = vector.extract_strided_slice %1189 {offsets = [0, 0], sizes = [2, 32], strides = [1, 1]} : vector<2x96xf32> to vector<2x32xf32>
    %1200 = arith.mulf %1199, %1191 : vector<2x32xf32>
    %1201 = arith.addf %1198, %1200 : vector<2x32xf32>
    %1202 = vector.extract_strided_slice %1179 {offsets = [0, 64], sizes = [2, 32], strides = [1, 1]} : vector<2x96xf32> to vector<2x32xf32>
    %1203 = math.tanh %1196 : vector<2x32xf32>
    %1204 = arith.mulf %1202, %1203 : vector<2x32xf32>
    %1205 = vector.extract_strided_slice %1189 {offsets = [0, 64], sizes = [2, 32], strides = [1, 1]} : vector<2x96xf32> to vector<2x32xf32>
    %1206 = math.tanh %1201 : vector<2x32xf32>
    %1207 = arith.mulf %1205, %1206 : vector<2x32xf32>
    %1208 = vector.shape_cast %2 : vector<2x1xi1> to vector<2x1xi1>
    %1209 = vector.broadcast %1208 : vector<2x1xi1> to vector<2x32xi1>
    %1210 = arith.select %1209, %1204, %17 : vector<2x32xi1>, vector<2x32xf32>
    %1211 = vector.shape_cast %2 : vector<2x1xi1> to vector<2x1xi1>
    %1212 = vector.broadcast %1211 : vector<2x1xi1> to vector<2x32xi1>
    %1213 = arith.select %1212, %1196, %17 : vector<2x32xi1>, vector<2x32xf32>
    %1214 = vector.shape_cast %16 : vector<2x1xi1> to vector<2x1xi1>
    %1215 = vector.broadcast %1214 : vector<2x1xi1> to vector<2x32xi1>
    %1216 = arith.select %1215, %1207, %17 : vector<2x32xi1>, vector<2x32xf32>
    %1217 = vector.shape_cast %16 : vector<2x1xi1> to vector<2x1xi1>
    %1218 = vector.broadcast %1217 : vector<2x1xi1> to vector<2x32xi1>
    %1219 = arith.select %1218, %1201, %17 : vector<2x32xi1>, vector<2x32xf32>
    %c0_406 = arith.constant 0 : index
    %c0_407 = arith.constant 0 : index
    %c0_408 = arith.constant 0 : index
    %1220 = vector.load %arg8[%c0_406, %c0_407, %c0_408] : memref<8x2x32xf32, #tpu.memory_space<vmem>>, vector<1x2x32xf32>
    %1221 = vector.shape_cast %1220 : vector<1x2x32xf32> to vector<2x32xf32>
    %1222 = vector.shape_cast %1210 : vector<2x32xf32> to vector<1x2x32xf32>
    tpu.vector_store %arg8[%c0_406, %c0_407, %c0_408], %1222 {strides = array<i32>} : memref<8x2x32xf32, #tpu.memory_space<vmem>>, vector<1x2x32xf32>,
    %c7_409 = arith.constant 7 : index
    %c0_410 = arith.constant 0 : index
    %c0_411 = arith.constant 0 : index
    %1223 = vector.load %arg9[%c7_409, %c0_410, %c0_411] : memref<8x2x32xf32, #tpu.memory_space<vmem>>, vector<1x2x32xf32>
    %1224 = vector.shape_cast %1223 : vector<1x2x32xf32> to vector<2x32xf32>
    %1225 = vector.shape_cast %1216 : vector<2x32xf32> to vector<1x2x32xf32>
    tpu.vector_store %arg9[%c7_409, %c0_410, %c0_411], %1225 {strides = array<i32>} : memref<8x2x32xf32, #tpu.memory_space<vmem>>, vector<1x2x32xf32>,
    %1226 = vector.extract_strided_slice %1117 {offsets = [0, 0], sizes = [2, 128], strides = [1, 1]} : vector<2x256xf32> to vector<2x128xf32>
    %cst_412 = arith.constant dense<0.000000e+00> : vector<2x128xf32>
    %1227 = tpu.matmul %1210, %1099, %cst_412 {dimension_numbers = #tpu.dot_dimension_numbers<[1], [0], [0], [1], [0, 0, 1, 1], [], []>} : vector<2x32xf32>, vector<32x128xf32>, vector<2x128xf32> -> vector<2x128xf32>
    %1228 = arith.addf %1226, %1227 : vector<2x128xf32>
    %1229 = vector.extract_strided_slice %1157 {offsets = [0, 128], sizes = [2, 128], strides = [1, 1]} : vector<2x256xf32> to vector<2x128xf32>
    %cst_413 = arith.constant dense<0.000000e+00> : vector<2x128xf32>
    %1230 = tpu.matmul %1216, %1101, %cst_413 {dimension_numbers = #tpu.dot_dimension_numbers<[1], [0], [0], [1], [0, 0, 1, 1], [], []>} : vector<2x32xf32>, vector<32x128xf32>, vector<2x128xf32> -> vector<2x128xf32>
    %1231 = arith.addf %1229, %1230 : vector<2x128xf32>
    %1232 = vector.extract_strided_slice %1228 {offsets = [0, 0], sizes = [2, 96], strides = [1, 1]} : vector<2x128xf32> to vector<2x96xf32>
    %cst_414 = arith.constant 5.000000e-01 : f32
    %1233 = vector.broadcast %cst_414 : f32 to vector<2x96xf32>
    %1234 = arith.mulf %1233, %1232 : vector<2x96xf32>
    %1235 = math.tanh %1234 : vector<2x96xf32>
    %cst_415 = arith.constant 5.000000e-01 : f32
    %1236 = vector.broadcast %cst_415 : f32 to vector<2x96xf32>
    %1237 = arith.mulf %1236, %1235 : vector<2x96xf32>
    %cst_416 = arith.constant 5.000000e-01 : f32
    %1238 = vector.broadcast %cst_416 : f32 to vector<2x96xf32>
    %1239 = arith.addf %1237, %1238 : vector<2x96xf32>
    %1240 = vector.extract_strided_slice %1228 {offsets = [0, 96], sizes = [2, 32], strides = [1, 1]} : vector<2x128xf32> to vector<2x32xf32>
    %1241 = math.tanh %1240 : vector<2x32xf32>
    %1242 = vector.extract_strided_slice %1231 {offsets = [0, 0], sizes = [2, 96], strides = [1, 1]} : vector<2x128xf32> to vector<2x96xf32>
    %cst_417 = arith.constant 5.000000e-01 : f32
    %1243 = vector.broadcast %cst_417 : f32 to vector<2x96xf32>
    %1244 = arith.mulf %1243, %1242 : vector<2x96xf32>
    %1245 = math.tanh %1244 : vector<2x96xf32>
    %cst_418 = arith.constant 5.000000e-01 : f32
    %1246 = vector.broadcast %cst_418 : f32 to vector<2x96xf32>
    %1247 = arith.mulf %1246, %1245 : vector<2x96xf32>
    %cst_419 = arith.constant 5.000000e-01 : f32
    %1248 = vector.broadcast %cst_419 : f32 to vector<2x96xf32>
    %1249 = arith.addf %1247, %1248 : vector<2x96xf32>
    %1250 = vector.extract_strided_slice %1231 {offsets = [0, 96], sizes = [2, 32], strides = [1, 1]} : vector<2x128xf32> to vector<2x32xf32>
    %1251 = math.tanh %1250 : vector<2x32xf32>
    %1252 = vector.extract_strided_slice %1239 {offsets = [0, 32], sizes = [2, 32], strides = [1, 1]} : vector<2x96xf32> to vector<2x32xf32>
    %1253 = arith.mulf %1252, %1213 : vector<2x32xf32>
    %1254 = vector.extract_strided_slice %1239 {offsets = [0, 0], sizes = [2, 32], strides = [1, 1]} : vector<2x96xf32> to vector<2x32xf32>
    %1255 = arith.mulf %1254, %1241 : vector<2x32xf32>
    %1256 = arith.addf %1253, %1255 : vector<2x32xf32>
    %1257 = vector.extract_strided_slice %1249 {offsets = [0, 32], sizes = [2, 32], strides = [1, 1]} : vector<2x96xf32> to vector<2x32xf32>
    %1258 = arith.mulf %1257, %1219 : vector<2x32xf32>
    %1259 = vector.extract_strided_slice %1249 {offsets = [0, 0], sizes = [2, 32], strides = [1, 1]} : vector<2x96xf32> to vector<2x32xf32>
    %1260 = arith.mulf %1259, %1251 : vector<2x32xf32>
    %1261 = arith.addf %1258, %1260 : vector<2x32xf32>
    %1262 = vector.extract_strided_slice %1239 {offsets = [0, 64], sizes = [2, 32], strides = [1, 1]} : vector<2x96xf32> to vector<2x32xf32>
    %1263 = math.tanh %1256 : vector<2x32xf32>
    %1264 = arith.mulf %1262, %1263 : vector<2x32xf32>
    %1265 = vector.extract_strided_slice %1249 {offsets = [0, 64], sizes = [2, 32], strides = [1, 1]} : vector<2x96xf32> to vector<2x32xf32>
    %1266 = math.tanh %1261 : vector<2x32xf32>
    %1267 = arith.mulf %1265, %1266 : vector<2x32xf32>
    %1268 = vector.shape_cast %4 : vector<2x1xi1> to vector<2x1xi1>
    %1269 = vector.broadcast %1268 : vector<2x1xi1> to vector<2x32xi1>
    %1270 = arith.select %1269, %1264, %1210 : vector<2x32xi1>, vector<2x32xf32>
    %1271 = vector.shape_cast %4 : vector<2x1xi1> to vector<2x1xi1>
    %1272 = vector.broadcast %1271 : vector<2x1xi1> to vector<2x32xi1>
    %1273 = arith.select %1272, %1256, %1213 : vector<2x32xi1>, vector<2x32xf32>
    %1274 = vector.shape_cast %14 : vector<2x1xi1> to vector<2x1xi1>
    %1275 = vector.broadcast %1274 : vector<2x1xi1> to vector<2x32xi1>
    %1276 = arith.select %1275, %1267, %1216 : vector<2x32xi1>, vector<2x32xf32>
    %1277 = vector.shape_cast %14 : vector<2x1xi1> to vector<2x1xi1>
    %1278 = vector.broadcast %1277 : vector<2x1xi1> to vector<2x32xi1>
    %1279 = arith.select %1278, %1261, %1219 : vector<2x32xi1>, vector<2x32xf32>
    %c1_420 = arith.constant 1 : index
    %c0_421 = arith.constant 0 : index
    %c0_422 = arith.constant 0 : index
    %1280 = vector.load %arg8[%c1_420, %c0_421, %c0_422] : memref<8x2x32xf32, #tpu.memory_space<vmem>>, vector<1x2x32xf32>
    %1281 = vector.shape_cast %1280 : vector<1x2x32xf32> to vector<2x32xf32>
    %1282 = vector.shape_cast %1270 : vector<2x32xf32> to vector<1x2x32xf32>
    tpu.vector_store %arg8[%c1_420, %c0_421, %c0_422], %1282 {strides = array<i32>} : memref<8x2x32xf32, #tpu.memory_space<vmem>>, vector<1x2x32xf32>,
    %c6_423 = arith.constant 6 : index
    %c0_424 = arith.constant 0 : index
    %c0_425 = arith.constant 0 : index
    %1283 = vector.load %arg9[%c6_423, %c0_424, %c0_425] : memref<8x2x32xf32, #tpu.memory_space<vmem>>, vector<1x2x32xf32>
    %1284 = vector.shape_cast %1283 : vector<1x2x32xf32> to vector<2x32xf32>
    %1285 = vector.shape_cast %1276 : vector<2x32xf32> to vector<1x2x32xf32>
    tpu.vector_store %arg9[%c6_423, %c0_424, %c0_425], %1285 {strides = array<i32>} : memref<8x2x32xf32, #tpu.memory_space<vmem>>, vector<1x2x32xf32>,
    %1286 = vector.extract_strided_slice %1125 {offsets = [0, 0], sizes = [2, 128], strides = [1, 1]} : vector<2x256xf32> to vector<2x128xf32>
    %cst_426 = arith.constant dense<0.000000e+00> : vector<2x128xf32>
    %1287 = tpu.matmul %1270, %1099, %cst_426 {dimension_numbers = #tpu.dot_dimension_numbers<[1], [0], [0], [1], [0, 0, 1, 1], [], []>} : vector<2x32xf32>, vector<32x128xf32>, vector<2x128xf32> -> vector<2x128xf32>
    %1288 = arith.addf %1286, %1287 : vector<2x128xf32>
    %1289 = vector.extract_strided_slice %1149 {offsets = [0, 128], sizes = [2, 128], strides = [1, 1]} : vector<2x256xf32> to vector<2x128xf32>
    %cst_427 = arith.constant dense<0.000000e+00> : vector<2x128xf32>
    %1290 = tpu.matmul %1276, %1101, %cst_427 {dimension_numbers = #tpu.dot_dimension_numbers<[1], [0], [0], [1], [0, 0, 1, 1], [], []>} : vector<2x32xf32>, vector<32x128xf32>, vector<2x128xf32> -> vector<2x128xf32>
    %1291 = arith.addf %1289, %1290 : vector<2x128xf32>
    %1292 = vector.extract_strided_slice %1288 {offsets = [0, 0], sizes = [2, 96], strides = [1, 1]} : vector<2x128xf32> to vector<2x96xf32>
    %cst_428 = arith.constant 5.000000e-01 : f32
    %1293 = vector.broadcast %cst_428 : f32 to vector<2x96xf32>
    %1294 = arith.mulf %1293, %1292 : vector<2x96xf32>
    %1295 = math.tanh %1294 : vector<2x96xf32>
    %cst_429 = arith.constant 5.000000e-01 : f32
    %1296 = vector.broadcast %cst_429 : f32 to vector<2x96xf32>
    %1297 = arith.mulf %1296, %1295 : vector<2x96xf32>
    %cst_430 = arith.constant 5.000000e-01 : f32
    %1298 = vector.broadcast %cst_430 : f32 to vector<2x96xf32>
    %1299 = arith.addf %1297, %1298 : vector<2x96xf32>
    %1300 = vector.extract_strided_slice %1288 {offsets = [0, 96], sizes = [2, 32], strides = [1, 1]} : vector<2x128xf32> to vector<2x32xf32>
    %1301 = math.tanh %1300 : vector<2x32xf32>
    %1302 = vector.extract_strided_slice %1291 {offsets = [0, 0], sizes = [2, 96], strides = [1, 1]} : vector<2x128xf32> to vector<2x96xf32>
    %cst_431 = arith.constant 5.000000e-01 : f32
    %1303 = vector.broadcast %cst_431 : f32 to vector<2x96xf32>
    %1304 = arith.mulf %1303, %1302 : vector<2x96xf32>
    %1305 = math.tanh %1304 : vector<2x96xf32>
    %cst_432 = arith.constant 5.000000e-01 : f32
    %1306 = vector.broadcast %cst_432 : f32 to vector<2x96xf32>
    %1307 = arith.mulf %1306, %1305 : vector<2x96xf32>
    %cst_433 = arith.constant 5.000000e-01 : f32
    %1308 = vector.broadcast %cst_433 : f32 to vector<2x96xf32>
    %1309 = arith.addf %1307, %1308 : vector<2x96xf32>
    %1310 = vector.extract_strided_slice %1291 {offsets = [0, 96], sizes = [2, 32], strides = [1, 1]} : vector<2x128xf32> to vector<2x32xf32>
    %1311 = math.tanh %1310 : vector<2x32xf32>
    %1312 = vector.extract_strided_slice %1299 {offsets = [0, 32], sizes = [2, 32], strides = [1, 1]} : vector<2x96xf32> to vector<2x32xf32>
    %1313 = arith.mulf %1312, %1273 : vector<2x32xf32>
    %1314 = vector.extract_strided_slice %1299 {offsets = [0, 0], sizes = [2, 32], strides = [1, 1]} : vector<2x96xf32> to vector<2x32xf32>
    %1315 = arith.mulf %1314, %1301 : vector<2x32xf32>
    %1316 = arith.addf %1313, %1315 : vector<2x32xf32>
    %1317 = vector.extract_strided_slice %1309 {offsets = [0, 32], sizes = [2, 32], strides = [1, 1]} : vector<2x96xf32> to vector<2x32xf32>
    %1318 = arith.mulf %1317, %1279 : vector<2x32xf32>
    %1319 = vector.extract_strided_slice %1309 {offsets = [0, 0], sizes = [2, 32], strides = [1, 1]} : vector<2x96xf32> to vector<2x32xf32>
    %1320 = arith.mulf %1319, %1311 : vector<2x32xf32>
    %1321 = arith.addf %1318, %1320 : vector<2x32xf32>
    %1322 = vector.extract_strided_slice %1299 {offsets = [0, 64], sizes = [2, 32], strides = [1, 1]} : vector<2x96xf32> to vector<2x32xf32>
    %1323 = math.tanh %1316 : vector<2x32xf32>
    %1324 = arith.mulf %1322, %1323 : vector<2x32xf32>
    %1325 = vector.extract_strided_slice %1309 {offsets = [0, 64], sizes = [2, 32], strides = [1, 1]} : vector<2x96xf32> to vector<2x32xf32>
    %1326 = math.tanh %1321 : vector<2x32xf32>
    %1327 = arith.mulf %1325, %1326 : vector<2x32xf32>
    %1328 = vector.shape_cast %6 : vector<2x1xi1> to vector<2x1xi1>
    %1329 = vector.broadcast %1328 : vector<2x1xi1> to vector<2x32xi1>
    %1330 = arith.select %1329, %1324, %1270 : vector<2x32xi1>, vector<2x32xf32>
    %1331 = vector.shape_cast %6 : vector<2x1xi1> to vector<2x1xi1>
    %1332 = vector.broadcast %1331 : vector<2x1xi1> to vector<2x32xi1>
    %1333 = arith.select %1332, %1316, %1273 : vector<2x32xi1>, vector<2x32xf32>
    %1334 = vector.shape_cast %12 : vector<2x1xi1> to vector<2x1xi1>
    %1335 = vector.broadcast %1334 : vector<2x1xi1> to vector<2x32xi1>
    %1336 = arith.select %1335, %1327, %1276 : vector<2x32xi1>, vector<2x32xf32>
    %1337 = vector.shape_cast %12 : vector<2x1xi1> to vector<2x1xi1>
    %1338 = vector.broadcast %1337 : vector<2x1xi1> to vector<2x32xi1>
    %1339 = arith.select %1338, %1321, %1279 : vector<2x32xi1>, vector<2x32xf32>
    %c2_434 = arith.constant 2 : index
    %c0_435 = arith.constant 0 : index
    %c0_436 = arith.constant 0 : index
    %1340 = vector.load %arg8[%c2_434, %c0_435, %c0_436] : memref<8x2x32xf32, #tpu.memory_space<vmem>>, vector<1x2x32xf32>
    %1341 = vector.shape_cast %1340 : vector<1x2x32xf32> to vector<2x32xf32>
    %1342 = vector.shape_cast %1330 : vector<2x32xf32> to vector<1x2x32xf32>
    tpu.vector_store %arg8[%c2_434, %c0_435, %c0_436], %1342 {strides = array<i32>} : memref<8x2x32xf32, #tpu.memory_space<vmem>>, vector<1x2x32xf32>,
    %c5_437 = arith.constant 5 : index
    %c0_438 = arith.constant 0 : index
    %c0_439 = arith.constant 0 : index
    %1343 = vector.load %arg9[%c5_437, %c0_438, %c0_439] : memref<8x2x32xf32, #tpu.memory_space<vmem>>, vector<1x2x32xf32>
    %1344 = vector.shape_cast %1343 : vector<1x2x32xf32> to vector<2x32xf32>
    %1345 = vector.shape_cast %1336 : vector<2x32xf32> to vector<1x2x32xf32>
    tpu.vector_store %arg9[%c5_437, %c0_438, %c0_439], %1345 {strides = array<i32>} : memref<8x2x32xf32, #tpu.memory_space<vmem>>, vector<1x2x32xf32>,
    %1346 = vector.extract_strided_slice %1133 {offsets = [0, 0], sizes = [2, 128], strides = [1, 1]} : vector<2x256xf32> to vector<2x128xf32>
    %cst_440 = arith.constant dense<0.000000e+00> : vector<2x128xf32>
    %1347 = tpu.matmul %1330, %1099, %cst_440 {dimension_numbers = #tpu.dot_dimension_numbers<[1], [0], [0], [1], [0, 0, 1, 1], [], []>} : vector<2x32xf32>, vector<32x128xf32>, vector<2x128xf32> -> vector<2x128xf32>
    %1348 = arith.addf %1346, %1347 : vector<2x128xf32>
    %1349 = vector.extract_strided_slice %1141 {offsets = [0, 128], sizes = [2, 128], strides = [1, 1]} : vector<2x256xf32> to vector<2x128xf32>
    %cst_441 = arith.constant dense<0.000000e+00> : vector<2x128xf32>
    %1350 = tpu.matmul %1336, %1101, %cst_441 {dimension_numbers = #tpu.dot_dimension_numbers<[1], [0], [0], [1], [0, 0, 1, 1], [], []>} : vector<2x32xf32>, vector<32x128xf32>, vector<2x128xf32> -> vector<2x128xf32>
    %1351 = arith.addf %1349, %1350 : vector<2x128xf32>
    %1352 = vector.extract_strided_slice %1348 {offsets = [0, 0], sizes = [2, 96], strides = [1, 1]} : vector<2x128xf32> to vector<2x96xf32>
    %cst_442 = arith.constant 5.000000e-01 : f32
    %1353 = vector.broadcast %cst_442 : f32 to vector<2x96xf32>
    %1354 = arith.mulf %1353, %1352 : vector<2x96xf32>
    %1355 = math.tanh %1354 : vector<2x96xf32>
    %cst_443 = arith.constant 5.000000e-01 : f32
    %1356 = vector.broadcast %cst_443 : f32 to vector<2x96xf32>
    %1357 = arith.mulf %1356, %1355 : vector<2x96xf32>
    %cst_444 = arith.constant 5.000000e-01 : f32
    %1358 = vector.broadcast %cst_444 : f32 to vector<2x96xf32>
    %1359 = arith.addf %1357, %1358 : vector<2x96xf32>
    %1360 = vector.extract_strided_slice %1348 {offsets = [0, 96], sizes = [2, 32], strides = [1, 1]} : vector<2x128xf32> to vector<2x32xf32>
    %1361 = math.tanh %1360 : vector<2x32xf32>
    %1362 = vector.extract_strided_slice %1351 {offsets = [0, 0], sizes = [2, 96], strides = [1, 1]} : vector<2x128xf32> to vector<2x96xf32>
    %cst_445 = arith.constant 5.000000e-01 : f32
    %1363 = vector.broadcast %cst_445 : f32 to vector<2x96xf32>
    %1364 = arith.mulf %1363, %1362 : vector<2x96xf32>
    %1365 = math.tanh %1364 : vector<2x96xf32>
    %cst_446 = arith.constant 5.000000e-01 : f32
    %1366 = vector.broadcast %cst_446 : f32 to vector<2x96xf32>
    %1367 = arith.mulf %1366, %1365 : vector<2x96xf32>
    %cst_447 = arith.constant 5.000000e-01 : f32
    %1368 = vector.broadcast %cst_447 : f32 to vector<2x96xf32>
    %1369 = arith.addf %1367, %1368 : vector<2x96xf32>
    %1370 = vector.extract_strided_slice %1351 {offsets = [0, 96], sizes = [2, 32], strides = [1, 1]} : vector<2x128xf32> to vector<2x32xf32>
    %1371 = math.tanh %1370 : vector<2x32xf32>
    %1372 = vector.extract_strided_slice %1359 {offsets = [0, 32], sizes = [2, 32], strides = [1, 1]} : vector<2x96xf32> to vector<2x32xf32>
    %1373 = arith.mulf %1372, %1333 : vector<2x32xf32>
    %1374 = vector.extract_strided_slice %1359 {offsets = [0, 0], sizes = [2, 32], strides = [1, 1]} : vector<2x96xf32> to vector<2x32xf32>
    %1375 = arith.mulf %1374, %1361 : vector<2x32xf32>
    %1376 = arith.addf %1373, %1375 : vector<2x32xf32>
    %1377 = vector.extract_strided_slice %1369 {offsets = [0, 32], sizes = [2, 32], strides = [1, 1]} : vector<2x96xf32> to vector<2x32xf32>
    %1378 = arith.mulf %1377, %1339 : vector<2x32xf32>
    %1379 = vector.extract_strided_slice %1369 {offsets = [0, 0], sizes = [2, 32], strides = [1, 1]} : vector<2x96xf32> to vector<2x32xf32>
    %1380 = arith.mulf %1379, %1371 : vector<2x32xf32>
    %1381 = arith.addf %1378, %1380 : vector<2x32xf32>
    %1382 = vector.extract_strided_slice %1359 {offsets = [0, 64], sizes = [2, 32], strides = [1, 1]} : vector<2x96xf32> to vector<2x32xf32>
    %1383 = math.tanh %1376 : vector<2x32xf32>
    %1384 = arith.mulf %1382, %1383 : vector<2x32xf32>
    %1385 = vector.extract_strided_slice %1369 {offsets = [0, 64], sizes = [2, 32], strides = [1, 1]} : vector<2x96xf32> to vector<2x32xf32>
    %1386 = math.tanh %1381 : vector<2x32xf32>
    %1387 = arith.mulf %1385, %1386 : vector<2x32xf32>
    %1388 = vector.shape_cast %8 : vector<2x1xi1> to vector<2x1xi1>
    %1389 = vector.broadcast %1388 : vector<2x1xi1> to vector<2x32xi1>
    %1390 = arith.select %1389, %1384, %1330 : vector<2x32xi1>, vector<2x32xf32>
    %1391 = vector.shape_cast %8 : vector<2x1xi1> to vector<2x1xi1>
    %1392 = vector.broadcast %1391 : vector<2x1xi1> to vector<2x32xi1>
    %1393 = arith.select %1392, %1376, %1333 : vector<2x32xi1>, vector<2x32xf32>
    %1394 = vector.shape_cast %10 : vector<2x1xi1> to vector<2x1xi1>
    %1395 = vector.broadcast %1394 : vector<2x1xi1> to vector<2x32xi1>
    %1396 = arith.select %1395, %1387, %1336 : vector<2x32xi1>, vector<2x32xf32>
    %1397 = vector.shape_cast %10 : vector<2x1xi1> to vector<2x1xi1>
    %1398 = vector.broadcast %1397 : vector<2x1xi1> to vector<2x32xi1>
    %1399 = arith.select %1398, %1381, %1339 : vector<2x32xi1>, vector<2x32xf32>
    %c3_448 = arith.constant 3 : index
    %c0_449 = arith.constant 0 : index
    %c0_450 = arith.constant 0 : index
    %1400 = vector.load %arg8[%c3_448, %c0_449, %c0_450] : memref<8x2x32xf32, #tpu.memory_space<vmem>>, vector<1x2x32xf32>
    %1401 = vector.shape_cast %1400 : vector<1x2x32xf32> to vector<2x32xf32>
    %1402 = vector.shape_cast %1390 : vector<2x32xf32> to vector<1x2x32xf32>
    tpu.vector_store %arg8[%c3_448, %c0_449, %c0_450], %1402 {strides = array<i32>} : memref<8x2x32xf32, #tpu.memory_space<vmem>>, vector<1x2x32xf32>,
    %c4_451 = arith.constant 4 : index
    %c0_452 = arith.constant 0 : index
    %c0_453 = arith.constant 0 : index
    %1403 = vector.load %arg9[%c4_451, %c0_452, %c0_453] : memref<8x2x32xf32, #tpu.memory_space<vmem>>, vector<1x2x32xf32>
    %1404 = vector.shape_cast %1403 : vector<1x2x32xf32> to vector<2x32xf32>
    %1405 = vector.shape_cast %1396 : vector<2x32xf32> to vector<1x2x32xf32>
    tpu.vector_store %arg9[%c4_451, %c0_452, %c0_453], %1405 {strides = array<i32>} : memref<8x2x32xf32, #tpu.memory_space<vmem>>, vector<1x2x32xf32>,
    %1406 = vector.extract_strided_slice %1141 {offsets = [0, 0], sizes = [2, 128], strides = [1, 1]} : vector<2x256xf32> to vector<2x128xf32>
    %cst_454 = arith.constant dense<0.000000e+00> : vector<2x128xf32>
    %1407 = tpu.matmul %1390, %1099, %cst_454 {dimension_numbers = #tpu.dot_dimension_numbers<[1], [0], [0], [1], [0, 0, 1, 1], [], []>} : vector<2x32xf32>, vector<32x128xf32>, vector<2x128xf32> -> vector<2x128xf32>
    %1408 = arith.addf %1406, %1407 : vector<2x128xf32>
    %1409 = vector.extract_strided_slice %1133 {offsets = [0, 128], sizes = [2, 128], strides = [1, 1]} : vector<2x256xf32> to vector<2x128xf32>
    %cst_455 = arith.constant dense<0.000000e+00> : vector<2x128xf32>
    %1410 = tpu.matmul %1396, %1101, %cst_455 {dimension_numbers = #tpu.dot_dimension_numbers<[1], [0], [0], [1], [0, 0, 1, 1], [], []>} : vector<2x32xf32>, vector<32x128xf32>, vector<2x128xf32> -> vector<2x128xf32>
    %1411 = arith.addf %1409, %1410 : vector<2x128xf32>
    %1412 = vector.extract_strided_slice %1408 {offsets = [0, 0], sizes = [2, 96], strides = [1, 1]} : vector<2x128xf32> to vector<2x96xf32>
    %cst_456 = arith.constant 5.000000e-01 : f32
    %1413 = vector.broadcast %cst_456 : f32 to vector<2x96xf32>
    %1414 = arith.mulf %1413, %1412 : vector<2x96xf32>
    %1415 = math.tanh %1414 : vector<2x96xf32>
    %cst_457 = arith.constant 5.000000e-01 : f32
    %1416 = vector.broadcast %cst_457 : f32 to vector<2x96xf32>
    %1417 = arith.mulf %1416, %1415 : vector<2x96xf32>
    %cst_458 = arith.constant 5.000000e-01 : f32
    %1418 = vector.broadcast %cst_458 : f32 to vector<2x96xf32>
    %1419 = arith.addf %1417, %1418 : vector<2x96xf32>
    %1420 = vector.extract_strided_slice %1408 {offsets = [0, 96], sizes = [2, 32], strides = [1, 1]} : vector<2x128xf32> to vector<2x32xf32>
    %1421 = math.tanh %1420 : vector<2x32xf32>
    %1422 = vector.extract_strided_slice %1411 {offsets = [0, 0], sizes = [2, 96], strides = [1, 1]} : vector<2x128xf32> to vector<2x96xf32>
    %cst_459 = arith.constant 5.000000e-01 : f32
    %1423 = vector.broadcast %cst_459 : f32 to vector<2x96xf32>
    %1424 = arith.mulf %1423, %1422 : vector<2x96xf32>
    %1425 = math.tanh %1424 : vector<2x96xf32>
    %cst_460 = arith.constant 5.000000e-01 : f32
    %1426 = vector.broadcast %cst_460 : f32 to vector<2x96xf32>
    %1427 = arith.mulf %1426, %1425 : vector<2x96xf32>
    %cst_461 = arith.constant 5.000000e-01 : f32
    %1428 = vector.broadcast %cst_461 : f32 to vector<2x96xf32>
    %1429 = arith.addf %1427, %1428 : vector<2x96xf32>
    %1430 = vector.extract_strided_slice %1411 {offsets = [0, 96], sizes = [2, 32], strides = [1, 1]} : vector<2x128xf32> to vector<2x32xf32>
    %1431 = math.tanh %1430 : vector<2x32xf32>
    %1432 = vector.extract_strided_slice %1419 {offsets = [0, 32], sizes = [2, 32], strides = [1, 1]} : vector<2x96xf32> to vector<2x32xf32>
    %1433 = arith.mulf %1432, %1393 : vector<2x32xf32>
    %1434 = vector.extract_strided_slice %1419 {offsets = [0, 0], sizes = [2, 32], strides = [1, 1]} : vector<2x96xf32> to vector<2x32xf32>
    %1435 = arith.mulf %1434, %1421 : vector<2x32xf32>
    %1436 = arith.addf %1433, %1435 : vector<2x32xf32>
    %1437 = vector.extract_strided_slice %1429 {offsets = [0, 32], sizes = [2, 32], strides = [1, 1]} : vector<2x96xf32> to vector<2x32xf32>
    %1438 = arith.mulf %1437, %1399 : vector<2x32xf32>
    %1439 = vector.extract_strided_slice %1429 {offsets = [0, 0], sizes = [2, 32], strides = [1, 1]} : vector<2x96xf32> to vector<2x32xf32>
    %1440 = arith.mulf %1439, %1431 : vector<2x32xf32>
    %1441 = arith.addf %1438, %1440 : vector<2x32xf32>
    %1442 = vector.extract_strided_slice %1419 {offsets = [0, 64], sizes = [2, 32], strides = [1, 1]} : vector<2x96xf32> to vector<2x32xf32>
    %1443 = math.tanh %1436 : vector<2x32xf32>
    %1444 = arith.mulf %1442, %1443 : vector<2x32xf32>
    %1445 = vector.extract_strided_slice %1429 {offsets = [0, 64], sizes = [2, 32], strides = [1, 1]} : vector<2x96xf32> to vector<2x32xf32>
    %1446 = math.tanh %1441 : vector<2x32xf32>
    %1447 = arith.mulf %1445, %1446 : vector<2x32xf32>
    %1448 = vector.shape_cast %10 : vector<2x1xi1> to vector<2x1xi1>
    %1449 = vector.broadcast %1448 : vector<2x1xi1> to vector<2x32xi1>
    %1450 = arith.select %1449, %1444, %1390 : vector<2x32xi1>, vector<2x32xf32>
    %1451 = vector.shape_cast %10 : vector<2x1xi1> to vector<2x1xi1>
    %1452 = vector.broadcast %1451 : vector<2x1xi1> to vector<2x32xi1>
    %1453 = arith.select %1452, %1436, %1393 : vector<2x32xi1>, vector<2x32xf32>
    %1454 = vector.shape_cast %8 : vector<2x1xi1> to vector<2x1xi1>
    %1455 = vector.broadcast %1454 : vector<2x1xi1> to vector<2x32xi1>
    %1456 = arith.select %1455, %1447, %1396 : vector<2x32xi1>, vector<2x32xf32>
    %1457 = vector.shape_cast %8 : vector<2x1xi1> to vector<2x1xi1>
    %1458 = vector.broadcast %1457 : vector<2x1xi1> to vector<2x32xi1>
    %1459 = arith.select %1458, %1441, %1399 : vector<2x32xi1>, vector<2x32xf32>
    %c4_462 = arith.constant 4 : index
    %c0_463 = arith.constant 0 : index
    %c0_464 = arith.constant 0 : index
    %1460 = vector.load %arg8[%c4_462, %c0_463, %c0_464] : memref<8x2x32xf32, #tpu.memory_space<vmem>>, vector<1x2x32xf32>
    %1461 = vector.shape_cast %1460 : vector<1x2x32xf32> to vector<2x32xf32>
    %1462 = vector.shape_cast %1450 : vector<2x32xf32> to vector<1x2x32xf32>
    tpu.vector_store %arg8[%c4_462, %c0_463, %c0_464], %1462 {strides = array<i32>} : memref<8x2x32xf32, #tpu.memory_space<vmem>>, vector<1x2x32xf32>,
    %c3_465 = arith.constant 3 : index
    %c0_466 = arith.constant 0 : index
    %c0_467 = arith.constant 0 : index
    %1463 = vector.load %arg9[%c3_465, %c0_466, %c0_467] : memref<8x2x32xf32, #tpu.memory_space<vmem>>, vector<1x2x32xf32>
    %1464 = vector.shape_cast %1463 : vector<1x2x32xf32> to vector<2x32xf32>
    %1465 = vector.shape_cast %1456 : vector<2x32xf32> to vector<1x2x32xf32>
    tpu.vector_store %arg9[%c3_465, %c0_466, %c0_467], %1465 {strides = array<i32>} : memref<8x2x32xf32, #tpu.memory_space<vmem>>, vector<1x2x32xf32>,
    %1466 = vector.extract_strided_slice %1149 {offsets = [0, 0], sizes = [2, 128], strides = [1, 1]} : vector<2x256xf32> to vector<2x128xf32>
    %cst_468 = arith.constant dense<0.000000e+00> : vector<2x128xf32>
    %1467 = tpu.matmul %1450, %1099, %cst_468 {dimension_numbers = #tpu.dot_dimension_numbers<[1], [0], [0], [1], [0, 0, 1, 1], [], []>} : vector<2x32xf32>, vector<32x128xf32>, vector<2x128xf32> -> vector<2x128xf32>
    %1468 = arith.addf %1466, %1467 : vector<2x128xf32>
    %1469 = vector.extract_strided_slice %1125 {offsets = [0, 128], sizes = [2, 128], strides = [1, 1]} : vector<2x256xf32> to vector<2x128xf32>
    %cst_469 = arith.constant dense<0.000000e+00> : vector<2x128xf32>
    %1470 = tpu.matmul %1456, %1101, %cst_469 {dimension_numbers = #tpu.dot_dimension_numbers<[1], [0], [0], [1], [0, 0, 1, 1], [], []>} : vector<2x32xf32>, vector<32x128xf32>, vector<2x128xf32> -> vector<2x128xf32>
    %1471 = arith.addf %1469, %1470 : vector<2x128xf32>
    %1472 = vector.extract_strided_slice %1468 {offsets = [0, 0], sizes = [2, 96], strides = [1, 1]} : vector<2x128xf32> to vector<2x96xf32>
    %cst_470 = arith.constant 5.000000e-01 : f32
    %1473 = vector.broadcast %cst_470 : f32 to vector<2x96xf32>
    %1474 = arith.mulf %1473, %1472 : vector<2x96xf32>
    %1475 = math.tanh %1474 : vector<2x96xf32>
    %cst_471 = arith.constant 5.000000e-01 : f32
    %1476 = vector.broadcast %cst_471 : f32 to vector<2x96xf32>
    %1477 = arith.mulf %1476, %1475 : vector<2x96xf32>
    %cst_472 = arith.constant 5.000000e-01 : f32
    %1478 = vector.broadcast %cst_472 : f32 to vector<2x96xf32>
    %1479 = arith.addf %1477, %1478 : vector<2x96xf32>
    %1480 = vector.extract_strided_slice %1468 {offsets = [0, 96], sizes = [2, 32], strides = [1, 1]} : vector<2x128xf32> to vector<2x32xf32>
    %1481 = math.tanh %1480 : vector<2x32xf32>
    %1482 = vector.extract_strided_slice %1471 {offsets = [0, 0], sizes = [2, 96], strides = [1, 1]} : vector<2x128xf32> to vector<2x96xf32>
    %cst_473 = arith.constant 5.000000e-01 : f32
    %1483 = vector.broadcast %cst_473 : f32 to vector<2x96xf32>
    %1484 = arith.mulf %1483, %1482 : vector<2x96xf32>
    %1485 = math.tanh %1484 : vector<2x96xf32>
    %cst_474 = arith.constant 5.000000e-01 : f32
    %1486 = vector.broadcast %cst_474 : f32 to vector<2x96xf32>
    %1487 = arith.mulf %1486, %1485 : vector<2x96xf32>
    %cst_475 = arith.constant 5.000000e-01 : f32
    %1488 = vector.broadcast %cst_475 : f32 to vector<2x96xf32>
    %1489 = arith.addf %1487, %1488 : vector<2x96xf32>
    %1490 = vector.extract_strided_slice %1471 {offsets = [0, 96], sizes = [2, 32], strides = [1, 1]} : vector<2x128xf32> to vector<2x32xf32>
    %1491 = math.tanh %1490 : vector<2x32xf32>
    %1492 = vector.extract_strided_slice %1479 {offsets = [0, 32], sizes = [2, 32], strides = [1, 1]} : vector<2x96xf32> to vector<2x32xf32>
    %1493 = arith.mulf %1492, %1453 : vector<2x32xf32>
    %1494 = vector.extract_strided_slice %1479 {offsets = [0, 0], sizes = [2, 32], strides = [1, 1]} : vector<2x96xf32> to vector<2x32xf32>
    %1495 = arith.mulf %1494, %1481 : vector<2x32xf32>
    %1496 = arith.addf %1493, %1495 : vector<2x32xf32>
    %1497 = vector.extract_strided_slice %1489 {offsets = [0, 32], sizes = [2, 32], strides = [1, 1]} : vector<2x96xf32> to vector<2x32xf32>
    %1498 = arith.mulf %1497, %1459 : vector<2x32xf32>
    %1499 = vector.extract_strided_slice %1489 {offsets = [0, 0], sizes = [2, 32], strides = [1, 1]} : vector<2x96xf32> to vector<2x32xf32>
    %1500 = arith.mulf %1499, %1491 : vector<2x32xf32>
    %1501 = arith.addf %1498, %1500 : vector<2x32xf32>
    %1502 = vector.extract_strided_slice %1479 {offsets = [0, 64], sizes = [2, 32], strides = [1, 1]} : vector<2x96xf32> to vector<2x32xf32>
    %1503 = math.tanh %1496 : vector<2x32xf32>
    %1504 = arith.mulf %1502, %1503 : vector<2x32xf32>
    %1505 = vector.extract_strided_slice %1489 {offsets = [0, 64], sizes = [2, 32], strides = [1, 1]} : vector<2x96xf32> to vector<2x32xf32>
    %1506 = math.tanh %1501 : vector<2x32xf32>
    %1507 = arith.mulf %1505, %1506 : vector<2x32xf32>
    %1508 = vector.shape_cast %12 : vector<2x1xi1> to vector<2x1xi1>
    %1509 = vector.broadcast %1508 : vector<2x1xi1> to vector<2x32xi1>
    %1510 = arith.select %1509, %1504, %1450 : vector<2x32xi1>, vector<2x32xf32>
    %1511 = vector.shape_cast %12 : vector<2x1xi1> to vector<2x1xi1>
    %1512 = vector.broadcast %1511 : vector<2x1xi1> to vector<2x32xi1>
    %1513 = arith.select %1512, %1496, %1453 : vector<2x32xi1>, vector<2x32xf32>
    %1514 = vector.shape_cast %6 : vector<2x1xi1> to vector<2x1xi1>
    %1515 = vector.broadcast %1514 : vector<2x1xi1> to vector<2x32xi1>
    %1516 = arith.select %1515, %1507, %1456 : vector<2x32xi1>, vector<2x32xf32>
    %1517 = vector.shape_cast %6 : vector<2x1xi1> to vector<2x1xi1>
    %1518 = vector.broadcast %1517 : vector<2x1xi1> to vector<2x32xi1>
    %1519 = arith.select %1518, %1501, %1459 : vector<2x32xi1>, vector<2x32xf32>
    %c5_476 = arith.constant 5 : index
    %c0_477 = arith.constant 0 : index
    %c0_478 = arith.constant 0 : index
    %1520 = vector.load %arg8[%c5_476, %c0_477, %c0_478] : memref<8x2x32xf32, #tpu.memory_space<vmem>>, vector<1x2x32xf32>
    %1521 = vector.shape_cast %1520 : vector<1x2x32xf32> to vector<2x32xf32>
    %1522 = vector.shape_cast %1510 : vector<2x32xf32> to vector<1x2x32xf32>
    tpu.vector_store %arg8[%c5_476, %c0_477, %c0_478], %1522 {strides = array<i32>} : memref<8x2x32xf32, #tpu.memory_space<vmem>>, vector<1x2x32xf32>,
    %c2_479 = arith.constant 2 : index
    %c0_480 = arith.constant 0 : index
    %c0_481 = arith.constant 0 : index
    %1523 = vector.load %arg9[%c2_479, %c0_480, %c0_481] : memref<8x2x32xf32, #tpu.memory_space<vmem>>, vector<1x2x32xf32>
    %1524 = vector.shape_cast %1523 : vector<1x2x32xf32> to vector<2x32xf32>
    %1525 = vector.shape_cast %1516 : vector<2x32xf32> to vector<1x2x32xf32>
    tpu.vector_store %arg9[%c2_479, %c0_480, %c0_481], %1525 {strides = array<i32>} : memref<8x2x32xf32, #tpu.memory_space<vmem>>, vector<1x2x32xf32>,
    %1526 = vector.extract_strided_slice %1157 {offsets = [0, 0], sizes = [2, 128], strides = [1, 1]} : vector<2x256xf32> to vector<2x128xf32>
    %cst_482 = arith.constant dense<0.000000e+00> : vector<2x128xf32>
    %1527 = tpu.matmul %1510, %1099, %cst_482 {dimension_numbers = #tpu.dot_dimension_numbers<[1], [0], [0], [1], [0, 0, 1, 1], [], []>} : vector<2x32xf32>, vector<32x128xf32>, vector<2x128xf32> -> vector<2x128xf32>
    %1528 = arith.addf %1526, %1527 : vector<2x128xf32>
    %1529 = vector.extract_strided_slice %1117 {offsets = [0, 128], sizes = [2, 128], strides = [1, 1]} : vector<2x256xf32> to vector<2x128xf32>
    %cst_483 = arith.constant dense<0.000000e+00> : vector<2x128xf32>
    %1530 = tpu.matmul %1516, %1101, %cst_483 {dimension_numbers = #tpu.dot_dimension_numbers<[1], [0], [0], [1], [0, 0, 1, 1], [], []>} : vector<2x32xf32>, vector<32x128xf32>, vector<2x128xf32> -> vector<2x128xf32>
    %1531 = arith.addf %1529, %1530 : vector<2x128xf32>
    %1532 = vector.extract_strided_slice %1528 {offsets = [0, 0], sizes = [2, 96], strides = [1, 1]} : vector<2x128xf32> to vector<2x96xf32>
    %cst_484 = arith.constant 5.000000e-01 : f32
    %1533 = vector.broadcast %cst_484 : f32 to vector<2x96xf32>
    %1534 = arith.mulf %1533, %1532 : vector<2x96xf32>
    %1535 = math.tanh %1534 : vector<2x96xf32>
    %cst_485 = arith.constant 5.000000e-01 : f32
    %1536 = vector.broadcast %cst_485 : f32 to vector<2x96xf32>
    %1537 = arith.mulf %1536, %1535 : vector<2x96xf32>
    %cst_486 = arith.constant 5.000000e-01 : f32
    %1538 = vector.broadcast %cst_486 : f32 to vector<2x96xf32>
    %1539 = arith.addf %1537, %1538 : vector<2x96xf32>
    %1540 = vector.extract_strided_slice %1528 {offsets = [0, 96], sizes = [2, 32], strides = [1, 1]} : vector<2x128xf32> to vector<2x32xf32>
    %1541 = math.tanh %1540 : vector<2x32xf32>
    %1542 = vector.extract_strided_slice %1531 {offsets = [0, 0], sizes = [2, 96], strides = [1, 1]} : vector<2x128xf32> to vector<2x96xf32>
    %cst_487 = arith.constant 5.000000e-01 : f32
    %1543 = vector.broadcast %cst_487 : f32 to vector<2x96xf32>
    %1544 = arith.mulf %1543, %1542 : vector<2x96xf32>
    %1545 = math.tanh %1544 : vector<2x96xf32>
    %cst_488 = arith.constant 5.000000e-01 : f32
    %1546 = vector.broadcast %cst_488 : f32 to vector<2x96xf32>
    %1547 = arith.mulf %1546, %1545 : vector<2x96xf32>
    %cst_489 = arith.constant 5.000000e-01 : f32
    %1548 = vector.broadcast %cst_489 : f32 to vector<2x96xf32>
    %1549 = arith.addf %1547, %1548 : vector<2x96xf32>
    %1550 = vector.extract_strided_slice %1531 {offsets = [0, 96], sizes = [2, 32], strides = [1, 1]} : vector<2x128xf32> to vector<2x32xf32>
    %1551 = math.tanh %1550 : vector<2x32xf32>
    %1552 = vector.extract_strided_slice %1539 {offsets = [0, 32], sizes = [2, 32], strides = [1, 1]} : vector<2x96xf32> to vector<2x32xf32>
    %1553 = arith.mulf %1552, %1513 : vector<2x32xf32>
    %1554 = vector.extract_strided_slice %1539 {offsets = [0, 0], sizes = [2, 32], strides = [1, 1]} : vector<2x96xf32> to vector<2x32xf32>
    %1555 = arith.mulf %1554, %1541 : vector<2x32xf32>
    %1556 = arith.addf %1553, %1555 : vector<2x32xf32>
    %1557 = vector.extract_strided_slice %1549 {offsets = [0, 32], sizes = [2, 32], strides = [1, 1]} : vector<2x96xf32> to vector<2x32xf32>
    %1558 = arith.mulf %1557, %1519 : vector<2x32xf32>
    %1559 = vector.extract_strided_slice %1549 {offsets = [0, 0], sizes = [2, 32], strides = [1, 1]} : vector<2x96xf32> to vector<2x32xf32>
    %1560 = arith.mulf %1559, %1551 : vector<2x32xf32>
    %1561 = arith.addf %1558, %1560 : vector<2x32xf32>
    %1562 = vector.extract_strided_slice %1539 {offsets = [0, 64], sizes = [2, 32], strides = [1, 1]} : vector<2x96xf32> to vector<2x32xf32>
    %1563 = math.tanh %1556 : vector<2x32xf32>
    %1564 = arith.mulf %1562, %1563 : vector<2x32xf32>
    %1565 = vector.extract_strided_slice %1549 {offsets = [0, 64], sizes = [2, 32], strides = [1, 1]} : vector<2x96xf32> to vector<2x32xf32>
    %1566 = math.tanh %1561 : vector<2x32xf32>
    %1567 = arith.mulf %1565, %1566 : vector<2x32xf32>
    %1568 = vector.shape_cast %14 : vector<2x1xi1> to vector<2x1xi1>
    %1569 = vector.broadcast %1568 : vector<2x1xi1> to vector<2x32xi1>
    %1570 = arith.select %1569, %1564, %1510 : vector<2x32xi1>, vector<2x32xf32>
    %1571 = vector.shape_cast %14 : vector<2x1xi1> to vector<2x1xi1>
    %1572 = vector.broadcast %1571 : vector<2x1xi1> to vector<2x32xi1>
    %1573 = arith.select %1572, %1556, %1513 : vector<2x32xi1>, vector<2x32xf32>
    %1574 = vector.shape_cast %4 : vector<2x1xi1> to vector<2x1xi1>
    %1575 = vector.broadcast %1574 : vector<2x1xi1> to vector<2x32xi1>
    %1576 = arith.select %1575, %1567, %1516 : vector<2x32xi1>, vector<2x32xf32>
    %1577 = vector.shape_cast %4 : vector<2x1xi1> to vector<2x1xi1>
    %1578 = vector.broadcast %1577 : vector<2x1xi1> to vector<2x32xi1>
    %1579 = arith.select %1578, %1561, %1519 : vector<2x32xi1>, vector<2x32xf32>
    %c6_490 = arith.constant 6 : index
    %c0_491 = arith.constant 0 : index
    %c0_492 = arith.constant 0 : index
    %1580 = vector.load %arg8[%c6_490, %c0_491, %c0_492] : memref<8x2x32xf32, #tpu.memory_space<vmem>>, vector<1x2x32xf32>
    %1581 = vector.shape_cast %1580 : vector<1x2x32xf32> to vector<2x32xf32>
    %1582 = vector.shape_cast %1570 : vector<2x32xf32> to vector<1x2x32xf32>
    tpu.vector_store %arg8[%c6_490, %c0_491, %c0_492], %1582 {strides = array<i32>} : memref<8x2x32xf32, #tpu.memory_space<vmem>>, vector<1x2x32xf32>,
    %c1_493 = arith.constant 1 : index
    %c0_494 = arith.constant 0 : index
    %c0_495 = arith.constant 0 : index
    %1583 = vector.load %arg9[%c1_493, %c0_494, %c0_495] : memref<8x2x32xf32, #tpu.memory_space<vmem>>, vector<1x2x32xf32>
    %1584 = vector.shape_cast %1583 : vector<1x2x32xf32> to vector<2x32xf32>
    %1585 = vector.shape_cast %1576 : vector<2x32xf32> to vector<1x2x32xf32>
    tpu.vector_store %arg9[%c1_493, %c0_494, %c0_495], %1585 {strides = array<i32>} : memref<8x2x32xf32, #tpu.memory_space<vmem>>, vector<1x2x32xf32>,
    %1586 = vector.extract_strided_slice %1165 {offsets = [0, 0], sizes = [2, 128], strides = [1, 1]} : vector<2x256xf32> to vector<2x128xf32>
    %cst_496 = arith.constant dense<0.000000e+00> : vector<2x128xf32>
    %1587 = tpu.matmul %1570, %1099, %cst_496 {dimension_numbers = #tpu.dot_dimension_numbers<[1], [0], [0], [1], [0, 0, 1, 1], [], []>} : vector<2x32xf32>, vector<32x128xf32>, vector<2x128xf32> -> vector<2x128xf32>
    %1588 = arith.addf %1586, %1587 : vector<2x128xf32>
    %1589 = vector.extract_strided_slice %1109 {offsets = [0, 128], sizes = [2, 128], strides = [1, 1]} : vector<2x256xf32> to vector<2x128xf32>
    %cst_497 = arith.constant dense<0.000000e+00> : vector<2x128xf32>
    %1590 = tpu.matmul %1576, %1101, %cst_497 {dimension_numbers = #tpu.dot_dimension_numbers<[1], [0], [0], [1], [0, 0, 1, 1], [], []>} : vector<2x32xf32>, vector<32x128xf32>, vector<2x128xf32> -> vector<2x128xf32>
    %1591 = arith.addf %1589, %1590 : vector<2x128xf32>
    %1592 = vector.extract_strided_slice %1588 {offsets = [0, 0], sizes = [2, 96], strides = [1, 1]} : vector<2x128xf32> to vector<2x96xf32>
    %cst_498 = arith.constant 5.000000e-01 : f32
    %1593 = vector.broadcast %cst_498 : f32 to vector<2x96xf32>
    %1594 = arith.mulf %1593, %1592 : vector<2x96xf32>
    %1595 = math.tanh %1594 : vector<2x96xf32>
    %cst_499 = arith.constant 5.000000e-01 : f32
    %1596 = vector.broadcast %cst_499 : f32 to vector<2x96xf32>
    %1597 = arith.mulf %1596, %1595 : vector<2x96xf32>
    %cst_500 = arith.constant 5.000000e-01 : f32
    %1598 = vector.broadcast %cst_500 : f32 to vector<2x96xf32>
    %1599 = arith.addf %1597, %1598 : vector<2x96xf32>
    %1600 = vector.extract_strided_slice %1588 {offsets = [0, 96], sizes = [2, 32], strides = [1, 1]} : vector<2x128xf32> to vector<2x32xf32>
    %1601 = math.tanh %1600 : vector<2x32xf32>
    %1602 = vector.extract_strided_slice %1591 {offsets = [0, 0], sizes = [2, 96], strides = [1, 1]} : vector<2x128xf32> to vector<2x96xf32>
    %cst_501 = arith.constant 5.000000e-01 : f32
    %1603 = vector.broadcast %cst_501 : f32 to vector<2x96xf32>
    %1604 = arith.mulf %1603, %1602 : vector<2x96xf32>
    %1605 = math.tanh %1604 : vector<2x96xf32>
    %cst_502 = arith.constant 5.000000e-01 : f32
    %1606 = vector.broadcast %cst_502 : f32 to vector<2x96xf32>
    %1607 = arith.mulf %1606, %1605 : vector<2x96xf32>
    %cst_503 = arith.constant 5.000000e-01 : f32
    %1608 = vector.broadcast %cst_503 : f32 to vector<2x96xf32>
    %1609 = arith.addf %1607, %1608 : vector<2x96xf32>
    %1610 = vector.extract_strided_slice %1591 {offsets = [0, 96], sizes = [2, 32], strides = [1, 1]} : vector<2x128xf32> to vector<2x32xf32>
    %1611 = math.tanh %1610 : vector<2x32xf32>
    %1612 = vector.extract_strided_slice %1599 {offsets = [0, 32], sizes = [2, 32], strides = [1, 1]} : vector<2x96xf32> to vector<2x32xf32>
    %1613 = arith.mulf %1612, %1573 : vector<2x32xf32>
    %1614 = vector.extract_strided_slice %1599 {offsets = [0, 0], sizes = [2, 32], strides = [1, 1]} : vector<2x96xf32> to vector<2x32xf32>
    %1615 = arith.mulf %1614, %1601 : vector<2x32xf32>
    %1616 = arith.addf %1613, %1615 : vector<2x32xf32>
    %1617 = vector.extract_strided_slice %1609 {offsets = [0, 32], sizes = [2, 32], strides = [1, 1]} : vector<2x96xf32> to vector<2x32xf32>
    %1618 = arith.mulf %1617, %1579 : vector<2x32xf32>
    %1619 = vector.extract_strided_slice %1609 {offsets = [0, 0], sizes = [2, 32], strides = [1, 1]} : vector<2x96xf32> to vector<2x32xf32>
    %1620 = arith.mulf %1619, %1611 : vector<2x32xf32>
    %1621 = arith.addf %1618, %1620 : vector<2x32xf32>
    %1622 = vector.extract_strided_slice %1599 {offsets = [0, 64], sizes = [2, 32], strides = [1, 1]} : vector<2x96xf32> to vector<2x32xf32>
    %1623 = math.tanh %1616 : vector<2x32xf32>
    %1624 = arith.mulf %1622, %1623 : vector<2x32xf32>
    %1625 = vector.extract_strided_slice %1609 {offsets = [0, 64], sizes = [2, 32], strides = [1, 1]} : vector<2x96xf32> to vector<2x32xf32>
    %1626 = math.tanh %1621 : vector<2x32xf32>
    %1627 = arith.mulf %1625, %1626 : vector<2x32xf32>
    %1628 = vector.shape_cast %16 : vector<2x1xi1> to vector<2x1xi1>
    %1629 = vector.broadcast %1628 : vector<2x1xi1> to vector<2x32xi1>
    %1630 = arith.select %1629, %1624, %1570 : vector<2x32xi1>, vector<2x32xf32>
    %1631 = vector.shape_cast %2 : vector<2x1xi1> to vector<2x1xi1>
    %1632 = vector.broadcast %1631 : vector<2x1xi1> to vector<2x32xi1>
    %1633 = arith.select %1632, %1627, %1576 : vector<2x32xi1>, vector<2x32xf32>
    %c7_504 = arith.constant 7 : index
    %c0_505 = arith.constant 0 : index
    %c0_506 = arith.constant 0 : index
    %1634 = vector.load %arg8[%c7_504, %c0_505, %c0_506] : memref<8x2x32xf32, #tpu.memory_space<vmem>>, vector<1x2x32xf32>
    %1635 = vector.shape_cast %1634 : vector<1x2x32xf32> to vector<2x32xf32>
    %1636 = vector.shape_cast %1630 : vector<2x32xf32> to vector<1x2x32xf32>
    tpu.vector_store %arg8[%c7_504, %c0_505, %c0_506], %1636 {strides = array<i32>} : memref<8x2x32xf32, #tpu.memory_space<vmem>>, vector<1x2x32xf32>,
    %c0_507 = arith.constant 0 : index
    %c0_508 = arith.constant 0 : index
    %c0_509 = arith.constant 0 : index
    %1637 = vector.load %arg9[%c0_507, %c0_508, %c0_509] : memref<8x2x32xf32, #tpu.memory_space<vmem>>, vector<1x2x32xf32>
    %1638 = vector.shape_cast %1637 : vector<1x2x32xf32> to vector<2x32xf32>
    %1639 = vector.shape_cast %1633 : vector<2x32xf32> to vector<1x2x32xf32>
    tpu.vector_store %arg9[%c0_507, %c0_508, %c0_509], %1639 {strides = array<i32>} : memref<8x2x32xf32, #tpu.memory_space<vmem>>, vector<1x2x32xf32>,
    %c0_510 = arith.constant 0 : index
    %c0_511 = arith.constant 0 : index
    %1640 = vector.load %arg5[%c0_510, %c0_511] : memref<384x128xf32, #tpu.memory_space<vmem>>, vector<32x128xf32>
    %c32 = arith.constant 32 : index
    %c0_512 = arith.constant 0 : index
    %1641 = vector.load %arg5[%c32, %c0_512] : memref<384x128xf32, #tpu.memory_space<vmem>>, vector<32x128xf32>
    %c64 = arith.constant 64 : index
    %c0_513 = arith.constant 0 : index
    %1642 = vector.load %arg5[%c64, %c0_513] : memref<384x128xf32, #tpu.memory_space<vmem>>, vector<32x128xf32>
    %c96 = arith.constant 96 : index
    %c0_514 = arith.constant 0 : index
    %1643 = vector.load %arg5[%c96, %c0_514] : memref<384x128xf32, #tpu.memory_space<vmem>>, vector<32x128xf32>
    %c128 = arith.constant 128 : index
    %c0_515 = arith.constant 0 : index
    %1644 = vector.load %arg5[%c128, %c0_515] : memref<384x128xf32, #tpu.memory_space<vmem>>, vector<32x128xf32>
    %c160 = arith.constant 160 : index
    %c0_516 = arith.constant 0 : index
    %1645 = vector.load %arg5[%c160, %c0_516] : memref<384x128xf32, #tpu.memory_space<vmem>>, vector<32x128xf32>
    %c192 = arith.constant 192 : index
    %c0_517 = arith.constant 0 : index
    %1646 = vector.load %arg5[%c192, %c0_517] : memref<384x128xf32, #tpu.memory_space<vmem>>, vector<32x128xf32>
    %c224 = arith.constant 224 : index
    %c0_518 = arith.constant 0 : index
    %1647 = vector.load %arg5[%c224, %c0_518] : memref<384x128xf32, #tpu.memory_space<vmem>>, vector<32x128xf32>
    %c256 = arith.constant 256 : index
    %c0_519 = arith.constant 0 : index
    %1648 = vector.load %arg5[%c256, %c0_519] : memref<384x128xf32, #tpu.memory_space<vmem>>, vector<128x128xf32>
    %c0_520 = arith.constant 0 : index
    %c0_521 = arith.constant 0 : index
    %1649 = vector.load %arg6[%c0_520, %c0_521] : memref<8x128xf32, #tpu.memory_space<vmem>>, vector<8x128xf32>
    %1650 = vector.extract_strided_slice %1649 {offsets = [0, 0], sizes = [1, 128], strides = [1, 1]} : vector<8x128xf32> to vector<1x128xf32>
    %1651 = vector.extract_strided_slice %1649 {offsets = [1, 0], sizes = [1, 128], strides = [1, 1]} : vector<8x128xf32> to vector<1x128xf32>
    %1652 = vector.extract_strided_slice %1649 {offsets = [2, 0], sizes = [1, 128], strides = [1, 1]} : vector<8x128xf32> to vector<1x128xf32>
    %1653 = vector.extract_strided_slice %1649 {offsets = [3, 0], sizes = [1, 128], strides = [1, 1]} : vector<8x128xf32> to vector<1x128xf32>
    %cst_522 = arith.constant dense<0.000000e+00> : vector<2x128xf32>
    %1654 = tpu.matmul %1630, %1642, %cst_522 {dimension_numbers = #tpu.dot_dimension_numbers<[1], [0], [0], [1], [0, 0, 1, 1], [], []>} : vector<2x32xf32>, vector<32x128xf32>, vector<2x128xf32> -> vector<2x128xf32>
    %cst_523 = arith.constant dense<0.000000e+00> : vector<2x128xf32>
    %1655 = tpu.matmul %1633, %1643, %cst_523 {dimension_numbers = #tpu.dot_dimension_numbers<[1], [0], [0], [1], [0, 0, 1, 1], [], []>} : vector<2x32xf32>, vector<32x128xf32>, vector<2x128xf32> -> vector<2x128xf32>
    %1656 = arith.addf %1654, %1655 : vector<2x128xf32>
    %1657 = vector.broadcast %1650 : vector<1x128xf32> to vector<2x128xf32>
    %1658 = arith.addf %1656, %1657 : vector<2x128xf32>
    %1659 = tpu.iota {dimensions = array<i32: 1>} : vector<2x8xi32>
    %cst_524 = arith.constant 0.000000e+00 : f32
    %1660 = vector.broadcast %cst_524 : f32 to vector<2x8xf32>
    %c0_525 = arith.constant 0 : index
    %c0_526 = arith.constant 0 : index
    %c0_527 = arith.constant 0 : index
    %1661 = vector.load %arg8[%c0_525, %c0_526, %c0_527] : memref<8x2x32xf32, #tpu.memory_space<vmem>>, vector<1x2x32xf32>
    %1662 = vector.shape_cast %1661 : vector<1x2x32xf32> to vector<2x32xf32>
    %cst_528 = arith.constant dense<0.000000e+00> : vector<2x128xf32>
    %1663 = tpu.matmul %1662, %1640, %cst_528 {dimension_numbers = #tpu.dot_dimension_numbers<[1], [0], [0], [1], [0, 0, 1, 1], [], []>} : vector<2x32xf32>, vector<32x128xf32>, vector<2x128xf32> -> vector<2x128xf32>
    %c0_529 = arith.constant 0 : index
    %c0_530 = arith.constant 0 : index
    %c0_531 = arith.constant 0 : index
    %1664 = vector.load %arg9[%c0_529, %c0_530, %c0_531] : memref<8x2x32xf32, #tpu.memory_space<vmem>>, vector<1x2x32xf32>
    %1665 = vector.shape_cast %1664 : vector<1x2x32xf32> to vector<2x32xf32>
    %cst_532 = arith.constant dense<0.000000e+00> : vector<2x128xf32>
    %1666 = tpu.matmul %1665, %1641, %cst_532 {dimension_numbers = #tpu.dot_dimension_numbers<[1], [0], [0], [1], [0, 0, 1, 1], [], []>} : vector<2x32xf32>, vector<32x128xf32>, vector<2x128xf32> -> vector<2x128xf32>
    %1667 = arith.addf %1663, %1666 : vector<2x128xf32>
    %1668 = arith.addf %1667, %1658 : vector<2x128xf32>
    %1669 = math.tanh %1668 : vector<2x128xf32>
    %1670 = vector.broadcast %1651 : vector<1x128xf32> to vector<2x128xf32>
    %1671 = arith.mulf %1669, %1670 : vector<2x128xf32>
    %cst_533 = arith.constant dense<0.000000e+00> : vector<2xf32>
    %1672 = vector.multi_reduction <add>, %1671, %cst_533 [1] : vector<2x128xf32> to vector<2xf32>
    %1673 = vector.shape_cast %1672 : vector<2xf32> to vector<2x1xf32>
    %c0_i32_534 = arith.constant 0 : i32
    %1674 = vector.broadcast %c0_i32_534 : i32 to vector<2x8xi32>
    %1675 = arith.cmpi eq, %1659, %1674 : vector<2x8xi32>
    %cst_535 = arith.constant 0.000000e+00 : f32
    %1676 = vector.shape_cast %1673 : vector<2x1xf32> to vector<2x1xf32>
    %1677 = vector.broadcast %1676 : vector<2x1xf32> to vector<2x8xf32>
    %1678 = vector.broadcast %cst_535 : f32 to vector<2x8xf32>
    %1679 = arith.select %1675, %1677, %1678 : vector<2x8xi1>, vector<2x8xf32>
    %1680 = arith.addf %1660, %1679 : vector<2x8xf32>
    %c1_536 = arith.constant 1 : index
    %c0_537 = arith.constant 0 : index
    %c0_538 = arith.constant 0 : index
    %1681 = vector.load %arg8[%c1_536, %c0_537, %c0_538] : memref<8x2x32xf32, #tpu.memory_space<vmem>>, vector<1x2x32xf32>
    %1682 = vector.shape_cast %1681 : vector<1x2x32xf32> to vector<2x32xf32>
    %cst_539 = arith.constant dense<0.000000e+00> : vector<2x128xf32>
    %1683 = tpu.matmul %1682, %1640, %cst_539 {dimension_numbers = #tpu.dot_dimension_numbers<[1], [0], [0], [1], [0, 0, 1, 1], [], []>} : vector<2x32xf32>, vector<32x128xf32>, vector<2x128xf32> -> vector<2x128xf32>
    %c1_540 = arith.constant 1 : index
    %c0_541 = arith.constant 0 : index
    %c0_542 = arith.constant 0 : index
    %1684 = vector.load %arg9[%c1_540, %c0_541, %c0_542] : memref<8x2x32xf32, #tpu.memory_space<vmem>>, vector<1x2x32xf32>
    %1685 = vector.shape_cast %1684 : vector<1x2x32xf32> to vector<2x32xf32>
    %cst_543 = arith.constant dense<0.000000e+00> : vector<2x128xf32>
    %1686 = tpu.matmul %1685, %1641, %cst_543 {dimension_numbers = #tpu.dot_dimension_numbers<[1], [0], [0], [1], [0, 0, 1, 1], [], []>} : vector<2x32xf32>, vector<32x128xf32>, vector<2x128xf32> -> vector<2x128xf32>
    %1687 = arith.addf %1683, %1686 : vector<2x128xf32>
    %1688 = arith.addf %1687, %1658 : vector<2x128xf32>
    %1689 = math.tanh %1688 : vector<2x128xf32>
    %1690 = vector.broadcast %1651 : vector<1x128xf32> to vector<2x128xf32>
    %1691 = arith.mulf %1689, %1690 : vector<2x128xf32>
    %cst_544 = arith.constant dense<0.000000e+00> : vector<2xf32>
    %1692 = vector.multi_reduction <add>, %1691, %cst_544 [1] : vector<2x128xf32> to vector<2xf32>
    %1693 = vector.shape_cast %1692 : vector<2xf32> to vector<2x1xf32>
    %c1_i32_545 = arith.constant 1 : i32
    %1694 = vector.broadcast %c1_i32_545 : i32 to vector<2x8xi32>
    %1695 = arith.cmpi eq, %1659, %1694 : vector<2x8xi32>
    %cst_546 = arith.constant 0.000000e+00 : f32
    %1696 = vector.shape_cast %1693 : vector<2x1xf32> to vector<2x1xf32>
    %1697 = vector.broadcast %1696 : vector<2x1xf32> to vector<2x8xf32>
    %1698 = vector.broadcast %cst_546 : f32 to vector<2x8xf32>
    %1699 = arith.select %1695, %1697, %1698 : vector<2x8xi1>, vector<2x8xf32>
    %1700 = arith.addf %1680, %1699 : vector<2x8xf32>
    %c2_547 = arith.constant 2 : index
    %c0_548 = arith.constant 0 : index
    %c0_549 = arith.constant 0 : index
    %1701 = vector.load %arg8[%c2_547, %c0_548, %c0_549] : memref<8x2x32xf32, #tpu.memory_space<vmem>>, vector<1x2x32xf32>
    %1702 = vector.shape_cast %1701 : vector<1x2x32xf32> to vector<2x32xf32>
    %cst_550 = arith.constant dense<0.000000e+00> : vector<2x128xf32>
    %1703 = tpu.matmul %1702, %1640, %cst_550 {dimension_numbers = #tpu.dot_dimension_numbers<[1], [0], [0], [1], [0, 0, 1, 1], [], []>} : vector<2x32xf32>, vector<32x128xf32>, vector<2x128xf32> -> vector<2x128xf32>
    %c2_551 = arith.constant 2 : index
    %c0_552 = arith.constant 0 : index
    %c0_553 = arith.constant 0 : index
    %1704 = vector.load %arg9[%c2_551, %c0_552, %c0_553] : memref<8x2x32xf32, #tpu.memory_space<vmem>>, vector<1x2x32xf32>
    %1705 = vector.shape_cast %1704 : vector<1x2x32xf32> to vector<2x32xf32>
    %cst_554 = arith.constant dense<0.000000e+00> : vector<2x128xf32>
    %1706 = tpu.matmul %1705, %1641, %cst_554 {dimension_numbers = #tpu.dot_dimension_numbers<[1], [0], [0], [1], [0, 0, 1, 1], [], []>} : vector<2x32xf32>, vector<32x128xf32>, vector<2x128xf32> -> vector<2x128xf32>
    %1707 = arith.addf %1703, %1706 : vector<2x128xf32>
    %1708 = arith.addf %1707, %1658 : vector<2x128xf32>
    %1709 = math.tanh %1708 : vector<2x128xf32>
    %1710 = vector.broadcast %1651 : vector<1x128xf32> to vector<2x128xf32>
    %1711 = arith.mulf %1709, %1710 : vector<2x128xf32>
    %cst_555 = arith.constant dense<0.000000e+00> : vector<2xf32>
    %1712 = vector.multi_reduction <add>, %1711, %cst_555 [1] : vector<2x128xf32> to vector<2xf32>
    %1713 = vector.shape_cast %1712 : vector<2xf32> to vector<2x1xf32>
    %c2_i32_556 = arith.constant 2 : i32
    %1714 = vector.broadcast %c2_i32_556 : i32 to vector<2x8xi32>
    %1715 = arith.cmpi eq, %1659, %1714 : vector<2x8xi32>
    %cst_557 = arith.constant 0.000000e+00 : f32
    %1716 = vector.shape_cast %1713 : vector<2x1xf32> to vector<2x1xf32>
    %1717 = vector.broadcast %1716 : vector<2x1xf32> to vector<2x8xf32>
    %1718 = vector.broadcast %cst_557 : f32 to vector<2x8xf32>
    %1719 = arith.select %1715, %1717, %1718 : vector<2x8xi1>, vector<2x8xf32>
    %1720 = arith.addf %1700, %1719 : vector<2x8xf32>
    %c3_558 = arith.constant 3 : index
    %c0_559 = arith.constant 0 : index
    %c0_560 = arith.constant 0 : index
    %1721 = vector.load %arg8[%c3_558, %c0_559, %c0_560] : memref<8x2x32xf32, #tpu.memory_space<vmem>>, vector<1x2x32xf32>
    %1722 = vector.shape_cast %1721 : vector<1x2x32xf32> to vector<2x32xf32>
    %cst_561 = arith.constant dense<0.000000e+00> : vector<2x128xf32>
    %1723 = tpu.matmul %1722, %1640, %cst_561 {dimension_numbers = #tpu.dot_dimension_numbers<[1], [0], [0], [1], [0, 0, 1, 1], [], []>} : vector<2x32xf32>, vector<32x128xf32>, vector<2x128xf32> -> vector<2x128xf32>
    %c3_562 = arith.constant 3 : index
    %c0_563 = arith.constant 0 : index
    %c0_564 = arith.constant 0 : index
    %1724 = vector.load %arg9[%c3_562, %c0_563, %c0_564] : memref<8x2x32xf32, #tpu.memory_space<vmem>>, vector<1x2x32xf32>
    %1725 = vector.shape_cast %1724 : vector<1x2x32xf32> to vector<2x32xf32>
    %cst_565 = arith.constant dense<0.000000e+00> : vector<2x128xf32>
    %1726 = tpu.matmul %1725, %1641, %cst_565 {dimension_numbers = #tpu.dot_dimension_numbers<[1], [0], [0], [1], [0, 0, 1, 1], [], []>} : vector<2x32xf32>, vector<32x128xf32>, vector<2x128xf32> -> vector<2x128xf32>
    %1727 = arith.addf %1723, %1726 : vector<2x128xf32>
    %1728 = arith.addf %1727, %1658 : vector<2x128xf32>
    %1729 = math.tanh %1728 : vector<2x128xf32>
    %1730 = vector.broadcast %1651 : vector<1x128xf32> to vector<2x128xf32>
    %1731 = arith.mulf %1729, %1730 : vector<2x128xf32>
    %cst_566 = arith.constant dense<0.000000e+00> : vector<2xf32>
    %1732 = vector.multi_reduction <add>, %1731, %cst_566 [1] : vector<2x128xf32> to vector<2xf32>
    %1733 = vector.shape_cast %1732 : vector<2xf32> to vector<2x1xf32>
    %c3_i32_567 = arith.constant 3 : i32
    %1734 = vector.broadcast %c3_i32_567 : i32 to vector<2x8xi32>
    %1735 = arith.cmpi eq, %1659, %1734 : vector<2x8xi32>
    %cst_568 = arith.constant 0.000000e+00 : f32
    %1736 = vector.shape_cast %1733 : vector<2x1xf32> to vector<2x1xf32>
    %1737 = vector.broadcast %1736 : vector<2x1xf32> to vector<2x8xf32>
    %1738 = vector.broadcast %cst_568 : f32 to vector<2x8xf32>
    %1739 = arith.select %1735, %1737, %1738 : vector<2x8xi1>, vector<2x8xf32>
    %1740 = arith.addf %1720, %1739 : vector<2x8xf32>
    %c4_569 = arith.constant 4 : index
    %c0_570 = arith.constant 0 : index
    %c0_571 = arith.constant 0 : index
    %1741 = vector.load %arg8[%c4_569, %c0_570, %c0_571] : memref<8x2x32xf32, #tpu.memory_space<vmem>>, vector<1x2x32xf32>
    %1742 = vector.shape_cast %1741 : vector<1x2x32xf32> to vector<2x32xf32>
    %cst_572 = arith.constant dense<0.000000e+00> : vector<2x128xf32>
    %1743 = tpu.matmul %1742, %1640, %cst_572 {dimension_numbers = #tpu.dot_dimension_numbers<[1], [0], [0], [1], [0, 0, 1, 1], [], []>} : vector<2x32xf32>, vector<32x128xf32>, vector<2x128xf32> -> vector<2x128xf32>
    %c4_573 = arith.constant 4 : index
    %c0_574 = arith.constant 0 : index
    %c0_575 = arith.constant 0 : index
    %1744 = vector.load %arg9[%c4_573, %c0_574, %c0_575] : memref<8x2x32xf32, #tpu.memory_space<vmem>>, vector<1x2x32xf32>
    %1745 = vector.shape_cast %1744 : vector<1x2x32xf32> to vector<2x32xf32>
    %cst_576 = arith.constant dense<0.000000e+00> : vector<2x128xf32>
    %1746 = tpu.matmul %1745, %1641, %cst_576 {dimension_numbers = #tpu.dot_dimension_numbers<[1], [0], [0], [1], [0, 0, 1, 1], [], []>} : vector<2x32xf32>, vector<32x128xf32>, vector<2x128xf32> -> vector<2x128xf32>
    %1747 = arith.addf %1743, %1746 : vector<2x128xf32>
    %1748 = arith.addf %1747, %1658 : vector<2x128xf32>
    %1749 = math.tanh %1748 : vector<2x128xf32>
    %1750 = vector.broadcast %1651 : vector<1x128xf32> to vector<2x128xf32>
    %1751 = arith.mulf %1749, %1750 : vector<2x128xf32>
    %cst_577 = arith.constant dense<0.000000e+00> : vector<2xf32>
    %1752 = vector.multi_reduction <add>, %1751, %cst_577 [1] : vector<2x128xf32> to vector<2xf32>
    %1753 = vector.shape_cast %1752 : vector<2xf32> to vector<2x1xf32>
    %c4_i32_578 = arith.constant 4 : i32
    %1754 = vector.broadcast %c4_i32_578 : i32 to vector<2x8xi32>
    %1755 = arith.cmpi eq, %1659, %1754 : vector<2x8xi32>
    %cst_579 = arith.constant 0.000000e+00 : f32
    %1756 = vector.shape_cast %1753 : vector<2x1xf32> to vector<2x1xf32>
    %1757 = vector.broadcast %1756 : vector<2x1xf32> to vector<2x8xf32>
    %1758 = vector.broadcast %cst_579 : f32 to vector<2x8xf32>
    %1759 = arith.select %1755, %1757, %1758 : vector<2x8xi1>, vector<2x8xf32>
    %1760 = arith.addf %1740, %1759 : vector<2x8xf32>
    %c5_580 = arith.constant 5 : index
    %c0_581 = arith.constant 0 : index
    %c0_582 = arith.constant 0 : index
    %1761 = vector.load %arg8[%c5_580, %c0_581, %c0_582] : memref<8x2x32xf32, #tpu.memory_space<vmem>>, vector<1x2x32xf32>
    %1762 = vector.shape_cast %1761 : vector<1x2x32xf32> to vector<2x32xf32>
    %cst_583 = arith.constant dense<0.000000e+00> : vector<2x128xf32>
    %1763 = tpu.matmul %1762, %1640, %cst_583 {dimension_numbers = #tpu.dot_dimension_numbers<[1], [0], [0], [1], [0, 0, 1, 1], [], []>} : vector<2x32xf32>, vector<32x128xf32>, vector<2x128xf32> -> vector<2x128xf32>
    %c5_584 = arith.constant 5 : index
    %c0_585 = arith.constant 0 : index
    %c0_586 = arith.constant 0 : index
    %1764 = vector.load %arg9[%c5_584, %c0_585, %c0_586] : memref<8x2x32xf32, #tpu.memory_space<vmem>>, vector<1x2x32xf32>
    %1765 = vector.shape_cast %1764 : vector<1x2x32xf32> to vector<2x32xf32>
    %cst_587 = arith.constant dense<0.000000e+00> : vector<2x128xf32>
    %1766 = tpu.matmul %1765, %1641, %cst_587 {dimension_numbers = #tpu.dot_dimension_numbers<[1], [0], [0], [1], [0, 0, 1, 1], [], []>} : vector<2x32xf32>, vector<32x128xf32>, vector<2x128xf32> -> vector<2x128xf32>
    %1767 = arith.addf %1763, %1766 : vector<2x128xf32>
    %1768 = arith.addf %1767, %1658 : vector<2x128xf32>
    %1769 = math.tanh %1768 : vector<2x128xf32>
    %1770 = vector.broadcast %1651 : vector<1x128xf32> to vector<2x128xf32>
    %1771 = arith.mulf %1769, %1770 : vector<2x128xf32>
    %cst_588 = arith.constant dense<0.000000e+00> : vector<2xf32>
    %1772 = vector.multi_reduction <add>, %1771, %cst_588 [1] : vector<2x128xf32> to vector<2xf32>
    %1773 = vector.shape_cast %1772 : vector<2xf32> to vector<2x1xf32>
    %c5_i32_589 = arith.constant 5 : i32
    %1774 = vector.broadcast %c5_i32_589 : i32 to vector<2x8xi32>
    %1775 = arith.cmpi eq, %1659, %1774 : vector<2x8xi32>
    %cst_590 = arith.constant 0.000000e+00 : f32
    %1776 = vector.shape_cast %1773 : vector<2x1xf32> to vector<2x1xf32>
    %1777 = vector.broadcast %1776 : vector<2x1xf32> to vector<2x8xf32>
    %1778 = vector.broadcast %cst_590 : f32 to vector<2x8xf32>
    %1779 = arith.select %1775, %1777, %1778 : vector<2x8xi1>, vector<2x8xf32>
    %1780 = arith.addf %1760, %1779 : vector<2x8xf32>
    %c6_591 = arith.constant 6 : index
    %c0_592 = arith.constant 0 : index
    %c0_593 = arith.constant 0 : index
    %1781 = vector.load %arg8[%c6_591, %c0_592, %c0_593] : memref<8x2x32xf32, #tpu.memory_space<vmem>>, vector<1x2x32xf32>
    %1782 = vector.shape_cast %1781 : vector<1x2x32xf32> to vector<2x32xf32>
    %cst_594 = arith.constant dense<0.000000e+00> : vector<2x128xf32>
    %1783 = tpu.matmul %1782, %1640, %cst_594 {dimension_numbers = #tpu.dot_dimension_numbers<[1], [0], [0], [1], [0, 0, 1, 1], [], []>} : vector<2x32xf32>, vector<32x128xf32>, vector<2x128xf32> -> vector<2x128xf32>
    %c6_595 = arith.constant 6 : index
    %c0_596 = arith.constant 0 : index
    %c0_597 = arith.constant 0 : index
    %1784 = vector.load %arg9[%c6_595, %c0_596, %c0_597] : memref<8x2x32xf32, #tpu.memory_space<vmem>>, vector<1x2x32xf32>
    %1785 = vector.shape_cast %1784 : vector<1x2x32xf32> to vector<2x32xf32>
    %cst_598 = arith.constant dense<0.000000e+00> : vector<2x128xf32>
    %1786 = tpu.matmul %1785, %1641, %cst_598 {dimension_numbers = #tpu.dot_dimension_numbers<[1], [0], [0], [1], [0, 0, 1, 1], [], []>} : vector<2x32xf32>, vector<32x128xf32>, vector<2x128xf32> -> vector<2x128xf32>
    %1787 = arith.addf %1783, %1786 : vector<2x128xf32>
    %1788 = arith.addf %1787, %1658 : vector<2x128xf32>
    %1789 = math.tanh %1788 : vector<2x128xf32>
    %1790 = vector.broadcast %1651 : vector<1x128xf32> to vector<2x128xf32>
    %1791 = arith.mulf %1789, %1790 : vector<2x128xf32>
    %cst_599 = arith.constant dense<0.000000e+00> : vector<2xf32>
    %1792 = vector.multi_reduction <add>, %1791, %cst_599 [1] : vector<2x128xf32> to vector<2xf32>
    %1793 = vector.shape_cast %1792 : vector<2xf32> to vector<2x1xf32>
    %c6_i32_600 = arith.constant 6 : i32
    %1794 = vector.broadcast %c6_i32_600 : i32 to vector<2x8xi32>
    %1795 = arith.cmpi eq, %1659, %1794 : vector<2x8xi32>
    %cst_601 = arith.constant 0.000000e+00 : f32
    %1796 = vector.shape_cast %1793 : vector<2x1xf32> to vector<2x1xf32>
    %1797 = vector.broadcast %1796 : vector<2x1xf32> to vector<2x8xf32>
    %1798 = vector.broadcast %cst_601 : f32 to vector<2x8xf32>
    %1799 = arith.select %1795, %1797, %1798 : vector<2x8xi1>, vector<2x8xf32>
    %1800 = arith.addf %1780, %1799 : vector<2x8xf32>
    %c7_602 = arith.constant 7 : index
    %c0_603 = arith.constant 0 : index
    %c0_604 = arith.constant 0 : index
    %1801 = vector.load %arg8[%c7_602, %c0_603, %c0_604] : memref<8x2x32xf32, #tpu.memory_space<vmem>>, vector<1x2x32xf32>
    %1802 = vector.shape_cast %1801 : vector<1x2x32xf32> to vector<2x32xf32>
    %cst_605 = arith.constant dense<0.000000e+00> : vector<2x128xf32>
    %1803 = tpu.matmul %1802, %1640, %cst_605 {dimension_numbers = #tpu.dot_dimension_numbers<[1], [0], [0], [1], [0, 0, 1, 1], [], []>} : vector<2x32xf32>, vector<32x128xf32>, vector<2x128xf32> -> vector<2x128xf32>
    %c7_606 = arith.constant 7 : index
    %c0_607 = arith.constant 0 : index
    %c0_608 = arith.constant 0 : index
    %1804 = vector.load %arg9[%c7_606, %c0_607, %c0_608] : memref<8x2x32xf32, #tpu.memory_space<vmem>>, vector<1x2x32xf32>
    %1805 = vector.shape_cast %1804 : vector<1x2x32xf32> to vector<2x32xf32>
    %cst_609 = arith.constant dense<0.000000e+00> : vector<2x128xf32>
    %1806 = tpu.matmul %1805, %1641, %cst_609 {dimension_numbers = #tpu.dot_dimension_numbers<[1], [0], [0], [1], [0, 0, 1, 1], [], []>} : vector<2x32xf32>, vector<32x128xf32>, vector<2x128xf32> -> vector<2x128xf32>
    %1807 = arith.addf %1803, %1806 : vector<2x128xf32>
    %1808 = arith.addf %1807, %1658 : vector<2x128xf32>
    %1809 = math.tanh %1808 : vector<2x128xf32>
    %1810 = vector.broadcast %1651 : vector<1x128xf32> to vector<2x128xf32>
    %1811 = arith.mulf %1809, %1810 : vector<2x128xf32>
    %cst_610 = arith.constant dense<0.000000e+00> : vector<2xf32>
    %1812 = vector.multi_reduction <add>, %1811, %cst_610 [1] : vector<2x128xf32> to vector<2xf32>
    %1813 = vector.shape_cast %1812 : vector<2xf32> to vector<2x1xf32>
    %c7_i32_611 = arith.constant 7 : i32
    %1814 = vector.broadcast %c7_i32_611 : i32 to vector<2x8xi32>
    %1815 = arith.cmpi eq, %1659, %1814 : vector<2x8xi32>
    %cst_612 = arith.constant 0.000000e+00 : f32
    %1816 = vector.shape_cast %1813 : vector<2x1xf32> to vector<2x1xf32>
    %1817 = vector.broadcast %1816 : vector<2x1xf32> to vector<2x8xf32>
    %1818 = vector.broadcast %cst_612 : f32 to vector<2x8xf32>
    %1819 = arith.select %1815, %1817, %1818 : vector<2x8xi1>, vector<2x8xf32>
    %1820 = arith.addf %1800, %1819 : vector<2x8xf32>
    %1821 = vector.broadcast %0 : vector<2x1xi32> to vector<2x8xi32>
    %1822 = arith.cmpi slt, %1659, %1821 : vector<2x8xi32>
    %cst_613 = arith.constant -1.000000e+30 : f32
    %1823 = vector.broadcast %cst_613 : f32 to vector<2x8xf32>
    %1824 = arith.select %1822, %1820, %1823 : vector<2x8xi1>, vector<2x8xf32>
    %cst_614 = arith.constant dense<0xFF800000> : vector<2xf32>
    %1825 = vector.multi_reduction <maximumf>, %1824, %cst_614 [1] : vector<2x8xf32> to vector<2xf32>
    %1826 = vector.shape_cast %1825 : vector<2xf32> to vector<2x1xf32>
    %1827 = vector.broadcast %1826 : vector<2x1xf32> to vector<2x8xf32>
    %1828 = arith.subf %1824, %1827 : vector<2x8xf32>
    %1829 = math.exp %1828 : vector<2x8xf32>
    %cst_615 = arith.constant 0.000000e+00 : f32
    %1830 = vector.broadcast %cst_615 : f32 to vector<2x8xf32>
    %1831 = arith.select %1822, %1829, %1830 : vector<2x8xi1>, vector<2x8xf32>
    %cst_616 = arith.constant dense<0.000000e+00> : vector<2xf32>
    %1832 = vector.multi_reduction <add>, %1831, %cst_616 [1] : vector<2x8xf32> to vector<2xf32>
    %1833 = vector.shape_cast %1832 : vector<2xf32> to vector<2x1xf32>
    %cst_617 = arith.constant 1.000000e-30 : f32
    %1834 = vector.broadcast %cst_617 : f32 to vector<2x1xf32>
    %1835 = arith.maximumf %1833, %1834 : vector<2x1xf32>
    %1836 = vector.broadcast %1835 : vector<2x1xf32> to vector<2x8xf32>
    %1837 = arith.divf %1831, %1836 : vector<2x8xf32>
    %1838 = vector.extract_strided_slice %1837 {offsets = [0, 0], sizes = [2, 1], strides = [1, 1]} : vector<2x8xf32> to vector<2x1xf32>
    %c0_618 = arith.constant 0 : index
    %c0_619 = arith.constant 0 : index
    %c0_620 = arith.constant 0 : index
    %1839 = vector.load %arg8[%c0_618, %c0_619, %c0_620] : memref<8x2x32xf32, #tpu.memory_space<vmem>>, vector<1x2x32xf32>
    %1840 = vector.shape_cast %1839 : vector<1x2x32xf32> to vector<2x32xf32>
    %1841 = vector.broadcast %1838 : vector<2x1xf32> to vector<2x32xf32>
    %1842 = arith.mulf %1841, %1840 : vector<2x32xf32>
    %1843 = arith.addf %17, %1842 : vector<2x32xf32>
    %c0_621 = arith.constant 0 : index
    %c0_622 = arith.constant 0 : index
    %c0_623 = arith.constant 0 : index
    %1844 = vector.load %arg9[%c0_621, %c0_622, %c0_623] : memref<8x2x32xf32, #tpu.memory_space<vmem>>, vector<1x2x32xf32>
    %1845 = vector.shape_cast %1844 : vector<1x2x32xf32> to vector<2x32xf32>
    %1846 = vector.broadcast %1838 : vector<2x1xf32> to vector<2x32xf32>
    %1847 = arith.mulf %1846, %1845 : vector<2x32xf32>
    %1848 = arith.addf %17, %1847 : vector<2x32xf32>
    %1849 = vector.extract_strided_slice %1837 {offsets = [0, 1], sizes = [2, 1], strides = [1, 1]} : vector<2x8xf32> to vector<2x1xf32>
    %c1_624 = arith.constant 1 : index
    %c0_625 = arith.constant 0 : index
    %c0_626 = arith.constant 0 : index
    %1850 = vector.load %arg8[%c1_624, %c0_625, %c0_626] : memref<8x2x32xf32, #tpu.memory_space<vmem>>, vector<1x2x32xf32>
    %1851 = vector.shape_cast %1850 : vector<1x2x32xf32> to vector<2x32xf32>
    %1852 = vector.broadcast %1849 : vector<2x1xf32> to vector<2x32xf32>
    %1853 = arith.mulf %1852, %1851 : vector<2x32xf32>
    %1854 = arith.addf %1843, %1853 : vector<2x32xf32>
    %c1_627 = arith.constant 1 : index
    %c0_628 = arith.constant 0 : index
    %c0_629 = arith.constant 0 : index
    %1855 = vector.load %arg9[%c1_627, %c0_628, %c0_629] : memref<8x2x32xf32, #tpu.memory_space<vmem>>, vector<1x2x32xf32>
    %1856 = vector.shape_cast %1855 : vector<1x2x32xf32> to vector<2x32xf32>
    %1857 = vector.broadcast %1849 : vector<2x1xf32> to vector<2x32xf32>
    %1858 = arith.mulf %1857, %1856 : vector<2x32xf32>
    %1859 = arith.addf %1848, %1858 : vector<2x32xf32>
    %1860 = vector.extract_strided_slice %1837 {offsets = [0, 2], sizes = [2, 1], strides = [1, 1]} : vector<2x8xf32> to vector<2x1xf32>
    %c2_630 = arith.constant 2 : index
    %c0_631 = arith.constant 0 : index
    %c0_632 = arith.constant 0 : index
    %1861 = vector.load %arg8[%c2_630, %c0_631, %c0_632] : memref<8x2x32xf32, #tpu.memory_space<vmem>>, vector<1x2x32xf32>
    %1862 = vector.shape_cast %1861 : vector<1x2x32xf32> to vector<2x32xf32>
    %1863 = vector.broadcast %1860 : vector<2x1xf32> to vector<2x32xf32>
    %1864 = arith.mulf %1863, %1862 : vector<2x32xf32>
    %1865 = arith.addf %1854, %1864 : vector<2x32xf32>
    %c2_633 = arith.constant 2 : index
    %c0_634 = arith.constant 0 : index
    %c0_635 = arith.constant 0 : index
    %1866 = vector.load %arg9[%c2_633, %c0_634, %c0_635] : memref<8x2x32xf32, #tpu.memory_space<vmem>>, vector<1x2x32xf32>
    %1867 = vector.shape_cast %1866 : vector<1x2x32xf32> to vector<2x32xf32>
    %1868 = vector.broadcast %1860 : vector<2x1xf32> to vector<2x32xf32>
    %1869 = arith.mulf %1868, %1867 : vector<2x32xf32>
    %1870 = arith.addf %1859, %1869 : vector<2x32xf32>
    %1871 = vector.extract_strided_slice %1837 {offsets = [0, 3], sizes = [2, 1], strides = [1, 1]} : vector<2x8xf32> to vector<2x1xf32>
    %c3_636 = arith.constant 3 : index
    %c0_637 = arith.constant 0 : index
    %c0_638 = arith.constant 0 : index
    %1872 = vector.load %arg8[%c3_636, %c0_637, %c0_638] : memref<8x2x32xf32, #tpu.memory_space<vmem>>, vector<1x2x32xf32>
    %1873 = vector.shape_cast %1872 : vector<1x2x32xf32> to vector<2x32xf32>
    %1874 = vector.broadcast %1871 : vector<2x1xf32> to vector<2x32xf32>
    %1875 = arith.mulf %1874, %1873 : vector<2x32xf32>
    %1876 = arith.addf %1865, %1875 : vector<2x32xf32>
    %c3_639 = arith.constant 3 : index
    %c0_640 = arith.constant 0 : index
    %c0_641 = arith.constant 0 : index
    %1877 = vector.load %arg9[%c3_639, %c0_640, %c0_641] : memref<8x2x32xf32, #tpu.memory_space<vmem>>, vector<1x2x32xf32>
    %1878 = vector.shape_cast %1877 : vector<1x2x32xf32> to vector<2x32xf32>
    %1879 = vector.broadcast %1871 : vector<2x1xf32> to vector<2x32xf32>
    %1880 = arith.mulf %1879, %1878 : vector<2x32xf32>
    %1881 = arith.addf %1870, %1880 : vector<2x32xf32>
    %1882 = vector.extract_strided_slice %1837 {offsets = [0, 4], sizes = [2, 1], strides = [1, 1]} : vector<2x8xf32> to vector<2x1xf32>
    %c4_642 = arith.constant 4 : index
    %c0_643 = arith.constant 0 : index
    %c0_644 = arith.constant 0 : index
    %1883 = vector.load %arg8[%c4_642, %c0_643, %c0_644] : memref<8x2x32xf32, #tpu.memory_space<vmem>>, vector<1x2x32xf32>
    %1884 = vector.shape_cast %1883 : vector<1x2x32xf32> to vector<2x32xf32>
    %1885 = vector.broadcast %1882 : vector<2x1xf32> to vector<2x32xf32>
    %1886 = arith.mulf %1885, %1884 : vector<2x32xf32>
    %1887 = arith.addf %1876, %1886 : vector<2x32xf32>
    %c4_645 = arith.constant 4 : index
    %c0_646 = arith.constant 0 : index
    %c0_647 = arith.constant 0 : index
    %1888 = vector.load %arg9[%c4_645, %c0_646, %c0_647] : memref<8x2x32xf32, #tpu.memory_space<vmem>>, vector<1x2x32xf32>
    %1889 = vector.shape_cast %1888 : vector<1x2x32xf32> to vector<2x32xf32>
    %1890 = vector.broadcast %1882 : vector<2x1xf32> to vector<2x32xf32>
    %1891 = arith.mulf %1890, %1889 : vector<2x32xf32>
    %1892 = arith.addf %1881, %1891 : vector<2x32xf32>
    %1893 = vector.extract_strided_slice %1837 {offsets = [0, 5], sizes = [2, 1], strides = [1, 1]} : vector<2x8xf32> to vector<2x1xf32>
    %c5_648 = arith.constant 5 : index
    %c0_649 = arith.constant 0 : index
    %c0_650 = arith.constant 0 : index
    %1894 = vector.load %arg8[%c5_648, %c0_649, %c0_650] : memref<8x2x32xf32, #tpu.memory_space<vmem>>, vector<1x2x32xf32>
    %1895 = vector.shape_cast %1894 : vector<1x2x32xf32> to vector<2x32xf32>
    %1896 = vector.broadcast %1893 : vector<2x1xf32> to vector<2x32xf32>
    %1897 = arith.mulf %1896, %1895 : vector<2x32xf32>
    %1898 = arith.addf %1887, %1897 : vector<2x32xf32>
    %c5_651 = arith.constant 5 : index
    %c0_652 = arith.constant 0 : index
    %c0_653 = arith.constant 0 : index
    %1899 = vector.load %arg9[%c5_651, %c0_652, %c0_653] : memref<8x2x32xf32, #tpu.memory_space<vmem>>, vector<1x2x32xf32>
    %1900 = vector.shape_cast %1899 : vector<1x2x32xf32> to vector<2x32xf32>
    %1901 = vector.broadcast %1893 : vector<2x1xf32> to vector<2x32xf32>
    %1902 = arith.mulf %1901, %1900 : vector<2x32xf32>
    %1903 = arith.addf %1892, %1902 : vector<2x32xf32>
    %1904 = vector.extract_strided_slice %1837 {offsets = [0, 6], sizes = [2, 1], strides = [1, 1]} : vector<2x8xf32> to vector<2x1xf32>
    %c6_654 = arith.constant 6 : index
    %c0_655 = arith.constant 0 : index
    %c0_656 = arith.constant 0 : index
    %1905 = vector.load %arg8[%c6_654, %c0_655, %c0_656] : memref<8x2x32xf32, #tpu.memory_space<vmem>>, vector<1x2x32xf32>
    %1906 = vector.shape_cast %1905 : vector<1x2x32xf32> to vector<2x32xf32>
    %1907 = vector.broadcast %1904 : vector<2x1xf32> to vector<2x32xf32>
    %1908 = arith.mulf %1907, %1906 : vector<2x32xf32>
    %1909 = arith.addf %1898, %1908 : vector<2x32xf32>
    %c6_657 = arith.constant 6 : index
    %c0_658 = arith.constant 0 : index
    %c0_659 = arith.constant 0 : index
    %1910 = vector.load %arg9[%c6_657, %c0_658, %c0_659] : memref<8x2x32xf32, #tpu.memory_space<vmem>>, vector<1x2x32xf32>
    %1911 = vector.shape_cast %1910 : vector<1x2x32xf32> to vector<2x32xf32>
    %1912 = vector.broadcast %1904 : vector<2x1xf32> to vector<2x32xf32>
    %1913 = arith.mulf %1912, %1911 : vector<2x32xf32>
    %1914 = arith.addf %1903, %1913 : vector<2x32xf32>
    %1915 = vector.extract_strided_slice %1837 {offsets = [0, 7], sizes = [2, 1], strides = [1, 1]} : vector<2x8xf32> to vector<2x1xf32>
    %c7_660 = arith.constant 7 : index
    %c0_661 = arith.constant 0 : index
    %c0_662 = arith.constant 0 : index
    %1916 = vector.load %arg8[%c7_660, %c0_661, %c0_662] : memref<8x2x32xf32, #tpu.memory_space<vmem>>, vector<1x2x32xf32>
    %1917 = vector.shape_cast %1916 : vector<1x2x32xf32> to vector<2x32xf32>
    %1918 = vector.broadcast %1915 : vector<2x1xf32> to vector<2x32xf32>
    %1919 = arith.mulf %1918, %1917 : vector<2x32xf32>
    %1920 = arith.addf %1909, %1919 : vector<2x32xf32>
    %c7_663 = arith.constant 7 : index
    %c0_664 = arith.constant 0 : index
    %c0_665 = arith.constant 0 : index
    %1921 = vector.load %arg9[%c7_663, %c0_664, %c0_665] : memref<8x2x32xf32, #tpu.memory_space<vmem>>, vector<1x2x32xf32>
    %1922 = vector.shape_cast %1921 : vector<1x2x32xf32> to vector<2x32xf32>
    %1923 = vector.broadcast %1915 : vector<2x1xf32> to vector<2x32xf32>
    %1924 = arith.mulf %1923, %1922 : vector<2x32xf32>
    %1925 = arith.addf %1914, %1924 : vector<2x32xf32>
    %cst_666 = arith.constant dense<0.000000e+00> : vector<2x128xf32>
    %1926 = tpu.matmul %1630, %1644, %cst_666 {dimension_numbers = #tpu.dot_dimension_numbers<[1], [0], [0], [1], [0, 0, 1, 1], [], []>} : vector<2x32xf32>, vector<32x128xf32>, vector<2x128xf32> -> vector<2x128xf32>
    %cst_667 = arith.constant dense<0.000000e+00> : vector<2x128xf32>
    %1927 = tpu.matmul %1633, %1645, %cst_667 {dimension_numbers = #tpu.dot_dimension_numbers<[1], [0], [0], [1], [0, 0, 1, 1], [], []>} : vector<2x32xf32>, vector<32x128xf32>, vector<2x128xf32> -> vector<2x128xf32>
    %1928 = arith.addf %1926, %1927 : vector<2x128xf32>
    %cst_668 = arith.constant dense<0.000000e+00> : vector<2x128xf32>
    %1929 = tpu.matmul %1920, %1646, %cst_668 {dimension_numbers = #tpu.dot_dimension_numbers<[1], [0], [0], [1], [0, 0, 1, 1], [], []>} : vector<2x32xf32>, vector<32x128xf32>, vector<2x128xf32> -> vector<2x128xf32>
    %1930 = arith.addf %1928, %1929 : vector<2x128xf32>
    %cst_669 = arith.constant dense<0.000000e+00> : vector<2x128xf32>
    %1931 = tpu.matmul %1925, %1647, %cst_669 {dimension_numbers = #tpu.dot_dimension_numbers<[1], [0], [0], [1], [0, 0, 1, 1], [], []>} : vector<2x32xf32>, vector<32x128xf32>, vector<2x128xf32> -> vector<2x128xf32>
    %1932 = arith.addf %1930, %1931 : vector<2x128xf32>
    %1933 = vector.broadcast %1652 : vector<1x128xf32> to vector<2x128xf32>
    %1934 = arith.addf %1932, %1933 : vector<2x128xf32>
    %1935 = math.tanh %1934 : vector<2x128xf32>
    %cst_670 = arith.constant dense<0.000000e+00> : vector<2x128xf32>
    %1936 = tpu.matmul %1935, %1648, %cst_670 {dimension_numbers = #tpu.dot_dimension_numbers<[1], [0], [0], [1], [0, 0, 1, 1], [], []>} : vector<2x128xf32>, vector<128x128xf32>, vector<2x128xf32> -> vector<2x128xf32>
    %1937 = vector.extract_strided_slice %1936 {offsets = [0, 0], sizes = [2, 8], strides = [1, 1]} : vector<2x128xf32> to vector<2x8xf32>
    %1938 = vector.extract_strided_slice %1653 {offsets = [0, 0], sizes = [1, 8], strides = [1, 1]} : vector<1x128xf32> to vector<1x8xf32>
    %1939 = vector.broadcast %1938 : vector<1x8xf32> to vector<2x8xf32>
    %1940 = arith.addf %1937, %1939 : vector<2x8xf32>
    %cst_671 = arith.constant dense<0xFF800000> : vector<2xf32>
    %1941 = vector.multi_reduction <maximumf>, %1940, %cst_671 [1] : vector<2x8xf32> to vector<2xf32>
    %1942 = vector.shape_cast %1941 : vector<2xf32> to vector<2x1xf32>
    %1943 = vector.broadcast %1942 : vector<2x1xf32> to vector<2x8xf32>
    %1944 = arith.subf %1940, %1943 : vector<2x8xf32>
    %1945 = math.exp %1944 : vector<2x8xf32>
    %cst_672 = arith.constant dense<0.000000e+00> : vector<2xf32>
    %1946 = vector.multi_reduction <add>, %1945, %cst_672 [1] : vector<2x8xf32> to vector<2xf32>
    %1947 = vector.shape_cast %1946 : vector<2xf32> to vector<2x1xf32>
    %1948 = vector.broadcast %1947 : vector<2x1xf32> to vector<2x8xf32>
    %1949 = arith.divf %1945, %1948 : vector<2x8xf32>
    %cst_673 = arith.constant 0.000000e+00 : f32
    %1950 = vector.broadcast %cst_673 : f32 to vector<2x128xf32>
    %c0_674 = arith.constant 0 : index
    %c0_675 = arith.constant 0 : index
    %1951 = vector.load %arg7[%c0_674, %c0_675] : memref<2x128xf32, #tpu.memory_space<vmem>>, vector<2x128xf32>
    tpu.vector_store %arg7[%c0_674, %c0_675], %1950 {strides = array<i32>} : memref<2x128xf32, #tpu.memory_space<vmem>>, vector<2x128xf32>,
    %c0_676 = arith.constant 0 : index
    %c0_677 = arith.constant 0 : index
    %1952 = vector.load %arg7[%c0_676, %c0_677] : memref<2x128xf32, #tpu.memory_space<vmem>>, vector<2x8xf32>
    tpu.vector_store %arg7[%c0_676, %c0_677], %1949 {strides = array<i32>} : memref<2x128xf32, #tpu.memory_space<vmem>>, vector<2x8xf32>,
    %c0_678 = arith.constant 0 : index
    %c8 = arith.constant 8 : index
    %1953 = vector.load %arg7[%c0_678, %c8] : memref<2x128xf32, #tpu.memory_space<vmem>>, vector<2x8xf32>
    tpu.vector_store %arg7[%c0_678, %c8], %1837 {strides = array<i32>} : memref<2x128xf32, #tpu.memory_space<vmem>>, vector<2x8xf32>,
    return
  }
}

</mosaic_0001>

<llo_original>
// kernel: intent_detection_forward.1
$region0: #{intent_detection_forward.1}
  #allocation0 [shape = 'u32[]', space=smem, size = 0x4, offset = 0x4, fixed_abs, tag = 'smem constant byte address 0x4 - core index']
  #allocation1 [shape = 'u32[72,128]{1,0:T(1,128)}', space=vmem, size = 0x9000, scoped, tag = 'internal scratch']
  #allocation2 [shape = 'f32[8,2,32]{2,1,0:T(2,128)}', space=vmem, size = 0x2000, scoped, tag = 'scratch operand']
  #allocation3 [shape = 'f32[8,2,32]{2,1,0:T(2,128)}', space=vmem, size = 0x2000, scoped, tag = 'scratch operand']
  #allocation4 [shape = 'f32[8,2,32]{2,1,0:T(2,128)}', space=vmem, size = 0x2000, scoped, tag = 'scratch operand']
  #allocation5 [shape = 'f32[8,2,32]{2,1,0:T(2,128)}', space=vmem, size = 0x2000, scoped, tag = 'scratch operand']
  %s0 = inlined_call_operand.vmem [shape: f32[8,2,16], index: 0, kind: input, shape index: {}]
  %s1 = inlined_call_operand.vmem [shape: s32[2,1], index: 1, kind: input, shape index: {}]
  %s2 = inlined_call_operand.hbm [shape: f32[3,64,256], index: 2, kind: input, shape index: {}]
  %s3 = inlined_call_operand.hbm [shape: f32[6,32,128], index: 3, kind: input, shape index: {}]
  %s4 = inlined_call_operand.vmem [shape: f32[3,1,256], index: 4, kind: input, shape index: {}]
  %s5 = inlined_call_operand.hbm [shape: f32[384,128], index: 5, kind: input, shape index: {}]
  %s6 = inlined_call_operand.vmem [shape: f32[8,128], index: 6, kind: input, shape index: {}]
  %s7 = inlined_call_operand.vmem [shape: f32[2,128], index: 7, kind: output, shape index: {}]
  %s8 = sld [smem:[#allocation0]]
  $region50: #{intent_detection_forward.1} parent=0
    _
  %s10 = ssub.s32 1, %s8
  %s11 = scalar_select 0, %s10, %s8
  $region1: #{intent_detection_forward.1} parent=0
    #allocation6 [shape = 'u8[196608]{0}', space=vmem, size = 0x30000, scoped, tag = 'input window, operand 2, single buffered']
    #allocation7 [shape = 's32[1]{0}', space=sflag, size = 0x4, scoped, tag = 'scoped memory for intent_detection_forward.1']
    #allocation8 [shape = 'u8[98304]{0}', space=vmem, size = 0x18000, scoped, tag = 'input window, operand 3, single buffered']
    #allocation9 [shape = 's32[1]{0}', space=sflag, size = 0x4, scoped, tag = 'scoped memory for intent_detection_forward.1']
    #allocation10 [shape = 'u8[196608]{0}', space=vmem, size = 0x30000, scoped, tag = 'input window, operand 5, single buffered']
    %12 = vsyncpa [#allocation7], 0
    %13 = vsyncpa [#allocation9], 0
    // Predicated region
    $region2: #{intent_detection_forward.1} parent=1 // pred_check
      _
    $region3: #{intent_detection_forward.1} parent=1 // pred_check_branch
      %15 = sbr.rel (0) target = $region5
    $region4: #{intent_detection_forward.1} parent=1 // pred_region
      _
    $region5: #{intent_detection_forward.1} parent=1 // pred_fallthru
      _
    // Predicated region
    $region6: #{intent_detection_forward.1} parent=1 // pred_check
      _
    $region7: #{intent_detection_forward.1} parent=1 // pred_check_branch
      %17 = sbr.rel (0) target = $region9
    $region8: #{intent_detection_forward.1} parent=1 // pred_region
      _
    $region9: #{intent_detection_forward.1} parent=1 // pred_fallthru
      _
    // Predicated region
    $region10: #{intent_detection_forward.1} parent=1 // pred_check
      _
    $region11: #{intent_detection_forward.1} parent=1 // pred_check_branch
      %19 = sbr.rel (0) target = $region13
    $region12: #{intent_detection_forward.1} parent=1 // pred_region
      %21 = vsyncadd [#allocation7], 0
      %s22 = sshll.u32 %s2, 4
      %s23 = int_to_ptr.hbm [resolvable:$true] %s22
      %s24 = sshll.u32 [#allocation6], 4
      %s25 = int_to_ptr.vmem [resolvable:$true] %s24
      %30 = dma.hbm_to_vmem [thread:$0]  %s23, 6144, %s25, [#allocation7], 256, 256, 16
    $region13: #{intent_detection_forward.1} parent=1 // pred_fallthru
      _
    // Predicated region
    $region14: #{intent_detection_forward.1} parent=1 // pred_check
      _
    $region15: #{intent_detection_forward.1} parent=1 // pred_check_branch
      %32 = sbr.rel (0) target = $region17
    $region16: #{intent_detection_forward.1} parent=1 // pred_region
      %34 = vsyncadd [#allocation9], 0
      %s35 = sshll.u32 %s3, 4
      %s36 = int_to_ptr.hbm [resolvable:$true] %s35
      %s37 = sshll.u32 [#allocation8], 4
      %s38 = int_to_ptr.vmem [resolvable:$true] %s37
      %43 = dma.hbm_to_vmem [thread:$0]  %s36, 3072, %s38, [#allocation9], 128, 128, 8
    $region17: #{intent_detection_forward.1} parent=1 // pred_fallthru
      _
    // Predicated region
    $region18: #{intent_detection_forward.1} parent=1 // pred_check
      _
    $region19: #{intent_detection_forward.1} parent=1 // pred_check_branch
      %45 = sbr.rel (0) target = $region21
    $region20: #{intent_detection_forward.1} parent=1 // pred_region
      _
    $region21: #{intent_detection_forward.1} parent=1 // pred_fallthru
      _
    // Predicated region
    $region22: #{intent_detection_forward.1} parent=1 // pred_check
      _
    $region23: #{intent_detection_forward.1} parent=1 // pred_check_branch
      %47 = sbr.rel (0) target = $region25
    $region24: #{intent_detection_forward.1} parent=1 // pred_region
      %49 = vsyncadd [#allocation9], 0
      %s50 = sshll.u32 %s5, 4
      %s51 = int_to_ptr.hbm [resolvable:$true] %s50
      %s52 = sshll.u32 [#allocation10], 4
      %s53 = int_to_ptr.vmem [resolvable:$true] %s52
      %58 = dma.hbm_to_vmem [thread:$0]  %s51, 6144, %s53, [#allocation9], 128, 128, 8
    $region25: #{intent_detection_forward.1} parent=1 // pred_fallthru
      _
    // Predicated region
    $region26: #{intent_detection_forward.1} parent=1 // pred_check
      _
    $region27: #{intent_detection_forward.1} parent=1 // pred_check_branch
      %60 = sbr.rel (0) target = $region29
    $region28: #{intent_detection_forward.1} parent=1 // pred_region
      _
    $region29: #{intent_detection_forward.1} parent=1 // pred_fallthru
      _
    // Predicated region
    $region30: #{intent_detection_forward.1} parent=1 // pred_check
      _
    $region31: #{intent_detection_forward.1} parent=1 // pred_check_branch
      %62 = sbr.rel (0) target = $region33
    $region32: #{intent_detection_forward.1} parent=1 // pred_region
      %64 = dma.done [#allocation7], 6144
    $region33: #{intent_detection_forward.1} parent=1 // pred_fallthru
      _
    // Predicated region
    $region34: #{intent_detection_forward.1} parent=1 // pred_check
      _
    $region35: #{intent_detection_forward.1} parent=1 // pred_check_branch
      %66 = sbr.rel (0) target = $region37
    $region36: #{intent_detection_forward.1} parent=1 // pred_region
      %68 = dma.done [#allocation9], 3072
    $region37: #{intent_detection_forward.1} parent=1 // pred_fallthru
      _
    // Predicated region
    $region38: #{intent_detection_forward.1} parent=1 // pred_check
      _
    $region39: #{intent_detection_forward.1} parent=1 // pred_check_branch
      %70 = sbr.rel (0) target = $region41
    $region40: #{intent_detection_forward.1} parent=1 // pred_region
      %72 = dma.done [#allocation9], 6144
    $region41: #{intent_detection_forward.1} parent=1 // pred_fallthru
      _
    %v73 = vld [vmem:[%s1] sm:$0x3]
    %vm74 = vcmp.gt.s32.totalorder %v73, 0
    %vm75 = vcmp.gt.s32.totalorder %v73, 1
    %vm76 = vcmp.gt.s32.totalorder %v73, 2
    %vm77 = vcmp.gt.s32.totalorder %v73, 3
    %vm78 = vcmp.gt.s32.totalorder %v73, 4
    %vm79 = vcmp.gt.s32.totalorder %v73, 5
    %vm80 = vcmp.gt.s32.totalorder %v73, 6
    %vm81 = vcmp.gt.s32.totalorder %v73, 7
    %v82 = vld [vmem:[#allocation6] sm:$0xff]
    %v83 = vld [vmem:[#allocation6 + $0x8] sm:$0xff]
    %v84 = vld [vmem:[#allocation6 + $0x10] sm:$0xff]
    %v85 = vld [vmem:[#allocation6 + $0x18] sm:$0xff]
    %v86 = vld [vmem:[%s4] sm:$0x3]
    %v87 = vld [vmem:[#allocation8] sm:$0xff]
    %v88 = vld [vmem:[#allocation8 + $0x8] sm:$0xff]
    %v89 = vld [vmem:[#allocation8 + $0x10] sm:$0xff]
    %v90 = vld [vmem:[#allocation8 + $0x18] sm:$0xff]
    %s91 = scalar_lea.vmem [#allocation8], 32
    %v92 = vld [vmem:[%s91] sm:$0xff]
    %v93 = vld [vmem:[%s91 + $0x8] sm:$0xff]
    %v94 = vld [vmem:[%s91 + $0x10] sm:$0xff]
    %v95 = vld [vmem:[%s91 + $0x18] sm:$0xff]
    %v96 = vld [vmem:[%s0] sm:$0x3]
    %v98 = vperm.slane %v86, 0
    %v99 = vperm.slane %v86, 1
    %vm102 = vcmask 130048
    %v104 = vsel %vm102, %v96, 0
    %106 = vmatpush.msra.mxu0 0.0
    %107 = vmatpush.msra.mxu0 0.0
    %108 = vmatpush.msra.mxu0 0.0
    %109 = vmatpush.msra.mxu0 0.0
    %110 = vmatpush.msra.mxu0 0.0
    %111 = vmatpush.msra.mxu0 0.0
    %112 = vmatpush.msra.mxu0 0.0
    %113 = vmatpush.msra.mxu0 0.0
    %114 = vmatpush.msra.mxu0 0.0
    %115 = vmatpush.msra.mxu0 0.0
    %116 = vmatpush.msra.mxu0 0.0
    %117 = vmatpush.msra.mxu0 0.0
    %118 = vmatpush.msra.mxu0 0.0
    %119 = vmatpush.msra.mxu0 0.0
    %120 = vmatpush.msra.mxu0 %v84
    %121 = vmatpush.msra.mxu0 %v82
    %122 = vmatmul.f32.gmra.mxu0 %v104
    %v123 = vpop.f32.mrf.mxu0
    %v124 = vadd.f32 %v98, %v123
    %125 = vdwg.mxu0
    %126 = vmatpush.msra.mxu0 0.0
    %127 = vmatpush.msra.mxu0 0.0
    %128 = vmatpush.msra.mxu0 0.0
    %129 = vmatpush.msra.mxu0 0.0
    %130 = vmatpush.msra.mxu0 0.0
    %131 = vmatpush.msra.mxu0 0.0
    %132 = vmatpush.msra.mxu0 0.0
    %133 = vmatpush.msra.mxu0 0.0
    %134 = vmatpush.msra.mxu0 0.0
    %135 = vmatpush.msra.mxu0 0.0
    %136 = vmatpush.msra.mxu0 0.0
    %137 = vmatpush.msra.mxu0 0.0
    %138 = vmatpush.msra.mxu0 0.0
    %139 = vmatpush.msra.mxu0 0.0
    %140 = vmatpush.msra.mxu0 %v85
    %141 = vmatpush.msra.mxu0 %v83
    %142 = vmatmul.f32.gmra.mxu0 %v104
    %v143 = vpop.f32.mrf.mxu0
    %v144 = vadd.f32 %v99, %v143
    %145 = vdwg.mxu0
    %s146 = scalar_lea.vmem %s0, 2
    %v147 = vld [vmem:[%s146] sm:$0x3]
    %v149 = vsel %vm102, %v147, 0
    %151 = vmatpush.msra.mxu0 0.0
    %152 = vmatpush.msra.mxu0 0.0
    %153 = vmatpush.msra.mxu0 0.0
    %154 = vmatpush.msra.mxu0 0.0
    %155 = vmatpush.msra.mxu0 0.0
    %156 = vmatpush.msra.mxu0 0.0
    %157 = vmatpush.msra.mxu0 0.0
    %158 = vmatpush.msra.mxu0 0.0
    %159 = vmatpush.msra.mxu0 0.0
    %160 = vmatpush.msra.mxu0 0.0
    %161 = vmatpush.msra.mxu0 0.0
    %162 = vmatpush.msra.mxu0 0.0
    %163 = vmatpush.msra.mxu0 0.0
    %164 = vmatpush.msra.mxu0 0.0
    %165 = vmatpush.msra.mxu0 %v84
    %166 = vmatpush.msra.mxu0 %v82
    %167 = vmatmul.f32.gmra.mxu0 %v149
    %v168 = vpop.f32.mrf.mxu0
    %v169 = vadd.f32 %v98, %v168
    %170 = vdwg.mxu0
    %171 = vmatpush.msra.mxu0 0.0
    %172 = vmatpush.msra.mxu0 0.0
    %173 = vmatpush.msra.mxu0 0.0
    %174 = vmatpush.msra.mxu0 0.0
    %175 = vmatpush.msra.mxu0 0.0
    %176 = vmatpush.msra.mxu0 0.0
    %177 = vmatpush.msra.mxu0 0.0
    %178 = vmatpush.msra.mxu0 0.0
    %179 = vmatpush.msra.mxu0 0.0
    %180 = vmatpush.msra.mxu0 0.0
    %181 = vmatpush.msra.mxu0 0.0
    %182 = vmatpush.msra.mxu0 0.0
    %183 = vmatpush.msra.mxu0 0.0
    %184 = vmatpush.msra.mxu0 0.0
    %185 = vmatpush.msra.mxu0 %v85
    %186 = vmatpush.msra.mxu0 %v83
    %187 = vmatmul.f32.gmra.mxu0 %v149
    %v188 = vpop.f32.mrf.mxu0
    %v189 = vadd.f32 %v99, %v188
    %190 = vdwg.mxu0
    %s191 = scalar_lea.vmem %s0, 4
    %v192 = vld [vmem:[%s191] sm:$0x3]
    %v194 = vsel %vm102, %v192, 0
    %196 = vmatpush.msra.mxu0 0.0
    %197 = vmatpush.msra.mxu0 0.0
    %198 = vmatpush.msra.mxu0 0.0
    %199 = vmatpush.msra.mxu0 0.0
    %200 = vmatpush.msra.mxu0 0.0
    %201 = vmatpush.msra.mxu0 0.0
    %202 = vmatpush.msra.mxu0 0.0
    %203 = vmatpush.msra.mxu0 0.0
    %204 = vmatpush.msra.mxu0 0.0
    %205 = vmatpush.msra.mxu0 0.0
    %206 = vmatpush.msra.mxu0 0.0
    %207 = vmatpush.msra.mxu0 0.0
    %208 = vmatpush.msra.mxu0 0.0
    %209 = vmatpush.msra.mxu0 0.0
    %210 = vmatpush.msra.mxu0 %v84
    %211 = vmatpush.msra.mxu0 %v82
    %212 = vmatmul.f32.gmra.mxu0 %v194
    %v213 = vpop.f32.mrf.mxu0
    %v214 = vadd.f32 %v98, %v213
    %215 = vdwg.mxu0
    %216 = vmatpush.msra.mxu0 0.0
    %217 = vmatpush.msra.mxu0 0.0
    %218 = vmatpush.msra.mxu0 0.0
    %219 = vmatpush.msra.mxu0 0.0
    %220 = vmatpush.msra.mxu0 0.0
    %221 = vmatpush.msra.mxu0 0.0
    %222 = vmatpush.msra.mxu0 0.0
    %223 = vmatpush.msra.mxu0 0.0
    %224 = vmatpush.msra.mxu0 0.0
    %225 = vmatpush.msra.mxu0 0.0
    %226 = vmatpush.msra.mxu0 0.0
    %227 = vmatpush.msra.mxu0 0.0
    %228 = vmatpush.msra.mxu0 0.0
    %229 = vmatpush.msra.mxu0 0.0
    %230 = vmatpush.msra.mxu0 %v85
    %231 = vmatpush.msra.mxu0 %v83
    %232 = vmatmul.f32.gmra.mxu0 %v194
    %v233 = vpop.f32.mrf.mxu0
    %v234 = vadd.f32 %v99, %v233
    %235 = vdwg.mxu0
    %s236 = scalar_lea.vmem %s0, 6
    %v237 = vld [vmem:[%s236] sm:$0x3]
    %v239 = vsel %vm102, %v237, 0
    %241 = vmatpush.msra.mxu0 0.0
    %242 = vmatpush.msra.mxu0 0.0
    %243 = vmatpush.msra.mxu0 0.0
    %244 = vmatpush.msra.mxu0 0.0
    %245 = vmatpush.msra.mxu0 0.0
    %246 = vmatpush.msra.mxu0 0.0
    %247 = vmatpush.msra.mxu0 0.0
    %248 = vmatpush.msra.mxu0 0.0
    %249 = vmatpush.msra.mxu0 0.0
    %250 = vmatpush.msra.mxu0 0.0
    %251 = vmatpush.msra.mxu0 0.0
    %252 = vmatpush.msra.mxu0 0.0
    %253 = vmatpush.msra.mxu0 0.0
    %254 = vmatpush.msra.mxu0 0.0
    %255 = vmatpush.msra.mxu0 %v84
    %256 = vmatpush.msra.mxu0 %v82
    %257 = vmatmul.f32.gmra.mxu0 %v239
    %v258 = vpop.f32.mrf.mxu0
    %v259 = vadd.f32 %v98, %v258
    %260 = vdwg.mxu0
    %261 = vmatpush.msra.mxu0 0.0
    %262 = vmatpush.msra.mxu0 0.0
    %263 = vmatpush.msra.mxu0 0.0
    %264 = vmatpush.msra.mxu0 0.0
    %265 = vmatpush.msra.mxu0 0.0
    %266 = vmatpush.msra.mxu0 0.0
    %267 = vmatpush.msra.mxu0 0.0
    %268 = vmatpush.msra.mxu0 0.0
    %269 = vmatpush.msra.mxu0 0.0
    %270 = vmatpush.msra.mxu0 0.0
    %271 = vmatpush.msra.mxu0 0.0
    %272 = vmatpush.msra.mxu0 0.0
    %273 = vmatpush.msra.mxu0 0.0
    %274 = vmatpush.msra.mxu0 0.0
    %275 = vmatpush.msra.mxu0 %v85
    %276 = vmatpush.msra.mxu0 %v83
    %277 = vmatmul.f32.gmra.mxu0 %v239
    %v278 = vpop.f32.mrf.mxu0
    %v279 = vadd.f32 %v99, %v278
    %280 = vdwg.mxu0
    %s281 = scalar_lea.vmem %s0, 8
    %v282 = vld [vmem:[%s281] sm:$0x3]
    %v284 = vsel %vm102, %v282, 0
    %286 = vmatpush.msra.mxu0 0.0
    %287 = vmatpush.msra.mxu0 0.0
    %288 = vmatpush.msra.mxu0 0.0
    %289 = vmatpush.msra.mxu0 0.0
    %290 = vmatpush.msra.mxu0 0.0
    %291 = vmatpush.msra.mxu0 0.0
    %292 = vmatpush.msra.mxu0 0.0
    %293 = vmatpush.msra.mxu0 0.0
    %294 = vmatpush.msra.mxu0 0.0
    %295 = vmatpush.msra.mxu0 0.0
    %296 = vmatpush.msra.mxu0 0.0
    %297 = vmatpush.msra.mxu0 0.0
    %298 = vmatpush.msra.mxu0 0.0
    %299 = vmatpush.msra.mxu0 0.0
    %300 = vmatpush.msra.mxu0 %v84
    %301 = vmatpush.msra.mxu0 %v82
    %302 = vmatmul.f32.gmra.mxu0 %v284
    %v303 = vpop.f32.mrf.mxu0
    %v304 = vadd.f32 %v98, %v303
    %305 = vdwg.mxu0
    %306 = vmatpush.msra.mxu0 0.0
    %307 = vmatpush.msra.mxu0 0.0
    %308 = vmatpush.msra.mxu0 0.0
    %309 = vmatpush.msra.mxu0 0.0
    %310 = vmatpush.msra.mxu0 0.0
    %311 = vmatpush.msra.mxu0 0.0
    %312 = vmatpush.msra.mxu0 0.0
    %313 = vmatpush.msra.mxu0 0.0
    %314 = vmatpush.msra.mxu0 0.0
    %315 = vmatpush.msra.mxu0 0.0
    %316 = vmatpush.msra.mxu0 0.0
    %317 = vmatpush.msra.mxu0 0.0
    %318 = vmatpush.msra.mxu0 0.0
    %319 = vmatpush.msra.mxu0 0.0
    %320 = vmatpush.msra.mxu0 %v85
    %321 = vmatpush.msra.mxu0 %v83
    %322 = vmatmul.f32.gmra.mxu0 %v284
    %v323 = vpop.f32.mrf.mxu0
    %v324 = vadd.f32 %v99, %v323
    %325 = vdwg.mxu0
    %s326 = scalar_lea.vmem %s0, 10
    %v327 = vld [vmem:[%s326] sm:$0x3]
    %v329 = vsel %vm102, %v327, 0
    %331 = vmatpush.msra.mxu0 0.0
    %332 = vmatpush.msra.mxu0 0.0
    %333 = vmatpush.msra.mxu0 0.0
    %334 = vmatpush.msra.mxu0 0.0
    %335 = vmatpush.msra.mxu0 0.0
    %336 = vmatpush.msra.mxu0 0.0
    %337 = vmatpush.msra.mxu0 0.0
    %338 = vmatpush.msra.mxu0 0.0
    %339 = vmatpush.msra.mxu0 0.0
    %340 = vmatpush.msra.mxu0 0.0
    %341 = vmatpush.msra.mxu0 0.0
    %342 = vmatpush.msra.mxu0 0.0
    %343 = vmatpush.msra.mxu0 0.0
    %344 = vmatpush.msra.mxu0 0.0
    %345 = vmatpush.msra.mxu0 %v84
    %346 = vmatpush.msra.mxu0 %v82
    %347 = vmatmul.f32.gmra.mxu0 %v329
    %v348 = vpop.f32.mrf.mxu0
    %v349 = vadd.f32 %v98, %v348
    %350 = vdwg.mxu0
    %351 = vmatpush.msra.mxu0 0.0
    %352 = vmatpush.msra.mxu0 0.0
    %353 = vmatpush.msra.mxu0 0.0
    %354 = vmatpush.msra.mxu0 0.0
    %355 = vmatpush.msra.mxu0 0.0
    %356 = vmatpush.msra.mxu0 0.0
    %357 = vmatpush.msra.mxu0 0.0
    %358 = vmatpush.msra.mxu0 0.0
    %359 = vmatpush.msra.mxu0 0.0
    %360 = vmatpush.msra.mxu0 0.0
    %361 = vmatpush.msra.mxu0 0.0
    %362 = vmatpush.msra.mxu0 0.0
    %363 = vmatpush.msra.mxu0 0.0
    %364 = vmatpush.msra.mxu0 0.0
    %365 = vmatpush.msra.mxu0 %v85
    %366 = vmatpush.msra.mxu0 %v83
    %367 = vmatmul.f32.gmra.mxu0 %v329
    %v368 = vpop.f32.mrf.mxu0
    %v369 = vadd.f32 %v99, %v368
    %370 = vdwg.mxu0
    %s371 = scalar_lea.vmem %s0, 12
    %v372 = vld [vmem:[%s371] sm:$0x3]
    %v374 = vsel %vm102, %v372, 0
    %376 = vmatpush.msra.mxu0 0.0
    %377 = vmatpush.msra.mxu0 0.0
    %378 = vmatpush.msra.mxu0 0.0
    %379 = vmatpush.msra.mxu0 0.0
    %380 = vmatpush.msra.mxu0 0.0
    %381 = vmatpush.msra.mxu0 0.0
    %382 = vmatpush.msra.mxu0 0.0
    %383 = vmatpush.msra.mxu0 0.0
    %384 = vmatpush.msra.mxu0 0.0
    %385 = vmatpush.msra.mxu0 0.0
    %386 = vmatpush.msra.mxu0 0.0
    %387 = vmatpush.msra.mxu0 0.0
    %388 = vmatpush.msra.mxu0 0.0
    %389 = vmatpush.msra.mxu0 0.0
    %390 = vmatpush.msra.mxu0 %v84
    %391 = vmatpush.msra.mxu0 %v82
    %392 = vmatmul.f32.gmra.mxu0 %v374
    %v393 = vpop.f32.mrf.mxu0
    %v394 = vadd.f32 %v98, %v393
    %395 = vdwg.mxu0
    %396 = vmatpush.msra.mxu0 0.0
    %397 = vmatpush.msra.mxu0 0.0
    %398 = vmatpush.msra.mxu0 0.0
    %399 = vmatpush.msra.mxu0 0.0
    %400 = vmatpush.msra.mxu0 0.0
    %401 = vmatpush.msra.mxu0 0.0
    %402 = vmatpush.msra.mxu0 0.0
    %403 = vmatpush.msra.mxu0 0.0
    %404 = vmatpush.msra.mxu0 0.0
    %405 = vmatpush.msra.mxu0 0.0
    %406 = vmatpush.msra.mxu0 0.0
    %407 = vmatpush.msra.mxu0 0.0
    %408 = vmatpush.msra.mxu0 0.0
    %409 = vmatpush.msra.mxu0 0.0
    %410 = vmatpush.msra.mxu0 %v85
    %411 = vmatpush.msra.mxu0 %v83
    %412 = vmatmul.f32.gmra.mxu0 %v374
    %v413 = vpop.f32.mrf.mxu0
    %v414 = vadd.f32 %v99, %v413
    %415 = vdwg.mxu0
    %s416 = scalar_lea.vmem %s0, 14
    %v417 = vld [vmem:[%s416] sm:$0x3]
    %v419 = vsel %vm102, %v417, 0
    %421 = vmatpush.msra.mxu0 0.0
    %422 = vmatpush.msra.mxu0 0.0
    %423 = vmatpush.msra.mxu0 0.0
    %424 = vmatpush.msra.mxu0 0.0
    %425 = vmatpush.msra.mxu0 0.0
    %426 = vmatpush.msra.mxu0 0.0
    %427 = vmatpush.msra.mxu0 0.0
    %428 = vmatpush.msra.mxu0 0.0
    %429 = vmatpush.msra.mxu0 0.0
    %430 = vmatpush.msra.mxu0 0.0
    %431 = vmatpush.msra.mxu0 0.0
    %432 = vmatpush.msra.mxu0 0.0
    %433 = vmatpush.msra.mxu0 0.0
    %434 = vmatpush.msra.mxu0 0.0
    %435 = vmatpush.msra.mxu0 %v84
    %436 = vmatpush.msra.mxu0 %v82
    %437 = vmatmul.f32.gmra.mxu0 %v419
    %v438 = vpop.f32.mrf.mxu0
    %v439 = vadd.f32 %v98, %v438
    %440 = vdwg.mxu0
    %441 = vmatpush.msra.mxu0 0.0
    %442 = vmatpush.msra.mxu0 0.0
    %443 = vmatpush.msra.mxu0 0.0
    %444 = vmatpush.msra.mxu0 0.0
    %445 = vmatpush.msra.mxu0 0.0
    %446 = vmatpush.msra.mxu0 0.0
    %447 = vmatpush.msra.mxu0 0.0
    %448 = vmatpush.msra.mxu0 0.0
    %449 = vmatpush.msra.mxu0 0.0
    %450 = vmatpush.msra.mxu0 0.0
    %451 = vmatpush.msra.mxu0 0.0
    %452 = vmatpush.msra.mxu0 0.0
    %453 = vmatpush.msra.mxu0 0.0
    %454 = vmatpush.msra.mxu0 0.0
    %455 = vmatpush.msra.mxu0 %v85
    %456 = vmatpush.msra.mxu0 %v83
    %457 = vmatmul.f32.gmra.mxu0 %v419
    %v458 = vpop.f32.mrf.mxu0
    %v459 = vadd.f32 %v99, %v458
    %460 = vdwg.mxu0
    %vm461 = vcmask 261120
    %v463 = vsel %vm461, 0.0, 0
    %465 = vmatpush.msra.mxu0 0.0
    %466 = vmatpush.msra.mxu0 0.0
    %467 = vmatpush.msra.mxu0 0.0
    %468 = vmatpush.msra.mxu0 0.0
    %469 = vmatpush.msra.mxu0 0.0
    %470 = vmatpush.msra.mxu0 0.0
    %471 = vmatpush.msra.mxu0 0.0
    %472 = vmatpush.msra.mxu0 0.0
    %473 = vmatpush.msra.mxu0 0.0
    %474 = vmatpush.msra.mxu0 0.0
    %475 = vmatpush.msra.mxu0 0.0
    %476 = vmatpush.msra.mxu0 0.0
    %477 = vmatpush.msra.mxu0 %v90
    %478 = vmatpush.msra.mxu0 %v89
    %479 = vmatpush.msra.mxu0 %v88
    %480 = vmatpush.msra.mxu0 %v87
    %481 = vmatmul.f32.gmra.mxu0 %v463
    %v482 = vpop.f32.mrf.mxu0
    %v483 = vadd.f32 0.0, %v482
    %484 = vdwg.mxu0
    %v485 = vadd.f32 %v124, %v483
    %486 = vmatpush.msra.mxu0 0.0
    %487 = vmatpush.msra.mxu0 0.0
    %488 = vmatpush.msra.mxu0 0.0
    %489 = vmatpush.msra.mxu0 0.0
    %490 = vmatpush.msra.mxu0 0.0
    %491 = vmatpush.msra.mxu0 0.0
    %492 = vmatpush.msra.mxu0 0.0
    %493 = vmatpush.msra.mxu0 0.0
    %494 = vmatpush.msra.mxu0 0.0
    %495 = vmatpush.msra.mxu0 0.0
    %496 = vmatpush.msra.mxu0 0.0
    %497 = vmatpush.msra.mxu0 0.0
    %498 = vmatpush.msra.mxu0 %v95
    %499 = vmatpush.msra.mxu0 %v94
    %500 = vmatpush.msra.mxu0 %v93
    %501 = vmatpush.msra.mxu0 %v92
    %502 = vmatmul.f32.gmra.mxu0 %v463
    %v503 = vpop.f32.mrf.mxu0
    %v504 = vadd.f32 0.0, %v503
    %505 = vdwg.mxu0
    %v506 = vadd.f32 %v459, %v504
    %v507 = vmul.f32 %v485, 0.5
    %v508 = vtanh.pop %v507
    %v509 = vmul.f32 %v508, 0.5
    %v510 = vadd.f32 %v509, 0.5
    %v511 = vtanh.pop %v485
    %v512 = vmul.f32 %v506, 0.5
    %v513 = vtanh.pop %v512
    %v514 = vmul.f32 %v513, 0.5
    %v515 = vadd.f32 %v514, 0.5
    %v516 = vtanh.pop %v506
    %v517 = vmul.f32 %v510, 0.0
    %519 = vrot.lane.b32.xlu0 %v511, 32
    %v520 = vpop.permute.xlu0 %519
    %v522 = vmul.f32 %v510, %v520
    %524 = vrot.lane.b32.xlu0 %v522, 32
    %v525 = vpop.permute.xlu0 %524
    %v527 = vadd.f32 %v517, %v525
    %v528 = vmul.f32 %v515, 0.0
    %530 = vrot.lane.b32.xlu0 %v516, 32
    %v531 = vpop.permute.xlu0 %530
    %v533 = vmul.f32 %v515, %v531
    %535 = vrot.lane.b32.xlu0 %v533, 32
    %v536 = vpop.permute.xlu0 %535
    %v538 = vadd.f32 %v528, %v536
    %v539 = vtanh.pop %v527
    %541 = vrot.lane.b32.xlu0 %v539, 32
    %v542 = vpop.permute.xlu0 %541
    %v544 = vmul.f32 %v510, %v542
    %v545 = vtanh.pop %v538
    %547 = vrot.lane.b32.xlu0 %v545, 32
    %v548 = vpop.permute.xlu0 %547
    %v550 = vmul.f32 %v515, %v548
    %v551 = vsel %vm74, 1, 0
    %552 = vset.pattern.permute.xlu0 0
    %553 = vperm.xlu0 %552, %v551
    %v554 = vpop.permute.xlu0 %553
    %vm555 = vcmp.eq.s32.totalorder %v554, 1
    %v556 = vsel %vm555, %v544, 0.0
    %v557 = vsel %vm555, %v527, 0.0
    %v558 = vsel %vm81, 1, 0
    %559 = vset.pattern.permute.xlu0 0
    %560 = vperm.xlu0 %559, %v558
    %v561 = vpop.permute.xlu0 %560
    %vm562 = vcmp.eq.s32.totalorder %v561, 1
    %v563 = vsel %vm562, %v550, 0.0
    %v564 = vsel %vm562, %v538, 0.0
    %566 = vrot.lane.b32.xlu0 %v556, 64
    %v567 = vpop.permute.xlu0 %566
    %vm569 = vcmask 254976
    %570 = vst.msk [vmem:[#allocation2] sm:$0x3] %vm569, %v567
    %572 = vrot.lane.b32.xlu0 %v563, 64
    %v573 = vpop.permute.xlu0 %572
    %s575 = scalar_lea.vmem [#allocation3], 14
    %576 = vst.msk [vmem:[%s575] sm:$0x3] %vm569, %v573
    %v577 = vsel %vm461, %v567, 0
    %579 = vmatpush.msra.mxu0 0.0
    %580 = vmatpush.msra.mxu0 0.0
    %581 = vmatpush.msra.mxu0 0.0
    %582 = vmatpush.msra.mxu0 0.0
    %583 = vmatpush.msra.mxu0 0.0
    %584 = vmatpush.msra.mxu0 0.0
    %585 = vmatpush.msra.mxu0 0.0
    %586 = vmatpush.msra.mxu0 0.0
    %587 = vmatpush.msra.mxu0 0.0
    %588 = vmatpush.msra.mxu0 0.0
    %589 = vmatpush.msra.mxu0 0.0
    %590 = vmatpush.msra.mxu0 0.0
    %591 = vmatpush.msra.mxu0 %v90
    %592 = vmatpush.msra.mxu0 %v89
    %593 = vmatpush.msra.mxu0 %v88
    %594 = vmatpush.msra.mxu0 %v87
    %595 = vmatmul.f32.gmra.mxu0 %v577
    %v596 = vpop.f32.mrf.mxu0
    %v597 = vadd.f32 0.0, %v596
    %598 = vdwg.mxu0
    %v599 = vadd.f32 %v169, %v597
    %v600 = vsel %vm461, %v573, 0
    %602 = vmatpush.msra.mxu0 0.0
    %603 = vmatpush.msra.mxu0 0.0
    %604 = vmatpush.msra.mxu0 0.0
    %605 = vmatpush.msra.mxu0 0.0
    %606 = vmatpush.msra.mxu0 0.0
    %607 = vmatpush.msra.mxu0 0.0
    %608 = vmatpush.msra.mxu0 0.0
    %609 = vmatpush.msra.mxu0 0.0
    %610 = vmatpush.msra.mxu0 0.0
    %611 = vmatpush.msra.mxu0 0.0
    %612 = vmatpush.msra.mxu0 0.0
    %613 = vmatpush.msra.mxu0 0.0
    %614 = vmatpush.msra.mxu0 %v95
    %615 = vmatpush.msra.mxu0 %v94
    %616 = vmatpush.msra.mxu0 %v93
    %617 = vmatpush.msra.mxu0 %v92
    %618 = vmatmul.f32.gmra.mxu0 %v600
    %v619 = vpop.f32.mrf.mxu0
    %v620 = vadd.f32 0.0, %v619
    %621 = vdwg.mxu0
    %v622 = vadd.f32 %v414, %v620
    %v623 = vmul.f32 %v599, 0.5
    %v624 = vtanh.pop %v623
    %v625 = vmul.f32 %v624, 0.5
    %v626 = vadd.f32 %v625, 0.5
    %v627 = vtanh.pop %v599
    %v628 = vmul.f32 %v622, 0.5
    %v629 = vtanh.pop %v628
    %v630 = vmul.f32 %v629, 0.5
    %v631 = vadd.f32 %v630, 0.5
    %v632 = vtanh.pop %v622
    %v633 = vmul.f32 %v626, %v557
    %635 = vrot.lane.b32.xlu0 %v627, 32
    %v636 = vpop.permute.xlu0 %635
    %v638 = vmul.f32 %v626, %v636
    %640 = vrot.lane.b32.xlu0 %v638, 32
    %v641 = vpop.permute.xlu0 %640
    %v643 = vadd.f32 %v633, %v641
    %v644 = vmul.f32 %v631, %v564
    %646 = vrot.lane.b32.xlu0 %v632, 32
    %v647 = vpop.permute.xlu0 %646
    %v649 = vmul.f32 %v631, %v647
    %651 = vrot.lane.b32.xlu0 %v649, 32
    %v652 = vpop.permute.xlu0 %651
    %v654 = vadd.f32 %v644, %v652
    %v655 = vtanh.pop %v643
    %657 = vrot.lane.b32.xlu0 %v655, 32
    %v658 = vpop.permute.xlu0 %657
    %v660 = vmul.f32 %v626, %v658
    %v661 = vtanh.pop %v654
    %663 = vrot.lane.b32.xlu0 %v661, 32
    %v664 = vpop.permute.xlu0 %663
    %v666 = vmul.f32 %v631, %v664
    %v667 = vsel %vm75, 1, 0
    %668 = vset.pattern.permute.xlu0 0
    %669 = vperm.xlu0 %668, %v667
    %v670 = vpop.permute.xlu0 %669
    %vm671 = vcmp.eq.s32.totalorder %v670, 1
    %v672 = vsel %vm671, %v660, %v556
    %v673 = vsel %vm671, %v643, %v557
    %v674 = vsel %vm80, 1, 0
    %675 = vset.pattern.permute.xlu0 0
    %676 = vperm.xlu0 %675, %v674
    %v677 = vpop.permute.xlu0 %676
    %vm678 = vcmp.eq.s32.totalorder %v677, 1
    %v679 = vsel %vm678, %v666, %v563
    %v680 = vsel %vm678, %v654, %v564
    %682 = vrot.lane.b32.xlu0 %v672, 64
    %v683 = vpop.permute.xlu0 %682
    %s685 = scalar_lea.vmem [#allocation2], 2
    %686 = vst.msk [vmem:[%s685] sm:$0x3] %vm569, %v683
    %688 = vrot.lane.b32.xlu0 %v679, 64
    %v689 = vpop.permute.xlu0 %688
    %s691 = scalar_lea.vmem [#allocation3], 12
    %692 = vst.msk [vmem:[%s691] sm:$0x3] %vm569, %v689
    %v693 = vsel %vm461, %v683, 0
    %695 = vmatpush.msra.mxu0 0.0
    %696 = vmatpush.msra.mxu0 0.0
    %697 = vmatpush.msra.mxu0 0.0
    %698 = vmatpush.msra.mxu0 0.0
    %699 = vmatpush.msra.mxu0 0.0
    %700 = vmatpush.msra.mxu0 0.0
    %701 = vmatpush.msra.mxu0 0.0
    %702 = vmatpush.msra.mxu0 0.0
    %703 = vmatpush.msra.mxu0 0.0
    %704 = vmatpush.msra.mxu0 0.0
    %705 = vmatpush.msra.mxu0 0.0
    %706 = vmatpush.msra.mxu0 0.0
    %707 = vmatpush.msra.mxu0 %v90
    %708 = vmatpush.msra.mxu0 %v89
    %709 = vmatpush.msra.mxu0 %v88
    %710 = vmatpush.msra.mxu0 %v87
    %711 = vmatmul.f32.gmra.mxu0 %v693
    %v712 = vpop.f32.mrf.mxu0
    %v713 = vadd.f32 0.0, %v712
    %714 = vdwg.mxu0
    %v715 = vadd.f32 %v214, %v713
    %v716 = vsel %vm461, %v689, 0
    %718 = vmatpush.msra.mxu0 0.0
    %719 = vmatpush.msra.mxu0 0.0
    %720 = vmatpush.msra.mxu0 0.0
    %721 = vmatpush.msra.mxu0 0.0
    %722 = vmatpush.msra.mxu0 0.0
    %723 = vmatpush.msra.mxu0 0.0
    %724 = vmatpush.msra.mxu0 0.0
    %725 = vmatpush.msra.mxu0 0.0
    %726 = vmatpush.msra.mxu0 0.0
    %727 = vmatpush.msra.mxu0 0.0
    %728 = vmatpush.msra.mxu0 0.0
    %729 = vmatpush.msra.mxu0 0.0
    %730 = vmatpush.msra.mxu0 %v95
    %731 = vmatpush.msra.mxu0 %v94
    %732 = vmatpush.msra.mxu0 %v93
    %733 = vmatpush.msra.mxu0 %v92
    %734 = vmatmul.f32.gmra.mxu0 %v716
    %v735 = vpop.f32.mrf.mxu0
    %v736 = vadd.f32 0.0, %v735
    %737 = vdwg.mxu0
    %v738 = vadd.f32 %v369, %v736
    %v739 = vmul.f32 %v715, 0.5
    %v740 = vtanh.pop %v739
    %v741 = vmul.f32 %v740, 0.5
    %v742 = vadd.f32 %v741, 0.5
    %v743 = vtanh.pop %v715
    %v744 = vmul.f32 %v738, 0.5
    %v745 = vtanh.pop %v744
    %v746 = vmul.f32 %v745, 0.5
    %v747 = vadd.f32 %v746, 0.5
    %v748 = vtanh.pop %v738
    %v749 = vmul.f32 %v742, %v673
    %751 = vrot.lane.b32.xlu0 %v743, 32
    %v752 = vpop.permute.xlu0 %751
    %v754 = vmul.f32 %v742, %v752
    %756 = vrot.lane.b32.xlu0 %v754, 32
    %v757 = vpop.permute.xlu0 %756
    %v759 = vadd.f32 %v749, %v757
    %v760 = vmul.f32 %v747, %v680
    %762 = vrot.lane.b32.xlu0 %v748, 32
    %v763 = vpop.permute.xlu0 %762
    %v765 = vmul.f32 %v747, %v763
    %767 = vrot.lane.b32.xlu0 %v765, 32
    %v768 = vpop.permute.xlu0 %767
    %v770 = vadd.f32 %v760, %v768
    %v771 = vtanh.pop %v759
    %773 = vrot.lane.b32.xlu0 %v771, 32
    %v774 = vpop.permute.xlu0 %773
    %v776 = vmul.f32 %v742, %v774
    %v777 = vtanh.pop %v770
    %779 = vrot.lane.b32.xlu0 %v777, 32
    %v780 = vpop.permute.xlu0 %779
    %v782 = vmul.f32 %v747, %v780
    %v783 = vsel %vm76, 1, 0
    %784 = vset.pattern.permute.xlu0 0
    %785 = vperm.xlu0 %784, %v783
    %v786 = vpop.permute.xlu0 %785
    %vm787 = vcmp.eq.s32.totalorder %v786, 1
    %v788 = vsel %vm787, %v776, %v672
    %v789 = vsel %vm787, %v759, %v673
    %v790 = vsel %vm79, 1, 0
    %791 = vset.pattern.permute.xlu0 0
    %792 = vperm.xlu0 %791, %v790
    %v793 = vpop.permute.xlu0 %792
    %vm794 = vcmp.eq.s32.totalorder %v793, 1
    %v795 = vsel %vm794, %v782, %v679
    %v796 = vsel %vm794, %v770, %v680
    %798 = vrot.lane.b32.xlu0 %v788, 64
    %v799 = vpop.permute.xlu0 %798
    %s801 = scalar_lea.vmem [#allocation2], 4
    %802 = vst.msk [vmem:[%s801] sm:$0x3] %vm569, %v799
    %804 = vrot.lane.b32.xlu0 %v795, 64
    %v805 = vpop.permute.xlu0 %804
    %s807 = scalar_lea.vmem [#allocation3], 10
    %808 = vst.msk [vmem:[%s807] sm:$0x3] %vm569, %v805
    %v809 = vsel %vm461, %v799, 0
    %811 = vmatpush.msra.mxu0 0.0
    %812 = vmatpush.msra.mxu0 0.0
    %813 = vmatpush.msra.mxu0 0.0
    %814 = vmatpush.msra.mxu0 0.0
    %815 = vmatpush.msra.mxu0 0.0
    %816 = vmatpush.msra.mxu0 0.0
    %817 = vmatpush.msra.mxu0 0.0
    %818 = vmatpush.msra.mxu0 0.0
    %819 = vmatpush.msra.mxu0 0.0
    %820 = vmatpush.msra.mxu0 0.0
    %821 = vmatpush.msra.mxu0 0.0
    %822 = vmatpush.msra.mxu0 0.0
    %823 = vmatpush.msra.mxu0 %v90
    %824 = vmatpush.msra.mxu0 %v89
    %825 = vmatpush.msra.mxu0 %v88
    %826 = vmatpush.msra.mxu0 %v87
    %827 = vmatmul.f32.gmra.mxu0 %v809
    %v828 = vpop.f32.mrf.mxu0
    %v829 = vadd.f32 0.0, %v828
    %830 = vdwg.mxu0
    %v831 = vadd.f32 %v259, %v829
    %v832 = vsel %vm461, %v805, 0
    %834 = vmatpush.msra.mxu0 0.0
    %835 = vmatpush.msra.mxu0 0.0
    %836 = vmatpush.msra.mxu0 0.0
    %837 = vmatpush.msra.mxu0 0.0
    %838 = vmatpush.msra.mxu0 0.0
    %839 = vmatpush.msra.mxu0 0.0
    %840 = vmatpush.msra.mxu0 0.0
    %841 = vmatpush.msra.mxu0 0.0
    %842 = vmatpush.msra.mxu0 0.0
    %843 = vmatpush.msra.mxu0 0.0
    %844 = vmatpush.msra.mxu0 0.0
    %845 = vmatpush.msra.mxu0 0.0
    %846 = vmatpush.msra.mxu0 %v95
    %847 = vmatpush.msra.mxu0 %v94
    %848 = vmatpush.msra.mxu0 %v93
    %849 = vmatpush.msra.mxu0 %v92
    %850 = vmatmul.f32.gmra.mxu0 %v832
    %v851 = vpop.f32.mrf.mxu0
    %v852 = vadd.f32 0.0, %v851
    %853 = vdwg.mxu0
    %v854 = vadd.f32 %v324, %v852
    %v855 = vmul.f32 %v831, 0.5
    %v856 = vtanh.pop %v855
    %v857 = vmul.f32 %v856, 0.5
    %v858 = vadd.f32 %v857, 0.5
    %v859 = vtanh.pop %v831
    %v860 = vmul.f32 %v854, 0.5
    %v861 = vtanh.pop %v860
    %v862 = vmul.f32 %v861, 0.5
    %v863 = vadd.f32 %v862, 0.5
    %v864 = vtanh.pop %v854
    %v865 = vmul.f32 %v858, %v789
    %867 = vrot.lane.b32.xlu0 %v859, 32
    %v868 = vpop.permute.xlu0 %867
    %v870 = vmul.f32 %v858, %v868
    %872 = vrot.lane.b32.xlu0 %v870, 32
    %v873 = vpop.permute.xlu0 %872
    %v875 = vadd.f32 %v865, %v873
    %v876 = vmul.f32 %v863, %v796
    %878 = vrot.lane.b32.xlu0 %v864, 32
    %v879 = vpop.permute.xlu0 %878
    %v881 = vmul.f32 %v863, %v879
    %883 = vrot.lane.b32.xlu0 %v881, 32
    %v884 = vpop.permute.xlu0 %883
    %v886 = vadd.f32 %v876, %v884
    %v887 = vtanh.pop %v875
    %889 = vrot.lane.b32.xlu0 %v887, 32
    %v890 = vpop.permute.xlu0 %889
    %v892 = vmul.f32 %v858, %v890
    %v893 = vtanh.pop %v886
    %895 = vrot.lane.b32.xlu0 %v893, 32
    %v896 = vpop.permute.xlu0 %895
    %v898 = vmul.f32 %v863, %v896
    %v899 = vsel %vm77, 1, 0
    %900 = vset.pattern.permute.xlu0 0
    %901 = vperm.xlu0 %900, %v899
    %v902 = vpop.permute.xlu0 %901
    %vm903 = vcmp.eq.s32.totalorder %v902, 1
    %v904 = vsel %vm903, %v892, %v788
    %v905 = vsel %vm903, %v875, %v789
    %v906 = vsel %vm78, 1, 0
    %907 = vset.pattern.permute.xlu0 0
    %908 = vperm.xlu0 %907, %v906
    %v909 = vpop.permute.xlu0 %908
    %vm910 = vcmp.eq.s32.totalorder %v909, 1
    %v911 = vsel %vm910, %v898, %v795
    %v912 = vsel %vm910, %v886, %v796
    %914 = vrot.lane.b32.xlu0 %v904, 64
    %v915 = vpop.permute.xlu0 %914
    %s917 = scalar_lea.vmem [#allocation2], 6
    %918 = vst.msk [vmem:[%s917] sm:$0x3] %vm569, %v915
    %920 = vrot.lane.b32.xlu0 %v911, 64
    %v921 = vpop.permute.xlu0 %920
    %s923 = scalar_lea.vmem [#allocation3], 8
    %924 = vst.msk [vmem:[%s923] sm:$0x3] %vm569, %v921
    %v925 = vsel %vm461, %v915, 0
    %927 = vmatpush.msra.mxu0 0.0
    %928 = vmatpush.msra.mxu0 0.0
    %929 = vmatpush.msra.mxu0 0.0
    %930 = vmatpush.msra.mxu0 0.0
    %931 = vmatpush.msra.mxu0 0.0
    %932 = vmatpush.msra.mxu0 0.0
    %933 = vmatpush.msra.mxu0 0.0
    %934 = vmatpush.msra.mxu0 0.0
    %935 = vmatpush.msra.mxu0 0.0
    %936 = vmatpush.msra.mxu0 0.0
    %937 = vmatpush.msra.mxu0 0.0
    %938 = vmatpush.msra.mxu0 0.0
    %939 = vmatpush.msra.mxu0 %v90
    %940 = vmatpush.msra.mxu0 %v89
    %941 = vmatpush.msra.mxu0 %v88
    %942 = vmatpush.msra.mxu0 %v87
    %943 = vmatmul.f32.gmra.mxu0 %v925
    %v944 = vpop.f32.mrf.mxu0
    %v945 = vadd.f32 0.0, %v944
    %946 = vdwg.mxu0
    %v947 = vadd.f32 %v304, %v945
    %v948 = vsel %vm461, %v921, 0
    %950 = vmatpush.msra.mxu0 0.0
    %951 = vmatpush.msra.mxu0 0.0
    %952 = vmatpush.msra.mxu0 0.0
    %953 = vmatpush.msra.mxu0 0.0
    %954 = vmatpush.msra.mxu0 0.0
    %955 = vmatpush.msra.mxu0 0.0
    %956 = vmatpush.msra.mxu0 0.0
    %957 = vmatpush.msra.mxu0 0.0
    %958 = vmatpush.msra.mxu0 0.0
    %959 = vmatpush.msra.mxu0 0.0
    %960 = vmatpush.msra.mxu0 0.0
    %961 = vmatpush.msra.mxu0 0.0
    %962 = vmatpush.msra.mxu0 %v95
    %963 = vmatpush.msra.mxu0 %v94
    %964 = vmatpush.msra.mxu0 %v93
    %965 = vmatpush.msra.mxu0 %v92
    %966 = vmatmul.f32.gmra.mxu0 %v948
    %v967 = vpop.f32.mrf.mxu0
    %v968 = vadd.f32 0.0, %v967
    %969 = vdwg.mxu0
    %v970 = vadd.f32 %v279, %v968
    %v971 = vmul.f32 %v947, 0.5
    %v972 = vtanh.pop %v971
    %v973 = vmul.f32 %v972, 0.5
    %v974 = vadd.f32 %v973, 0.5
    %v975 = vtanh.pop %v947
    %v976 = vmul.f32 %v970, 0.5
    %v977 = vtanh.pop %v976
    %v978 = vmul.f32 %v977, 0.5
    %v979 = vadd.f32 %v978, 0.5
    %v980 = vtanh.pop %v970
    %v981 = vmul.f32 %v974, %v905
    %983 = vrot.lane.b32.xlu0 %v975, 32
    %v984 = vpop.permute.xlu0 %983
    %v986 = vmul.f32 %v974, %v984
    %988 = vrot.lane.b32.xlu0 %v986, 32
    %v989 = vpop.permute.xlu0 %988
    %v991 = vadd.f32 %v981, %v989
    %v992 = vmul.f32 %v979, %v912
    %994 = vrot.lane.b32.xlu0 %v980, 32
    %v995 = vpop.permute.xlu0 %994
    %v997 = vmul.f32 %v979, %v995
    %999 = vrot.lane.b32.xlu0 %v997, 32
    %v1000 = vpop.permute.xlu0 %999
    %v1002 = vadd.f32 %v992, %v1000
    %v1003 = vtanh.pop %v991
    %1005 = vrot.lane.b32.xlu0 %v1003, 32
    %v1006 = vpop.permute.xlu0 %1005
    %v1008 = vmul.f32 %v974, %v1006
    %v1009 = vtanh.pop %v1002
    %1011 = vrot.lane.b32.xlu0 %v1009, 32
    %v1012 = vpop.permute.xlu0 %1011
    %v1014 = vmul.f32 %v979, %v1012
    %v1015 = vsel %vm910, %v1008, %v904
    %v1016 = vsel %vm910, %v991, %v905
    %v1017 = vsel %vm903, %v1014, %v911
    %v1018 = vsel %vm903, %v1002, %v912
    %1020 = vrot.lane.b32.xlu0 %v1015, 64
    %v1021 = vpop.permute.xlu0 %1020
    %s1023 = scalar_lea.vmem [#allocation2], 8
    %1024 = vst.msk [vmem:[%s1023] sm:$0x3] %vm569, %v1021
    %1026 = vrot.lane.b32.xlu0 %v1017, 64
    %v1027 = vpop.permute.xlu0 %1026
    %s1029 = scalar_lea.vmem [#allocation3], 6
    %1030 = vst.msk [vmem:[%s1029] sm:$0x3] %vm569, %v1027
    %v1031 = vsel %vm461, %v1021, 0
    %1033 = vmatpush.msra.mxu0 0.0
    %1034 = vmatpush.msra.mxu0 0.0
    %1035 = vmatpush.msra.mxu0 0.0
    %1036 = vmatpush.msra.mxu0 0.0
    %1037 = vmatpush.msra.mxu0 0.0
    %1038 = vmatpush.msra.mxu0 0.0
    %1039 = vmatpush.msra.mxu0 0.0
    %1040 = vmatpush.msra.mxu0 0.0
    %1041 = vmatpush.msra.mxu0 0.0
    %1042 = vmatpush.msra.mxu0 0.0
    %1043 = vmatpush.msra.mxu0 0.0
    %1044 = vmatpush.msra.mxu0 0.0
    %1045 = vmatpush.msra.mxu0 %v90
    %1046 = vmatpush.msra.mxu0 %v89
    %1047 = vmatpush.msra.mxu0 %v88
    %1048 = vmatpush.msra.mxu0 %v87
    %1049 = vmatmul.f32.gmra.mxu0 %v1031
    %v1050 = vpop.f32.mrf.mxu0
    %v1051 = vadd.f32 0.0, %v1050
    %1052 = vdwg.mxu0
    %v1053 = vadd.f32 %v349, %v1051
    %v1054 = vsel %vm461, %v1027, 0
    %1056 = vmatpush.msra.mxu0 0.0
    %1057 = vmatpush.msra.mxu0 0.0
    %1058 = vmatpush.msra.mxu0 0.0
    %1059 = vmatpush.msra.mxu0 0.0
    %1060 = vmatpush.msra.mxu0 0.0
    %1061 = vmatpush.msra.mxu0 0.0
    %1062 = vmatpush.msra.mxu0 0.0
    %1063 = vmatpush.msra.mxu0 0.0
    %1064 = vmatpush.msra.mxu0 0.0
    %1065 = vmatpush.msra.mxu0 0.0
    %1066 = vmatpush.msra.mxu0 0.0
    %1067 = vmatpush.msra.mxu0 0.0
    %1068 = vmatpush.msra.mxu0 %v95
    %1069 = vmatpush.msra.mxu0 %v94
    %1070 = vmatpush.msra.mxu0 %v93
    %1071 = vmatpush.msra.mxu0 %v92
    %1072 = vmatmul.f32.gmra.mxu0 %v1054
    %v1073 = vpop.f32.mrf.mxu0
    %v1074 = vadd.f32 0.0, %v1073
    %1075 = vdwg.mxu0
    %v1076 = vadd.f32 %v234, %v1074
    %v1077 = vmul.f32 %v1053, 0.5
    %v1078 = vtanh.pop %v1077
    %v1079 = vmul.f32 %v1078, 0.5
    %v1080 = vadd.f32 %v1079, 0.5
    %v1081 = vtanh.pop %v1053
    %v1082 = vmul.f32 %v1076, 0.5
    %v1083 = vtanh.pop %v1082
    %v1084 = vmul.f32 %v1083, 0.5
    %v1085 = vadd.f32 %v1084, 0.5
    %v1086 = vtanh.pop %v1076
    %v1087 = vmul.f32 %v1080, %v1016
    %1089 = vrot.lane.b32.xlu0 %v1081, 32
    %v1090 = vpop.permute.xlu0 %1089
    %v1092 = vmul.f32 %v1080, %v1090
    %1094 = vrot.lane.b32.xlu0 %v1092, 32
    %v1095 = vpop.permute.xlu0 %1094
    %v1097 = vadd.f32 %v1087, %v1095
    %v1098 = vmul.f32 %v1085, %v1018
    %1100 = vrot.lane.b32.xlu0 %v1086, 32
    %v1101 = vpop.permute.xlu0 %1100
    %v1103 = vmul.f32 %v1085, %v1101
    %1105 = vrot.lane.b32.xlu0 %v1103, 32
    %v1106 = vpop.permute.xlu0 %1105
    %v1108 = vadd.f32 %v1098, %v1106
    %v1109 = vtanh.pop %v1097
    %1111 = vrot.lane.b32.xlu0 %v1109, 32
    %v1112 = vpop.permute.xlu0 %1111
    %v1114 = vmul.f32 %v1080, %v1112
    %v1115 = vtanh.pop %v1108
    %1117 = vrot.lane.b32.xlu0 %v1115, 32
    %v1118 = vpop.permute.xlu0 %1117
    %v1120 = vmul.f32 %v1085, %v1118
    %v1121 = vsel %vm794, %v1114, %v1015
    %v1122 = vsel %vm794, %v1097, %v1016
    %v1123 = vsel %vm787, %v1120, %v1017
    %v1124 = vsel %vm787, %v1108, %v1018
    %1126 = vrot.lane.b32.xlu0 %v1121, 64
    %v1127 = vpop.permute.xlu0 %1126
    %s1129 = scalar_lea.vmem [#allocation2], 10
    %1130 = vst.msk [vmem:[%s1129] sm:$0x3] %vm569, %v1127
    %1132 = vrot.lane.b32.xlu0 %v1123, 64
    %v1133 = vpop.permute.xlu0 %1132
    %s1135 = scalar_lea.vmem [#allocation3], 4
    %1136 = vst.msk [vmem:[%s1135] sm:$0x3] %vm569, %v1133
    %v1137 = vsel %vm461, %v1127, 0
    %1139 = vmatpush.msra.mxu0 0.0
    %1140 = vmatpush.msra.mxu0 0.0
    %1141 = vmatpush.msra.mxu0 0.0
    %1142 = vmatpush.msra.mxu0 0.0
    %1143 = vmatpush.msra.mxu0 0.0
    %1144 = vmatpush.msra.mxu0 0.0
    %1145 = vmatpush.msra.mxu0 0.0
    %1146 = vmatpush.msra.mxu0 0.0
    %1147 = vmatpush.msra.mxu0 0.0
    %1148 = vmatpush.msra.mxu0 0.0
    %1149 = vmatpush.msra.mxu0 0.0
    %1150 = vmatpush.msra.mxu0 0.0
    %1151 = vmatpush.msra.mxu0 %v90
    %1152 = vmatpush.msra.mxu0 %v89
    %1153 = vmatpush.msra.mxu0 %v88
    %1154 = vmatpush.msra.mxu0 %v87
    %1155 = vmatmul.f32.gmra.mxu0 %v1137
    %v1156 = vpop.f32.mrf.mxu0
    %v1157 = vadd.f32 0.0, %v1156
    %1158 = vdwg.mxu0
    %v1159 = vadd.f32 %v394, %v1157
    %v1160 = vsel %vm461, %v1133, 0
    %1162 = vmatpush.msra.mxu0 0.0
    %1163 = vmatpush.msra.mxu0 0.0
    %1164 = vmatpush.msra.mxu0 0.0
    %1165 = vmatpush.msra.mxu0 0.0
    %1166 = vmatpush.msra.mxu0 0.0
    %1167 = vmatpush.msra.mxu0 0.0
    %1168 = vmatpush.msra.mxu0 0.0
    %1169 = vmatpush.msra.mxu0 0.0
    %1170 = vmatpush.msra.mxu0 0.0
    %1171 = vmatpush.msra.mxu0 0.0
    %1172 = vmatpush.msra.mxu0 0.0
    %1173 = vmatpush.msra.mxu0 0.0
    %1174 = vmatpush.msra.mxu0 %v95
    %1175 = vmatpush.msra.mxu0 %v94
    %1176 = vmatpush.msra.mxu0 %v93
    %1177 = vmatpush.msra.mxu0 %v92
    %1178 = vmatmul.f32.gmra.mxu0 %v1160
    %v1179 = vpop.f32.mrf.mxu0
    %v1180 = vadd.f32 0.0, %v1179
    %1181 = vdwg.mxu0
    %v1182 = vadd.f32 %v189, %v1180
    %v1183 = vmul.f32 %v1159, 0.5
    %v1184 = vtanh.pop %v1183
    %v1185 = vmul.f32 %v1184, 0.5
    %v1186 = vadd.f32 %v1185, 0.5
    %v1187 = vtanh.pop %v1159
    %v1188 = vmul.f32 %v1182, 0.5
    %v1189 = vtanh.pop %v1188
    %v1190 = vmul.f32 %v1189, 0.5
    %v1191 = vadd.f32 %v1190, 0.5
    %v1192 = vtanh.pop %v1182
    %v1193 = vmul.f32 %v1186, %v1122
    %1195 = vrot.lane.b32.xlu0 %v1187, 32
    %v1196 = vpop.permute.xlu0 %1195
    %v1198 = vmul.f32 %v1186, %v1196
    %1200 = vrot.lane.b32.xlu0 %v1198, 32
    %v1201 = vpop.permute.xlu0 %1200
    %v1203 = vadd.f32 %v1193, %v1201
    %v1204 = vmul.f32 %v1191, %v1124
    %1206 = vrot.lane.b32.xlu0 %v1192, 32
    %v1207 = vpop.permute.xlu0 %1206
    %v1209 = vmul.f32 %v1191, %v1207
    %1211 = vrot.lane.b32.xlu0 %v1209, 32
    %v1212 = vpop.permute.xlu0 %1211
    %v1214 = vadd.f32 %v1204, %v1212
    %v1215 = vtanh.pop %v1203
    %1217 = vrot.lane.b32.xlu0 %v1215, 32
    %v1218 = vpop.permute.xlu0 %1217
    %v1220 = vmul.f32 %v1186, %v1218
    %v1221 = vtanh.pop %v1214
    %1223 = vrot.lane.b32.xlu0 %v1221, 32
    %v1224 = vpop.permute.xlu0 %1223
    %v1226 = vmul.f32 %v1191, %v1224
    %v1227 = vsel %vm678, %v1220, %v1121
    %v1228 = vsel %vm678, %v1203, %v1122
    %v1229 = vsel %vm671, %v1226, %v1123
    %v1230 = vsel %vm671, %v1214, %v1124
    %1232 = vrot.lane.b32.xlu0 %v1227, 64
    %v1233 = vpop.permute.xlu0 %1232
    %s1235 = scalar_lea.vmem [#allocation2], 12
    %1236 = vst.msk [vmem:[%s1235] sm:$0x3] %vm569, %v1233
    %1238 = vrot.lane.b32.xlu0 %v1229, 64
    %v1239 = vpop.permute.xlu0 %1238
    %s1241 = scalar_lea.vmem [#allocation3], 2
    %1242 = vst.msk [vmem:[%s1241] sm:$0x3] %vm569, %v1239
    %v1243 = vsel %vm461, %v1233, 0
    %1245 = vmatpush.msra.mxu0 0.0
    %1246 = vmatpush.msra.mxu0 0.0
    %1247 = vmatpush.msra.mxu0 0.0
    %1248 = vmatpush.msra.mxu0 0.0
    %1249 = vmatpush.msra.mxu0 0.0
    %1250 = vmatpush.msra.mxu0 0.0
    %1251 = vmatpush.msra.mxu0 0.0
    %1252 = vmatpush.msra.mxu0 0.0
    %1253 = vmatpush.msra.mxu0 0.0
    %1254 = vmatpush.msra.mxu0 0.0
    %1255 = vmatpush.msra.mxu0 0.0
    %1256 = vmatpush.msra.mxu0 0.0
    %1257 = vmatpush.msra.mxu0 %v90
    %1258 = vmatpush.msra.mxu0 %v89
    %1259 = vmatpush.msra.mxu0 %v88
    %1260 = vmatpush.msra.mxu0 %v87
    %1261 = vmatmul.f32.gmra.mxu0 %v1243
    %v1262 = vpop.f32.mrf.mxu0
    %v1263 = vadd.f32 0.0, %v1262
    %1264 = vdwg.mxu0
    %v1265 = vadd.f32 %v439, %v1263
    %v1266 = vsel %vm461, %v1239, 0
    %1268 = vmatpush.msra.mxu0 0.0
    %1269 = vmatpush.msra.mxu0 0.0
    %1270 = vmatpush.msra.mxu0 0.0
    %1271 = vmatpush.msra.mxu0 0.0
    %1272 = vmatpush.msra.mxu0 0.0
    %1273 = vmatpush.msra.mxu0 0.0
    %1274 = vmatpush.msra.mxu0 0.0
    %1275 = vmatpush.msra.mxu0 0.0
    %1276 = vmatpush.msra.mxu0 0.0
    %1277 = vmatpush.msra.mxu0 0.0
    %1278 = vmatpush.msra.mxu0 0.0
    %1279 = vmatpush.msra.mxu0 0.0
    %1280 = vmatpush.msra.mxu0 %v95
    %1281 = vmatpush.msra.mxu0 %v94
    %1282 = vmatpush.msra.mxu0 %v93
    %1283 = vmatpush.msra.mxu0 %v92
    %1284 = vmatmul.f32.gmra.mxu0 %v1266
    %v1285 = vpop.f32.mrf.mxu0
    %v1286 = vadd.f32 0.0, %v1285
    %1287 = vdwg.mxu0
    %v1288 = vadd.f32 %v144, %v1286
    %v1289 = vmul.f32 %v1265, 0.5
    %v1290 = vtanh.pop %v1289
    %v1291 = vmul.f32 %v1290, 0.5
    %v1292 = vadd.f32 %v1291, 0.5
    %v1293 = vtanh.pop %v1265
    %v1294 = vmul.f32 %v1288, 0.5
    %v1295 = vtanh.pop %v1294
    %v1296 = vmul.f32 %v1295, 0.5
    %v1297 = vadd.f32 %v1296, 0.5
    %v1298 = vtanh.pop %v1288
    %v1299 = vmul.f32 %v1292, %v1228
    %1301 = vrot.lane.b32.xlu0 %v1293, 32
    %v1302 = vpop.permute.xlu0 %1301
    %v1304 = vmul.f32 %v1292, %v1302
    %1306 = vrot.lane.b32.xlu0 %v1304, 32
    %v1307 = vpop.permute.xlu0 %1306
    %v1309 = vadd.f32 %v1299, %v1307
    %v1310 = vmul.f32 %v1297, %v1230
    %1312 = vrot.lane.b32.xlu0 %v1298, 32
    %v1313 = vpop.permute.xlu0 %1312
    %v1315 = vmul.f32 %v1297, %v1313
    %1317 = vrot.lane.b32.xlu0 %v1315, 32
    %v1318 = vpop.permute.xlu0 %1317
    %v1320 = vadd.f32 %v1310, %v1318
    %v1321 = vtanh.pop %v1309
    %1323 = vrot.lane.b32.xlu0 %v1321, 32
    %v1324 = vpop.permute.xlu0 %1323
    %v1326 = vmul.f32 %v1292, %v1324
    %v1327 = vtanh.pop %v1320
    %1329 = vrot.lane.b32.xlu0 %v1327, 32
    %v1330 = vpop.permute.xlu0 %1329
    %v1332 = vmul.f32 %v1297, %v1330
    %v1333 = vsel %vm562, %v1326, %v1227
    %v1334 = vsel %vm555, %v1332, %v1229
    %1336 = vrot.lane.b32.xlu0 %v1333, 64
    %v1337 = vpop.permute.xlu0 %1336
    %s1339 = scalar_lea.vmem [#allocation2], 14
    %1340 = vst.msk [vmem:[%s1339] sm:$0x3] %vm569, %v1337
    %1342 = vrot.lane.b32.xlu0 %v1334, 64
    %v1343 = vpop.permute.xlu0 %1342
    %1345 = vst.msk [vmem:[#allocation3] sm:$0x3] %vm569, %v1343
    %s1346 = scalar_lea.vmem [#allocation6], 128
    %v1347 = vld [vmem:[%s1346] sm:$0xff]
    %v1348 = vld [vmem:[%s1346 + $0x8] sm:$0xff]
    %v1349 = vld [vmem:[%s1346 + $0x10] sm:$0xff]
    %v1350 = vld [vmem:[%s1346 + $0x18] sm:$0xff]
    %v1351 = vld [vmem:[%s1346 + $0x20] sm:$0xff]
    %v1352 = vld [vmem:[%s1346 + $0x28] sm:$0xff]
    %v1353 = vld [vmem:[%s1346 + $0x30] sm:$0xff]
    %v1354 = vld [vmem:[%s1346 + $0x38] sm:$0xff]
    %v1355 = vld [vmem:[%s1346 + $0x40] sm:$0xff]
    %v1356 = vld [vmem:[%s1346 + $0x48] sm:$0xff]
    %v1357 = vld [vmem:[%s1346 + $0x50] sm:$0xff]
    %v1358 = vld [vmem:[%s1346 + $0x58] sm:$0xff]
    %v1359 = vld [vmem:[%s1346 + $0x60] sm:$0xff]
    %v1360 = vld [vmem:[%s1346 + $0x68] sm:$0xff]
    %v1361 = vld [vmem:[%s1346 + $0x70] sm:$0xff]
    %v1362 = vld [vmem:[%s1346 + $0x78] sm:$0xff]
    %s1363 = scalar_lea.vmem %s4, 2
    %v1364 = vld [vmem:[%s1363] sm:$0x3]
    %s1365 = scalar_lea.vmem [#allocation8], 64
    %v1366 = vld [vmem:[%s1365] sm:$0xff]
    %v1367 = vld [vmem:[%s1365 + $0x8] sm:$0xff]
    %v1368 = vld [vmem:[%s1365 + $0x10] sm:$0xff]
    %v1369 = vld [vmem:[%s1365 + $0x18] sm:$0xff]
    %s1370 = scalar_lea.vmem [#allocation8], 96
    %v1371 = vld [vmem:[%s1370] sm:$0xff]
    %v1372 = vld [vmem:[%s1370 + $0x8] sm:$0xff]
    %v1373 = vld [vmem:[%s1370 + $0x10] sm:$0xff]
    %v1374 = vld [vmem:[%s1370 + $0x18] sm:$0xff]
    %v1375 = vld [vmem:[#allocation2] sm:$0x3]
    %v1376 = vld [vmem:[#allocation3] sm:$0x3]
    %1378 = vrot.lane.b32.xlu0 %v1376, 32
    %v1379 = vpop.permute.xlu0 %1378
    %v1381 = vsel %vm461, %v1375, %v1379
    %v1383 = vperm.slane %v1364, 0
    %v1384 = vperm.slane %v1364, 1
    %vm1387 = vcmask 523264
    %v1389 = vsel %vm1387, %v1381, 0
    %1391 = vmatpush.msra.mxu0 0.0
    %1392 = vmatpush.msra.mxu0 0.0
    %1393 = vmatpush.msra.mxu0 0.0
    %1394 = vmatpush.msra.mxu0 0.0
    %1395 = vmatpush.msra.mxu0 0.0
    %1396 = vmatpush.msra.mxu0 0.0
    %1397 = vmatpush.msra.mxu0 0.0
    %1398 = vmatpush.msra.mxu0 0.0
    %1399 = vmatpush.msra.mxu0 %v1361
    %1400 = vmatpush.msra.mxu0 %v1359
    %1401 = vmatpush.msra.mxu0 %v1357
    %1402 = vmatpush.msra.mxu0 %v1355
    %1403 = vmatpush.msra.mxu0 %v1353
    %1404 = vmatpush.msra.mxu0 %v1351
    %1405 = vmatpush.msra.mxu0 %v1349
    %1406 = vmatpush.msra.mxu0 %v1347
    %1407 = vmatmul.f32.gmra.mxu0 %v1389
    %v1408 = vpop.f32.mrf.mxu0
    %v1409 = vadd.f32 %v1383, %v1408
    %1410 = vdwg.mxu0
    %1411 = vmatpush.msra.mxu0 0.0
    %1412 = vmatpush.msra.mxu0 0.0
    %1413 = vmatpush.msra.mxu0 0.0
    %1414 = vmatpush.msra.mxu0 0.0
    %1415 = vmatpush.msra.mxu0 0.0
    %1416 = vmatpush.msra.mxu0 0.0
    %1417 = vmatpush.msra.mxu0 0.0
    %1418 = vmatpush.msra.mxu0 0.0
    %1419 = vmatpush.msra.mxu0 %v1362
    %1420 = vmatpush.msra.mxu0 %v1360
    %1421 = vmatpush.msra.mxu0 %v1358
    %1422 = vmatpush.msra.mxu0 %v1356
    %1423 = vmatpush.msra.mxu0 %v1354
    %1424 = vmatpush.msra.mxu0 %v1352
    %1425 = vmatpush.msra.mxu0 %v1350
    %1426 = vmatpush.msra.mxu0 %v1348
    %1427 = vmatmul.f32.gmra.mxu0 %v1389
    %v1428 = vpop.f32.mrf.mxu0
    %v1429 = vadd.f32 %v1384, %v1428
    %1430 = vdwg.mxu0
    %v1431 = vld [vmem:[%s685] sm:$0x3]
    %v1432 = vld [vmem:[%s1241] sm:$0x3]
    %1434 = vrot.lane.b32.xlu0 %v1432, 32
    %v1435 = vpop.permute.xlu0 %1434
    %v1437 = vsel %vm461, %v1431, %v1435
    %v1439 = vsel %vm1387, %v1437, 0
    %1441 = vmatpush.msra.mxu0 0.0
    %1442 = vmatpush.msra.mxu0 0.0
    %1443 = vmatpush.msra.mxu0 0.0
    %1444 = vmatpush.msra.mxu0 0.0
    %1445 = vmatpush.msra.mxu0 0.0
    %1446 = vmatpush.msra.mxu0 0.0
    %1447 = vmatpush.msra.mxu0 0.0
    %1448 = vmatpush.msra.mxu0 0.0
    %1449 = vmatpush.msra.mxu0 %v1361
    %1450 = vmatpush.msra.mxu0 %v1359
    %1451 = vmatpush.msra.mxu0 %v1357
    %1452 = vmatpush.msra.mxu0 %v1355
    %1453 = vmatpush.msra.mxu0 %v1353
    %1454 = vmatpush.msra.mxu0 %v1351
    %1455 = vmatpush.msra.mxu0 %v1349
    %1456 = vmatpush.msra.mxu0 %v1347
    %1457 = vmatmul.f32.gmra.mxu0 %v1439
    %v1458 = vpop.f32.mrf.mxu0
    %v1459 = vadd.f32 %v1383, %v1458
    %1460 = vdwg.mxu0
    %1461 = vmatpush.msra.mxu0 0.0
    %1462 = vmatpush.msra.mxu0 0.0
    %1463 = vmatpush.msra.mxu0 0.0
    %1464 = vmatpush.msra.mxu0 0.0
    %1465 = vmatpush.msra.mxu0 0.0
    %1466 = vmatpush.msra.mxu0 0.0
    %1467 = vmatpush.msra.mxu0 0.0
    %1468 = vmatpush.msra.mxu0 0.0
    %1469 = vmatpush.msra.mxu0 %v1362
    %1470 = vmatpush.msra.mxu0 %v1360
    %1471 = vmatpush.msra.mxu0 %v1358
    %1472 = vmatpush.msra.mxu0 %v1356
    %1473 = vmatpush.msra.mxu0 %v1354
    %1474 = vmatpush.msra.mxu0 %v1352
    %1475 = vmatpush.msra.mxu0 %v1350
    %1476 = vmatpush.msra.mxu0 %v1348
    %1477 = vmatmul.f32.gmra.mxu0 %v1439
    %v1478 = vpop.f32.mrf.mxu0
    %v1479 = vadd.f32 %v1384, %v1478
    %1480 = vdwg.mxu0
    %v1481 = vld [vmem:[%s801] sm:$0x3]
    %v1482 = vld [vmem:[%s1135] sm:$0x3]
    %1484 = vrot.lane.b32.xlu0 %v1482, 32
    %v1485 = vpop.permute.xlu0 %1484
    %v1487 = vsel %vm461, %v1481, %v1485
    %v1489 = vsel %vm1387, %v1487, 0
    %1491 = vmatpush.msra.mxu0 0.0
    %1492 = vmatpush.msra.mxu0 0.0
    %1493 = vmatpush.msra.mxu0 0.0
    %1494 = vmatpush.msra.mxu0 0.0
    %1495 = vmatpush.msra.mxu0 0.0
    %1496 = vmatpush.msra.mxu0 0.0
    %1497 = vmatpush.msra.mxu0 0.0
    %1498 = vmatpush.msra.mxu0 0.0
    %1499 = vmatpush.msra.mxu0 %v1361
    %1500 = vmatpush.msra.mxu0 %v1359
    %1501 = vmatpush.msra.mxu0 %v1357
    %1502 = vmatpush.msra.mxu0 %v1355
    %1503 = vmatpush.msra.mxu0 %v1353
    %1504 = vmatpush.msra.mxu0 %v1351
    %1505 = vmatpush.msra.mxu0 %v1349
    %1506 = vmatpush.msra.mxu0 %v1347
    %1507 = vmatmul.f32.gmra.mxu0 %v1489
    %v1508 = vpop.f32.mrf.mxu0
    %v1509 = vadd.f32 %v1383, %v1508
    %1510 = vdwg.mxu0
    %1511 = vmatpush.msra.mxu0 0.0
    %1512 = vmatpush.msra.mxu0 0.0
    %1513 = vmatpush.msra.mxu0 0.0
    %1514 = vmatpush.msra.mxu0 0.0
    %1515 = vmatpush.msra.mxu0 0.0
    %1516 = vmatpush.msra.mxu0 0.0
    %1517 = vmatpush.msra.mxu0 0.0
    %1518 = vmatpush.msra.mxu0 0.0
    %1519 = vmatpush.msra.mxu0 %v1362
    %1520 = vmatpush.msra.mxu0 %v1360
    %1521 = vmatpush.msra.mxu0 %v1358
    %1522 = vmatpush.msra.mxu0 %v1356
    %1523 = vmatpush.msra.mxu0 %v1354
    %1524 = vmatpush.msra.mxu0 %v1352
    %1525 = vmatpush.msra.mxu0 %v1350
    %1526 = vmatpush.msra.mxu0 %v1348
    %1527 = vmatmul.f32.gmra.mxu0 %v1489
    %v1528 = vpop.f32.mrf.mxu0
    %v1529 = vadd.f32 %v1384, %v1528
    %1530 = vdwg.mxu0
    %v1531 = vld [vmem:[%s917] sm:$0x3]
    %v1532 = vld [vmem:[%s1029] sm:$0x3]
    %1534 = vrot.lane.b32.xlu0 %v1532, 32
    %v1535 = vpop.permute.xlu0 %1534
    %v1537 = vsel %vm461, %v1531, %v1535
    %v1539 = vsel %vm1387, %v1537, 0
    %1541 = vmatpush.msra.mxu0 0.0
    %1542 = vmatpush.msra.mxu0 0.0
    %1543 = vmatpush.msra.mxu0 0.0
    %1544 = vmatpush.msra.mxu0 0.0
    %1545 = vmatpush.msra.mxu0 0.0
    %1546 = vmatpush.msra.mxu0 0.0
    %1547 = vmatpush.msra.mxu0 0.0
    %1548 = vmatpush.msra.mxu0 0.0
    %1549 = vmatpush.msra.mxu0 %v1361
    %1550 = vmatpush.msra.mxu0 %v1359
    %1551 = vmatpush.msra.mxu0 %v1357
    %1552 = vmatpush.msra.mxu0 %v1355
    %1553 = vmatpush.msra.mxu0 %v1353
    %1554 = vmatpush.msra.mxu0 %v1351
    %1555 = vmatpush.msra.mxu0 %v1349
    %1556 = vmatpush.msra.mxu0 %v1347
    %1557 = vmatmul.f32.gmra.mxu0 %v1539
    %v1558 = vpop.f32.mrf.mxu0
    %v1559 = vadd.f32 %v1383, %v1558
    %1560 = vdwg.mxu0
    %1561 = vmatpush.msra.mxu0 0.0
    %1562 = vmatpush.msra.mxu0 0.0
    %1563 = vmatpush.msra.mxu0 0.0
    %1564 = vmatpush.msra.mxu0 0.0
    %1565 = vmatpush.msra.mxu0 0.0
    %1566 = vmatpush.msra.mxu0 0.0
    %1567 = vmatpush.msra.mxu0 0.0
    %1568 = vmatpush.msra.mxu0 0.0
    %1569 = vmatpush.msra.mxu0 %v1362
    %1570 = vmatpush.msra.mxu0 %v1360
    %1571 = vmatpush.msra.mxu0 %v1358
    %1572 = vmatpush.msra.mxu0 %v1356
    %1573 = vmatpush.msra.mxu0 %v1354
    %1574 = vmatpush.msra.mxu0 %v1352
    %1575 = vmatpush.msra.mxu0 %v1350
    %1576 = vmatpush.msra.mxu0 %v1348
    %1577 = vmatmul.f32.gmra.mxu0 %v1539
    %v1578 = vpop.f32.mrf.mxu0
    %v1579 = vadd.f32 %v1384, %v1578
    %1580 = vdwg.mxu0
    %v1581 = vld [vmem:[%s1023] sm:$0x3]
    %v1582 = vld [vmem:[%s923] sm:$0x3]
    %1584 = vrot.lane.b32.xlu0 %v1582, 32
    %v1585 = vpop.permute.xlu0 %1584
    %v1587 = vsel %vm461, %v1581, %v1585
    %v1589 = vsel %vm1387, %v1587, 0
    %1591 = vmatpush.msra.mxu0 0.0
    %1592 = vmatpush.msra.mxu0 0.0
    %1593 = vmatpush.msra.mxu0 0.0
    %1594 = vmatpush.msra.mxu0 0.0
    %1595 = vmatpush.msra.mxu0 0.0
    %1596 = vmatpush.msra.mxu0 0.0
    %1597 = vmatpush.msra.mxu0 0.0
    %1598 = vmatpush.msra.mxu0 0.0
    %1599 = vmatpush.msra.mxu0 %v1361
    %1600 = vmatpush.msra.mxu0 %v1359
    %1601 = vmatpush.msra.mxu0 %v1357
    %1602 = vmatpush.msra.mxu0 %v1355
    %1603 = vmatpush.msra.mxu0 %v1353
    %1604 = vmatpush.msra.mxu0 %v1351
    %1605 = vmatpush.msra.mxu0 %v1349
    %1606 = vmatpush.msra.mxu0 %v1347
    %1607 = vmatmul.f32.gmra.mxu0 %v1589
    %v1608 = vpop.f32.mrf.mxu0
    %v1609 = vadd.f32 %v1383, %v1608
    %1610 = vdwg.mxu0
    %1611 = vmatpush.msra.mxu0 0.0
    %1612 = vmatpush.msra.mxu0 0.0
    %1613 = vmatpush.msra.mxu0 0.0
    %1614 = vmatpush.msra.mxu0 0.0
    %1615 = vmatpush.msra.mxu0 0.0
    %1616 = vmatpush.msra.mxu0 0.0
    %1617 = vmatpush.msra.mxu0 0.0
    %1618 = vmatpush.msra.mxu0 0.0
    %1619 = vmatpush.msra.mxu0 %v1362
    %1620 = vmatpush.msra.mxu0 %v1360
    %1621 = vmatpush.msra.mxu0 %v1358
    %1622 = vmatpush.msra.mxu0 %v1356
    %1623 = vmatpush.msra.mxu0 %v1354
    %1624 = vmatpush.msra.mxu0 %v1352
    %1625 = vmatpush.msra.mxu0 %v1350
    %1626 = vmatpush.msra.mxu0 %v1348
    %1627 = vmatmul.f32.gmra.mxu0 %v1589
    %v1628 = vpop.f32.mrf.mxu0
    %v1629 = vadd.f32 %v1384, %v1628
    %1630 = vdwg.mxu0
    %v1631 = vld [vmem:[%s1129] sm:$0x3]
    %v1632 = vld [vmem:[%s807] sm:$0x3]
    %1634 = vrot.lane.b32.xlu0 %v1632, 32
    %v1635 = vpop.permute.xlu0 %1634
    %v1637 = vsel %vm461, %v1631, %v1635
    %v1639 = vsel %vm1387, %v1637, 0
    %1641 = vmatpush.msra.mxu0 0.0
    %1642 = vmatpush.msra.mxu0 0.0
    %1643 = vmatpush.msra.mxu0 0.0
    %1644 = vmatpush.msra.mxu0 0.0
    %1645 = vmatpush.msra.mxu0 0.0
    %1646 = vmatpush.msra.mxu0 0.0
    %1647 = vmatpush.msra.mxu0 0.0
    %1648 = vmatpush.msra.mxu0 0.0
    %1649 = vmatpush.msra.mxu0 %v1361
    %1650 = vmatpush.msra.mxu0 %v1359
    %1651 = vmatpush.msra.mxu0 %v1357
    %1652 = vmatpush.msra.mxu0 %v1355
    %1653 = vmatpush.msra.mxu0 %v1353
    %1654 = vmatpush.msra.mxu0 %v1351
    %1655 = vmatpush.msra.mxu0 %v1349
    %1656 = vmatpush.msra.mxu0 %v1347
    %1657 = vmatmul.f32.gmra.mxu0 %v1639
    %v1658 = vpop.f32.mrf.mxu0
    %v1659 = vadd.f32 %v1383, %v1658
    %1660 = vdwg.mxu0
    %1661 = vmatpush.msra.mxu0 0.0
    %1662 = vmatpush.msra.mxu0 0.0
    %1663 = vmatpush.msra.mxu0 0.0
    %1664 = vmatpush.msra.mxu0 0.0
    %1665 = vmatpush.msra.mxu0 0.0
    %1666 = vmatpush.msra.mxu0 0.0
    %1667 = vmatpush.msra.mxu0 0.0
    %1668 = vmatpush.msra.mxu0 0.0
    %1669 = vmatpush.msra.mxu0 %v1362
    %1670 = vmatpush.msra.mxu0 %v1360
    %1671 = vmatpush.msra.mxu0 %v1358
    %1672 = vmatpush.msra.mxu0 %v1356
    %1673 = vmatpush.msra.mxu0 %v1354
    %1674 = vmatpush.msra.mxu0 %v1352
    %1675 = vmatpush.msra.mxu0 %v1350
    %1676 = vmatpush.msra.mxu0 %v1348
    %1677 = vmatmul.f32.gmra.mxu0 %v1639
    %v1678 = vpop.f32.mrf.mxu0
    %v1679 = vadd.f32 %v1384, %v1678
    %1680 = vdwg.mxu0
    %v1681 = vld [vmem:[%s1235] sm:$0x3]
    %v1682 = vld [vmem:[%s691] sm:$0x3]
    %1684 = vrot.lane.b32.xlu0 %v1682, 32
    %v1685 = vpop.permute.xlu0 %1684
    %v1687 = vsel %vm461, %v1681, %v1685
    %v1689 = vsel %vm1387, %v1687, 0
    %1691 = vmatpush.msra.mxu0 0.0
    %1692 = vmatpush.msra.mxu0 0.0
    %1693 = vmatpush.msra.mxu0 0.0
    %1694 = vmatpush.msra.mxu0 0.0
    %1695 = vmatpush.msra.mxu0 0.0
    %1696 = vmatpush.msra.mxu0 0.0
    %1697 = vmatpush.msra.mxu0 0.0
    %1698 = vmatpush.msra.mxu0 0.0
    %1699 = vmatpush.msra.mxu0 %v1361
    %1700 = vmatpush.msra.mxu0 %v1359
    %1701 = vmatpush.msra.mxu0 %v1357
    %1702 = vmatpush.msra.mxu0 %v1355
    %1703 = vmatpush.msra.mxu0 %v1353
    %1704 = vmatpush.msra.mxu0 %v1351
    %1705 = vmatpush.msra.mxu0 %v1349
    %1706 = vmatpush.msra.mxu0 %v1347
    %1707 = vmatmul.f32.gmra.mxu0 %v1689
    %v1708 = vpop.f32.mrf.mxu0
    %v1709 = vadd.f32 %v1383, %v1708
    %1710 = vdwg.mxu0
    %1711 = vmatpush.msra.mxu0 0.0
    %1712 = vmatpush.msra.mxu0 0.0
    %1713 = vmatpush.msra.mxu0 0.0
    %1714 = vmatpush.msra.mxu0 0.0
    %1715 = vmatpush.msra.mxu0 0.0
    %1716 = vmatpush.msra.mxu0 0.0
    %1717 = vmatpush.msra.mxu0 0.0
    %1718 = vmatpush.msra.mxu0 0.0
    %1719 = vmatpush.msra.mxu0 %v1362
    %1720 = vmatpush.msra.mxu0 %v1360
    %1721 = vmatpush.msra.mxu0 %v1358
    %1722 = vmatpush.msra.mxu0 %v1356
    %1723 = vmatpush.msra.mxu0 %v1354
    %1724 = vmatpush.msra.mxu0 %v1352
    %1725 = vmatpush.msra.mxu0 %v1350
    %1726 = vmatpush.msra.mxu0 %v1348
    %1727 = vmatmul.f32.gmra.mxu0 %v1689
    %v1728 = vpop.f32.mrf.mxu0
    %v1729 = vadd.f32 %v1384, %v1728
    %1730 = vdwg.mxu0
    %v1731 = vld [vmem:[%s1339] sm:$0x3]
    %v1732 = vld [vmem:[%s575] sm:$0x3]
    %1734 = vrot.lane.b32.xlu0 %v1732, 32
    %v1735 = vpop.permute.xlu0 %1734
    %v1737 = vsel %vm461, %v1731, %v1735
    %v1739 = vsel %vm1387, %v1737, 0
    %1741 = vmatpush.msra.mxu0 0.0
    %1742 = vmatpush.msra.mxu0 0.0
    %1743 = vmatpush.msra.mxu0 0.0
    %1744 = vmatpush.msra.mxu0 0.0
    %1745 = vmatpush.msra.mxu0 0.0
    %1746 = vmatpush.msra.mxu0 0.0
    %1747 = vmatpush.msra.mxu0 0.0
    %1748 = vmatpush.msra.mxu0 0.0
    %1749 = vmatpush.msra.mxu0 %v1361
    %1750 = vmatpush.msra.mxu0 %v1359
    %1751 = vmatpush.msra.mxu0 %v1357
    %1752 = vmatpush.msra.mxu0 %v1355
    %1753 = vmatpush.msra.mxu0 %v1353
    %1754 = vmatpush.msra.mxu0 %v1351
    %1755 = vmatpush.msra.mxu0 %v1349
    %1756 = vmatpush.msra.mxu0 %v1347
    %1757 = vmatmul.f32.gmra.mxu0 %v1739
    %v1758 = vpop.f32.mrf.mxu0
    %v1759 = vadd.f32 %v1383, %v1758
    %1760 = vdwg.mxu0
    %1761 = vmatpush.msra.mxu0 0.0
    %1762 = vmatpush.msra.mxu0 0.0
    %1763 = vmatpush.msra.mxu0 0.0
    %1764 = vmatpush.msra.mxu0 0.0
    %1765 = vmatpush.msra.mxu0 0.0
    %1766 = vmatpush.msra.mxu0 0.0
    %1767 = vmatpush.msra.mxu0 0.0
    %1768 = vmatpush.msra.mxu0 0.0
    %1769 = vmatpush.msra.mxu0 %v1362
    %1770 = vmatpush.msra.mxu0 %v1360
    %1771 = vmatpush.msra.mxu0 %v1358
    %1772 = vmatpush.msra.mxu0 %v1356
    %1773 = vmatpush.msra.mxu0 %v1354
    %1774 = vmatpush.msra.mxu0 %v1352
    %1775 = vmatpush.msra.mxu0 %v1350
    %1776 = vmatpush.msra.mxu0 %v1348
    %1777 = vmatmul.f32.gmra.mxu0 %v1739
    %v1778 = vpop.f32.mrf.mxu0
    %v1779 = vadd.f32 %v1384, %v1778
    %1780 = vdwg.mxu0
    %1781 = vmatpush.msra.mxu0 0.0
    %1782 = vmatpush.msra.mxu0 0.0
    %1783 = vmatpush.msra.mxu0 0.0
    %1784 = vmatpush.msra.mxu0 0.0
    %1785 = vmatpush.msra.mxu0 0.0
    %1786 = vmatpush.msra.mxu0 0.0
    %1787 = vmatpush.msra.mxu0 0.0
    %1788 = vmatpush.msra.mxu0 0.0
    %1789 = vmatpush.msra.mxu0 0.0
    %1790 = vmatpush.msra.mxu0 0.0
    %1791 = vmatpush.msra.mxu0 0.0
    %1792 = vmatpush.msra.mxu0 0.0
    %1793 = vmatpush.msra.mxu0 %v1369
    %1794 = vmatpush.msra.mxu0 %v1368
    %1795 = vmatpush.msra.mxu0 %v1367
    %1796 = vmatpush.msra.mxu0 %v1366
    %1797 = vmatmul.f32.gmra.mxu0 %v463
    %v1798 = vpop.f32.mrf.mxu0
    %v1799 = vadd.f32 0.0, %v1798
    %1800 = vdwg.mxu0
    %v1801 = vadd.f32 %v1409, %v1799
    %1802 = vmatpush.msra.mxu0 0.0
    %1803 = vmatpush.msra.mxu0 0.0
    %1804 = vmatpush.msra.mxu0 0.0
    %1805 = vmatpush.msra.mxu0 0.0
    %1806 = vmatpush.msra.mxu0 0.0
    %1807 = vmatpush.msra.mxu0 0.0
    %1808 = vmatpush.msra.mxu0 0.0
    %1809 = vmatpush.msra.mxu0 0.0
    %1810 = vmatpush.msra.mxu0 0.0
    %1811 = vmatpush.msra.mxu0 0.0
    %1812 = vmatpush.msra.mxu0 0.0
    %1813 = vmatpush.msra.mxu0 0.0
    %1814 = vmatpush.msra.mxu0 %v1374
    %1815 = vmatpush.msra.mxu0 %v1373
    %1816 = vmatpush.msra.mxu0 %v1372
    %1817 = vmatpush.msra.mxu0 %v1371
    %1818 = vmatmul.f32.gmra.mxu0 %v463
    %v1819 = vpop.f32.mrf.mxu0
    %v1820 = vadd.f32 0.0, %v1819
    %1821 = vdwg.mxu0
    %v1822 = vadd.f32 %v1779, %v1820
    %v1823 = vmul.f32 %v1801, 0.5
    %v1824 = vtanh.pop %v1823
    %v1825 = vmul.f32 %v1824, 0.5
    %v1826 = vadd.f32 %v1825, 0.5
    %v1827 = vtanh.pop %v1801
    %v1828 = vmul.f32 %v1822, 0.5
    %v1829 = vtanh.pop %v1828
    %v1830 = vmul.f32 %v1829, 0.5
    %v1831 = vadd.f32 %v1830, 0.5
    %v1832 = vtanh.pop %v1822
    %v1833 = vmul.f32 %v1826, 0.0
    %1835 = vrot.lane.b32.xlu0 %v1827, 32
    %v1836 = vpop.permute.xlu0 %1835
    %v1838 = vmul.f32 %v1826, %v1836
    %1840 = vrot.lane.b32.xlu0 %v1838, 32
    %v1841 = vpop.permute.xlu0 %1840
    %v1843 = vadd.f32 %v1833, %v1841
    %v1844 = vmul.f32 %v1831, 0.0
    %1846 = vrot.lane.b32.xlu0 %v1832, 32
    %v1847 = vpop.permute.xlu0 %1846
    %v1849 = vmul.f32 %v1831, %v1847
    %1851 = vrot.lane.b32.xlu0 %v1849, 32
    %v1852 = vpop.permute.xlu0 %1851
    %v1854 = vadd.f32 %v1844, %v1852
    %v1855 = vtanh.pop %v1843
    %1857 = vrot.lane.b32.xlu0 %v1855, 32
    %v1858 = vpop.permute.xlu0 %1857
    %v1860 = vmul.f32 %v1826, %v1858
    %v1861 = vtanh.pop %v1854
    %1863 = vrot.lane.b32.xlu0 %v1861, 32
    %v1864 = vpop.permute.xlu0 %1863
    %v1866 = vmul.f32 %v1831, %v1864
    %v1867 = vsel %vm555, %v1860, 0.0
    %v1868 = vsel %vm555, %v1843, 0.0
    %v1869 = vsel %vm562, %v1866, 0.0
    %v1870 = vsel %vm562, %v1854, 0.0
    %1872 = vrot.lane.b32.xlu0 %v1867, 64
    %v1873 = vpop.permute.xlu0 %1872
    %1875 = vst.msk [vmem:[#allocation4] sm:$0x3] %vm569, %v1873
    %1877 = vrot.lane.b32.xlu0 %v1869, 64
    %v1878 = vpop.permute.xlu0 %1877
    %s1880 = scalar_lea.vmem [#allocation5], 14
    %1881 = vst.msk [vmem:[%s1880] sm:$0x3] %vm569, %v1878
    %v1882 = vsel %vm461, %v1873, 0
    %1884 = vmatpush.msra.mxu0 0.0
    %1885 = vmatpush.msra.mxu0 0.0
    %1886 = vmatpush.msra.mxu0 0.0
    %1887 = vmatpush.msra.mxu0 0.0
    %1888 = vmatpush.msra.mxu0 0.0
    %1889 = vmatpush.msra.mxu0 0.0
    %1890 = vmatpush.msra.mxu0 0.0
    %1891 = vmatpush.msra.mxu0 0.0
    %1892 = vmatpush.msra.mxu0 0.0
    %1893 = vmatpush.msra.mxu0 0.0
    %1894 = vmatpush.msra.mxu0 0.0
    %1895 = vmatpush.msra.mxu0 0.0
    %1896 = vmatpush.msra.mxu0 %v1369
    %1897 = vmatpush.msra.mxu0 %v1368
    %1898 = vmatpush.msra.mxu0 %v1367
    %1899 = vmatpush.msra.mxu0 %v1366
    %1900 = vmatmul.f32.gmra.mxu0 %v1882
    %v1901 = vpop.f32.mrf.mxu0
    %v1902 = vadd.f32 0.0, %v1901
    %1903 = vdwg.mxu0
    %v1904 = vadd.f32 %v1459, %v1902
    %v1905 = vsel %vm461, %v1878, 0
    %1907 = vmatpush.msra.mxu0 0.0
    %1908 = vmatpush.msra.mxu0 0.0
    %1909 = vmatpush.msra.mxu0 0.0
    %1910 = vmatpush.msra.mxu0 0.0
    %1911 = vmatpush.msra.mxu0 0.0
    %1912 = vmatpush.msra.mxu0 0.0
    %1913 = vmatpush.msra.mxu0 0.0
    %1914 = vmatpush.msra.mxu0 0.0
    %1915 = vmatpush.msra.mxu0 0.0
    %1916 = vmatpush.msra.mxu0 0.0
    %1917 = vmatpush.msra.mxu0 0.0
    %1918 = vmatpush.msra.mxu0 0.0
    %1919 = vmatpush.msra.mxu0 %v1374
    %1920 = vmatpush.msra.mxu0 %v1373
    %1921 = vmatpush.msra.mxu0 %v1372
    %1922 = vmatpush.msra.mxu0 %v1371
    %1923 = vmatmul.f32.gmra.mxu0 %v1905
    %v1924 = vpop.f32.mrf.mxu0
    %v1925 = vadd.f32 0.0, %v1924
    %1926 = vdwg.mxu0
    %v1927 = vadd.f32 %v1729, %v1925
    %v1928 = vmul.f32 %v1904, 0.5
    %v1929 = vtanh.pop %v1928
    %v1930 = vmul.f32 %v1929, 0.5
    %v1931 = vadd.f32 %v1930, 0.5
    %v1932 = vtanh.pop %v1904
    %v1933 = vmul.f32 %v1927, 0.5
    %v1934 = vtanh.pop %v1933
    %v1935 = vmul.f32 %v1934, 0.5
    %v1936 = vadd.f32 %v1935, 0.5
    %v1937 = vtanh.pop %v1927
    %v1938 = vmul.f32 %v1931, %v1868
    %1940 = vrot.lane.b32.xlu0 %v1932, 32
    %v1941 = vpop.permute.xlu0 %1940
    %v1943 = vmul.f32 %v1931, %v1941
    %1945 = vrot.lane.b32.xlu0 %v1943, 32
    %v1946 = vpop.permute.xlu0 %1945
    %v1948 = vadd.f32 %v1938, %v1946
    %v1949 = vmul.f32 %v1936, %v1870
    %1951 = vrot.lane.b32.xlu0 %v1937, 32
    %v1952 = vpop.permute.xlu0 %1951
    %v1954 = vmul.f32 %v1936, %v1952
    %1956 = vrot.lane.b32.xlu0 %v1954, 32
    %v1957 = vpop.permute.xlu0 %1956
    %v1959 = vadd.f32 %v1949, %v1957
    %v1960 = vtanh.pop %v1948
    %1962 = vrot.lane.b32.xlu0 %v1960, 32
    %v1963 = vpop.permute.xlu0 %1962
    %v1965 = vmul.f32 %v1931, %v1963
    %v1966 = vtanh.pop %v1959
    %1968 = vrot.lane.b32.xlu0 %v1966, 32
    %v1969 = vpop.permute.xlu0 %1968
    %v1971 = vmul.f32 %v1936, %v1969
    %v1972 = vsel %vm671, %v1965, %v1867
    %v1973 = vsel %vm671, %v1948, %v1868
    %v1974 = vsel %vm678, %v1971, %v1869
    %v1975 = vsel %vm678, %v1959, %v1870
    %1977 = vrot.lane.b32.xlu0 %v1972, 64
    %v1978 = vpop.permute.xlu0 %1977
    %s1980 = scalar_lea.vmem [#allocation4], 2
    %1981 = vst.msk [vmem:[%s1980] sm:$0x3] %vm569, %v1978
    %1983 = vrot.lane.b32.xlu0 %v1974, 64
    %v1984 = vpop.permute.xlu0 %1983
    %s1986 = scalar_lea.vmem [#allocation5], 12
    %1987 = vst.msk [vmem:[%s1986] sm:$0x3] %vm569, %v1984
    %v1988 = vsel %vm461, %v1978, 0
    %1990 = vmatpush.msra.mxu0 0.0
    %1991 = vmatpush.msra.mxu0 0.0
    %1992 = vmatpush.msra.mxu0 0.0
    %1993 = vmatpush.msra.mxu0 0.0
    %1994 = vmatpush.msra.mxu0 0.0
    %1995 = vmatpush.msra.mxu0 0.0
    %1996 = vmatpush.msra.mxu0 0.0
    %1997 = vmatpush.msra.mxu0 0.0
    %1998 = vmatpush.msra.mxu0 0.0
    %1999 = vmatpush.msra.mxu0 0.0
    %2000 = vmatpush.msra.mxu0 0.0
    %2001 = vmatpush.msra.mxu0 0.0
    %2002 = vmatpush.msra.mxu0 %v1369
    %2003 = vmatpush.msra.mxu0 %v1368
    %2004 = vmatpush.msra.mxu0 %v1367
    %2005 = vmatpush.msra.mxu0 %v1366
    %2006 = vmatmul.f32.gmra.mxu0 %v1988
    %v2007 = vpop.f32.mrf.mxu0
    %v2008 = vadd.f32 0.0, %v2007
    %2009 = vdwg.mxu0
    %v2010 = vadd.f32 %v1509, %v2008
    %v2011 = vsel %vm461, %v1984, 0
    %2013 = vmatpush.msra.mxu0 0.0
    %2014 = vmatpush.msra.mxu0 0.0
    %2015 = vmatpush.msra.mxu0 0.0
    %2016 = vmatpush.msra.mxu0 0.0
    %2017 = vmatpush.msra.mxu0 0.0
    %2018 = vmatpush.msra.mxu0 0.0
    %2019 = vmatpush.msra.mxu0 0.0
    %2020 = vmatpush.msra.mxu0 0.0
    %2021 = vmatpush.msra.mxu0 0.0
    %2022 = vmatpush.msra.mxu0 0.0
    %2023 = vmatpush.msra.mxu0 0.0
    %2024 = vmatpush.msra.mxu0 0.0
    %2025 = vmatpush.msra.mxu0 %v1374
    %2026 = vmatpush.msra.mxu0 %v1373
    %2027 = vmatpush.msra.mxu0 %v1372
    %2028 = vmatpush.msra.mxu0 %v1371
    %2029 = vmatmul.f32.gmra.mxu0 %v2011
    %v2030 = vpop.f32.mrf.mxu0
    %v2031 = vadd.f32 0.0, %v2030
    %2032 = vdwg.mxu0
    %v2033 = vadd.f32 %v1679, %v2031
    %v2034 = vmul.f32 %v2010, 0.5
    %v2035 = vtanh.pop %v2034
    %v2036 = vmul.f32 %v2035, 0.5
    %v2037 = vadd.f32 %v2036, 0.5
    %v2038 = vtanh.pop %v2010
    %v2039 = vmul.f32 %v2033, 0.5
    %v2040 = vtanh.pop %v2039
    %v2041 = vmul.f32 %v2040, 0.5
    %v2042 = vadd.f32 %v2041, 0.5
    %v2043 = vtanh.pop %v2033
    %v2044 = vmul.f32 %v2037, %v1973
    %2046 = vrot.lane.b32.xlu0 %v2038, 32
    %v2047 = vpop.permute.xlu0 %2046
    %v2049 = vmul.f32 %v2037, %v2047
    %2051 = vrot.lane.b32.xlu0 %v2049, 32
    %v2052 = vpop.permute.xlu0 %2051
    %v2054 = vadd.f32 %v2044, %v2052
    %v2055 = vmul.f32 %v2042, %v1975
    %2057 = vrot.lane.b32.xlu0 %v2043, 32
    %v2058 = vpop.permute.xlu0 %2057
    %v2060 = vmul.f32 %v2042, %v2058
    %2062 = vrot.lane.b32.xlu0 %v2060, 32
    %v2063 = vpop.permute.xlu0 %2062
    %v2065 = vadd.f32 %v2055, %v2063
    %v2066 = vtanh.pop %v2054
    %2068 = vrot.lane.b32.xlu0 %v2066, 32
    %v2069 = vpop.permute.xlu0 %2068
    %v2071 = vmul.f32 %v2037, %v2069
    %v2072 = vtanh.pop %v2065
    %2074 = vrot.lane.b32.xlu0 %v2072, 32
    %v2075 = vpop.permute.xlu0 %2074
    %v2077 = vmul.f32 %v2042, %v2075
    %v2078 = vsel %vm787, %v2071, %v1972
    %v2079 = vsel %vm787, %v2054, %v1973
    %v2080 = vsel %vm794, %v2077, %v1974
    %v2081 = vsel %vm794, %v2065, %v1975
    %2083 = vrot.lane.b32.xlu0 %v2078, 64
    %v2084 = vpop.permute.xlu0 %2083
    %s2086 = scalar_lea.vmem [#allocation4], 4
    %2087 = vst.msk [vmem:[%s2086] sm:$0x3] %vm569, %v2084
    %2089 = vrot.lane.b32.xlu0 %v2080, 64
    %v2090 = vpop.permute.xlu0 %2089
    %s2092 = scalar_lea.vmem [#allocation5], 10
    %2093 = vst.msk [vmem:[%s2092] sm:$0x3] %vm569, %v2090
    %v2094 = vsel %vm461, %v2084, 0
    %2096 = vmatpush.msra.mxu0 0.0
    %2097 = vmatpush.msra.mxu0 0.0
    %2098 = vmatpush.msra.mxu0 0.0
    %2099 = vmatpush.msra.mxu0 0.0
    %2100 = vmatpush.msra.mxu0 0.0
    %2101 = vmatpush.msra.mxu0 0.0
    %2102 = vmatpush.msra.mxu0 0.0
    %2103 = vmatpush.msra.mxu0 0.0
    %2104 = vmatpush.msra.mxu0 0.0
    %2105 = vmatpush.msra.mxu0 0.0
    %2106 = vmatpush.msra.mxu0 0.0
    %2107 = vmatpush.msra.mxu0 0.0
    %2108 = vmatpush.msra.mxu0 %v1369
    %2109 = vmatpush.msra.mxu0 %v1368
    %2110 = vmatpush.msra.mxu0 %v1367
    %2111 = vmatpush.msra.mxu0 %v1366
    %2112 = vmatmul.f32.gmra.mxu0 %v2094
    %v2113 = vpop.f32.mrf.mxu0
    %v2114 = vadd.f32 0.0, %v2113
    %2115 = vdwg.mxu0
    %v2116 = vadd.f32 %v1559, %v2114
    %v2117 = vsel %vm461, %v2090, 0
    %2119 = vmatpush.msra.mxu0 0.0
    %2120 = vmatpush.msra.mxu0 0.0
    %2121 = vmatpush.msra.mxu0 0.0
    %2122 = vmatpush.msra.mxu0 0.0
    %2123 = vmatpush.msra.mxu0 0.0
    %2124 = vmatpush.msra.mxu0 0.0
    %2125 = vmatpush.msra.mxu0 0.0
    %2126 = vmatpush.msra.mxu0 0.0
    %2127 = vmatpush.msra.mxu0 0.0
    %2128 = vmatpush.msra.mxu0 0.0
    %2129 = vmatpush.msra.mxu0 0.0
    %2130 = vmatpush.msra.mxu0 0.0
    %2131 = vmatpush.msra.mxu0 %v1374
    %2132 = vmatpush.msra.mxu0 %v1373
    %2133 = vmatpush.msra.mxu0 %v1372
    %2134 = vmatpush.msra.mxu0 %v1371
    %2135 = vmatmul.f32.gmra.mxu0 %v2117
    %v2136 = vpop.f32.mrf.mxu0
    %v2137 = vadd.f32 0.0, %v2136
    %2138 = vdwg.mxu0
    %v2139 = vadd.f32 %v1629, %v2137
    %v2140 = vmul.f32 %v2116, 0.5
    %v2141 = vtanh.pop %v2140
    %v2142 = vmul.f32 %v2141, 0.5
    %v2143 = vadd.f32 %v2142, 0.5
    %v2144 = vtanh.pop %v2116
    %v2145 = vmul.f32 %v2139, 0.5
    %v2146 = vtanh.pop %v2145
    %v2147 = vmul.f32 %v2146, 0.5
    %v2148 = vadd.f32 %v2147, 0.5
    %v2149 = vtanh.pop %v2139
    %v2150 = vmul.f32 %v2143, %v2079
    %2152 = vrot.lane.b32.xlu0 %v2144, 32
    %v2153 = vpop.permute.xlu0 %2152
    %v2155 = vmul.f32 %v2143, %v2153
    %2157 = vrot.lane.b32.xlu0 %v2155, 32
    %v2158 = vpop.permute.xlu0 %2157
    %v2160 = vadd.f32 %v2150, %v2158
    %v2161 = vmul.f32 %v2148, %v2081
    %2163 = vrot.lane.b32.xlu0 %v2149, 32
    %v2164 = vpop.permute.xlu0 %2163
    %v2166 = vmul.f32 %v2148, %v2164
    %2168 = vrot.lane.b32.xlu0 %v2166, 32
    %v2169 = vpop.permute.xlu0 %2168
    %v2171 = vadd.f32 %v2161, %v2169
    %v2172 = vtanh.pop %v2160
    %2174 = vrot.lane.b32.xlu0 %v2172, 32
    %v2175 = vpop.permute.xlu0 %2174
    %v2177 = vmul.f32 %v2143, %v2175
    %v2178 = vtanh.pop %v2171
    %2180 = vrot.lane.b32.xlu0 %v2178, 32
    %v2181 = vpop.permute.xlu0 %2180
    %v2183 = vmul.f32 %v2148, %v2181
    %v2184 = vsel %vm903, %v2177, %v2078
    %v2185 = vsel %vm903, %v2160, %v2079
    %v2186 = vsel %vm910, %v2183, %v2080
    %v2187 = vsel %vm910, %v2171, %v2081
    %2189 = vrot.lane.b32.xlu0 %v2184, 64
    %v2190 = vpop.permute.xlu0 %2189
    %s2192 = scalar_lea.vmem [#allocation4], 6
    %2193 = vst.msk [vmem:[%s2192] sm:$0x3] %vm569, %v2190
    %2195 = vrot.lane.b32.xlu0 %v2186, 64
    %v2196 = vpop.permute.xlu0 %2195
    %s2198 = scalar_lea.vmem [#allocation5], 8
    %2199 = vst.msk [vmem:[%s2198] sm:$0x3] %vm569, %v2196
    %v2200 = vsel %vm461, %v2190, 0
    %2202 = vmatpush.msra.mxu0 0.0
    %2203 = vmatpush.msra.mxu0 0.0
    %2204 = vmatpush.msra.mxu0 0.0
    %2205 = vmatpush.msra.mxu0 0.0
    %2206 = vmatpush.msra.mxu0 0.0
    %2207 = vmatpush.msra.mxu0 0.0
    %2208 = vmatpush.msra.mxu0 0.0
    %2209 = vmatpush.msra.mxu0 0.0
    %2210 = vmatpush.msra.mxu0 0.0
    %2211 = vmatpush.msra.mxu0 0.0
    %2212 = vmatpush.msra.mxu0 0.0
    %2213 = vmatpush.msra.mxu0 0.0
    %2214 = vmatpush.msra.mxu0 %v1369
    %2215 = vmatpush.msra.mxu0 %v1368
    %2216 = vmatpush.msra.mxu0 %v1367
    %2217 = vmatpush.msra.mxu0 %v1366
    %2218 = vmatmul.f32.gmra.mxu0 %v2200
    %v2219 = vpop.f32.mrf.mxu0
    %v2220 = vadd.f32 0.0, %v2219
    %2221 = vdwg.mxu0
    %v2222 = vadd.f32 %v1609, %v2220
    %v2223 = vsel %vm461, %v2196, 0
    %2225 = vmatpush.msra.mxu0 0.0
    %2226 = vmatpush.msra.mxu0 0.0
    %2227 = vmatpush.msra.mxu0 0.0
    %2228 = vmatpush.msra.mxu0 0.0
    %2229 = vmatpush.msra.mxu0 0.0
    %2230 = vmatpush.msra.mxu0 0.0
    %2231 = vmatpush.msra.mxu0 0.0
    %2232 = vmatpush.msra.mxu0 0.0
    %2233 = vmatpush.msra.mxu0 0.0
    %2234 = vmatpush.msra.mxu0 0.0
    %2235 = vmatpush.msra.mxu0 0.0
    %2236 = vmatpush.msra.mxu0 0.0
    %2237 = vmatpush.msra.mxu0 %v1374
    %2238 = vmatpush.msra.mxu0 %v1373
    %2239 = vmatpush.msra.mxu0 %v1372
    %2240 = vmatpush.msra.mxu0 %v1371
    %2241 = vmatmul.f32.gmra.mxu0 %v2223
    %v2242 = vpop.f32.mrf.mxu0
    %v2243 = vadd.f32 0.0, %v2242
    %2244 = vdwg.mxu0
    %v2245 = vadd.f32 %v1579, %v2243
    %v2246 = vmul.f32 %v2222, 0.5
    %v2247 = vtanh.pop %v2246
    %v2248 = vmul.f32 %v2247, 0.5
    %v2249 = vadd.f32 %v2248, 0.5
    %v2250 = vtanh.pop %v2222
    %v2251 = vmul.f32 %v2245, 0.5
    %v2252 = vtanh.pop %v2251
    %v2253 = vmul.f32 %v2252, 0.5
    %v2254 = vadd.f32 %v2253, 0.5
    %v2255 = vtanh.pop %v2245
    %v2256 = vmul.f32 %v2249, %v2185
    %2258 = vrot.lane.b32.xlu0 %v2250, 32
    %v2259 = vpop.permute.xlu0 %2258
    %v2261 = vmul.f32 %v2249, %v2259
    %2263 = vrot.lane.b32.xlu0 %v2261, 32
    %v2264 = vpop.permute.xlu0 %2263
    %v2266 = vadd.f32 %v2256, %v2264
    %v2267 = vmul.f32 %v2254, %v2187
    %2269 = vrot.lane.b32.xlu0 %v2255, 32
    %v2270 = vpop.permute.xlu0 %2269
    %v2272 = vmul.f32 %v2254, %v2270
    %2274 = vrot.lane.b32.xlu0 %v2272, 32
    %v2275 = vpop.permute.xlu0 %2274
    %v2277 = vadd.f32 %v2267, %v2275
    %v2278 = vtanh.pop %v2266
    %2280 = vrot.lane.b32.xlu0 %v2278, 32
    %v2281 = vpop.permute.xlu0 %2280
    %v2283 = vmul.f32 %v2249, %v2281
    %v2284 = vtanh.pop %v2277
    %2286 = vrot.lane.b32.xlu0 %v2284, 32
    %v2287 = vpop.permute.xlu0 %2286
    %v2289 = vmul.f32 %v2254, %v2287
    %v2290 = vsel %vm910, %v2283, %v2184
    %v2291 = vsel %vm910, %v2266, %v2185
    %v2292 = vsel %vm903, %v2289, %v2186
    %v2293 = vsel %vm903, %v2277, %v2187
    %2295 = vrot.lane.b32.xlu0 %v2290, 64
    %v2296 = vpop.permute.xlu0 %2295
    %s2298 = scalar_lea.vmem [#allocation4], 8
    %2299 = vst.msk [vmem:[%s2298] sm:$0x3] %vm569, %v2296
    %2301 = vrot.lane.b32.xlu0 %v2292, 64
    %v2302 = vpop.permute.xlu0 %2301
    %s2304 = scalar_lea.vmem [#allocation5], 6
    %2305 = vst.msk [vmem:[%s2304] sm:$0x3] %vm569, %v2302
    %v2306 = vsel %vm461, %v2296, 0
    %2308 = vmatpush.msra.mxu0 0.0
    %2309 = vmatpush.msra.mxu0 0.0
    %2310 = vmatpush.msra.mxu0 0.0
    %2311 = vmatpush.msra.mxu0 0.0
    %2312 = vmatpush.msra.mxu0 0.0
    %2313 = vmatpush.msra.mxu0 0.0
    %2314 = vmatpush.msra.mxu0 0.0
    %2315 = vmatpush.msra.mxu0 0.0
    %2316 = vmatpush.msra.mxu0 0.0
    %2317 = vmatpush.msra.mxu0 0.0
    %2318 = vmatpush.msra.mxu0 0.0
    %2319 = vmatpush.msra.mxu0 0.0
    %2320 = vmatpush.msra.mxu0 %v1369
    %2321 = vmatpush.msra.mxu0 %v1368
    %2322 = vmatpush.msra.mxu0 %v1367
    %2323 = vmatpush.msra.mxu0 %v1366
    %2324 = vmatmul.f32.gmra.mxu0 %v2306
    %v2325 = vpop.f32.mrf.mxu0
    %v2326 = vadd.f32 0.0, %v2325
    %2327 = vdwg.mxu0
    %v2328 = vadd.f32 %v1659, %v2326
    %v2329 = vsel %vm461, %v2302, 0
    %2331 = vmatpush.msra.mxu0 0.0
    %2332 = vmatpush.msra.mxu0 0.0
    %2333 = vmatpush.msra.mxu0 0.0
    %2334 = vmatpush.msra.mxu0 0.0
    %2335 = vmatpush.msra.mxu0 0.0
    %2336 = vmatpush.msra.mxu0 0.0
    %2337 = vmatpush.msra.mxu0 0.0
    %2338 = vmatpush.msra.mxu0 0.0
    %2339 = vmatpush.msra.mxu0 0.0
    %2340 = vmatpush.msra.mxu0 0.0
    %2341 = vmatpush.msra.mxu0 0.0
    %2342 = vmatpush.msra.mxu0 0.0
    %2343 = vmatpush.msra.mxu0 %v1374
    %2344 = vmatpush.msra.mxu0 %v1373
    %2345 = vmatpush.msra.mxu0 %v1372
    %2346 = vmatpush.msra.mxu0 %v1371
    %2347 = vmatmul.f32.gmra.mxu0 %v2329
    %v2348 = vpop.f32.mrf.mxu0
    %v2349 = vadd.f32 0.0, %v2348
    %2350 = vdwg.mxu0
    %v2351 = vadd.f32 %v1529, %v2349
    %v2352 = vmul.f32 %v2328, 0.5
    %v2353 = vtanh.pop %v2352
    %v2354 = vmul.f32 %v2353, 0.5
    %v2355 = vadd.f32 %v2354, 0.5
    %v2356 = vtanh.pop %v2328
    %v2357 = vmul.f32 %v2351, 0.5
    %v2358 = vtanh.pop %v2357
    %v2359 = vmul.f32 %v2358, 0.5
    %v2360 = vadd.f32 %v2359, 0.5
    %v2361 = vtanh.pop %v2351
    %v2362 = vmul.f32 %v2355, %v2291
    %2364 = vrot.lane.b32.xlu0 %v2356, 32
    %v2365 = vpop.permute.xlu0 %2364
    %v2367 = vmul.f32 %v2355, %v2365
    %2369 = vrot.lane.b32.xlu0 %v2367, 32
    %v2370 = vpop.permute.xlu0 %2369
    %v2372 = vadd.f32 %v2362, %v2370
    %v2373 = vmul.f32 %v2360, %v2293
    %2375 = vrot.lane.b32.xlu0 %v2361, 32
    %v2376 = vpop.permute.xlu0 %2375
    %v2378 = vmul.f32 %v2360, %v2376
    %2380 = vrot.lane.b32.xlu0 %v2378, 32
    %v2381 = vpop.permute.xlu0 %2380
    %v2383 = vadd.f32 %v2373, %v2381
    %v2384 = vtanh.pop %v2372
    %2386 = vrot.lane.b32.xlu0 %v2384, 32
    %v2387 = vpop.permute.xlu0 %2386
    %v2389 = vmul.f32 %v2355, %v2387
    %v2390 = vtanh.pop %v2383
    %2392 = vrot.lane.b32.xlu0 %v2390, 32
    %v2393 = vpop.permute.xlu0 %2392
    %v2395 = vmul.f32 %v2360, %v2393
    %v2396 = vsel %vm794, %v2389, %v2290
    %v2397 = vsel %vm794, %v2372, %v2291
    %v2398 = vsel %vm787, %v2395, %v2292
    %v2399 = vsel %vm787, %v2383, %v2293
    %2401 = vrot.lane.b32.xlu0 %v2396, 64
    %v2402 = vpop.permute.xlu0 %2401
    %s2404 = scalar_lea.vmem [#allocation4], 10
    %2405 = vst.msk [vmem:[%s2404] sm:$0x3] %vm569, %v2402
    %2407 = vrot.lane.b32.xlu0 %v2398, 64
    %v2408 = vpop.permute.xlu0 %2407
    %s2410 = scalar_lea.vmem [#allocation5], 4
    %2411 = vst.msk [vmem:[%s2410] sm:$0x3] %vm569, %v2408
    %v2412 = vsel %vm461, %v2402, 0
    %2414 = vmatpush.msra.mxu0 0.0
    %2415 = vmatpush.msra.mxu0 0.0
    %2416 = vmatpush.msra.mxu0 0.0
    %2417 = vmatpush.msra.mxu0 0.0
    %2418 = vmatpush.msra.mxu0 0.0
    %2419 = vmatpush.msra.mxu0 0.0
    %2420 = vmatpush.msra.mxu0 0.0
    %2421 = vmatpush.msra.mxu0 0.0
    %2422 = vmatpush.msra.mxu0 0.0
    %2423 = vmatpush.msra.mxu0 0.0
    %2424 = vmatpush.msra.mxu0 0.0
    %2425 = vmatpush.msra.mxu0 0.0
    %2426 = vmatpush.msra.mxu0 %v1369
    %2427 = vmatpush.msra.mxu0 %v1368
    %2428 = vmatpush.msra.mxu0 %v1367
    %2429 = vmatpush.msra.mxu0 %v1366
    %2430 = vmatmul.f32.gmra.mxu0 %v2412
    %v2431 = vpop.f32.mrf.mxu0
    %v2432 = vadd.f32 0.0, %v2431
    %2433 = vdwg.mxu0
    %v2434 = vadd.f32 %v1709, %v2432
    %v2435 = vsel %vm461, %v2408, 0
    %2437 = vmatpush.msra.mxu0 0.0
    %2438 = vmatpush.msra.mxu0 0.0
    %2439 = vmatpush.msra.mxu0 0.0
    %2440 = vmatpush.msra.mxu0 0.0
    %2441 = vmatpush.msra.mxu0 0.0
    %2442 = vmatpush.msra.mxu0 0.0
    %2443 = vmatpush.msra.mxu0 0.0
    %2444 = vmatpush.msra.mxu0 0.0
    %2445 = vmatpush.msra.mxu0 0.0
    %2446 = vmatpush.msra.mxu0 0.0
    %2447 = vmatpush.msra.mxu0 0.0
    %2448 = vmatpush.msra.mxu0 0.0
    %2449 = vmatpush.msra.mxu0 %v1374
    %2450 = vmatpush.msra.mxu0 %v1373
    %2451 = vmatpush.msra.mxu0 %v1372
    %2452 = vmatpush.msra.mxu0 %v1371
    %2453 = vmatmul.f32.gmra.mxu0 %v2435
    %v2454 = vpop.f32.mrf.mxu0
    %v2455 = vadd.f32 0.0, %v2454
    %2456 = vdwg.mxu0
    %v2457 = vadd.f32 %v1479, %v2455
    %v2458 = vmul.f32 %v2434, 0.5
    %v2459 = vtanh.pop %v2458
    %v2460 = vmul.f32 %v2459, 0.5
    %v2461 = vadd.f32 %v2460, 0.5
    %v2462 = vtanh.pop %v2434
    %v2463 = vmul.f32 %v2457, 0.5
    %v2464 = vtanh.pop %v2463
    %v2465 = vmul.f32 %v2464, 0.5
    %v2466 = vadd.f32 %v2465, 0.5
    %v2467 = vtanh.pop %v2457
    %v2468 = vmul.f32 %v2461, %v2397
    %2470 = vrot.lane.b32.xlu0 %v2462, 32
    %v2471 = vpop.permute.xlu0 %2470
    %v2473 = vmul.f32 %v2461, %v2471
    %2475 = vrot.lane.b32.xlu0 %v2473, 32
    %v2476 = vpop.permute.xlu0 %2475
    %v2478 = vadd.f32 %v2468, %v2476
    %v2479 = vmul.f32 %v2466, %v2399
    %2481 = vrot.lane.b32.xlu0 %v2467, 32
    %v2482 = vpop.permute.xlu0 %2481
    %v2484 = vmul.f32 %v2466, %v2482
    %2486 = vrot.lane.b32.xlu0 %v2484, 32
    %v2487 = vpop.permute.xlu0 %2486
    %v2489 = vadd.f32 %v2479, %v2487
    %v2490 = vtanh.pop %v2478
    %2492 = vrot.lane.b32.xlu0 %v2490, 32
    %v2493 = vpop.permute.xlu0 %2492
    %v2495 = vmul.f32 %v2461, %v2493
    %v2496 = vtanh.pop %v2489
    %2498 = vrot.lane.b32.xlu0 %v2496, 32
    %v2499 = vpop.permute.xlu0 %2498
    %v2501 = vmul.f32 %v2466, %v2499
    %v2502 = vsel %vm678, %v2495, %v2396
    %v2503 = vsel %vm678, %v2478, %v2397
    %v2504 = vsel %vm671, %v2501, %v2398
    %v2505 = vsel %vm671, %v2489, %v2399
    %2507 = vrot.lane.b32.xlu0 %v2502, 64
    %v2508 = vpop.permute.xlu0 %2507
    %s2510 = scalar_lea.vmem [#allocation4], 12
    %2511 = vst.msk [vmem:[%s2510] sm:$0x3] %vm569, %v2508
    %2513 = vrot.lane.b32.xlu0 %v2504, 64
    %v2514 = vpop.permute.xlu0 %2513
    %s2516 = scalar_lea.vmem [#allocation5], 2
    %2517 = vst.msk [vmem:[%s2516] sm:$0x3] %vm569, %v2514
    %v2518 = vsel %vm461, %v2508, 0
    %2520 = vmatpush.msra.mxu0 0.0
    %2521 = vmatpush.msra.mxu0 0.0
    %2522 = vmatpush.msra.mxu0 0.0
    %2523 = vmatpush.msra.mxu0 0.0
    %2524 = vmatpush.msra.mxu0 0.0
    %2525 = vmatpush.msra.mxu0 0.0
    %2526 = vmatpush.msra.mxu0 0.0
    %2527 = vmatpush.msra.mxu0 0.0
    %2528 = vmatpush.msra.mxu0 0.0
    %2529 = vmatpush.msra.mxu0 0.0
    %2530 = vmatpush.msra.mxu0 0.0
    %2531 = vmatpush.msra.mxu0 0.0
    %2532 = vmatpush.msra.mxu0 %v1369
    %2533 = vmatpush.msra.mxu0 %v1368
    %2534 = vmatpush.msra.mxu0 %v1367
    %2535 = vmatpush.msra.mxu0 %v1366
    %2536 = vmatmul.f32.gmra.mxu0 %v2518
    %v2537 = vpop.f32.mrf.mxu0
    %v2538 = vadd.f32 0.0, %v2537
    %2539 = vdwg.mxu0
    %v2540 = vadd.f32 %v1759, %v2538
    %v2541 = vsel %vm461, %v2514, 0
    %2543 = vmatpush.msra.mxu0 0.0
    %2544 = vmatpush.msra.mxu0 0.0
    %2545 = vmatpush.msra.mxu0 0.0
    %2546 = vmatpush.msra.mxu0 0.0
    %2547 = vmatpush.msra.mxu0 0.0
    %2548 = vmatpush.msra.mxu0 0.0
    %2549 = vmatpush.msra.mxu0 0.0
    %2550 = vmatpush.msra.mxu0 0.0
    %2551 = vmatpush.msra.mxu0 0.0
    %2552 = vmatpush.msra.mxu0 0.0
    %2553 = vmatpush.msra.mxu0 0.0
    %2554 = vmatpush.msra.mxu0 0.0
    %2555 = vmatpush.msra.mxu0 %v1374
    %2556 = vmatpush.msra.mxu0 %v1373
    %2557 = vmatpush.msra.mxu0 %v1372
    %2558 = vmatpush.msra.mxu0 %v1371
    %2559 = vmatmul.f32.gmra.mxu0 %v2541
    %v2560 = vpop.f32.mrf.mxu0
    %v2561 = vadd.f32 0.0, %v2560
    %2562 = vdwg.mxu0
    %v2563 = vadd.f32 %v1429, %v2561
    %v2564 = vmul.f32 %v2540, 0.5
    %v2565 = vtanh.pop %v2564
    %v2566 = vmul.f32 %v2565, 0.5
    %v2567 = vadd.f32 %v2566, 0.5
    %v2568 = vtanh.pop %v2540
    %v2569 = vmul.f32 %v2563, 0.5
    %v2570 = vtanh.pop %v2569
    %v2571 = vmul.f32 %v2570, 0.5
    %v2572 = vadd.f32 %v2571, 0.5
    %v2573 = vtanh.pop %v2563
    %v2574 = vmul.f32 %v2567, %v2503
    %2576 = vrot.lane.b32.xlu0 %v2568, 32
    %v2577 = vpop.permute.xlu0 %2576
    %v2579 = vmul.f32 %v2567, %v2577
    %2581 = vrot.lane.b32.xlu0 %v2579, 32
    %v2582 = vpop.permute.xlu0 %2581
    %v2584 = vadd.f32 %v2574, %v2582
    %v2585 = vmul.f32 %v2572, %v2505
    %2587 = vrot.lane.b32.xlu0 %v2573, 32
    %v2588 = vpop.permute.xlu0 %2587
    %v2590 = vmul.f32 %v2572, %v2588
    %2592 = vrot.lane.b32.xlu0 %v2590, 32
    %v2593 = vpop.permute.xlu0 %2592
    %v2595 = vadd.f32 %v2585, %v2593
    %v2596 = vtanh.pop %v2584
    %2598 = vrot.lane.b32.xlu0 %v2596, 32
    %v2599 = vpop.permute.xlu0 %2598
    %v2601 = vmul.f32 %v2567, %v2599
    %v2602 = vtanh.pop %v2595
    %2604 = vrot.lane.b32.xlu0 %v2602, 32
    %v2605 = vpop.permute.xlu0 %2604
    %v2607 = vmul.f32 %v2572, %v2605
    %v2608 = vsel %vm562, %v2601, %v2502
    %v2609 = vsel %vm555, %v2607, %v2504
    %2611 = vrot.lane.b32.xlu0 %v2608, 64
    %v2612 = vpop.permute.xlu0 %2611
    %s2614 = scalar_lea.vmem [#allocation4], 14
    %2615 = vst.msk [vmem:[%s2614] sm:$0x3] %vm569, %v2612
    %2617 = vrot.lane.b32.xlu0 %v2609, 64
    %v2618 = vpop.permute.xlu0 %2617
    %2620 = vst.msk [vmem:[#allocation5] sm:$0x3] %vm569, %v2618
    %s2621 = scalar_lea.vmem [#allocation6], 256
    %v2622 = vld [vmem:[%s2621] sm:$0xff]
    %v2623 = vld [vmem:[%s2621 + $0x8] sm:$0xff]
    %v2624 = vld [vmem:[%s2621 + $0x10] sm:$0xff]
    %v2625 = vld [vmem:[%s2621 + $0x18] sm:$0xff]
    %v2626 = vld [vmem:[%s2621 + $0x20] sm:$0xff]
    %v2627 = vld [vmem:[%s2621 + $0x28] sm:$0xff]
    %v2628 = vld [vmem:[%s2621 + $0x30] sm:$0xff]
    %v2629 = vld [vmem:[%s2621 + $0x38] sm:$0xff]
    %v2630 = vld [vmem:[%s2621 + $0x40] sm:$0xff]
    %v2631 = vld [vmem:[%s2621 + $0x48] sm:$0xff]
    %v2632 = vld [vmem:[%s2621 + $0x50] sm:$0xff]
    %v2633 = vld [vmem:[%s2621 + $0x58] sm:$0xff]
    %v2634 = vld [vmem:[%s2621 + $0x60] sm:$0xff]
    %v2635 = vld [vmem:[%s2621 + $0x68] sm:$0xff]
    %v2636 = vld [vmem:[%s2621 + $0x70] sm:$0xff]
    %v2637 = vld [vmem:[%s2621 + $0x78] sm:$0xff]
    %s2638 = scalar_lea.vmem %s4, 4
    %v2639 = vld [vmem:[%s2638] sm:$0x3]
    %s2640 = scalar_lea.vmem [#allocation8], 128
    %v2641 = vld [vmem:[%s2640] sm:$0xff]
    %v2642 = vld [vmem:[%s2640 + $0x8] sm:$0xff]
    %v2643 = vld [vmem:[%s2640 + $0x10] sm:$0xff]
    %v2644 = vld [vmem:[%s2640 + $0x18] sm:$0xff]
    %s2645 = scalar_lea.vmem [#allocation8], 160
    %v2646 = vld [vmem:[%s2645] sm:$0xff]
    %v2647 = vld [vmem:[%s2645 + $0x8] sm:$0xff]
    %v2648 = vld [vmem:[%s2645 + $0x10] sm:$0xff]
    %v2649 = vld [vmem:[%s2645 + $0x18] sm:$0xff]
    %v2650 = vld [vmem:[#allocation4] sm:$0x3]
    %v2651 = vld [vmem:[#allocation5] sm:$0x3]
    %2653 = vrot.lane.b32.xlu0 %v2651, 32
    %v2654 = vpop.permute.xlu0 %2653
    %v2656 = vsel %vm461, %v2650, %v2654
    %v2658 = vperm.slane %v2639, 0
    %v2659 = vperm.slane %v2639, 1
    %v2663 = vsel %vm1387, %v2656, 0
    %2665 = vmatpush.msra.mxu0 0.0
    %2666 = vmatpush.msra.mxu0 0.0
    %2667 = vmatpush.msra.mxu0 0.0
    %2668 = vmatpush.msra.mxu0 0.0
    %2669 = vmatpush.msra.mxu0 0.0
    %2670 = vmatpush.msra.mxu0 0.0
    %2671 = vmatpush.msra.mxu0 0.0
    %2672 = vmatpush.msra.mxu0 0.0
    %2673 = vmatpush.msra.mxu0 %v2636
    %2674 = vmatpush.msra.mxu0 %v2634
    %2675 = vmatpush.msra.mxu0 %v2632
    %2676 = vmatpush.msra.mxu0 %v2630
    %2677 = vmatpush.msra.mxu0 %v2628
    %2678 = vmatpush.msra.mxu0 %v2626
    %2679 = vmatpush.msra.mxu0 %v2624
    %2680 = vmatpush.msra.mxu0 %v2622
    %2681 = vmatmul.f32.gmra.mxu0 %v2663
    %v2682 = vpop.f32.mrf.mxu0
    %v2683 = vadd.f32 %v2658, %v2682
    %2684 = vdwg.mxu0
    %2685 = vmatpush.msra.mxu0 0.0
    %2686 = vmatpush.msra.mxu0 0.0
    %2687 = vmatpush.msra.mxu0 0.0
    %2688 = vmatpush.msra.mxu0 0.0
    %2689 = vmatpush.msra.mxu0 0.0
    %2690 = vmatpush.msra.mxu0 0.0
    %2691 = vmatpush.msra.mxu0 0.0
    %2692 = vmatpush.msra.mxu0 0.0
    %2693 = vmatpush.msra.mxu0 %v2637
    %2694 = vmatpush.msra.mxu0 %v2635
    %2695 = vmatpush.msra.mxu0 %v2633
    %2696 = vmatpush.msra.mxu0 %v2631
    %2697 = vmatpush.msra.mxu0 %v2629
    %2698 = vmatpush.msra.mxu0 %v2627
    %2699 = vmatpush.msra.mxu0 %v2625
    %2700 = vmatpush.msra.mxu0 %v2623
    %2701 = vmatmul.f32.gmra.mxu0 %v2663
    %v2702 = vpop.f32.mrf.mxu0
    %v2703 = vadd.f32 %v2659, %v2702
    %2704 = vdwg.mxu0
    %v2705 = vld [vmem:[%s1980] sm:$0x3]
    %v2706 = vld [vmem:[%s2516] sm:$0x3]
    %2708 = vrot.lane.b32.xlu0 %v2706, 32
    %v2709 = vpop.permute.xlu0 %2708
    %v2711 = vsel %vm461, %v2705, %v2709
    %v2713 = vsel %vm1387, %v2711, 0
    %2715 = vmatpush.msra.mxu0 0.0
    %2716 = vmatpush.msra.mxu0 0.0
    %2717 = vmatpush.msra.mxu0 0.0
    %2718 = vmatpush.msra.mxu0 0.0
    %2719 = vmatpush.msra.mxu0 0.0
    %2720 = vmatpush.msra.mxu0 0.0
    %2721 = vmatpush.msra.mxu0 0.0
    %2722 = vmatpush.msra.mxu0 0.0
    %2723 = vmatpush.msra.mxu0 %v2636
    %2724 = vmatpush.msra.mxu0 %v2634
    %2725 = vmatpush.msra.mxu0 %v2632
    %2726 = vmatpush.msra.mxu0 %v2630
    %2727 = vmatpush.msra.mxu0 %v2628
    %2728 = vmatpush.msra.mxu0 %v2626
    %2729 = vmatpush.msra.mxu0 %v2624
    %2730 = vmatpush.msra.mxu0 %v2622
    %2731 = vmatmul.f32.gmra.mxu0 %v2713
    %v2732 = vpop.f32.mrf.mxu0
    %v2733 = vadd.f32 %v2658, %v2732
    %2734 = vdwg.mxu0
    %2735 = vmatpush.msra.mxu0 0.0
    %2736 = vmatpush.msra.mxu0 0.0
    %2737 = vmatpush.msra.mxu0 0.0
    %2738 = vmatpush.msra.mxu0 0.0
    %2739 = vmatpush.msra.mxu0 0.0
    %2740 = vmatpush.msra.mxu0 0.0
    %2741 = vmatpush.msra.mxu0 0.0
    %2742 = vmatpush.msra.mxu0 0.0
    %2743 = vmatpush.msra.mxu0 %v2637
    %2744 = vmatpush.msra.mxu0 %v2635
    %2745 = vmatpush.msra.mxu0 %v2633
    %2746 = vmatpush.msra.mxu0 %v2631
    %2747 = vmatpush.msra.mxu0 %v2629
    %2748 = vmatpush.msra.mxu0 %v2627
    %2749 = vmatpush.msra.mxu0 %v2625
    %2750 = vmatpush.msra.mxu0 %v2623
    %2751 = vmatmul.f32.gmra.mxu0 %v2713
    %v2752 = vpop.f32.mrf.mxu0
    %v2753 = vadd.f32 %v2659, %v2752
    %2754 = vdwg.mxu0
    %v2755 = vld [vmem:[%s2086] sm:$0x3]
    %v2756 = vld [vmem:[%s2410] sm:$0x3]
    %2758 = vrot.lane.b32.xlu0 %v2756, 32
    %v2759 = vpop.permute.xlu0 %2758
    %v2761 = vsel %vm461, %v2755, %v2759
    %v2763 = vsel %vm1387, %v2761, 0
    %2765 = vmatpush.msra.mxu0 0.0
    %2766 = vmatpush.msra.mxu0 0.0
    %2767 = vmatpush.msra.mxu0 0.0
    %2768 = vmatpush.msra.mxu0 0.0
    %2769 = vmatpush.msra.mxu0 0.0
    %2770 = vmatpush.msra.mxu0 0.0
    %2771 = vmatpush.msra.mxu0 0.0
    %2772 = vmatpush.msra.mxu0 0.0
    %2773 = vmatpush.msra.mxu0 %v2636
    %2774 = vmatpush.msra.mxu0 %v2634
    %2775 = vmatpush.msra.mxu0 %v2632
    %2776 = vmatpush.msra.mxu0 %v2630
    %2777 = vmatpush.msra.mxu0 %v2628
    %2778 = vmatpush.msra.mxu0 %v2626
    %2779 = vmatpush.msra.mxu0 %v2624
    %2780 = vmatpush.msra.mxu0 %v2622
    %2781 = vmatmul.f32.gmra.mxu0 %v2763
    %v2782 = vpop.f32.mrf.mxu0
    %v2783 = vadd.f32 %v2658, %v2782
    %2784 = vdwg.mxu0
    %2785 = vmatpush.msra.mxu0 0.0
    %2786 = vmatpush.msra.mxu0 0.0
    %2787 = vmatpush.msra.mxu0 0.0
    %2788 = vmatpush.msra.mxu0 0.0
    %2789 = vmatpush.msra.mxu0 0.0
    %2790 = vmatpush.msra.mxu0 0.0
    %2791 = vmatpush.msra.mxu0 0.0
    %2792 = vmatpush.msra.mxu0 0.0
    %2793 = vmatpush.msra.mxu0 %v2637
    %2794 = vmatpush.msra.mxu0 %v2635
    %2795 = vmatpush.msra.mxu0 %v2633
    %2796 = vmatpush.msra.mxu0 %v2631
    %2797 = vmatpush.msra.mxu0 %v2629
    %2798 = vmatpush.msra.mxu0 %v2627
    %2799 = vmatpush.msra.mxu0 %v2625
    %2800 = vmatpush.msra.mxu0 %v2623
    %2801 = vmatmul.f32.gmra.mxu0 %v2763
    %v2802 = vpop.f32.mrf.mxu0
    %v2803 = vadd.f32 %v2659, %v2802
    %2804 = vdwg.mxu0
    %v2805 = vld [vmem:[%s2192] sm:$0x3]
    %v2806 = vld [vmem:[%s2304] sm:$0x3]
    %2808 = vrot.lane.b32.xlu0 %v2806, 32
    %v2809 = vpop.permute.xlu0 %2808
    %v2811 = vsel %vm461, %v2805, %v2809
    %v2813 = vsel %vm1387, %v2811, 0
    %2815 = vmatpush.msra.mxu0 0.0
    %2816 = vmatpush.msra.mxu0 0.0
    %2817 = vmatpush.msra.mxu0 0.0
    %2818 = vmatpush.msra.mxu0 0.0
    %2819 = vmatpush.msra.mxu0 0.0
    %2820 = vmatpush.msra.mxu0 0.0
    %2821 = vmatpush.msra.mxu0 0.0
    %2822 = vmatpush.msra.mxu0 0.0
    %2823 = vmatpush.msra.mxu0 %v2636
    %2824 = vmatpush.msra.mxu0 %v2634
    %2825 = vmatpush.msra.mxu0 %v2632
    %2826 = vmatpush.msra.mxu0 %v2630
    %2827 = vmatpush.msra.mxu0 %v2628
    %2828 = vmatpush.msra.mxu0 %v2626
    %2829 = vmatpush.msra.mxu0 %v2624
    %2830 = vmatpush.msra.mxu0 %v2622
    %2831 = vmatmul.f32.gmra.mxu0 %v2813
    %v2832 = vpop.f32.mrf.mxu0
    %v2833 = vadd.f32 %v2658, %v2832
    %2834 = vdwg.mxu0
    %2835 = vmatpush.msra.mxu0 0.0
    %2836 = vmatpush.msra.mxu0 0.0
    %2837 = vmatpush.msra.mxu0 0.0
    %2838 = vmatpush.msra.mxu0 0.0
    %2839 = vmatpush.msra.mxu0 0.0
    %2840 = vmatpush.msra.mxu0 0.0
    %2841 = vmatpush.msra.mxu0 0.0
    %2842 = vmatpush.msra.mxu0 0.0
    %2843 = vmatpush.msra.mxu0 %v2637
    %2844 = vmatpush.msra.mxu0 %v2635
    %2845 = vmatpush.msra.mxu0 %v2633
    %2846 = vmatpush.msra.mxu0 %v2631
    %2847 = vmatpush.msra.mxu0 %v2629
    %2848 = vmatpush.msra.mxu0 %v2627
    %2849 = vmatpush.msra.mxu0 %v2625
    %2850 = vmatpush.msra.mxu0 %v2623
    %2851 = vmatmul.f32.gmra.mxu0 %v2813
    %v2852 = vpop.f32.mrf.mxu0
    %v2853 = vadd.f32 %v2659, %v2852
    %2854 = vdwg.mxu0
    %v2855 = vld [vmem:[%s2298] sm:$0x3]
    %v2856 = vld [vmem:[%s2198] sm:$0x3]
    %2858 = vrot.lane.b32.xlu0 %v2856, 32
    %v2859 = vpop.permute.xlu0 %2858
    %v2861 = vsel %vm461, %v2855, %v2859
    %v2863 = vsel %vm1387, %v2861, 0
    %2865 = vmatpush.msra.mxu0 0.0
    %2866 = vmatpush.msra.mxu0 0.0
    %2867 = vmatpush.msra.mxu0 0.0
    %2868 = vmatpush.msra.mxu0 0.0
    %2869 = vmatpush.msra.mxu0 0.0
    %2870 = vmatpush.msra.mxu0 0.0
    %2871 = vmatpush.msra.mxu0 0.0
    %2872 = vmatpush.msra.mxu0 0.0
    %2873 = vmatpush.msra.mxu0 %v2636
    %2874 = vmatpush.msra.mxu0 %v2634
    %2875 = vmatpush.msra.mxu0 %v2632
    %2876 = vmatpush.msra.mxu0 %v2630
    %2877 = vmatpush.msra.mxu0 %v2628
    %2878 = vmatpush.msra.mxu0 %v2626
    %2879 = vmatpush.msra.mxu0 %v2624
    %2880 = vmatpush.msra.mxu0 %v2622
    %2881 = vmatmul.f32.gmra.mxu0 %v2863
    %v2882 = vpop.f32.mrf.mxu0
    %v2883 = vadd.f32 %v2658, %v2882
    %2884 = vdwg.mxu0
    %2885 = vmatpush.msra.mxu0 0.0
    %2886 = vmatpush.msra.mxu0 0.0
    %2887 = vmatpush.msra.mxu0 0.0
    %2888 = vmatpush.msra.mxu0 0.0
    %2889 = vmatpush.msra.mxu0 0.0
    %2890 = vmatpush.msra.mxu0 0.0
    %2891 = vmatpush.msra.mxu0 0.0
    %2892 = vmatpush.msra.mxu0 0.0
    %2893 = vmatpush.msra.mxu0 %v2637
    %2894 = vmatpush.msra.mxu0 %v2635
    %2895 = vmatpush.msra.mxu0 %v2633
    %2896 = vmatpush.msra.mxu0 %v2631
    %2897 = vmatpush.msra.mxu0 %v2629
    %2898 = vmatpush.msra.mxu0 %v2627
    %2899 = vmatpush.msra.mxu0 %v2625
    %2900 = vmatpush.msra.mxu0 %v2623
    %2901 = vmatmul.f32.gmra.mxu0 %v2863
    %v2902 = vpop.f32.mrf.mxu0
    %v2903 = vadd.f32 %v2659, %v2902
    %2904 = vdwg.mxu0
    %v2905 = vld [vmem:[%s2404] sm:$0x3]
    %v2906 = vld [vmem:[%s2092] sm:$0x3]
    %2908 = vrot.lane.b32.xlu0 %v2906, 32
    %v2909 = vpop.permute.xlu0 %2908
    %v2911 = vsel %vm461, %v2905, %v2909
    %v2913 = vsel %vm1387, %v2911, 0
    %2915 = vmatpush.msra.mxu0 0.0
    %2916 = vmatpush.msra.mxu0 0.0
    %2917 = vmatpush.msra.mxu0 0.0
    %2918 = vmatpush.msra.mxu0 0.0
    %2919 = vmatpush.msra.mxu0 0.0
    %2920 = vmatpush.msra.mxu0 0.0
    %2921 = vmatpush.msra.mxu0 0.0
    %2922 = vmatpush.msra.mxu0 0.0
    %2923 = vmatpush.msra.mxu0 %v2636
    %2924 = vmatpush.msra.mxu0 %v2634
    %2925 = vmatpush.msra.mxu0 %v2632
    %2926 = vmatpush.msra.mxu0 %v2630
    %2927 = vmatpush.msra.mxu0 %v2628
    %2928 = vmatpush.msra.mxu0 %v2626
    %2929 = vmatpush.msra.mxu0 %v2624
    %2930 = vmatpush.msra.mxu0 %v2622
    %2931 = vmatmul.f32.gmra.mxu0 %v2913
    %v2932 = vpop.f32.mrf.mxu0
    %v2933 = vadd.f32 %v2658, %v2932
    %2934 = vdwg.mxu0
    %2935 = vmatpush.msra.mxu0 0.0
    %2936 = vmatpush.msra.mxu0 0.0
    %2937 = vmatpush.msra.mxu0 0.0
    %2938 = vmatpush.msra.mxu0 0.0
    %2939 = vmatpush.msra.mxu0 0.0
    %2940 = vmatpush.msra.mxu0 0.0
    %2941 = vmatpush.msra.mxu0 0.0
    %2942 = vmatpush.msra.mxu0 0.0
    %2943 = vmatpush.msra.mxu0 %v2637
    %2944 = vmatpush.msra.mxu0 %v2635
    %2945 = vmatpush.msra.mxu0 %v2633
    %2946 = vmatpush.msra.mxu0 %v2631
    %2947 = vmatpush.msra.mxu0 %v2629
    %2948 = vmatpush.msra.mxu0 %v2627
    %2949 = vmatpush.msra.mxu0 %v2625
    %2950 = vmatpush.msra.mxu0 %v2623
    %2951 = vmatmul.f32.gmra.mxu0 %v2913
    %v2952 = vpop.f32.mrf.mxu0
    %v2953 = vadd.f32 %v2659, %v2952
    %2954 = vdwg.mxu0
    %v2955 = vld [vmem:[%s2510] sm:$0x3]
    %v2956 = vld [vmem:[%s1986] sm:$0x3]
    %2958 = vrot.lane.b32.xlu0 %v2956, 32
    %v2959 = vpop.permute.xlu0 %2958
    %v2961 = vsel %vm461, %v2955, %v2959
    %v2963 = vsel %vm1387, %v2961, 0
    %2965 = vmatpush.msra.mxu0 0.0
    %2966 = vmatpush.msra.mxu0 0.0
    %2967 = vmatpush.msra.mxu0 0.0
    %2968 = vmatpush.msra.mxu0 0.0
    %2969 = vmatpush.msra.mxu0 0.0
    %2970 = vmatpush.msra.mxu0 0.0
    %2971 = vmatpush.msra.mxu0 0.0
    %2972 = vmatpush.msra.mxu0 0.0
    %2973 = vmatpush.msra.mxu0 %v2636
    %2974 = vmatpush.msra.mxu0 %v2634
    %2975 = vmatpush.msra.mxu0 %v2632
    %2976 = vmatpush.msra.mxu0 %v2630
    %2977 = vmatpush.msra.mxu0 %v2628
    %2978 = vmatpush.msra.mxu0 %v2626
    %2979 = vmatpush.msra.mxu0 %v2624
    %2980 = vmatpush.msra.mxu0 %v2622
    %2981 = vmatmul.f32.gmra.mxu0 %v2963
    %v2982 = vpop.f32.mrf.mxu0
    %v2983 = vadd.f32 %v2658, %v2982
    %2984 = vdwg.mxu0
    %2985 = vmatpush.msra.mxu0 0.0
    %2986 = vmatpush.msra.mxu0 0.0
    %2987 = vmatpush.msra.mxu0 0.0
    %2988 = vmatpush.msra.mxu0 0.0
    %2989 = vmatpush.msra.mxu0 0.0
    %2990 = vmatpush.msra.mxu0 0.0
    %2991 = vmatpush.msra.mxu0 0.0
    %2992 = vmatpush.msra.mxu0 0.0
    %2993 = vmatpush.msra.mxu0 %v2637
    %2994 = vmatpush.msra.mxu0 %v2635
    %2995 = vmatpush.msra.mxu0 %v2633
    %2996 = vmatpush.msra.mxu0 %v2631
    %2997 = vmatpush.msra.mxu0 %v2629
    %2998 = vmatpush.msra.mxu0 %v2627
    %2999 = vmatpush.msra.mxu0 %v2625
    %3000 = vmatpush.msra.mxu0 %v2623
    %3001 = vmatmul.f32.gmra.mxu0 %v2963
    %v3002 = vpop.f32.mrf.mxu0
    %v3003 = vadd.f32 %v2659, %v3002
    %3004 = vdwg.mxu0
    %v3005 = vld [vmem:[%s2614] sm:$0x3]
    %v3006 = vld [vmem:[%s1880] sm:$0x3]
    %3008 = vrot.lane.b32.xlu0 %v3006, 32
    %v3009 = vpop.permute.xlu0 %3008
    %v3011 = vsel %vm461, %v3005, %v3009
    %v3013 = vsel %vm1387, %v3011, 0
    %3015 = vmatpush.msra.mxu0 0.0
    %3016 = vmatpush.msra.mxu0 0.0
    %3017 = vmatpush.msra.mxu0 0.0
    %3018 = vmatpush.msra.mxu0 0.0
    %3019 = vmatpush.msra.mxu0 0.0
    %3020 = vmatpush.msra.mxu0 0.0
    %3021 = vmatpush.msra.mxu0 0.0
    %3022 = vmatpush.msra.mxu0 0.0
    %3023 = vmatpush.msra.mxu0 %v2636
    %3024 = vmatpush.msra.mxu0 %v2634
    %3025 = vmatpush.msra.mxu0 %v2632
    %3026 = vmatpush.msra.mxu0 %v2630
    %3027 = vmatpush.msra.mxu0 %v2628
    %3028 = vmatpush.msra.mxu0 %v2626
    %3029 = vmatpush.msra.mxu0 %v2624
    %3030 = vmatpush.msra.mxu0 %v2622
    %3031 = vmatmul.f32.gmra.mxu0 %v3013
    %v3032 = vpop.f32.mrf.mxu0
    %v3033 = vadd.f32 %v2658, %v3032
    %3034 = vdwg.mxu0
    %3035 = vmatpush.msra.mxu0 0.0
    %3036 = vmatpush.msra.mxu0 0.0
    %3037 = vmatpush.msra.mxu0 0.0
    %3038 = vmatpush.msra.mxu0 0.0
    %3039 = vmatpush.msra.mxu0 0.0
    %3040 = vmatpush.msra.mxu0 0.0
    %3041 = vmatpush.msra.mxu0 0.0
    %3042 = vmatpush.msra.mxu0 0.0
    %3043 = vmatpush.msra.mxu0 %v2637
    %3044 = vmatpush.msra.mxu0 %v2635
    %3045 = vmatpush.msra.mxu0 %v2633
    %3046 = vmatpush.msra.mxu0 %v2631
    %3047 = vmatpush.msra.mxu0 %v2629
    %3048 = vmatpush.msra.mxu0 %v2627
    %3049 = vmatpush.msra.mxu0 %v2625
    %3050 = vmatpush.msra.mxu0 %v2623
    %3051 = vmatmul.f32.gmra.mxu0 %v3013
    %v3052 = vpop.f32.mrf.mxu0
    %v3053 = vadd.f32 %v2659, %v3052
    %3054 = vdwg.mxu0
    %3055 = vmatpush.msra.mxu0 0.0
    %3056 = vmatpush.msra.mxu0 0.0
    %3057 = vmatpush.msra.mxu0 0.0
    %3058 = vmatpush.msra.mxu0 0.0
    %3059 = vmatpush.msra.mxu0 0.0
    %3060 = vmatpush.msra.mxu0 0.0
    %3061 = vmatpush.msra.mxu0 0.0
    %3062 = vmatpush.msra.mxu0 0.0
    %3063 = vmatpush.msra.mxu0 0.0
    %3064 = vmatpush.msra.mxu0 0.0
    %3065 = vmatpush.msra.mxu0 0.0
    %3066 = vmatpush.msra.mxu0 0.0
    %3067 = vmatpush.msra.mxu0 %v2644
    %3068 = vmatpush.msra.mxu0 %v2643
    %3069 = vmatpush.msra.mxu0 %v2642
    %3070 = vmatpush.msra.mxu0 %v2641
    %3071 = vmatmul.f32.gmra.mxu0 %v463
    %v3072 = vpop.f32.mrf.mxu0
    %v3073 = vadd.f32 0.0, %v3072
    %3074 = vdwg.mxu0
    %v3075 = vadd.f32 %v2683, %v3073
    %3076 = vmatpush.msra.mxu0 0.0
    %3077 = vmatpush.msra.mxu0 0.0
    %3078 = vmatpush.msra.mxu0 0.0
    %3079 = vmatpush.msra.mxu0 0.0
    %3080 = vmatpush.msra.mxu0 0.0
    %3081 = vmatpush.msra.mxu0 0.0
    %3082 = vmatpush.msra.mxu0 0.0
    %3083 = vmatpush.msra.mxu0 0.0
    %3084 = vmatpush.msra.mxu0 0.0
    %3085 = vmatpush.msra.mxu0 0.0
    %3086 = vmatpush.msra.mxu0 0.0
    %3087 = vmatpush.msra.mxu0 0.0
    %3088 = vmatpush.msra.mxu0 %v2649
    %3089 = vmatpush.msra.mxu0 %v2648
    %3090 = vmatpush.msra.mxu0 %v2647
    %3091 = vmatpush.msra.mxu0 %v2646
    %3092 = vmatmul.f32.gmra.mxu0 %v463
    %v3093 = vpop.f32.mrf.mxu0
    %v3094 = vadd.f32 0.0, %v3093
    %3095 = vdwg.mxu0
    %v3096 = vadd.f32 %v3053, %v3094
    %v3097 = vmul.f32 %v3075, 0.5
    %v3098 = vtanh.pop %v3097
    %v3099 = vmul.f32 %v3098, 0.5
    %v3100 = vadd.f32 %v3099, 0.5
    %v3101 = vtanh.pop %v3075
    %v3102 = vmul.f32 %v3096, 0.5
    %v3103 = vtanh.pop %v3102
    %v3104 = vmul.f32 %v3103, 0.5
    %v3105 = vadd.f32 %v3104, 0.5
    %v3106 = vtanh.pop %v3096
    %v3107 = vmul.f32 %v3100, 0.0
    %3109 = vrot.lane.b32.xlu0 %v3101, 32
    %v3110 = vpop.permute.xlu0 %3109
    %v3112 = vmul.f32 %v3100, %v3110
    %3114 = vrot.lane.b32.xlu0 %v3112, 32
    %v3115 = vpop.permute.xlu0 %3114
    %v3117 = vadd.f32 %v3107, %v3115
    %v3118 = vmul.f32 %v3105, 0.0
    %3120 = vrot.lane.b32.xlu0 %v3106, 32
    %v3121 = vpop.permute.xlu0 %3120
    %v3123 = vmul.f32 %v3105, %v3121
    %3125 = vrot.lane.b32.xlu0 %v3123, 32
    %v3126 = vpop.permute.xlu0 %3125
    %v3128 = vadd.f32 %v3118, %v3126
    %v3129 = vtanh.pop %v3117
    %3131 = vrot.lane.b32.xlu0 %v3129, 32
    %v3132 = vpop.permute.xlu0 %3131
    %v3134 = vmul.f32 %v3100, %v3132
    %v3135 = vtanh.pop %v3128
    %3137 = vrot.lane.b32.xlu0 %v3135, 32
    %v3138 = vpop.permute.xlu0 %3137
    %v3140 = vmul.f32 %v3105, %v3138
    %v3141 = vsel %vm555, %v3134, 0.0
    %v3142 = vsel %vm555, %v3117, 0.0
    %v3143 = vsel %vm562, %v3140, 0.0
    %v3144 = vsel %vm562, %v3128, 0.0
    %3146 = vrot.lane.b32.xlu0 %v3141, 64
    %v3147 = vpop.permute.xlu0 %3146
    %3149 = vst.msk [vmem:[#allocation2] sm:$0x3] %vm569, %v3147
    %3151 = vrot.lane.b32.xlu0 %v3143, 64
    %v3152 = vpop.permute.xlu0 %3151
    %3154 = vst.msk [vmem:[%s575] sm:$0x3] %vm569, %v3152
    %v3155 = vsel %vm461, %v3147, 0
    %3157 = vmatpush.msra.mxu0 0.0
    %3158 = vmatpush.msra.mxu0 0.0
    %3159 = vmatpush.msra.mxu0 0.0
    %3160 = vmatpush.msra.mxu0 0.0
    %3161 = vmatpush.msra.mxu0 0.0
    %3162 = vmatpush.msra.mxu0 0.0
    %3163 = vmatpush.msra.mxu0 0.0
    %3164 = vmatpush.msra.mxu0 0.0
    %3165 = vmatpush.msra.mxu0 0.0
    %3166 = vmatpush.msra.mxu0 0.0
    %3167 = vmatpush.msra.mxu0 0.0
    %3168 = vmatpush.msra.mxu0 0.0
    %3169 = vmatpush.msra.mxu0 %v2644
    %3170 = vmatpush.msra.mxu0 %v2643
    %3171 = vmatpush.msra.mxu0 %v2642
    %3172 = vmatpush.msra.mxu0 %v2641
    %3173 = vmatmul.f32.gmra.mxu0 %v3155
    %v3174 = vpop.f32.mrf.mxu0
    %v3175 = vadd.f32 0.0, %v3174
    %3176 = vdwg.mxu0
    %v3177 = vadd.f32 %v2733, %v3175
    %v3178 = vsel %vm461, %v3152, 0
    %3180 = vmatpush.msra.mxu0 0.0
    %3181 = vmatpush.msra.mxu0 0.0
    %3182 = vmatpush.msra.mxu0 0.0
    %3183 = vmatpush.msra.mxu0 0.0
    %3184 = vmatpush.msra.mxu0 0.0
    %3185 = vmatpush.msra.mxu0 0.0
    %3186 = vmatpush.msra.mxu0 0.0
    %3187 = vmatpush.msra.mxu0 0.0
    %3188 = vmatpush.msra.mxu0 0.0
    %3189 = vmatpush.msra.mxu0 0.0
    %3190 = vmatpush.msra.mxu0 0.0
    %3191 = vmatpush.msra.mxu0 0.0
    %3192 = vmatpush.msra.mxu0 %v2649
    %3193 = vmatpush.msra.mxu0 %v2648
    %3194 = vmatpush.msra.mxu0 %v2647
    %3195 = vmatpush.msra.mxu0 %v2646
    %3196 = vmatmul.f32.gmra.mxu0 %v3178
    %v3197 = vpop.f32.mrf.mxu0
    %v3198 = vadd.f32 0.0, %v3197
    %3199 = vdwg.mxu0
    %v3200 = vadd.f32 %v3003, %v3198
    %v3201 = vmul.f32 %v3177, 0.5
    %v3202 = vtanh.pop %v3201
    %v3203 = vmul.f32 %v3202, 0.5
    %v3204 = vadd.f32 %v3203, 0.5
    %v3205 = vtanh.pop %v3177
    %v3206 = vmul.f32 %v3200, 0.5
    %v3207 = vtanh.pop %v3206
    %v3208 = vmul.f32 %v3207, 0.5
    %v3209 = vadd.f32 %v3208, 0.5
    %v3210 = vtanh.pop %v3200
    %v3211 = vmul.f32 %v3204, %v3142
    %3213 = vrot.lane.b32.xlu0 %v3205, 32
    %v3214 = vpop.permute.xlu0 %3213
    %v3216 = vmul.f32 %v3204, %v3214
    %3218 = vrot.lane.b32.xlu0 %v3216, 32
    %v3219 = vpop.permute.xlu0 %3218
    %v3221 = vadd.f32 %v3211, %v3219
    %v3222 = vmul.f32 %v3209, %v3144
    %3224 = vrot.lane.b32.xlu0 %v3210, 32
    %v3225 = vpop.permute.xlu0 %3224
    %v3227 = vmul.f32 %v3209, %v3225
    %3229 = vrot.lane.b32.xlu0 %v3227, 32
    %v3230 = vpop.permute.xlu0 %3229
    %v3232 = vadd.f32 %v3222, %v3230
    %v3233 = vtanh.pop %v3221
    %3235 = vrot.lane.b32.xlu0 %v3233, 32
    %v3236 = vpop.permute.xlu0 %3235
    %v3238 = vmul.f32 %v3204, %v3236
    %v3239 = vtanh.pop %v3232
    %3241 = vrot.lane.b32.xlu0 %v3239, 32
    %v3242 = vpop.permute.xlu0 %3241
    %v3244 = vmul.f32 %v3209, %v3242
    %v3245 = vsel %vm671, %v3238, %v3141
    %v3246 = vsel %vm671, %v3221, %v3142
    %v3247 = vsel %vm678, %v3244, %v3143
    %v3248 = vsel %vm678, %v3232, %v3144
    %3250 = vrot.lane.b32.xlu0 %v3245, 64
    %v3251 = vpop.permute.xlu0 %3250
    %3253 = vst.msk [vmem:[%s685] sm:$0x3] %vm569, %v3251
    %3255 = vrot.lane.b32.xlu0 %v3247, 64
    %v3256 = vpop.permute.xlu0 %3255
    %3258 = vst.msk [vmem:[%s691] sm:$0x3] %vm569, %v3256
    %v3259 = vsel %vm461, %v3251, 0
    %3261 = vmatpush.msra.mxu0 0.0
    %3262 = vmatpush.msra.mxu0 0.0
    %3263 = vmatpush.msra.mxu0 0.0
    %3264 = vmatpush.msra.mxu0 0.0
    %3265 = vmatpush.msra.mxu0 0.0
    %3266 = vmatpush.msra.mxu0 0.0
    %3267 = vmatpush.msra.mxu0 0.0
    %3268 = vmatpush.msra.mxu0 0.0
    %3269 = vmatpush.msra.mxu0 0.0
    %3270 = vmatpush.msra.mxu0 0.0
    %3271 = vmatpush.msra.mxu0 0.0
    %3272 = vmatpush.msra.mxu0 0.0
    %3273 = vmatpush.msra.mxu0 %v2644
    %3274 = vmatpush.msra.mxu0 %v2643
    %3275 = vmatpush.msra.mxu0 %v2642
    %3276 = vmatpush.msra.mxu0 %v2641
    %3277 = vmatmul.f32.gmra.mxu0 %v3259
    %v3278 = vpop.f32.mrf.mxu0
    %v3279 = vadd.f32 0.0, %v3278
    %3280 = vdwg.mxu0
    %v3281 = vadd.f32 %v2783, %v3279
    %v3282 = vsel %vm461, %v3256, 0
    %3284 = vmatpush.msra.mxu0 0.0
    %3285 = vmatpush.msra.mxu0 0.0
    %3286 = vmatpush.msra.mxu0 0.0
    %3287 = vmatpush.msra.mxu0 0.0
    %3288 = vmatpush.msra.mxu0 0.0
    %3289 = vmatpush.msra.mxu0 0.0
    %3290 = vmatpush.msra.mxu0 0.0
    %3291 = vmatpush.msra.mxu0 0.0
    %3292 = vmatpush.msra.mxu0 0.0
    %3293 = vmatpush.msra.mxu0 0.0
    %3294 = vmatpush.msra.mxu0 0.0
    %3295 = vmatpush.msra.mxu0 0.0
    %3296 = vmatpush.msra.mxu0 %v2649
    %3297 = vmatpush.msra.mxu0 %v2648
    %3298 = vmatpush.msra.mxu0 %v2647
    %3299 = vmatpush.msra.mxu0 %v2646
    %3300 = vmatmul.f32.gmra.mxu0 %v3282
    %v3301 = vpop.f32.mrf.mxu0
    %v3302 = vadd.f32 0.0, %v3301
    %3303 = vdwg.mxu0
    %v3304 = vadd.f32 %v2953, %v3302
    %v3305 = vmul.f32 %v3281, 0.5
    %v3306 = vtanh.pop %v3305
    %v3307 = vmul.f32 %v3306, 0.5
    %v3308 = vadd.f32 %v3307, 0.5
    %v3309 = vtanh.pop %v3281
    %v3310 = vmul.f32 %v3304, 0.5
    %v3311 = vtanh.pop %v3310
    %v3312 = vmul.f32 %v3311, 0.5
    %v3313 = vadd.f32 %v3312, 0.5
    %v3314 = vtanh.pop %v3304
    %v3315 = vmul.f32 %v3308, %v3246
    %3317 = vrot.lane.b32.xlu0 %v3309, 32
    %v3318 = vpop.permute.xlu0 %3317
    %v3320 = vmul.f32 %v3308, %v3318
    %3322 = vrot.lane.b32.xlu0 %v3320, 32
    %v3323 = vpop.permute.xlu0 %3322
    %v3325 = vadd.f32 %v3315, %v3323
    %v3326 = vmul.f32 %v3313, %v3248
    %3328 = vrot.lane.b32.xlu0 %v3314, 32
    %v3329 = vpop.permute.xlu0 %3328
    %v3331 = vmul.f32 %v3313, %v3329
    %3333 = vrot.lane.b32.xlu0 %v3331, 32
    %v3334 = vpop.permute.xlu0 %3333
    %v3336 = vadd.f32 %v3326, %v3334
    %v3337 = vtanh.pop %v3325
    %3339 = vrot.lane.b32.xlu0 %v3337, 32
    %v3340 = vpop.permute.xlu0 %3339
    %v3342 = vmul.f32 %v3308, %v3340
    %v3343 = vtanh.pop %v3336
    %3345 = vrot.lane.b32.xlu0 %v3343, 32
    %v3346 = vpop.permute.xlu0 %3345
    %v3348 = vmul.f32 %v3313, %v3346
    %v3349 = vsel %vm787, %v3342, %v3245
    %v3350 = vsel %vm787, %v3325, %v3246
    %v3351 = vsel %vm794, %v3348, %v3247
    %v3352 = vsel %vm794, %v3336, %v3248
    %3354 = vrot.lane.b32.xlu0 %v3349, 64
    %v3355 = vpop.permute.xlu0 %3354
    %3357 = vst.msk [vmem:[%s801] sm:$0x3] %vm569, %v3355
    %3359 = vrot.lane.b32.xlu0 %v3351, 64
    %v3360 = vpop.permute.xlu0 %3359
    %3362 = vst.msk [vmem:[%s807] sm:$0x3] %vm569, %v3360
    %v3363 = vsel %vm461, %v3355, 0
    %3365 = vmatpush.msra.mxu0 0.0
    %3366 = vmatpush.msra.mxu0 0.0
    %3367 = vmatpush.msra.mxu0 0.0
    %3368 = vmatpush.msra.mxu0 0.0
    %3369 = vmatpush.msra.mxu0 0.0
    %3370 = vmatpush.msra.mxu0 0.0
    %3371 = vmatpush.msra.mxu0 0.0
    %3372 = vmatpush.msra.mxu0 0.0
    %3373 = vmatpush.msra.mxu0 0.0
    %3374 = vmatpush.msra.mxu0 0.0
    %3375 = vmatpush.msra.mxu0 0.0
    %3376 = vmatpush.msra.mxu0 0.0
    %3377 = vmatpush.msra.mxu0 %v2644
    %3378 = vmatpush.msra.mxu0 %v2643
    %3379 = vmatpush.msra.mxu0 %v2642
    %3380 = vmatpush.msra.mxu0 %v2641
    %3381 = vmatmul.f32.gmra.mxu0 %v3363
    %v3382 = vpop.f32.mrf.mxu0
    %v3383 = vadd.f32 0.0, %v3382
    %3384 = vdwg.mxu0
    %v3385 = vadd.f32 %v2833, %v3383
    %v3386 = vsel %vm461, %v3360, 0
    %3388 = vmatpush.msra.mxu0 0.0
    %3389 = vmatpush.msra.mxu0 0.0
    %3390 = vmatpush.msra.mxu0 0.0
    %3391 = vmatpush.msra.mxu0 0.0
    %3392 = vmatpush.msra.mxu0 0.0
    %3393 = vmatpush.msra.mxu0 0.0
    %3394 = vmatpush.msra.mxu0 0.0
    %3395 = vmatpush.msra.mxu0 0.0
    %3396 = vmatpush.msra.mxu0 0.0
    %3397 = vmatpush.msra.mxu0 0.0
    %3398 = vmatpush.msra.mxu0 0.0
    %3399 = vmatpush.msra.mxu0 0.0
    %3400 = vmatpush.msra.mxu0 %v2649
    %3401 = vmatpush.msra.mxu0 %v2648
    %3402 = vmatpush.msra.mxu0 %v2647
    %3403 = vmatpush.msra.mxu0 %v2646
    %3404 = vmatmul.f32.gmra.mxu0 %v3386
    %v3405 = vpop.f32.mrf.mxu0
    %v3406 = vadd.f32 0.0, %v3405
    %3407 = vdwg.mxu0
    %v3408 = vadd.f32 %v2903, %v3406
    %v3409 = vmul.f32 %v3385, 0.5
    %v3410 = vtanh.pop %v3409
    %v3411 = vmul.f32 %v3410, 0.5
    %v3412 = vadd.f32 %v3411, 0.5
    %v3413 = vtanh.pop %v3385
    %v3414 = vmul.f32 %v3408, 0.5
    %v3415 = vtanh.pop %v3414
    %v3416 = vmul.f32 %v3415, 0.5
    %v3417 = vadd.f32 %v3416, 0.5
    %v3418 = vtanh.pop %v3408
    %v3419 = vmul.f32 %v3412, %v3350
    %3421 = vrot.lane.b32.xlu0 %v3413, 32
    %v3422 = vpop.permute.xlu0 %3421
    %v3424 = vmul.f32 %v3412, %v3422
    %3426 = vrot.lane.b32.xlu0 %v3424, 32
    %v3427 = vpop.permute.xlu0 %3426
    %v3429 = vadd.f32 %v3419, %v3427
    %v3430 = vmul.f32 %v3417, %v3352
    %3432 = vrot.lane.b32.xlu0 %v3418, 32
    %v3433 = vpop.permute.xlu0 %3432
    %v3435 = vmul.f32 %v3417, %v3433
    %3437 = vrot.lane.b32.xlu0 %v3435, 32
    %v3438 = vpop.permute.xlu0 %3437
    %v3440 = vadd.f32 %v3430, %v3438
    %v3441 = vtanh.pop %v3429
    %3443 = vrot.lane.b32.xlu0 %v3441, 32
    %v3444 = vpop.permute.xlu0 %3443
    %v3446 = vmul.f32 %v3412, %v3444
    %v3447 = vtanh.pop %v3440
    %3449 = vrot.lane.b32.xlu0 %v3447, 32
    %v3450 = vpop.permute.xlu0 %3449
    %v3452 = vmul.f32 %v3417, %v3450
    %v3453 = vsel %vm903, %v3446, %v3349
    %v3454 = vsel %vm903, %v3429, %v3350
    %v3455 = vsel %vm910, %v3452, %v3351
    %v3456 = vsel %vm910, %v3440, %v3352
    %3458 = vrot.lane.b32.xlu0 %v3453, 64
    %v3459 = vpop.permute.xlu0 %3458
    %3461 = vst.msk [vmem:[%s917] sm:$0x3] %vm569, %v3459
    %3463 = vrot.lane.b32.xlu0 %v3455, 64
    %v3464 = vpop.permute.xlu0 %3463
    %3466 = vst.msk [vmem:[%s923] sm:$0x3] %vm569, %v3464
    %v3467 = vsel %vm461, %v3459, 0
    %3469 = vmatpush.msra.mxu0 0.0
    %3470 = vmatpush.msra.mxu0 0.0
    %3471 = vmatpush.msra.mxu0 0.0
    %3472 = vmatpush.msra.mxu0 0.0
    %3473 = vmatpush.msra.mxu0 0.0
    %3474 = vmatpush.msra.mxu0 0.0
    %3475 = vmatpush.msra.mxu0 0.0
    %3476 = vmatpush.msra.mxu0 0.0
    %3477 = vmatpush.msra.mxu0 0.0
    %3478 = vmatpush.msra.mxu0 0.0
    %3479 = vmatpush.msra.mxu0 0.0
    %3480 = vmatpush.msra.mxu0 0.0
    %3481 = vmatpush.msra.mxu0 %v2644
    %3482 = vmatpush.msra.mxu0 %v2643
    %3483 = vmatpush.msra.mxu0 %v2642
    %3484 = vmatpush.msra.mxu0 %v2641
    %3485 = vmatmul.f32.gmra.mxu0 %v3467
    %v3486 = vpop.f32.mrf.mxu0
    %v3487 = vadd.f32 0.0, %v3486
    %3488 = vdwg.mxu0
    %v3489 = vadd.f32 %v2883, %v3487
    %v3490 = vsel %vm461, %v3464, 0
    %3492 = vmatpush.msra.mxu0 0.0
    %3493 = vmatpush.msra.mxu0 0.0
    %3494 = vmatpush.msra.mxu0 0.0
    %3495 = vmatpush.msra.mxu0 0.0
    %3496 = vmatpush.msra.mxu0 0.0
    %3497 = vmatpush.msra.mxu0 0.0
    %3498 = vmatpush.msra.mxu0 0.0
    %3499 = vmatpush.msra.mxu0 0.0
    %3500 = vmatpush.msra.mxu0 0.0
    %3501 = vmatpush.msra.mxu0 0.0
    %3502 = vmatpush.msra.mxu0 0.0
    %3503 = vmatpush.msra.mxu0 0.0
    %3504 = vmatpush.msra.mxu0 %v2649
    %3505 = vmatpush.msra.mxu0 %v2648
    %3506 = vmatpush.msra.mxu0 %v2647
    %3507 = vmatpush.msra.mxu0 %v2646
    %3508 = vmatmul.f32.gmra.mxu0 %v3490
    %v3509 = vpop.f32.mrf.mxu0
    %v3510 = vadd.f32 0.0, %v3509
    %3511 = vdwg.mxu0
    %v3512 = vadd.f32 %v2853, %v3510
    %v3513 = vmul.f32 %v3489, 0.5
    %v3514 = vtanh.pop %v3513
    %v3515 = vmul.f32 %v3514, 0.5
    %v3516 = vadd.f32 %v3515, 0.5
    %v3517 = vtanh.pop %v3489
    %v3518 = vmul.f32 %v3512, 0.5
    %v3519 = vtanh.pop %v3518
    %v3520 = vmul.f32 %v3519, 0.5
    %v3521 = vadd.f32 %v3520, 0.5
    %v3522 = vtanh.pop %v3512
    %v3523 = vmul.f32 %v3516, %v3454
    %3525 = vrot.lane.b32.xlu0 %v3517, 32
    %v3526 = vpop.permute.xlu0 %3525
    %v3528 = vmul.f32 %v3516, %v3526
    %3530 = vrot.lane.b32.xlu0 %v3528, 32
    %v3531 = vpop.permute.xlu0 %3530
    %v3533 = vadd.f32 %v3523, %v3531
    %v3534 = vmul.f32 %v3521, %v3456
    %3536 = vrot.lane.b32.xlu0 %v3522, 32
    %v3537 = vpop.permute.xlu0 %3536
    %v3539 = vmul.f32 %v3521, %v3537
    %3541 = vrot.lane.b32.xlu0 %v3539, 32
    %v3542 = vpop.permute.xlu0 %3541
    %v3544 = vadd.f32 %v3534, %v3542
    %v3545 = vtanh.pop %v3533
    %3547 = vrot.lane.b32.xlu0 %v3545, 32
    %v3548 = vpop.permute.xlu0 %3547
    %v3550 = vmul.f32 %v3516, %v3548
    %v3551 = vtanh.pop %v3544
    %3553 = vrot.lane.b32.xlu0 %v3551, 32
    %v3554 = vpop.permute.xlu0 %3553
    %v3556 = vmul.f32 %v3521, %v3554
    %v3557 = vsel %vm910, %v3550, %v3453
    %v3558 = vsel %vm910, %v3533, %v3454
    %v3559 = vsel %vm903, %v3556, %v3455
    %v3560 = vsel %vm903, %v3544, %v3456
    %3562 = vrot.lane.b32.xlu0 %v3557, 64
    %v3563 = vpop.permute.xlu0 %3562
    %3565 = vst.msk [vmem:[%s1023] sm:$0x3] %vm569, %v3563
    %3567 = vrot.lane.b32.xlu0 %v3559, 64
    %v3568 = vpop.permute.xlu0 %3567
    %3570 = vst.msk [vmem:[%s1029] sm:$0x3] %vm569, %v3568
    %v3571 = vsel %vm461, %v3563, 0
    %3573 = vmatpush.msra.mxu0 0.0
    %3574 = vmatpush.msra.mxu0 0.0
    %3575 = vmatpush.msra.mxu0 0.0
    %3576 = vmatpush.msra.mxu0 0.0
    %3577 = vmatpush.msra.mxu0 0.0
    %3578 = vmatpush.msra.mxu0 0.0
    %3579 = vmatpush.msra.mxu0 0.0
    %3580 = vmatpush.msra.mxu0 0.0
    %3581 = vmatpush.msra.mxu0 0.0
    %3582 = vmatpush.msra.mxu0 0.0
    %3583 = vmatpush.msra.mxu0 0.0
    %3584 = vmatpush.msra.mxu0 0.0
    %3585 = vmatpush.msra.mxu0 %v2644
    %3586 = vmatpush.msra.mxu0 %v2643
    %3587 = vmatpush.msra.mxu0 %v2642
    %3588 = vmatpush.msra.mxu0 %v2641
    %3589 = vmatmul.f32.gmra.mxu0 %v3571
    %v3590 = vpop.f32.mrf.mxu0
    %v3591 = vadd.f32 0.0, %v3590
    %3592 = vdwg.mxu0
    %v3593 = vadd.f32 %v2933, %v3591
    %v3594 = vsel %vm461, %v3568, 0
    %3596 = vmatpush.msra.mxu0 0.0
    %3597 = vmatpush.msra.mxu0 0.0
    %3598 = vmatpush.msra.mxu0 0.0
    %3599 = vmatpush.msra.mxu0 0.0
    %3600 = vmatpush.msra.mxu0 0.0
    %3601 = vmatpush.msra.mxu0 0.0
    %3602 = vmatpush.msra.mxu0 0.0
    %3603 = vmatpush.msra.mxu0 0.0
    %3604 = vmatpush.msra.mxu0 0.0
    %3605 = vmatpush.msra.mxu0 0.0
    %3606 = vmatpush.msra.mxu0 0.0
    %3607 = vmatpush.msra.mxu0 0.0
    %3608 = vmatpush.msra.mxu0 %v2649
    %3609 = vmatpush.msra.mxu0 %v2648
    %3610 = vmatpush.msra.mxu0 %v2647
    %3611 = vmatpush.msra.mxu0 %v2646
    %3612 = vmatmul.f32.gmra.mxu0 %v3594
    %v3613 = vpop.f32.mrf.mxu0
    %v3614 = vadd.f32 0.0, %v3613
    %3615 = vdwg.mxu0
    %v3616 = vadd.f32 %v2803, %v3614
    %v3617 = vmul.f32 %v3593, 0.5
    %v3618 = vtanh.pop %v3617
    %v3619 = vmul.f32 %v3618, 0.5
    %v3620 = vadd.f32 %v3619, 0.5
    %v3621 = vtanh.pop %v3593
    %v3622 = vmul.f32 %v3616, 0.5
    %v3623 = vtanh.pop %v3622
    %v3624 = vmul.f32 %v3623, 0.5
    %v3625 = vadd.f32 %v3624, 0.5
    %v3626 = vtanh.pop %v3616
    %v3627 = vmul.f32 %v3620, %v3558
    %3629 = vrot.lane.b32.xlu0 %v3621, 32
    %v3630 = vpop.permute.xlu0 %3629
    %v3632 = vmul.f32 %v3620, %v3630
    %3634 = vrot.lane.b32.xlu0 %v3632, 32
    %v3635 = vpop.permute.xlu0 %3634
    %v3637 = vadd.f32 %v3627, %v3635
    %v3638 = vmul.f32 %v3625, %v3560
    %3640 = vrot.lane.b32.xlu0 %v3626, 32
    %v3641 = vpop.permute.xlu0 %3640
    %v3643 = vmul.f32 %v3625, %v3641
    %3645 = vrot.lane.b32.xlu0 %v3643, 32
    %v3646 = vpop.permute.xlu0 %3645
    %v3648 = vadd.f32 %v3638, %v3646
    %v3649 = vtanh.pop %v3637
    %3651 = vrot.lane.b32.xlu0 %v3649, 32
    %v3652 = vpop.permute.xlu0 %3651
    %v3654 = vmul.f32 %v3620, %v3652
    %v3655 = vtanh.pop %v3648
    %3657 = vrot.lane.b32.xlu0 %v3655, 32
    %v3658 = vpop.permute.xlu0 %3657
    %v3660 = vmul.f32 %v3625, %v3658
    %v3661 = vsel %vm794, %v3654, %v3557
    %v3662 = vsel %vm794, %v3637, %v3558
    %v3663 = vsel %vm787, %v3660, %v3559
    %v3664 = vsel %vm787, %v3648, %v3560
    %3666 = vrot.lane.b32.xlu0 %v3661, 64
    %v3667 = vpop.permute.xlu0 %3666
    %3669 = vst.msk [vmem:[%s1129] sm:$0x3] %vm569, %v3667
    %3671 = vrot.lane.b32.xlu0 %v3663, 64
    %v3672 = vpop.permute.xlu0 %3671
    %3674 = vst.msk [vmem:[%s1135] sm:$0x3] %vm569, %v3672
    %v3675 = vsel %vm461, %v3667, 0
    %3677 = vmatpush.msra.mxu0 0.0
    %3678 = vmatpush.msra.mxu0 0.0
    %3679 = vmatpush.msra.mxu0 0.0
    %3680 = vmatpush.msra.mxu0 0.0
    %3681 = vmatpush.msra.mxu0 0.0
    %3682 = vmatpush.msra.mxu0 0.0
    %3683 = vmatpush.msra.mxu0 0.0
    %3684 = vmatpush.msra.mxu0 0.0
    %3685 = vmatpush.msra.mxu0 0.0
    %3686 = vmatpush.msra.mxu0 0.0
    %3687 = vmatpush.msra.mxu0 0.0
    %3688 = vmatpush.msra.mxu0 0.0
    %3689 = vmatpush.msra.mxu0 %v2644
    %3690 = vmatpush.msra.mxu0 %v2643
    %3691 = vmatpush.msra.mxu0 %v2642
    %3692 = vmatpush.msra.mxu0 %v2641
    %3693 = vmatmul.f32.gmra.mxu0 %v3675
    %v3694 = vpop.f32.mrf.mxu0
    %v3695 = vadd.f32 0.0, %v3694
    %3696 = vdwg.mxu0
    %v3697 = vadd.f32 %v2983, %v3695
    %v3698 = vsel %vm461, %v3672, 0
    %3700 = vmatpush.msra.mxu0 0.0
    %3701 = vmatpush.msra.mxu0 0.0
    %3702 = vmatpush.msra.mxu0 0.0
    %3703 = vmatpush.msra.mxu0 0.0
    %3704 = vmatpush.msra.mxu0 0.0
    %3705 = vmatpush.msra.mxu0 0.0
    %3706 = vmatpush.msra.mxu0 0.0
    %3707 = vmatpush.msra.mxu0 0.0
    %3708 = vmatpush.msra.mxu0 0.0
    %3709 = vmatpush.msra.mxu0 0.0
    %3710 = vmatpush.msra.mxu0 0.0
    %3711 = vmatpush.msra.mxu0 0.0
    %3712 = vmatpush.msra.mxu0 %v2649
    %3713 = vmatpush.msra.mxu0 %v2648
    %3714 = vmatpush.msra.mxu0 %v2647
    %3715 = vmatpush.msra.mxu0 %v2646
    %3716 = vmatmul.f32.gmra.mxu0 %v3698
    %v3717 = vpop.f32.mrf.mxu0
    %v3718 = vadd.f32 0.0, %v3717
    %3719 = vdwg.mxu0
    %v3720 = vadd.f32 %v2753, %v3718
    %v3721 = vmul.f32 %v3697, 0.5
    %v3722 = vtanh.pop %v3721
    %v3723 = vmul.f32 %v3722, 0.5
    %v3724 = vadd.f32 %v3723, 0.5
    %v3725 = vtanh.pop %v3697
    %v3726 = vmul.f32 %v3720, 0.5
    %v3727 = vtanh.pop %v3726
    %v3728 = vmul.f32 %v3727, 0.5
    %v3729 = vadd.f32 %v3728, 0.5
    %v3730 = vtanh.pop %v3720
    %v3731 = vmul.f32 %v3724, %v3662
    %3733 = vrot.lane.b32.xlu0 %v3725, 32
    %v3734 = vpop.permute.xlu0 %3733
    %v3736 = vmul.f32 %v3724, %v3734
    %3738 = vrot.lane.b32.xlu0 %v3736, 32
    %v3739 = vpop.permute.xlu0 %3738
    %v3741 = vadd.f32 %v3731, %v3739
    %v3742 = vmul.f32 %v3729, %v3664
    %3744 = vrot.lane.b32.xlu0 %v3730, 32
    %v3745 = vpop.permute.xlu0 %3744
    %v3747 = vmul.f32 %v3729, %v3745
    %3749 = vrot.lane.b32.xlu0 %v3747, 32
    %v3750 = vpop.permute.xlu0 %3749
    %v3752 = vadd.f32 %v3742, %v3750
    %v3753 = vtanh.pop %v3741
    %3755 = vrot.lane.b32.xlu0 %v3753, 32
    %v3756 = vpop.permute.xlu0 %3755
    %v3758 = vmul.f32 %v3724, %v3756
    %v3759 = vtanh.pop %v3752
    %3761 = vrot.lane.b32.xlu0 %v3759, 32
    %v3762 = vpop.permute.xlu0 %3761
    %v3764 = vmul.f32 %v3729, %v3762
    %v3765 = vsel %vm678, %v3758, %v3661
    %v3766 = vsel %vm678, %v3741, %v3662
    %v3767 = vsel %vm671, %v3764, %v3663
    %v3768 = vsel %vm671, %v3752, %v3664
    %3770 = vrot.lane.b32.xlu0 %v3765, 64
    %v3771 = vpop.permute.xlu0 %3770
    %3773 = vst.msk [vmem:[%s1235] sm:$0x3] %vm569, %v3771
    %3775 = vrot.lane.b32.xlu0 %v3767, 64
    %v3776 = vpop.permute.xlu0 %3775
    %3778 = vst.msk [vmem:[%s1241] sm:$0x3] %vm569, %v3776
    %v3779 = vsel %vm461, %v3771, 0
    %3781 = vmatpush.msra.mxu0 0.0
    %3782 = vmatpush.msra.mxu0 0.0
    %3783 = vmatpush.msra.mxu0 0.0
    %3784 = vmatpush.msra.mxu0 0.0
    %3785 = vmatpush.msra.mxu0 0.0
    %3786 = vmatpush.msra.mxu0 0.0
    %3787 = vmatpush.msra.mxu0 0.0
    %3788 = vmatpush.msra.mxu0 0.0
    %3789 = vmatpush.msra.mxu0 0.0
    %3790 = vmatpush.msra.mxu0 0.0
    %3791 = vmatpush.msra.mxu0 0.0
    %3792 = vmatpush.msra.mxu0 0.0
    %3793 = vmatpush.msra.mxu0 %v2644
    %3794 = vmatpush.msra.mxu0 %v2643
    %3795 = vmatpush.msra.mxu0 %v2642
    %3796 = vmatpush.msra.mxu0 %v2641
    %3797 = vmatmul.f32.gmra.mxu0 %v3779
    %v3798 = vpop.f32.mrf.mxu0
    %v3799 = vadd.f32 0.0, %v3798
    %3800 = vdwg.mxu0
    %v3801 = vadd.f32 %v3033, %v3799
    %v3802 = vsel %vm461, %v3776, 0
    %3804 = vmatpush.msra.mxu0 0.0
    %3805 = vmatpush.msra.mxu0 0.0
    %3806 = vmatpush.msra.mxu0 0.0
    %3807 = vmatpush.msra.mxu0 0.0
    %3808 = vmatpush.msra.mxu0 0.0
    %3809 = vmatpush.msra.mxu0 0.0
    %3810 = vmatpush.msra.mxu0 0.0
    %3811 = vmatpush.msra.mxu0 0.0
    %3812 = vmatpush.msra.mxu0 0.0
    %3813 = vmatpush.msra.mxu0 0.0
    %3814 = vmatpush.msra.mxu0 0.0
    %3815 = vmatpush.msra.mxu0 0.0
    %3816 = vmatpush.msra.mxu0 %v2649
    %3817 = vmatpush.msra.mxu0 %v2648
    %3818 = vmatpush.msra.mxu0 %v2647
    %3819 = vmatpush.msra.mxu0 %v2646
    %3820 = vmatmul.f32.gmra.mxu0 %v3802
    %v3821 = vpop.f32.mrf.mxu0
    %v3822 = vadd.f32 0.0, %v3821
    %3823 = vdwg.mxu0
    %v3824 = vadd.f32 %v2703, %v3822
    %v3825 = vmul.f32 %v3801, 0.5
    %v3826 = vtanh.pop %v3825
    %v3827 = vmul.f32 %v3826, 0.5
    %v3828 = vadd.f32 %v3827, 0.5
    %v3829 = vtanh.pop %v3801
    %v3830 = vmul.f32 %v3824, 0.5
    %v3831 = vtanh.pop %v3830
    %v3832 = vmul.f32 %v3831, 0.5
    %v3833 = vadd.f32 %v3832, 0.5
    %v3834 = vtanh.pop %v3824
    %v3835 = vmul.f32 %v3828, %v3766
    %3837 = vrot.lane.b32.xlu0 %v3829, 32
    %v3838 = vpop.permute.xlu0 %3837
    %v3840 = vmul.f32 %v3828, %v3838
    %3842 = vrot.lane.b32.xlu0 %v3840, 32
    %v3843 = vpop.permute.xlu0 %3842
    %v3845 = vadd.f32 %v3835, %v3843
    %v3846 = vmul.f32 %v3833, %v3768
    %3848 = vrot.lane.b32.xlu0 %v3834, 32
    %v3849 = vpop.permute.xlu0 %3848
    %v3851 = vmul.f32 %v3833, %v3849
    %3853 = vrot.lane.b32.xlu0 %v3851, 32
    %v3854 = vpop.permute.xlu0 %3853
    %v3856 = vadd.f32 %v3846, %v3854
    %v3857 = vtanh.pop %v3845
    %3859 = vrot.lane.b32.xlu0 %v3857, 32
    %v3860 = vpop.permute.xlu0 %3859
    %v3862 = vmul.f32 %v3828, %v3860
    %v3863 = vtanh.pop %v3856
    %3865 = vrot.lane.b32.xlu0 %v3863, 32
    %v3866 = vpop.permute.xlu0 %3865
    %v3868 = vmul.f32 %v3833, %v3866
    %v3869 = vsel %vm562, %v3862, %v3765
    %v3870 = vsel %vm555, %v3868, %v3767
    %3872 = vrot.lane.b32.xlu0 %v3869, 64
    %v3873 = vpop.permute.xlu0 %3872
    %3875 = vst.msk [vmem:[%s1339] sm:$0x3] %vm569, %v3873
    %3877 = vrot.lane.b32.xlu0 %v3870, 64
    %v3878 = vpop.permute.xlu0 %3877
    %3880 = vst.msk [vmem:[#allocation3] sm:$0x3] %vm569, %v3878
    %v3881 = vld [vmem:[#allocation10] sm:$0xff]
    %v3882 = vld [vmem:[#allocation10 + $0x8] sm:$0xff]
    %v3883 = vld [vmem:[#allocation10 + $0x10] sm:$0xff]
    %v3884 = vld [vmem:[#allocation10 + $0x18] sm:$0xff]
    %v3885 = vld [vmem:[#allocation10 + $0x20] sm:$0xff]
    %v3886 = vld [vmem:[#allocation10 + $0x28] sm:$0xff]
    %v3887 = vld [vmem:[#allocation10 + $0x30] sm:$0xff]
    %v3888 = vld [vmem:[#allocation10 + $0x38] sm:$0xff]
    %v3889 = vld [vmem:[#allocation10 + $0x40] sm:$0xff]
    %v3890 = vld [vmem:[#allocation10 + $0x48] sm:$0xff]
    %v3891 = vld [vmem:[#allocation10 + $0x50] sm:$0xff]
    %v3892 = vld [vmem:[#allocation10 + $0x58] sm:$0xff]
    %v3893 = vld [vmem:[#allocation10 + $0x60] sm:$0xff]
    %v3894 = vld [vmem:[#allocation10 + $0x68] sm:$0xff]
    %v3895 = vld [vmem:[#allocation10 + $0x70] sm:$0xff]
    %v3896 = vld [vmem:[#allocation10 + $0x78] sm:$0xff]
    %v3897 = vld [vmem:[#allocation10 + $0x80] sm:$0xff]
    %v3898 = vld [vmem:[#allocation10 + $0x88] sm:$0xff]
    %v3899 = vld [vmem:[#allocation10 + $0x90] sm:$0xff]
    %v3900 = vld [vmem:[#allocation10 + $0x98] sm:$0xff]
    %v3901 = vld [vmem:[#allocation10 + $0xa0] sm:$0xff]
    %v3902 = vld [vmem:[#allocation10 + $0xa8] sm:$0xff]
    %v3903 = vld [vmem:[#allocation10 + $0xb0] sm:$0xff]
    %v3904 = vld [vmem:[#allocation10 + $0xb8] sm:$0xff]
    %v3905 = vld [vmem:[#allocation10 + $0xc0] sm:$0xff]
    %v3906 = vld [vmem:[#allocation10 + $0xc8] sm:$0xff]
    %v3907 = vld [vmem:[#allocation10 + $0xd0] sm:$0xff]
    %v3908 = vld [vmem:[#allocation10 + $0xd8] sm:$0xff]
    %v3909 = vld [vmem:[#allocation10 + $0xe0] sm:$0xff]
    %v3910 = vld [vmem:[#allocation10 + $0xe8] sm:$0xff]
    %v3911 = vld [vmem:[#allocation10 + $0xf0] sm:$0xff]
    %v3912 = vld [vmem:[#allocation10 + $0xf8] sm:$0xff]
    %v3913 = vld [vmem:[#allocation10 + $0x100] sm:$0xff]
    %v3914 = vld [vmem:[#allocation10 + $0x108] sm:$0xff]
    %v3915 = vld [vmem:[#allocation10 + $0x110] sm:$0xff]
    %v3916 = vld [vmem:[#allocation10 + $0x118] sm:$0xff]
    %v3917 = vld [vmem:[#allocation10 + $0x120] sm:$0xff]
    %v3918 = vld [vmem:[#allocation10 + $0x128] sm:$0xff]
    %v3919 = vld [vmem:[#allocation10 + $0x130] sm:$0xff]
    %v3920 = vld [vmem:[#allocation10 + $0x138] sm:$0xff]
    %v3921 = vld [vmem:[#allocation10 + $0x140] sm:$0xff]
    %v3922 = vld [vmem:[#allocation10 + $0x148] sm:$0xff]
    %v3923 = vld [vmem:[#allocation10 + $0x150] sm:$0xff]
    %v3924 = vld [vmem:[#allocation10 + $0x158] sm:$0xff]
    %v3925 = vld [vmem:[#allocation10 + $0x160] sm:$0xff]
    %v3926 = vld [vmem:[#allocation10 + $0x168] sm:$0xff]
    %v3927 = vld [vmem:[#allocation10 + $0x170] sm:$0xff]
    %v3928 = vld [vmem:[#allocation10 + $0x178] sm:$0xff]
    %v3929 = vld [vmem:[%s6] sm:$0xff]
    %v3930 = vsel %vm461, %v3878, 0
    %3932 = vmatpush.msra.mxu0 0.0
    %3933 = vmatpush.msra.mxu0 0.0
    %3934 = vmatpush.msra.mxu0 0.0
    %3935 = vmatpush.msra.mxu0 0.0
    %3936 = vmatpush.msra.mxu0 0.0
    %3937 = vmatpush.msra.mxu0 0.0
    %3938 = vmatpush.msra.mxu0 0.0
    %3939 = vmatpush.msra.mxu0 0.0
    %3940 = vmatpush.msra.mxu0 0.0
    %3941 = vmatpush.msra.mxu0 0.0
    %3942 = vmatpush.msra.mxu0 0.0
    %3943 = vmatpush.msra.mxu0 0.0
    %3944 = vmatpush.msra.mxu0 %v3896
    %3945 = vmatpush.msra.mxu0 %v3895
    %3946 = vmatpush.msra.mxu0 %v3894
    %3947 = vmatpush.msra.mxu0 %v3893
    %3948 = vmatmul.f32.gmra.mxu0 %v3930
    %v3949 = vpop.f32.mrf.mxu0
    %v3950 = vadd.f32 0.0, %v3949
    %3951 = vdwg.mxu0
    %v3952 = vsel %vm461, %v3873, 0
    %3954 = vmatpush.msra.mxu0 0.0
    %3955 = vmatpush.msra.mxu0 0.0
    %3956 = vmatpush.msra.mxu0 0.0
    %3957 = vmatpush.msra.mxu0 0.0
    %3958 = vmatpush.msra.mxu0 0.0
    %3959 = vmatpush.msra.mxu0 0.0
    %3960 = vmatpush.msra.mxu0 0.0
    %3961 = vmatpush.msra.mxu0 0.0
    %3962 = vmatpush.msra.mxu0 0.0
    %3963 = vmatpush.msra.mxu0 0.0
    %3964 = vmatpush.msra.mxu0 0.0
    %3965 = vmatpush.msra.mxu0 0.0
    %3966 = vmatpush.msra.mxu0 %v3892
    %3967 = vmatpush.msra.mxu0 %v3891
    %3968 = vmatpush.msra.mxu0 %v3890
    %3969 = vmatpush.msra.mxu0 %v3889
    %3970 = vmatmul.f32.gmra.mxu0 %v3952
    %v3971 = vpop.f32.mrf.mxu0
    %v3972 = vadd.f32 %v3950, %v3971
    %3973 = vdwg.mxu0
    %v3974 = vperm.slane %v3929, 0
    %v3975 = vadd.f32 %v3972, %v3974
    %v3976 = vlaneseq
    %v3977 = vand.u32 %v3976, 127
    %v3978 = vld [vmem:[#allocation2] sm:$0x3]
    %v3979 = vld [vmem:[#allocation3] sm:$0x3]
    %v3981 = vsel %vm461, %v3979, 0
    %3983 = vmatpush.msra.mxu0 0.0
    %3984 = vmatpush.msra.mxu0 0.0
    %3985 = vmatpush.msra.mxu0 0.0
    %3986 = vmatpush.msra.mxu0 0.0
    %3987 = vmatpush.msra.mxu0 0.0
    %3988 = vmatpush.msra.mxu0 0.0
    %3989 = vmatpush.msra.mxu0 0.0
    %3990 = vmatpush.msra.mxu0 0.0
    %3991 = vmatpush.msra.mxu0 0.0
    %3992 = vmatpush.msra.mxu0 0.0
    %3993 = vmatpush.msra.mxu0 0.0
    %3994 = vmatpush.msra.mxu0 0.0
    %3995 = vmatpush.msra.mxu0 %v3888
    %3996 = vmatpush.msra.mxu0 %v3887
    %3997 = vmatpush.msra.mxu0 %v3886
    %3998 = vmatpush.msra.mxu0 %v3885
    %3999 = vmatmul.f32.gmra.mxu0 %v3981
    %v4000 = vpop.f32.mrf.mxu0
    %v4001 = vadd.f32 0.0, %v4000
    %4002 = vdwg.mxu0
    %v4004 = vsel %vm461, %v3978, 0
    %4006 = vmatpush.msra.mxu0 0.0
    %4007 = vmatpush.msra.mxu0 0.0
    %4008 = vmatpush.msra.mxu0 0.0
    %4009 = vmatpush.msra.mxu0 0.0
    %4010 = vmatpush.msra.mxu0 0.0
    %4011 = vmatpush.msra.mxu0 0.0
    %4012 = vmatpush.msra.mxu0 0.0
    %4013 = vmatpush.msra.mxu0 0.0
    %4014 = vmatpush.msra.mxu0 0.0
    %4015 = vmatpush.msra.mxu0 0.0
    %4016 = vmatpush.msra.mxu0 0.0
    %4017 = vmatpush.msra.mxu0 0.0
    %4018 = vmatpush.msra.mxu0 %v3884
    %4019 = vmatpush.msra.mxu0 %v3883
    %4020 = vmatpush.msra.mxu0 %v3882
    %4021 = vmatpush.msra.mxu0 %v3881
    %4022 = vmatmul.f32.gmra.mxu0 %v4004
    %v4023 = vpop.f32.mrf.mxu0
    %v4024 = vadd.f32 %v4001, %v4023
    %4025 = vdwg.mxu0
    %v4026 = vadd.f32 %v4024, %v3975
    %v4027 = vtanh.pop %v4026
    %v4028 = vperm.slane %v3929, 1
    %v4029 = vmul.f32 %v4027, %v4028
    %vm4030 = vcmask 1041408
    %v4031 = vsel %vm4030, %v4029, 0.0
    %4032 = vadd.xlane.f32.xlu0 %v4031
    %v4033 = vpop.xlane.xlu0 %4032
    %vm4034 = vcmp.eq.s32.totalorder %v3977, 0
    %v4035 = vsel %vm4034, %v4033, 0.0
    %v4036 = vadd.f32 %v4035, 0.0
    %v4037 = vld [vmem:[%s685] sm:$0x3]
    %v4038 = vld [vmem:[%s1241] sm:$0x3]
    %v4040 = vsel %vm461, %v4038, 0
    %4042 = vmatpush.msra.mxu0 0.0
    %4043 = vmatpush.msra.mxu0 0.0
    %4044 = vmatpush.msra.mxu0 0.0
    %4045 = vmatpush.msra.mxu0 0.0
    %4046 = vmatpush.msra.mxu0 0.0
    %4047 = vmatpush.msra.mxu0 0.0
    %4048 = vmatpush.msra.mxu0 0.0
    %4049 = vmatpush.msra.mxu0 0.0
    %4050 = vmatpush.msra.mxu0 0.0
    %4051 = vmatpush.msra.mxu0 0.0
    %4052 = vmatpush.msra.mxu0 0.0
    %4053 = vmatpush.msra.mxu0 0.0
    %4054 = vmatpush.msra.mxu0 %v3888
    %4055 = vmatpush.msra.mxu0 %v3887
    %4056 = vmatpush.msra.mxu0 %v3886
    %4057 = vmatpush.msra.mxu0 %v3885
    %4058 = vmatmul.f32.gmra.mxu0 %v4040
    %v4059 = vpop.f32.mrf.mxu0
    %v4060 = vadd.f32 0.0, %v4059
    %4061 = vdwg.mxu0
    %v4063 = vsel %vm461, %v4037, 0
    %4065 = vmatpush.msra.mxu0 0.0
    %4066 = vmatpush.msra.mxu0 0.0
    %4067 = vmatpush.msra.mxu0 0.0
    %4068 = vmatpush.msra.mxu0 0.0
    %4069 = vmatpush.msra.mxu0 0.0
    %4070 = vmatpush.msra.mxu0 0.0
    %4071 = vmatpush.msra.mxu0 0.0
    %4072 = vmatpush.msra.mxu0 0.0
    %4073 = vmatpush.msra.mxu0 0.0
    %4074 = vmatpush.msra.mxu0 0.0
    %4075 = vmatpush.msra.mxu0 0.0
    %4076 = vmatpush.msra.mxu0 0.0
    %4077 = vmatpush.msra.mxu0 %v3884
    %4078 = vmatpush.msra.mxu0 %v3883
    %4079 = vmatpush.msra.mxu0 %v3882
    %4080 = vmatpush.msra.mxu0 %v3881
    %4081 = vmatmul.f32.gmra.mxu0 %v4063
    %v4082 = vpop.f32.mrf.mxu0
    %v4083 = vadd.f32 %v4060, %v4082
    %4084 = vdwg.mxu0
    %v4085 = vadd.f32 %v4083, %v3975
    %v4086 = vtanh.pop %v4085
    %v4087 = vmul.f32 %v4086, %v4028
    %v4088 = vsel %vm4030, %v4087, 0.0
    %4089 = vadd.xlane.f32.xlu0 %v4088
    %v4090 = vpop.xlane.xlu0 %4089
    %vm4091 = vcmp.eq.s32.totalorder %v3977, 1
    %v4092 = vsel %vm4091, %v4090, 0.0
    %v4093 = vadd.f32 %v4036, %v4092
    %v4094 = vld [vmem:[%s801] sm:$0x3]
    %v4095 = vld [vmem:[%s1135] sm:$0x3]
    %v4097 = vsel %vm461, %v4095, 0
    %4099 = vmatpush.msra.mxu0 0.0
    %4100 = vmatpush.msra.mxu0 0.0
    %4101 = vmatpush.msra.mxu0 0.0
    %4102 = vmatpush.msra.mxu0 0.0
    %4103 = vmatpush.msra.mxu0 0.0
    %4104 = vmatpush.msra.mxu0 0.0
    %4105 = vmatpush.msra.mxu0 0.0
    %4106 = vmatpush.msra.mxu0 0.0
    %4107 = vmatpush.msra.mxu0 0.0
    %4108 = vmatpush.msra.mxu0 0.0
    %4109 = vmatpush.msra.mxu0 0.0
    %4110 = vmatpush.msra.mxu0 0.0
    %4111 = vmatpush.msra.mxu0 %v3888
    %4112 = vmatpush.msra.mxu0 %v3887
    %4113 = vmatpush.msra.mxu0 %v3886
    %4114 = vmatpush.msra.mxu0 %v3885
    %4115 = vmatmul.f32.gmra.mxu0 %v4097
    %v4116 = vpop.f32.mrf.mxu0
    %v4117 = vadd.f32 0.0, %v4116
    %4118 = vdwg.mxu0
    %v4120 = vsel %vm461, %v4094, 0
    %4122 = vmatpush.msra.mxu0 0.0
    %4123 = vmatpush.msra.mxu0 0.0
    %4124 = vmatpush.msra.mxu0 0.0
    %4125 = vmatpush.msra.mxu0 0.0
    %4126 = vmatpush.msra.mxu0 0.0
    %4127 = vmatpush.msra.mxu0 0.0
    %4128 = vmatpush.msra.mxu0 0.0
    %4129 = vmatpush.msra.mxu0 0.0
    %4130 = vmatpush.msra.mxu0 0.0
    %4131 = vmatpush.msra.mxu0 0.0
    %4132 = vmatpush.msra.mxu0 0.0
    %4133 = vmatpush.msra.mxu0 0.0
    %4134 = vmatpush.msra.mxu0 %v3884
    %4135 = vmatpush.msra.mxu0 %v3883
    %4136 = vmatpush.msra.mxu0 %v3882
    %4137 = vmatpush.msra.mxu0 %v3881
    %4138 = vmatmul.f32.gmra.mxu0 %v4120
    %v4139 = vpop.f32.mrf.mxu0
    %v4140 = vadd.f32 %v4117, %v4139
    %4141 = vdwg.mxu0
    %v4142 = vadd.f32 %v4140, %v3975
    %v4143 = vtanh.pop %v4142
    %v4144 = vmul.f32 %v4143, %v4028
    %v4145 = vsel %vm4030, %v4144, 0.0
    %4146 = vadd.xlane.f32.xlu0 %v4145
    %v4147 = vpop.xlane.xlu0 %4146
    %vm4148 = vcmp.eq.s32.totalorder %v3977, 2
    %v4149 = vsel %vm4148, %v4147, 0.0
    %v4150 = vadd.f32 %v4093, %v4149
    %v4151 = vld [vmem:[%s917] sm:$0x3]
    %v4152 = vld [vmem:[%s1029] sm:$0x3]
    %v4154 = vsel %vm461, %v4152, 0
    %4156 = vmatpush.msra.mxu0 0.0
    %4157 = vmatpush.msra.mxu0 0.0
    %4158 = vmatpush.msra.mxu0 0.0
    %4159 = vmatpush.msra.mxu0 0.0
    %4160 = vmatpush.msra.mxu0 0.0
    %4161 = vmatpush.msra.mxu0 0.0
    %4162 = vmatpush.msra.mxu0 0.0
    %4163 = vmatpush.msra.mxu0 0.0
    %4164 = vmatpush.msra.mxu0 0.0
    %4165 = vmatpush.msra.mxu0 0.0
    %4166 = vmatpush.msra.mxu0 0.0
    %4167 = vmatpush.msra.mxu0 0.0
    %4168 = vmatpush.msra.mxu0 %v3888
    %4169 = vmatpush.msra.mxu0 %v3887
    %4170 = vmatpush.msra.mxu0 %v3886
    %4171 = vmatpush.msra.mxu0 %v3885
    %4172 = vmatmul.f32.gmra.mxu0 %v4154
    %v4173 = vpop.f32.mrf.mxu0
    %v4174 = vadd.f32 0.0, %v4173
    %4175 = vdwg.mxu0
    %v4177 = vsel %vm461, %v4151, 0
    %4179 = vmatpush.msra.mxu0 0.0
    %4180 = vmatpush.msra.mxu0 0.0
    %4181 = vmatpush.msra.mxu0 0.0
    %4182 = vmatpush.msra.mxu0 0.0
    %4183 = vmatpush.msra.mxu0 0.0
    %4184 = vmatpush.msra.mxu0 0.0
    %4185 = vmatpush.msra.mxu0 0.0
    %4186 = vmatpush.msra.mxu0 0.0
    %4187 = vmatpush.msra.mxu0 0.0
    %4188 = vmatpush.msra.mxu0 0.0
    %4189 = vmatpush.msra.mxu0 0.0
    %4190 = vmatpush.msra.mxu0 0.0
    %4191 = vmatpush.msra.mxu0 %v3884
    %4192 = vmatpush.msra.mxu0 %v3883
    %4193 = vmatpush.msra.mxu0 %v3882
    %4194 = vmatpush.msra.mxu0 %v3881
    %4195 = vmatmul.f32.gmra.mxu0 %v4177
    %v4196 = vpop.f32.mrf.mxu0
    %v4197 = vadd.f32 %v4174, %v4196
    %4198 = vdwg.mxu0
    %v4199 = vadd.f32 %v4197, %v3975
    %v4200 = vtanh.pop %v4199
    %v4201 = vmul.f32 %v4200, %v4028
    %v4202 = vsel %vm4030, %v4201, 0.0
    %4203 = vadd.xlane.f32.xlu0 %v4202
    %v4204 = vpop.xlane.xlu0 %4203
    %vm4205 = vcmp.eq.s32.totalorder %v3977, 3
    %v4206 = vsel %vm4205, %v4204, 0.0
    %v4207 = vadd.f32 %v4150, %v4206
    %v4208 = vld [vmem:[%s1023] sm:$0x3]
    %v4209 = vld [vmem:[%s923] sm:$0x3]
    %v4211 = vsel %vm461, %v4209, 0
    %4213 = vmatpush.msra.mxu0 0.0
    %4214 = vmatpush.msra.mxu0 0.0
    %4215 = vmatpush.msra.mxu0 0.0
    %4216 = vmatpush.msra.mxu0 0.0
    %4217 = vmatpush.msra.mxu0 0.0
    %4218 = vmatpush.msra.mxu0 0.0
    %4219 = vmatpush.msra.mxu0 0.0
    %4220 = vmatpush.msra.mxu0 0.0
    %4221 = vmatpush.msra.mxu0 0.0
    %4222 = vmatpush.msra.mxu0 0.0
    %4223 = vmatpush.msra.mxu0 0.0
    %4224 = vmatpush.msra.mxu0 0.0
    %4225 = vmatpush.msra.mxu0 %v3888
    %4226 = vmatpush.msra.mxu0 %v3887
    %4227 = vmatpush.msra.mxu0 %v3886
    %4228 = vmatpush.msra.mxu0 %v3885
    %4229 = vmatmul.f32.gmra.mxu0 %v4211
    %v4230 = vpop.f32.mrf.mxu0
    %v4231 = vadd.f32 0.0, %v4230
    %4232 = vdwg.mxu0
    %v4234 = vsel %vm461, %v4208, 0
    %4236 = vmatpush.msra.mxu0 0.0
    %4237 = vmatpush.msra.mxu0 0.0
    %4238 = vmatpush.msra.mxu0 0.0
    %4239 = vmatpush.msra.mxu0 0.0
    %4240 = vmatpush.msra.mxu0 0.0
    %4241 = vmatpush.msra.mxu0 0.0
    %4242 = vmatpush.msra.mxu0 0.0
    %4243 = vmatpush.msra.mxu0 0.0
    %4244 = vmatpush.msra.mxu0 0.0
    %4245 = vmatpush.msra.mxu0 0.0
    %4246 = vmatpush.msra.mxu0 0.0
    %4247 = vmatpush.msra.mxu0 0.0
    %4248 = vmatpush.msra.mxu0 %v3884
    %4249 = vmatpush.msra.mxu0 %v3883
    %4250 = vmatpush.msra.mxu0 %v3882
    %4251 = vmatpush.msra.mxu0 %v3881
    %4252 = vmatmul.f32.gmra.mxu0 %v4234
    %v4253 = vpop.f32.mrf.mxu0
    %v4254 = vadd.f32 %v4231, %v4253
    %4255 = vdwg.mxu0
    %v4256 = vadd.f32 %v4254, %v3975
    %v4257 = vtanh.pop %v4256
    %v4258 = vmul.f32 %v4257, %v4028
    %v4259 = vsel %vm4030, %v4258, 0.0
    %4260 = vadd.xlane.f32.xlu0 %v4259
    %v4261 = vpop.xlane.xlu0 %4260
    %vm4262 = vcmp.eq.s32.totalorder %v3977, 4
    %v4263 = vsel %vm4262, %v4261, 0.0
    %v4264 = vadd.f32 %v4207, %v4263
    %v4265 = vld [vmem:[%s1129] sm:$0x3]
    %v4266 = vld [vmem:[%s807] sm:$0x3]
    %v4268 = vsel %vm461, %v4266, 0
    %4270 = vmatpush.msra.mxu0 0.0
    %4271 = vmatpush.msra.mxu0 0.0
    %4272 = vmatpush.msra.mxu0 0.0
    %4273 = vmatpush.msra.mxu0 0.0
    %4274 = vmatpush.msra.mxu0 0.0
    %4275 = vmatpush.msra.mxu0 0.0
    %4276 = vmatpush.msra.mxu0 0.0
    %4277 = vmatpush.msra.mxu0 0.0
    %4278 = vmatpush.msra.mxu0 0.0
    %4279 = vmatpush.msra.mxu0 0.0
    %4280 = vmatpush.msra.mxu0 0.0
    %4281 = vmatpush.msra.mxu0 0.0
    %4282 = vmatpush.msra.mxu0 %v3888
    %4283 = vmatpush.msra.mxu0 %v3887
    %4284 = vmatpush.msra.mxu0 %v3886
    %4285 = vmatpush.msra.mxu0 %v3885
    %4286 = vmatmul.f32.gmra.mxu0 %v4268
    %v4287 = vpop.f32.mrf.mxu0
    %v4288 = vadd.f32 0.0, %v4287
    %4289 = vdwg.mxu0
    %v4291 = vsel %vm461, %v4265, 0
    %4293 = vmatpush.msra.mxu0 0.0
    %4294 = vmatpush.msra.mxu0 0.0
    %4295 = vmatpush.msra.mxu0 0.0
    %4296 = vmatpush.msra.mxu0 0.0
    %4297 = vmatpush.msra.mxu0 0.0
    %4298 = vmatpush.msra.mxu0 0.0
    %4299 = vmatpush.msra.mxu0 0.0
    %4300 = vmatpush.msra.mxu0 0.0
    %4301 = vmatpush.msra.mxu0 0.0
    %4302 = vmatpush.msra.mxu0 0.0
    %4303 = vmatpush.msra.mxu0 0.0
    %4304 = vmatpush.msra.mxu0 0.0
    %4305 = vmatpush.msra.mxu0 %v3884
    %4306 = vmatpush.msra.mxu0 %v3883
    %4307 = vmatpush.msra.mxu0 %v3882
    %4308 = vmatpush.msra.mxu0 %v3881
    %4309 = vmatmul.f32.gmra.mxu0 %v4291
    %v4310 = vpop.f32.mrf.mxu0
    %v4311 = vadd.f32 %v4288, %v4310
    %4312 = vdwg.mxu0
    %v4313 = vadd.f32 %v4311, %v3975
    %v4314 = vtanh.pop %v4313
    %v4315 = vmul.f32 %v4314, %v4028
    %v4316 = vsel %vm4030, %v4315, 0.0
    %4317 = vadd.xlane.f32.xlu0 %v4316
    %v4318 = vpop.xlane.xlu0 %4317
    %vm4319 = vcmp.eq.s32.totalorder %v3977, 5
    %v4320 = vsel %vm4319, %v4318, 0.0
    %v4321 = vadd.f32 %v4264, %v4320
    %v4322 = vld [vmem:[%s1235] sm:$0x3]
    %v4323 = vld [vmem:[%s691] sm:$0x3]
    %v4325 = vsel %vm461, %v4323, 0
    %4327 = vmatpush.msra.mxu0 0.0
    %4328 = vmatpush.msra.mxu0 0.0
    %4329 = vmatpush.msra.mxu0 0.0
    %4330 = vmatpush.msra.mxu0 0.0
    %4331 = vmatpush.msra.mxu0 0.0
    %4332 = vmatpush.msra.mxu0 0.0
    %4333 = vmatpush.msra.mxu0 0.0
    %4334 = vmatpush.msra.mxu0 0.0
    %4335 = vmatpush.msra.mxu0 0.0
    %4336 = vmatpush.msra.mxu0 0.0
    %4337 = vmatpush.msra.mxu0 0.0
    %4338 = vmatpush.msra.mxu0 0.0
    %4339 = vmatpush.msra.mxu0 %v3888
    %4340 = vmatpush.msra.mxu0 %v3887
    %4341 = vmatpush.msra.mxu0 %v3886
    %4342 = vmatpush.msra.mxu0 %v3885
    %4343 = vmatmul.f32.gmra.mxu0 %v4325
    %v4344 = vpop.f32.mrf.mxu0
    %v4345 = vadd.f32 0.0, %v4344
    %4346 = vdwg.mxu0
    %v4348 = vsel %vm461, %v4322, 0
    %4350 = vmatpush.msra.mxu0 0.0
    %4351 = vmatpush.msra.mxu0 0.0
    %4352 = vmatpush.msra.mxu0 0.0
    %4353 = vmatpush.msra.mxu0 0.0
    %4354 = vmatpush.msra.mxu0 0.0
    %4355 = vmatpush.msra.mxu0 0.0
    %4356 = vmatpush.msra.mxu0 0.0
    %4357 = vmatpush.msra.mxu0 0.0
    %4358 = vmatpush.msra.mxu0 0.0
    %4359 = vmatpush.msra.mxu0 0.0
    %4360 = vmatpush.msra.mxu0 0.0
    %4361 = vmatpush.msra.mxu0 0.0
    %4362 = vmatpush.msra.mxu0 %v3884
    %4363 = vmatpush.msra.mxu0 %v3883
    %4364 = vmatpush.msra.mxu0 %v3882
    %4365 = vmatpush.msra.mxu0 %v3881
    %4366 = vmatmul.f32.gmra.mxu0 %v4348
    %v4367 = vpop.f32.mrf.mxu0
    %v4368 = vadd.f32 %v4345, %v4367
    %4369 = vdwg.mxu0
    %v4370 = vadd.f32 %v4368, %v3975
    %v4371 = vtanh.pop %v4370
    %v4372 = vmul.f32 %v4371, %v4028
    %v4373 = vsel %vm4030, %v4372, 0.0
    %4374 = vadd.xlane.f32.xlu0 %v4373
    %v4375 = vpop.xlane.xlu0 %4374
    %vm4376 = vcmp.eq.s32.totalorder %v3977, 6
    %v4377 = vsel %vm4376, %v4375, 0.0
    %v4378 = vadd.f32 %v4321, %v4377
    %v4379 = vld [vmem:[%s1339] sm:$0x3]
    %v4380 = vld [vmem:[%s575] sm:$0x3]
    %v4382 = vsel %vm461, %v4380, 0
    %4384 = vmatpush.msra.mxu0 0.0
    %4385 = vmatpush.msra.mxu0 0.0
    %4386 = vmatpush.msra.mxu0 0.0
    %4387 = vmatpush.msra.mxu0 0.0
    %4388 = vmatpush.msra.mxu0 0.0
    %4389 = vmatpush.msra.mxu0 0.0
    %4390 = vmatpush.msra.mxu0 0.0
    %4391 = vmatpush.msra.mxu0 0.0
    %4392 = vmatpush.msra.mxu0 0.0
    %4393 = vmatpush.msra.mxu0 0.0
    %4394 = vmatpush.msra.mxu0 0.0
    %4395 = vmatpush.msra.mxu0 0.0
    %4396 = vmatpush.msra.mxu0 %v3888
    %4397 = vmatpush.msra.mxu0 %v3887
    %4398 = vmatpush.msra.mxu0 %v3886
    %4399 = vmatpush.msra.mxu0 %v3885
    %4400 = vmatmul.f32.gmra.mxu0 %v4382
    %v4401 = vpop.f32.mrf.mxu0
    %v4402 = vadd.f32 0.0, %v4401
    %4403 = vdwg.mxu0
    %v4405 = vsel %vm461, %v4379, 0
    %4407 = vmatpush.msra.mxu0 0.0
    %4408 = vmatpush.msra.mxu0 0.0
    %4409 = vmatpush.msra.mxu0 0.0
    %4410 = vmatpush.msra.mxu0 0.0
    %4411 = vmatpush.msra.mxu0 0.0
    %4412 = vmatpush.msra.mxu0 0.0
    %4413 = vmatpush.msra.mxu0 0.0
    %4414 = vmatpush.msra.mxu0 0.0
    %4415 = vmatpush.msra.mxu0 0.0
    %4416 = vmatpush.msra.mxu0 0.0
    %4417 = vmatpush.msra.mxu0 0.0
    %4418 = vmatpush.msra.mxu0 0.0
    %4419 = vmatpush.msra.mxu0 %v3884
    %4420 = vmatpush.msra.mxu0 %v3883
    %4421 = vmatpush.msra.mxu0 %v3882
    %4422 = vmatpush.msra.mxu0 %v3881
    %4423 = vmatmul.f32.gmra.mxu0 %v4405
    %v4424 = vpop.f32.mrf.mxu0
    %v4425 = vadd.f32 %v4402, %v4424
    %4426 = vdwg.mxu0
    %v4427 = vadd.f32 %v4425, %v3975
    %v4428 = vtanh.pop %v4427
    %v4429 = vmul.f32 %v4428, %v4028
    %v4430 = vsel %vm4030, %v4429, 0.0
    %4431 = vadd.xlane.f32.xlu0 %v4430
    %v4432 = vpop.xlane.xlu0 %4431
    %vm4433 = vcmp.eq.s32.totalorder %v3977, 7
    %v4434 = vsel %vm4433, %v4432, 0.0
    %v4435 = vadd.f32 %v4378, %v4434
    %4436 = vset.pattern.permute.xlu0 0
    %4437 = vperm.xlu0 %4436, %v73
    %v4438 = vpop.permute.xlu0 %4437
    %vm4439 = vcmp.lt.s32.totalorder %v3977, %v4438
    %v4440 = vsel %vm4439, %v4435, -1e+30
    %vm4441 = vcmask 58368
    %v4442 = vsel %vm4441, %v4440, -inf
    %4443 = vmax.xlane.f32.xlu0 %v4442
    %v4444 = vpop.xlane.xlu0 %4443
    %v4445 = vsub.f32 %v4440, %v4444
    %v4446 = vmul.f32 %v4445, 1.442695
    %v4447 = vpow.pop %v4446
    %v4448 = vsel %vm4439, %v4447, 0.0
    %v4449 = vsel %vm4441, %v4448, 0.0
    %4450 = vadd.xlane.f32.xlu0 %v4449
    %v4451 = vpop.xlane.xlu0 %4450
    %v4452 = vmax.f32 %v4451, 1e-30
    %v4453 = vrcp.pop %v4452
    %v4454 = vmul.f32 %v4452, %v4453
    %v4455 = vsub.f32 1.0, %v4454
    %v4456 = vmul.f32 %v4453, %v4455
    %v4457 = vadd.f32 %v4453, %v4456
    %vm4458 = vweird.f32 %v4452
    %vm4459 = vweird.f32 %v4453
    %vm4460 = vmor %vm4458, %vm4459
    %v4461 = vsel %vm4460, %v4453, %v4457
    %v4462 = vand.u32 2147483647, %v4452
    %vm4463 = vcmp.eq.f32.partialorder %v4462, 8.507059e+37
    %v4464 = vand.u32 %v4452, 2147483648
    %v4465 = vor.u32 1.1754944e-38, %v4464
    %v4466 = vsel %vm4463, %v4465, %v4461
    %v4467 = vmul.f32 %v4448, %v4466
    %4469 = vset.pattern.permute.xlu0 0
    %4470 = vperm.xlu0 %4469, %v4467
    %v4471 = vpop.permute.xlu0 %4470
    %v4473 = vmul.f32 %v4471, %v3978
    %v4474 = vadd.f32 %v4473, 0.0
    %v4475 = vmul.f32 %v4471, %v3979
    %v4476 = vadd.f32 %v4475, 0.0
    %4477 = vset.pattern.permute.xlu0 1
    %4478 = vperm.xlu0 %4477, %v4467
    %v4479 = vpop.permute.xlu0 %4478
    %v4481 = vmul.f32 %v4479, %v4037
    %v4482 = vadd.f32 %v4474, %v4481
    %v4483 = vmul.f32 %v4479, %v4038
    %v4484 = vadd.f32 %v4476, %v4483
    %4485 = vset.pattern.permute.xlu0 2
    %4486 = vperm.xlu0 %4485, %v4467
    %v4487 = vpop.permute.xlu0 %4486
    %v4489 = vmul.f32 %v4487, %v4094
    %v4490 = vadd.f32 %v4482, %v4489
    %v4491 = vmul.f32 %v4487, %v4095
    %v4492 = vadd.f32 %v4484, %v4491
    %4493 = vset.pattern.permute.xlu0 3
    %4494 = vperm.xlu0 %4493, %v4467
    %v4495 = vpop.permute.xlu0 %4494
    %v4497 = vmul.f32 %v4495, %v4151
    %v4498 = vadd.f32 %v4490, %v4497
    %v4499 = vmul.f32 %v4495, %v4152
    %v4500 = vadd.f32 %v4492, %v4499
    %4501 = vset.pattern.permute.xlu0 4
    %4502 = vperm.xlu0 %4501, %v4467
    %v4503 = vpop.permute.xlu0 %4502
    %v4505 = vmul.f32 %v4503, %v4208
    %v4506 = vadd.f32 %v4498, %v4505
    %v4507 = vmul.f32 %v4503, %v4209
    %v4508 = vadd.f32 %v4500, %v4507
    %4509 = vset.pattern.permute.xlu0 5
    %4510 = vperm.xlu0 %4509, %v4467
    %v4511 = vpop.permute.xlu0 %4510
    %v4513 = vmul.f32 %v4511, %v4265
    %v4514 = vadd.f32 %v4506, %v4513
    %v4515 = vmul.f32 %v4511, %v4266
    %v4516 = vadd.f32 %v4508, %v4515
    %4517 = vset.pattern.permute.xlu0 6
    %4518 = vperm.xlu0 %4517, %v4467
    %v4519 = vpop.permute.xlu0 %4518
    %v4521 = vmul.f32 %v4519, %v4322
    %v4522 = vadd.f32 %v4514, %v4521
    %v4523 = vmul.f32 %v4519, %v4323
    %v4524 = vadd.f32 %v4516, %v4523
    %4525 = vset.pattern.permute.xlu0 7
    %4526 = vperm.xlu0 %4525, %v4467
    %v4527 = vpop.permute.xlu0 %4526
    %v4529 = vmul.f32 %v4527, %v4379
    %v4530 = vadd.f32 %v4522, %v4529
    %v4531 = vmul.f32 %v4527, %v4380
    %v4532 = vadd.f32 %v4524, %v4531
    %4533 = vmatpush.msra.mxu0 0.0
    %4534 = vmatpush.msra.mxu0 0.0
    %4535 = vmatpush.msra.mxu0 0.0
    %4536 = vmatpush.msra.mxu0 0.0
    %4537 = vmatpush.msra.mxu0 0.0
    %4538 = vmatpush.msra.mxu0 0.0
    %4539 = vmatpush.msra.mxu0 0.0
    %4540 = vmatpush.msra.mxu0 0.0
    %4541 = vmatpush.msra.mxu0 0.0
    %4542 = vmatpush.msra.mxu0 0.0
    %4543 = vmatpush.msra.mxu0 0.0
    %4544 = vmatpush.msra.mxu0 0.0
    %4545 = vmatpush.msra.mxu0 %v3904
    %4546 = vmatpush.msra.mxu0 %v3903
    %4547 = vmatpush.msra.mxu0 %v3902
    %4548 = vmatpush.msra.mxu0 %v3901
    %4549 = vmatmul.f32.gmra.mxu0 %v3930
    %v4550 = vpop.f32.mrf.mxu0
    %v4551 = vadd.f32 0.0, %v4550
    %4552 = vdwg.mxu0
    %4553 = vmatpush.msra.mxu0 0.0
    %4554 = vmatpush.msra.mxu0 0.0
    %4555 = vmatpush.msra.mxu0 0.0
    %4556 = vmatpush.msra.mxu0 0.0
    %4557 = vmatpush.msra.mxu0 0.0
    %4558 = vmatpush.msra.mxu0 0.0
    %4559 = vmatpush.msra.mxu0 0.0
    %4560 = vmatpush.msra.mxu0 0.0
    %4561 = vmatpush.msra.mxu0 0.0
    %4562 = vmatpush.msra.mxu0 0.0
    %4563 = vmatpush.msra.mxu0 0.0
    %4564 = vmatpush.msra.mxu0 0.0
    %4565 = vmatpush.msra.mxu0 %v3900
    %4566 = vmatpush.msra.mxu0 %v3899
    %4567 = vmatpush.msra.mxu0 %v3898
    %4568 = vmatpush.msra.mxu0 %v3897
    %4569 = vmatmul.f32.gmra.mxu0 %v3952
    %v4570 = vpop.f32.mrf.mxu0
    %v4571 = vadd.f32 %v4551, %v4570
    %4572 = vdwg.mxu0
    %v4574 = vsel %vm461, %v4530, 0
    %4576 = vmatpush.msra.mxu0 0.0
    %4577 = vmatpush.msra.mxu0 0.0
    %4578 = vmatpush.msra.mxu0 0.0
    %4579 = vmatpush.msra.mxu0 0.0
    %4580 = vmatpush.msra.mxu0 0.0
    %4581 = vmatpush.msra.mxu0 0.0
    %4582 = vmatpush.msra.mxu0 0.0
    %4583 = vmatpush.msra.mxu0 0.0
    %4584 = vmatpush.msra.mxu0 0.0
    %4585 = vmatpush.msra.mxu0 0.0
    %4586 = vmatpush.msra.mxu0 0.0
    %4587 = vmatpush.msra.mxu0 0.0
    %4588 = vmatpush.msra.mxu0 %v3908
    %4589 = vmatpush.msra.mxu0 %v3907
    %4590 = vmatpush.msra.mxu0 %v3906
    %4591 = vmatpush.msra.mxu0 %v3905
    %4592 = vmatmul.f32.gmra.mxu0 %v4574
    %v4593 = vpop.f32.mrf.mxu0
    %v4594 = vadd.f32 0.0, %v4593
    %4595 = vdwg.mxu0
    %v4596 = vadd.f32 %v4571, %v4594
    %v4598 = vsel %vm461, %v4532, 0
    %4600 = vmatpush.msra.mxu0 0.0
    %4601 = vmatpush.msra.mxu0 0.0
    %4602 = vmatpush.msra.mxu0 0.0
    %4603 = vmatpush.msra.mxu0 0.0
    %4604 = vmatpush.msra.mxu0 0.0
    %4605 = vmatpush.msra.mxu0 0.0
    %4606 = vmatpush.msra.mxu0 0.0
    %4607 = vmatpush.msra.mxu0 0.0
    %4608 = vmatpush.msra.mxu0 0.0
    %4609 = vmatpush.msra.mxu0 0.0
    %4610 = vmatpush.msra.mxu0 0.0
    %4611 = vmatpush.msra.mxu0 0.0
    %4612 = vmatpush.msra.mxu0 %v3912
    %4613 = vmatpush.msra.mxu0 %v3911
    %4614 = vmatpush.msra.mxu0 %v3910
    %4615 = vmatpush.msra.mxu0 %v3909
    %4616 = vmatmul.f32.gmra.mxu0 %v4598
    %v4617 = vpop.f32.mrf.mxu0
    %v4618 = vadd.f32 0.0, %v4617
    %4619 = vdwg.mxu0
    %v4620 = vadd.f32 %v4596, %v4618
    %v4621 = vperm.slane %v3929, 2
    %v4622 = vadd.f32 %v4620, %v4621
    %v4623 = vtanh.pop %v4622
    %4624 = vmatpush.msra.mxu0 %v3928
    %4625 = vmatpush.msra.mxu0 %v3927
    %4626 = vmatpush.msra.mxu0 %v3926
    %4627 = vmatpush.msra.mxu0 %v3925
    %4628 = vmatpush.msra.mxu0 %v3924
    %4629 = vmatpush.msra.mxu0 %v3923
    %4630 = vmatpush.msra.mxu0 %v3922
    %4631 = vmatpush.msra.mxu0 %v3921
    %4632 = vmatpush.msra.mxu0 %v3920
    %4633 = vmatpush.msra.mxu0 %v3919
    %4634 = vmatpush.msra.mxu0 %v3918
    %4635 = vmatpush.msra.mxu0 %v3917
    %4636 = vmatpush.msra.mxu0 %v3916
    %4637 = vmatpush.msra.mxu0 %v3915
    %4638 = vmatpush.msra.mxu0 %v3914
    %4639 = vmatpush.msra.mxu0 %v3913
    %4640 = vmatmul.f32.gmra.mxu0 %v4623
    %v4641 = vpop.f32.mrf.mxu0
    %v4642 = vadd.f32 0.0, %v4641
    %4643 = vdwg.mxu0
    %v4644 = vperm.slane %v3929, 3
    %v4645 = vadd.f32 %v4642, %v4644
    %v4646 = vsel %vm4441, %v4645, -inf
    %4647 = vmax.xlane.f32.xlu0 %v4646
    %v4648 = vpop.xlane.xlu0 %4647
    %v4649 = vsub.f32 %v4645, %v4648
    %v4650 = vmul.f32 %v4649, 1.442695
    %v4651 = vpow.pop %v4650
    %v4652 = vsel %vm4441, %v4651, 0.0
    %4653 = vadd.xlane.f32.xlu0 %v4652
    %v4654 = vpop.xlane.xlu0 %4653
    %v4655 = vrcp.pop %v4654
    %v4656 = vmul.f32 %v4654, %v4655
    %v4657 = vsub.f32 1.0, %v4656
    %v4658 = vmul.f32 %v4655, %v4657
    %v4659 = vadd.f32 %v4655, %v4658
    %vm4660 = vweird.f32 %v4654
    %vm4661 = vweird.f32 %v4655
    %vm4662 = vmor %vm4660, %vm4661
    %v4663 = vsel %vm4662, %v4655, %v4659
    %v4664 = vand.u32 2147483647, %v4654
    %vm4665 = vcmp.eq.f32.partialorder %v4664, 8.507059e+37
    %v4666 = vand.u32 %v4654, 2147483648
    %v4667 = vor.u32 1.1754944e-38, %v4666
    %v4668 = vsel %vm4665, %v4667, %v4663
    %v4669 = vmul.f32 %v4651, %v4668
    %4670 = vst [vmem:[%s7] sm:$0x3] 0.0
    %4671 = vst.msk [vmem:[%s7] sm:$0x3] %vm4441, %v4669
    %4672 = vrot.lane.b32.xlu0 %v4467, 8
    %v4673 = vpop.permute.xlu0 %4672
    %vm4675 = vcmask 123968
    %4676 = vst.msk [vmem:[%s7] sm:$0x3] %vm4675, %v4673
    // Predicated region
    $region42: #{intent_detection_forward.1} parent=1 // pred_check
      _
    $region43: #{intent_detection_forward.1} parent=1 // pred_check_branch
      %4678 = sbr.rel (0) target = $region45
    $region44: #{intent_detection_forward.1} parent=1 // pred_region
      _
    $region45: #{intent_detection_forward.1} parent=1 // pred_fallthru
      _
    // Predicated region
    $region46: #{intent_detection_forward.1} parent=1 // pred_check
      _
    $region47: #{intent_detection_forward.1} parent=1 // pred_check_branch
      %4680 = sbr.rel (0) target = $region49
    $region48: #{intent_detection_forward.1} parent=1 // pred_region
      _
    $region49: #{intent_detection_forward.1} parent=1 // pred_fallthru
      _
    %4681 = vsyncpa [#allocation7], 1
    %4682 = vsyncpa [#allocation9], 1

</llo_original>
